<compile_context>
chip_gen: v7x
topology: tpu7x:2x2x1
jax: 0.10.0
libtpu: 0.0.40
codegen_flags: <defaults>
</compile_context>

<pallas_src>
import functools

import jax
import jax.numpy as jnp
from jax import lax
from jax.experimental import pallas as pl
from jax.experimental.pallas import tpu as pltpu


# ----------------------------------------------------------------------------
# Small helpers
# ----------------------------------------------------------------------------
def _round_up(x, m):
    return ((x + m - 1) // m) * m


def _pad_gate_cols(w, h, h_pad):
    """Pad the last axis (size 4*h, gate order i,f,g,o) to 4*h_pad per-gate."""
    if h == h_pad:
        return w
    lead = w.shape[:-1]
    w4 = w.reshape(lead + (4, h))
    w4 = jnp.pad(w4, [(0, 0)] * len(lead) + [(0, 0), (0, h_pad - h)])
    return w4.reshape(lead + (4 * h_pad,))


def _prep_layer(w_ih, w_hh, b_ih, b_hh, d_pad, h, h_pad, dtype):
    """PyTorch (4H,D)/(4H,H) weights -> transposed, zero-padded, gate-aligned."""
    wih = _pad_gate_cols(jnp.transpose(w_ih), h, h_pad)          # (D, 4*h_pad)
    wih = jnp.pad(wih, ((0, d_pad - wih.shape[0]), (0, 0))).astype(dtype)
    whh = _pad_gate_cols(jnp.transpose(w_hh), h, h_pad)          # (H, 4*h_pad)
    whh = jnp.pad(whh, ((0, h_pad - h), (0, 0))).astype(dtype)
    b = _pad_gate_cols((b_ih + b_hh).reshape(1, -1), h, h_pad).astype(jnp.float32)
    return wih, whh, b


def _pick_t_tile(T, n_pad, d_pad0, h_pad, itemsize, act_budget=8 * 1024 * 1024):
    """Largest time tile whose per-tile activation traffic fits the budget."""
    per_t = n_pad * (2 * d_pad0 * itemsize      # double-buffered input tile
                     + 2 * h_pad * itemsize     # double-buffered output tile
                     + h_pad * itemsize         # inter-layer act scratch
                     + 4 * h_pad * 4)           # gates_x scratch (f32)
    t_tile = max(1, min(T, act_budget // max(per_t, 1)))
    return int(min(t_tile, 256))


def _vmem_bytes_estimate(t_tile, n_pad, d_pad0, h_pad, num_layers, itemsize):
    g = 4 * h_pad
    weights = 2 * itemsize * (d_pad0 * g + (2 * num_layers - 1) * h_pad * g)
    biases = 2 * 4 * num_layers * g
    x_tiles = 2 * t_tile * n_pad * d_pad0 * itemsize
    out_tiles = 2 * t_tile * n_pad * h_pad * itemsize
    scratch = (2 * num_layers * n_pad * h_pad * 4        # h, c carries (f32)
               + t_tile * n_pad * h_pad * itemsize       # inter-layer act
               + t_tile * n_pad * g * 4)                 # gates_x (f32)
    return weights + biases + x_tiles + out_tiles + scratch


# ----------------------------------------------------------------------------
# Pallas kernels
# ----------------------------------------------------------------------------
def _fused_lstm_kernel(*refs, num_layers, h_pad, unroll):
    """All LSTM layers over one (t_tile, n_pad, *) time tile.

    refs = [x,
            wih_0..wih_{L-1}, whh_0..whh_{L-1}, b_0..b_{L-1},
            out,
            h_scr, c_scr, act_scr, gx_scr]
    """
    x_ref = refs[0]
    wih_refs = refs[1:1 + num_layers]
    whh_refs = refs[1 + num_layers:1 + 2 * num_layers]
    b_refs = refs[1 + 2 * num_layers:1 + 3 * num_layers]
    out_ref = refs[1 + 3 * num_layers]
    h_scr, c_scr, act_scr, gx_scr = refs[2 + 3 * num_layers:]

    t_tile, n_pad, _ = x_ref.shape
    H = h_pad

    # (h, c) carried across time tiles in VMEM scratch: init on the first tile.
    @pl.when(pl.program_id(0) == 0)
    def _init():
        h_scr[...] = jnp.zeros_like(h_scr)
        c_scr[...] = jnp.zeros_like(c_scr)

    for l in range(num_layers):
        # Hoisted input projection: one big MXU matmul for the whole tile
        # (instead of T tiny (N,D)@(D,4H) matmuls inside the recurrence).
        act_in = x_ref[...] if l == 0 else act_scr[...]
        d_in = act_in.shape[-1]
        gx = jnp.dot(act_in.reshape(t_tile * n_pad, d_in), wih_refs[l][...],
                     preferred_element_type=jnp.float32) + b_refs[l][...]
        gx_scr[...] = gx.reshape(t_tile, n_pad, 4 * H)

        # Final layer streams straight into the pipelined output tile.
        dst_ref = out_ref if l == num_layers - 1 else act_scr
        whh_ref = whh_refs[l]

        def step(t, carry):
            h, c = carry                              # f32 recurrent state
            whh = whh_ref[...]
            gates = gx_scr[t] + jnp.dot(h.astype(whh.dtype), whh,
                                        preferred_element_type=jnp.float32)
            # H is a multiple of 128 -> each gate slice is whole lane tiles.
            i = jax.nn.sigmoid(gates[:, 0:H])
            f = jax.nn.sigmoid(gates[:, H:2 * H])
            g = jnp.tanh(gates[:, 2 * H:3 * H])
            o = jax.nn.sigmoid(gates[:, 3 * H:4 * H])
            c_new = f * c + i * g
            h_new = o * jnp.tanh(c_new)
            dst_ref[t] = h_new.astype(dst_ref.dtype)
            return (h_new, c_new)

        h_out, c_out = lax.fori_loop(0, t_tile, step, (h_scr[l], c_scr[l]),
                                     unroll=unroll)
        h_scr[l] = h_out
        c_scr[l] = c_out


def linear_kernel(x_ref, w_ref, b_ref, o_ref):
    """o = x @ w + b   (w pre-transposed to (in, out), b is (1, out))."""
    o_ref[...] = (jnp.dot(x_ref[...], w_ref[...],
                          preferred_element_type=jnp.float32)
                  + b_ref[...]).astype(o_ref.dtype)


# ----------------------------------------------------------------------------
# Wrappers
# ----------------------------------------------------------------------------
def run_linear(x, w, b, compute_dtype):
    """x: (N, F_in); w: (F_out, F_in) PyTorch layout; b: (F_out,).

    Computes into a sublane/lane padded tile (lane-dense stores) and slices
    the real (N, F_out) block outside the kernel.
    """
    N, F_in = x.shape
    F_out = w.shape[0]
    n_pad = _round_up(max(N, 1), 8)
    fi_pad = _round_up(F_in, 128)
    fo_pad = _round_up(F_out, 128)
    x_p = jnp.pad(x.astype(compute_dtype), ((0, n_pad - N), (0, fi_pad - F_in)))
    w_p = jnp.pad(jnp.transpose(w),
                  ((0, fi_pad - F_in), (0, fo_pad - F_out))).astype(compute_dtype)
    b_p = jnp.pad(b.reshape(1, -1),
                  ((0, 0), (0, fo_pad - F_out))).astype(jnp.float32)
    vmem = pl.BlockSpec(memory_space=pltpu.MemorySpace.VMEM)
    out = pl.pallas_call(
        linear_kernel,
        out_shape=jax.ShapeDtypeStruct((n_pad, fo_pad), jnp.float32),
        in_specs=[vmem, vmem, vmem],
        out_specs=vmem,
    )(x_p, w_p, b_p)
    return out[:N, :F_out]


@functools.partial(jax.jit, static_argnames=("horizon", "compute_dtype"))
def lstm_forward(x, params, horizon, compute_dtype=jnp.float32):
    """Reproduces LSTM.forward of the PyTorch module (eval semantics).

    x: (N, input_size, T)   -> returns (N, output_size * horizon) float32.
    """
    N, C, T = x.shape
    num_layers = len(params["rnn"])
    H = params["rnn"][0][1].shape[1]                 # w_hh: (4H, H)

    itemsize = jax.dtypes.canonicalize_dtype(compute_dtype).itemsize
    h_pad = _round_up(H, 128)                        # lane-aligned gates/hidden
    n_pad = _round_up(max(N, 1), 8)                  # sublane-aligned batch
    d_pad0 = _round_up(C, 128)                       # lane-aligned layer-0 input
    t_tile = _pick_t_tile(T, n_pad, d_pad0, h_pad, itemsize)
    t_pad = _round_up(T, t_tile)

    # x.permute(0, 2, 1) -> (N, T, C); kernel wants (T, N, C).  Zero padding:
    # padded weight rows are zero and time padding is trailing-only, so padded
    # rows / lanes / timesteps never influence the real outputs.
    x_tnc = jnp.transpose(x, (2, 0, 1)).astype(compute_dtype)
    x_p = jnp.pad(x_tnc, ((0, t_pad - T), (0, n_pad - N), (0, d_pad0 - C)))

    wih_l, whh_l, b_l = [], [], []
    for li, (w_ih, w_hh, b_ih, b_hh) in enumerate(params["rnn"]):
        d_pad = d_pad0 if li == 0 else h_pad
        wi, wh, bb = _prep_layer(w_ih, w_hh, b_ih, b_hh, d_pad, H, h_pad,
                                 compute_dtype)
        wih_l.append(wi)
        whh_l.append(wh)
        b_l.append(bb)

    est = _vmem_bytes_estimate(t_tile, n_pad, d_pad0, h_pad, num_layers, itemsize)
    vmem_limit = int(min(64 * 1024 * 1024,
                         max(32 * 1024 * 1024, int(1.25 * est))))

    kernel = functools.partial(_fused_lstm_kernel, num_layers=num_layers,
                               h_pad=h_pad, unroll=min(t_tile, 8))

    grid_spec = pltpu.PrefetchScalarGridSpec(
        num_scalar_prefetch=0,
        grid=(t_pad // t_tile,),
        in_specs=(
            [pl.BlockSpec((t_tile, n_pad, d_pad0), lambda t: (t, 0, 0))]
            + [pl.BlockSpec(w.shape, lambda t: (0, 0)) for w in wih_l]
            + [pl.BlockSpec(w.shape, lambda t: (0, 0)) for w in whh_l]
            + [pl.BlockSpec(b.shape, lambda t: (0, 0)) for b in b_l]),
        out_specs=pl.BlockSpec((t_tile, n_pad, h_pad), lambda t: (t, 0, 0)),
        scratch_shapes=[
            pltpu.VMEM((num_layers, n_pad, h_pad), jnp.float32),   # h carry
            pltpu.VMEM((num_layers, n_pad, h_pad), jnp.float32),   # c carry
            pltpu.VMEM((t_tile, n_pad, h_pad), compute_dtype),     # layer act
            pltpu.VMEM((t_tile, n_pad, 4 * h_pad), jnp.float32),   # gates_x
        ])

    h_seq = pl.pallas_call(
        kernel,
        out_shape=jax.ShapeDtypeStruct((t_pad, n_pad, h_pad), compute_dtype),
        grid_spec=grid_spec,
        compiler_params=pltpu.CompilerParams(
            dimension_semantics=("arbitrary",),      # serial recurrence over T
            vmem_limit_bytes=vmem_limit),
    )(x_p, *wih_l, *whh_l, *b_l)

    # Slice BEFORE transposing: only the last `horizon` real timesteps, real
    # batch rows and real hidden lanes leave the padded layout.
    h_last = h_seq[T - horizon:T, :N, :H]            # (horizon, N, H)
    feat = jnp.transpose(h_last, (1, 2, 0)).reshape(N, H * horizon)
    return run_linear(feat, params["lin_w"], params["lin_b"], compute_dtype)


# ----------------------------------------------------------------------------
# Pure-JAX reference (for correctness check only)
# ----------------------------------------------------------------------------
def lstm_forward_ref(x, params, horizon):
    h_seq = jnp.transpose(x, (2, 0, 1)).astype(jnp.float32)  # (T, N, C)
    for (w_ih, w_hh, b_ih, b_hh) in params["rnn"]:
        T, N, _ = h_seq.shape
        H = w_hh.shape[1]
        h = jnp.zeros((N, H), jnp.float32)
        c = jnp.zeros((N, H), jnp.float32)
        outs = []
        for t in range(T):
            gates = h_seq[t] @ w_ih.T + h @ w_hh.T + b_ih + b_hh
            i = jax.nn.sigmoid(gates[:, 0:H])
            f = jax.nn.sigmoid(gates[:, H:2 * H])
            g = jnp.tanh(gates[:, 2 * H:3 * H])
            o = jax.nn.sigmoid(gates[:, 3 * H:4 * H])
            c = f * c + i * g
            h = o * jnp.tanh(c)
            outs.append(h)
        h_seq = jnp.stack(outs, axis=0)
    out_nht = jnp.transpose(h_seq, (1, 2, 0))
    feat = out_nht[:, :, -horizon:].reshape(out_nht.shape[0], -1)
    return feat @ params["lin_w"].T + params["lin_b"]


# ----------------------------------------------------------------------------
# Parameter init (deterministic, PyTorch-style uniform(-1/sqrt(H), 1/sqrt(H)))
# ----------------------------------------------------------------------------
def init_params(key, input_size, hidden_size, output_size, num_layers, horizon):
    k = 1.0 / jnp.sqrt(hidden_size)
    rnn = []
    for layer in range(num_layers):
        d_in = input_size if layer == 0 else hidden_size
        key, k1, k2, k3, k4 = jax.random.split(key, 5)
        w_ih = jax.random.uniform(k1, (4 * hidden_size, d_in),
                                  minval=-k, maxval=k, dtype=jnp.float32)
        w_hh = jax.random.uniform(k2, (4 * hidden_size, hidden_size),
                                  minval=-k, maxval=k, dtype=jnp.float32)
        b_ih = jax.random.uniform(k3, (4 * hidden_size,),
                                  minval=-k, maxval=k, dtype=jnp.float32)
        b_hh = jax.random.uniform(k4, (4 * hidden_size,),
                                  minval=-k, maxval=k, dtype=jnp.float32)
        rnn.append((w_ih, w_hh, b_ih, b_hh))

    f_in = hidden_size * horizon
    f_out = output_size * horizon
    kl = 1.0 / jnp.sqrt(f_in)
    key, k1, k2 = jax.random.split(key, 3)
    lin_w = jax.random.uniform(k1, (f_out, f_in), minval=-kl, maxval=kl,
                               dtype=jnp.float32)
    lin_b = jax.random.uniform(k2, (f_out,), minval=-kl, maxval=kl,
                               dtype=jnp.float32)
    return {"rnn": rnn, "lin_w": lin_w, "lin_b": lin_b}


# ----------------------------------------------------------------------------
if __name__ == "__main__":
    N, INPUT, T = 2, 4, 8
    HIDDEN, OUTPUT, LAYERS, HORIZON = 32, 3, 2, 2

    key = jax.random.PRNGKey(0)
    key, kx, kp = jax.random.split(key, 3)
    x = jax.random.normal(kx, (N, INPUT, T), dtype=jnp.float32)
    params = init_params(kp, INPUT, HIDDEN, OUTPUT, LAYERS, HORIZON)

    ref = lstm_forward_ref(x, params, HORIZON)

    # f32 path: strict parity with the f32 reference.
    out = lstm_forward(x, params, HORIZON, compute_dtype=jnp.float32)
    out = jax.block_until_ready(out)
    assert out.shape == (N, OUTPUT * HORIZON), out.shape
    assert jnp.allclose(out, ref, atol=5e-5, rtol=5e-5), (
        float(jnp.max(jnp.abs(out - ref))))

    # bf16 weights/activations path (v6e/v7x MXU-native); gate math and the
    # (h, c) state stay f32, so it tracks the f32 reference loosely.
    out_bf16 = lstm_forward(x, params, HORIZON, compute_dtype=jnp.bfloat16)
    out_bf16 = jax.block_until_ready(out_bf16)
    assert out_bf16.shape == (N, OUTPUT * HORIZON), out_bf16.shape
    assert bool(jnp.all(jnp.isfinite(out_bf16)))
    assert jnp.allclose(out_bf16, ref, atol=1e-1, rtol=1e-1), (
        float(jnp.max(jnp.abs(out_bf16 - ref))))

    print("KERNEL_OK")
</pallas_src>

<mosaic_0001>
module attributes {stable_mosaic.version = 11 : i64} {
  func.func @linear_kernel(%arg0: memref<8x128xf32, #tpu.memory_space<vmem>>, %arg1: memref<128x128xf32, #tpu.memory_space<vmem>>, %arg2: memref<1x128xf32, #tpu.memory_space<vmem>>, %arg3: memref<8x128xf32, #tpu.memory_space<vmem>>) attributes {dimension_semantics = [], scalar_prefetch = 0 : i64, scratch_operands = 0 : i64, tpu.core_type = #tpu.core_type<tc>} {
    %c0 = arith.constant 0 : index
    %c0_0 = arith.constant 0 : index
    %0 = vector.load %arg0[%c0, %c0_0] : memref<8x128xf32, #tpu.memory_space<vmem>>, vector<8x128xf32>
    %c0_1 = arith.constant 0 : index
    %c0_2 = arith.constant 0 : index
    %1 = vector.load %arg1[%c0_1, %c0_2] : memref<128x128xf32, #tpu.memory_space<vmem>>, vector<128x128xf32>
    %cst = arith.constant dense<0.000000e+00> : vector<8x128xf32>
    %2 = tpu.matmul %0, %1, %cst {dimension_numbers = #tpu.dot_dimension_numbers<[1], [0], [0], [1], [0, 0, 1, 1], [], []>} : vector<8x128xf32>, vector<128x128xf32>, vector<8x128xf32> -> vector<8x128xf32>
    %c0_3 = arith.constant 0 : index
    %c0_4 = arith.constant 0 : index
    %3 = vector.load %arg2[%c0_3, %c0_4] : memref<1x128xf32, #tpu.memory_space<vmem>>, vector<1x128xf32>
    %4 = vector.broadcast %3 : vector<1x128xf32> to vector<8x128xf32>
    %5 = arith.addf %2, %4 : vector<8x128xf32>
    %c0_5 = arith.constant 0 : index
    %c0_6 = arith.constant 0 : index
    %6 = vector.load %arg3[%c0_5, %c0_6] : memref<8x128xf32, #tpu.memory_space<vmem>>, vector<8x128xf32>
    tpu.vector_store %arg3[%c0_5, %c0_6], %5 {strides = array<i32>} : memref<8x128xf32, #tpu.memory_space<vmem>>, vector<8x128xf32>,
    return
  }
}

module attributes {stable_mosaic.version = 11 : i64} {
  func.func @_fused_lstm_kernel(%arg0: i32, %arg1: memref<8x8x128xf32, #tpu.memory_space<vmem>>, %arg2: memref<128x512xf32, #tpu.memory_space<vmem>>, %arg3: memref<128x512xf32, #tpu.memory_space<vmem>>, %arg4: memref<128x512xf32, #tpu.memory_space<vmem>>, %arg5: memref<128x512xf32, #tpu.memory_space<vmem>>, %arg6: memref<1x512xf32, #tpu.memory_space<vmem>>, %arg7: memref<1x512xf32, #tpu.memory_space<vmem>>, %arg8: memref<8x8x128xf32, #tpu.memory_space<vmem>>, %arg9: memref<2x8x128xf32, #tpu.memory_space<vmem>>, %arg10: memref<2x8x128xf32, #tpu.memory_space<vmem>>, %arg11: memref<8x8x128xf32, #tpu.memory_space<vmem>>, %arg12: memref<8x8x512xf32, #tpu.memory_space<vmem>>) attributes {dimension_semantics = [#tpu.dimension_semantics<arbitrary>], iteration_bounds = array<i64: 1>, scalar_prefetch = 0 : i64, scratch_operands = 4 : i64, tpu.core_type = #tpu.core_type<tc>, window_params = [{transform_indices = @transform_0, window_bounds = array<i64: 8, 8, 128>}, {pipeline_mode = #tpu.pipeline_mode<synchronous>, transform_indices = @transform_1, window_bounds = array<i64: 128, 512>}, {pipeline_mode = #tpu.pipeline_mode<synchronous>, transform_indices = @transform_2, window_bounds = array<i64: 128, 512>}, {pipeline_mode = #tpu.pipeline_mode<synchronous>, transform_indices = @transform_3, window_bounds = array<i64: 128, 512>}, {pipeline_mode = #tpu.pipeline_mode<synchronous>, transform_indices = @transform_4, window_bounds = array<i64: 128, 512>}, {pipeline_mode = #tpu.pipeline_mode<synchronous>, transform_indices = @transform_5, window_bounds = array<i64: 1, 512>}, {pipeline_mode = #tpu.pipeline_mode<synchronous>, transform_indices = @transform_6, window_bounds = array<i64: 1, 512>}, {transform_indices = @transform_7, window_bounds = array<i64: 8, 8, 128>}]} {
    %c0_i32 = arith.constant 0 : i32
    %0 = arith.cmpi eq, %arg0, %c0_i32 : i32
    %1 = arith.extui %0 : i1 to i32
    %c0_i32_0 = arith.constant 0 : i32
    %2 = arith.cmpi ne, %1, %c0_i32_0 : i32
    scf.if %2 {
      %cst_214 = arith.constant 0.000000e+00 : f32
      %601 = vector.broadcast %cst_214 : f32 to vector<2x8x128xf32>
      %c0_215 = arith.constant 0 : index
      %c0_216 = arith.constant 0 : index
      %c0_217 = arith.constant 0 : index
      %602 = vector.load %arg9[%c0_215, %c0_216, %c0_217] : memref<2x8x128xf32, #tpu.memory_space<vmem>>, vector<2x8x128xf32>
      tpu.vector_store %arg9[%c0_215, %c0_216, %c0_217], %601 {strides = array<i32>} : memref<2x8x128xf32, #tpu.memory_space<vmem>>, vector<2x8x128xf32>,
      %cst_218 = arith.constant 0.000000e+00 : f32
      %603 = vector.broadcast %cst_218 : f32 to vector<2x8x128xf32>
      %c0_219 = arith.constant 0 : index
      %c0_220 = arith.constant 0 : index
      %c0_221 = arith.constant 0 : index
      %604 = vector.load %arg10[%c0_219, %c0_220, %c0_221] : memref<2x8x128xf32, #tpu.memory_space<vmem>>, vector<2x8x128xf32>
      tpu.vector_store %arg10[%c0_219, %c0_220, %c0_221], %603 {strides = array<i32>} : memref<2x8x128xf32, #tpu.memory_space<vmem>>, vector<2x8x128xf32>,
    } else {
    }
    %c0 = arith.constant 0 : index
    %c0_1 = arith.constant 0 : index
    %c0_2 = arith.constant 0 : index
    %3 = vector.load %arg1[%c0, %c0_1, %c0_2] : memref<8x8x128xf32, #tpu.memory_space<vmem>>, vector<8x8x128xf32>
    %4 = vector.shape_cast %3 : vector<8x8x128xf32> to vector<64x128xf32>
    %c0_3 = arith.constant 0 : index
    %c0_4 = arith.constant 0 : index
    %5 = vector.load %arg2[%c0_3, %c0_4] : memref<128x512xf32, #tpu.memory_space<vmem>>, vector<128x512xf32>
    %cst = arith.constant dense<0.000000e+00> : vector<64x512xf32>
    %6 = tpu.matmul %4, %5, %cst {dimension_numbers = #tpu.dot_dimension_numbers<[1], [0], [0], [1], [0, 0, 1, 1], [], []>} : vector<64x128xf32>, vector<128x512xf32>, vector<64x512xf32> -> vector<64x512xf32>
    %c0_5 = arith.constant 0 : index
    %c0_6 = arith.constant 0 : index
    %7 = vector.load %arg6[%c0_5, %c0_6] : memref<1x512xf32, #tpu.memory_space<vmem>>, vector<1x512xf32>
    %8 = vector.broadcast %7 : vector<1x512xf32> to vector<64x512xf32>
    %9 = arith.addf %6, %8 : vector<64x512xf32>
    %10 = vector.shape_cast %9 : vector<64x512xf32> to vector<8x8x512xf32>
    %c0_7 = arith.constant 0 : index
    %c0_8 = arith.constant 0 : index
    %c0_9 = arith.constant 0 : index
    %11 = vector.load %arg12[%c0_7, %c0_8, %c0_9] : memref<8x8x512xf32, #tpu.memory_space<vmem>>, vector<8x8x512xf32>
    tpu.vector_store %arg12[%c0_7, %c0_8, %c0_9], %10 {strides = array<i32>} : memref<8x8x512xf32, #tpu.memory_space<vmem>>, vector<8x8x512xf32>,
    %c0_10 = arith.constant 0 : index
    %c0_11 = arith.constant 0 : index
    %c0_12 = arith.constant 0 : index
    %12 = vector.load %arg9[%c0_10, %c0_11, %c0_12] : memref<2x8x128xf32, #tpu.memory_space<vmem>>, vector<1x8x128xf32>
    %13 = vector.shape_cast %12 : vector<1x8x128xf32> to vector<8x128xf32>
    %c0_13 = arith.constant 0 : index
    %c0_14 = arith.constant 0 : index
    %c0_15 = arith.constant 0 : index
    %14 = vector.load %arg10[%c0_13, %c0_14, %c0_15] : memref<2x8x128xf32, #tpu.memory_space<vmem>>, vector<1x8x128xf32>
    %15 = vector.shape_cast %14 : vector<1x8x128xf32> to vector<8x128xf32>
    %c0_i32_16 = arith.constant 0 : i32
    %c0_17 = arith.constant 0 : index
    %c0_18 = arith.constant 0 : index
    %16 = vector.load %arg4[%c0_17, %c0_18] : memref<128x512xf32, #tpu.memory_space<vmem>>, vector<128x512xf32>
    %17 = arith.index_cast %c0_i32_16 : i32 to index
    %c0_19 = arith.constant 0 : index
    %c0_20 = arith.constant 0 : index
    %18 = vector.load %arg12[%17, %c0_19, %c0_20] : memref<8x8x512xf32, #tpu.memory_space<vmem>>, vector<1x8x512xf32>
    %19 = vector.shape_cast %18 : vector<1x8x512xf32> to vector<8x512xf32>
    %cst_21 = arith.constant dense<0.000000e+00> : vector<8x512xf32>
    %20 = tpu.matmul %13, %16, %cst_21 {dimension_numbers = #tpu.dot_dimension_numbers<[1], [0], [0], [1], [0, 0, 1, 1], [], []>} : vector<8x128xf32>, vector<128x512xf32>, vector<8x512xf32> -> vector<8x512xf32>
    %21 = arith.addf %19, %20 : vector<8x512xf32>
    %22 = vector.extract_strided_slice %21 {offsets = [0, 0], sizes = [8, 128], strides = [1, 1]} : vector<8x512xf32> to vector<8x128xf32>
    %23 = arith.negf %22 : vector<8x128xf32>
    %24 = math.exp %23 : vector<8x128xf32>
    %cst_22 = arith.constant 1.000000e+00 : f32
    %25 = vector.broadcast %cst_22 : f32 to vector<8x128xf32>
    %26 = arith.addf %25, %24 : vector<8x128xf32>
    %27 = arith.divf %25, %26 : vector<8x128xf32>
    %28 = vector.extract_strided_slice %21 {offsets = [0, 128], sizes = [8, 128], strides = [1, 1]} : vector<8x512xf32> to vector<8x128xf32>
    %29 = arith.negf %28 : vector<8x128xf32>
    %30 = math.exp %29 : vector<8x128xf32>
    %cst_23 = arith.constant 1.000000e+00 : f32
    %31 = vector.broadcast %cst_23 : f32 to vector<8x128xf32>
    %32 = arith.addf %31, %30 : vector<8x128xf32>
    %33 = arith.divf %31, %32 : vector<8x128xf32>
    %34 = vector.extract_strided_slice %21 {offsets = [0, 256], sizes = [8, 128], strides = [1, 1]} : vector<8x512xf32> to vector<8x128xf32>
    %35 = math.tanh %34 : vector<8x128xf32>
    %36 = vector.extract_strided_slice %21 {offsets = [0, 384], sizes = [8, 128], strides = [1, 1]} : vector<8x512xf32> to vector<8x128xf32>
    %37 = arith.negf %36 : vector<8x128xf32>
    %38 = math.exp %37 : vector<8x128xf32>
    %cst_24 = arith.constant 1.000000e+00 : f32
    %39 = vector.broadcast %cst_24 : f32 to vector<8x128xf32>
    %40 = arith.addf %39, %38 : vector<8x128xf32>
    %41 = arith.divf %39, %40 : vector<8x128xf32>
    %42 = arith.mulf %33, %15 : vector<8x128xf32>
    %43 = arith.mulf %27, %35 : vector<8x128xf32>
    %44 = arith.addf %42, %43 : vector<8x128xf32>
    %45 = math.tanh %44 : vector<8x128xf32>
    %46 = arith.mulf %41, %45 : vector<8x128xf32>
    %47 = arith.index_cast %c0_i32_16 : i32 to index
    %c0_25 = arith.constant 0 : index
    %c0_26 = arith.constant 0 : index
    %48 = vector.load %arg11[%47, %c0_25, %c0_26] : memref<8x8x128xf32, #tpu.memory_space<vmem>>, vector<1x8x128xf32>
    %49 = vector.shape_cast %48 : vector<1x8x128xf32> to vector<8x128xf32>
    %50 = vector.shape_cast %46 : vector<8x128xf32> to vector<1x8x128xf32>
    tpu.vector_store %arg11[%47, %c0_25, %c0_26], %50 {strides = array<i32>} : memref<8x8x128xf32, #tpu.memory_space<vmem>>, vector<1x8x128xf32>,
    %c1_i32 = arith.constant 1 : i32
    %c0_27 = arith.constant 0 : index
    %c0_28 = arith.constant 0 : index
    %51 = vector.load %arg4[%c0_27, %c0_28] : memref<128x512xf32, #tpu.memory_space<vmem>>, vector<128x512xf32>
    %52 = arith.index_cast %c1_i32 : i32 to index
    %c0_29 = arith.constant 0 : index
    %c0_30 = arith.constant 0 : index
    %53 = vector.load %arg12[%52, %c0_29, %c0_30] : memref<8x8x512xf32, #tpu.memory_space<vmem>>, vector<1x8x512xf32>
    %54 = vector.shape_cast %53 : vector<1x8x512xf32> to vector<8x512xf32>
    %cst_31 = arith.constant dense<0.000000e+00> : vector<8x512xf32>
    %55 = tpu.matmul %46, %51, %cst_31 {dimension_numbers = #tpu.dot_dimension_numbers<[1], [0], [0], [1], [0, 0, 1, 1], [], []>} : vector<8x128xf32>, vector<128x512xf32>, vector<8x512xf32> -> vector<8x512xf32>
    %56 = arith.addf %54, %55 : vector<8x512xf32>
    %57 = vector.extract_strided_slice %56 {offsets = [0, 0], sizes = [8, 128], strides = [1, 1]} : vector<8x512xf32> to vector<8x128xf32>
    %58 = arith.negf %57 : vector<8x128xf32>
    %59 = math.exp %58 : vector<8x128xf32>
    %cst_32 = arith.constant 1.000000e+00 : f32
    %60 = vector.broadcast %cst_32 : f32 to vector<8x128xf32>
    %61 = arith.addf %60, %59 : vector<8x128xf32>
    %62 = arith.divf %60, %61 : vector<8x128xf32>
    %63 = vector.extract_strided_slice %56 {offsets = [0, 128], sizes = [8, 128], strides = [1, 1]} : vector<8x512xf32> to vector<8x128xf32>
    %64 = arith.negf %63 : vector<8x128xf32>
    %65 = math.exp %64 : vector<8x128xf32>
    %cst_33 = arith.constant 1.000000e+00 : f32
    %66 = vector.broadcast %cst_33 : f32 to vector<8x128xf32>
    %67 = arith.addf %66, %65 : vector<8x128xf32>
    %68 = arith.divf %66, %67 : vector<8x128xf32>
    %69 = vector.extract_strided_slice %56 {offsets = [0, 256], sizes = [8, 128], strides = [1, 1]} : vector<8x512xf32> to vector<8x128xf32>
    %70 = math.tanh %69 : vector<8x128xf32>
    %71 = vector.extract_strided_slice %56 {offsets = [0, 384], sizes = [8, 128], strides = [1, 1]} : vector<8x512xf32> to vector<8x128xf32>
    %72 = arith.negf %71 : vector<8x128xf32>
    %73 = math.exp %72 : vector<8x128xf32>
    %cst_34 = arith.constant 1.000000e+00 : f32
    %74 = vector.broadcast %cst_34 : f32 to vector<8x128xf32>
    %75 = arith.addf %74, %73 : vector<8x128xf32>
    %76 = arith.divf %74, %75 : vector<8x128xf32>
    %77 = arith.mulf %68, %44 : vector<8x128xf32>
    %78 = arith.mulf %62, %70 : vector<8x128xf32>
    %79 = arith.addf %77, %78 : vector<8x128xf32>
    %80 = math.tanh %79 : vector<8x128xf32>
    %81 = arith.mulf %76, %80 : vector<8x128xf32>
    %82 = arith.index_cast %c1_i32 : i32 to index
    %c0_35 = arith.constant 0 : index
    %c0_36 = arith.constant 0 : index
    %83 = vector.load %arg11[%82, %c0_35, %c0_36] : memref<8x8x128xf32, #tpu.memory_space<vmem>>, vector<1x8x128xf32>
    %84 = vector.shape_cast %83 : vector<1x8x128xf32> to vector<8x128xf32>
    %85 = vector.shape_cast %81 : vector<8x128xf32> to vector<1x8x128xf32>
    tpu.vector_store %arg11[%82, %c0_35, %c0_36], %85 {strides = array<i32>} : memref<8x8x128xf32, #tpu.memory_space<vmem>>, vector<1x8x128xf32>,
    %c2_i32 = arith.constant 2 : i32
    %c0_37 = arith.constant 0 : index
    %c0_38 = arith.constant 0 : index
    %86 = vector.load %arg4[%c0_37, %c0_38] : memref<128x512xf32, #tpu.memory_space<vmem>>, vector<128x512xf32>
    %87 = arith.index_cast %c2_i32 : i32 to index
    %c0_39 = arith.constant 0 : index
    %c0_40 = arith.constant 0 : index
    %88 = vector.load %arg12[%87, %c0_39, %c0_40] : memref<8x8x512xf32, #tpu.memory_space<vmem>>, vector<1x8x512xf32>
    %89 = vector.shape_cast %88 : vector<1x8x512xf32> to vector<8x512xf32>
    %cst_41 = arith.constant dense<0.000000e+00> : vector<8x512xf32>
    %90 = tpu.matmul %81, %86, %cst_41 {dimension_numbers = #tpu.dot_dimension_numbers<[1], [0], [0], [1], [0, 0, 1, 1], [], []>} : vector<8x128xf32>, vector<128x512xf32>, vector<8x512xf32> -> vector<8x512xf32>
    %91 = arith.addf %89, %90 : vector<8x512xf32>
    %92 = vector.extract_strided_slice %91 {offsets = [0, 0], sizes = [8, 128], strides = [1, 1]} : vector<8x512xf32> to vector<8x128xf32>
    %93 = arith.negf %92 : vector<8x128xf32>
    %94 = math.exp %93 : vector<8x128xf32>
    %cst_42 = arith.constant 1.000000e+00 : f32
    %95 = vector.broadcast %cst_42 : f32 to vector<8x128xf32>
    %96 = arith.addf %95, %94 : vector<8x128xf32>
    %97 = arith.divf %95, %96 : vector<8x128xf32>
    %98 = vector.extract_strided_slice %91 {offsets = [0, 128], sizes = [8, 128], strides = [1, 1]} : vector<8x512xf32> to vector<8x128xf32>
    %99 = arith.negf %98 : vector<8x128xf32>
    %100 = math.exp %99 : vector<8x128xf32>
    %cst_43 = arith.constant 1.000000e+00 : f32
    %101 = vector.broadcast %cst_43 : f32 to vector<8x128xf32>
    %102 = arith.addf %101, %100 : vector<8x128xf32>
    %103 = arith.divf %101, %102 : vector<8x128xf32>
    %104 = vector.extract_strided_slice %91 {offsets = [0, 256], sizes = [8, 128], strides = [1, 1]} : vector<8x512xf32> to vector<8x128xf32>
    %105 = math.tanh %104 : vector<8x128xf32>
    %106 = vector.extract_strided_slice %91 {offsets = [0, 384], sizes = [8, 128], strides = [1, 1]} : vector<8x512xf32> to vector<8x128xf32>
    %107 = arith.negf %106 : vector<8x128xf32>
    %108 = math.exp %107 : vector<8x128xf32>
    %cst_44 = arith.constant 1.000000e+00 : f32
    %109 = vector.broadcast %cst_44 : f32 to vector<8x128xf32>
    %110 = arith.addf %109, %108 : vector<8x128xf32>
    %111 = arith.divf %109, %110 : vector<8x128xf32>
    %112 = arith.mulf %103, %79 : vector<8x128xf32>
    %113 = arith.mulf %97, %105 : vector<8x128xf32>
    %114 = arith.addf %112, %113 : vector<8x128xf32>
    %115 = math.tanh %114 : vector<8x128xf32>
    %116 = arith.mulf %111, %115 : vector<8x128xf32>
    %117 = arith.index_cast %c2_i32 : i32 to index
    %c0_45 = arith.constant 0 : index
    %c0_46 = arith.constant 0 : index
    %118 = vector.load %arg11[%117, %c0_45, %c0_46] : memref<8x8x128xf32, #tpu.memory_space<vmem>>, vector<1x8x128xf32>
    %119 = vector.shape_cast %118 : vector<1x8x128xf32> to vector<8x128xf32>
    %120 = vector.shape_cast %116 : vector<8x128xf32> to vector<1x8x128xf32>
    tpu.vector_store %arg11[%117, %c0_45, %c0_46], %120 {strides = array<i32>} : memref<8x8x128xf32, #tpu.memory_space<vmem>>, vector<1x8x128xf32>,
    %c3_i32 = arith.constant 3 : i32
    %c0_47 = arith.constant 0 : index
    %c0_48 = arith.constant 0 : index
    %121 = vector.load %arg4[%c0_47, %c0_48] : memref<128x512xf32, #tpu.memory_space<vmem>>, vector<128x512xf32>
    %122 = arith.index_cast %c3_i32 : i32 to index
    %c0_49 = arith.constant 0 : index
    %c0_50 = arith.constant 0 : index
    %123 = vector.load %arg12[%122, %c0_49, %c0_50] : memref<8x8x512xf32, #tpu.memory_space<vmem>>, vector<1x8x512xf32>
    %124 = vector.shape_cast %123 : vector<1x8x512xf32> to vector<8x512xf32>
    %cst_51 = arith.constant dense<0.000000e+00> : vector<8x512xf32>
    %125 = tpu.matmul %116, %121, %cst_51 {dimension_numbers = #tpu.dot_dimension_numbers<[1], [0], [0], [1], [0, 0, 1, 1], [], []>} : vector<8x128xf32>, vector<128x512xf32>, vector<8x512xf32> -> vector<8x512xf32>
    %126 = arith.addf %124, %125 : vector<8x512xf32>
    %127 = vector.extract_strided_slice %126 {offsets = [0, 0], sizes = [8, 128], strides = [1, 1]} : vector<8x512xf32> to vector<8x128xf32>
    %128 = arith.negf %127 : vector<8x128xf32>
    %129 = math.exp %128 : vector<8x128xf32>
    %cst_52 = arith.constant 1.000000e+00 : f32
    %130 = vector.broadcast %cst_52 : f32 to vector<8x128xf32>
    %131 = arith.addf %130, %129 : vector<8x128xf32>
    %132 = arith.divf %130, %131 : vector<8x128xf32>
    %133 = vector.extract_strided_slice %126 {offsets = [0, 128], sizes = [8, 128], strides = [1, 1]} : vector<8x512xf32> to vector<8x128xf32>
    %134 = arith.negf %133 : vector<8x128xf32>
    %135 = math.exp %134 : vector<8x128xf32>
    %cst_53 = arith.constant 1.000000e+00 : f32
    %136 = vector.broadcast %cst_53 : f32 to vector<8x128xf32>
    %137 = arith.addf %136, %135 : vector<8x128xf32>
    %138 = arith.divf %136, %137 : vector<8x128xf32>
    %139 = vector.extract_strided_slice %126 {offsets = [0, 256], sizes = [8, 128], strides = [1, 1]} : vector<8x512xf32> to vector<8x128xf32>
    %140 = math.tanh %139 : vector<8x128xf32>
    %141 = vector.extract_strided_slice %126 {offsets = [0, 384], sizes = [8, 128], strides = [1, 1]} : vector<8x512xf32> to vector<8x128xf32>
    %142 = arith.negf %141 : vector<8x128xf32>
    %143 = math.exp %142 : vector<8x128xf32>
    %cst_54 = arith.constant 1.000000e+00 : f32
    %144 = vector.broadcast %cst_54 : f32 to vector<8x128xf32>
    %145 = arith.addf %144, %143 : vector<8x128xf32>
    %146 = arith.divf %144, %145 : vector<8x128xf32>
    %147 = arith.mulf %138, %114 : vector<8x128xf32>
    %148 = arith.mulf %132, %140 : vector<8x128xf32>
    %149 = arith.addf %147, %148 : vector<8x128xf32>
    %150 = math.tanh %149 : vector<8x128xf32>
    %151 = arith.mulf %146, %150 : vector<8x128xf32>
    %152 = arith.index_cast %c3_i32 : i32 to index
    %c0_55 = arith.constant 0 : index
    %c0_56 = arith.constant 0 : index
    %153 = vector.load %arg11[%152, %c0_55, %c0_56] : memref<8x8x128xf32, #tpu.memory_space<vmem>>, vector<1x8x128xf32>
    %154 = vector.shape_cast %153 : vector<1x8x128xf32> to vector<8x128xf32>
    %155 = vector.shape_cast %151 : vector<8x128xf32> to vector<1x8x128xf32>
    tpu.vector_store %arg11[%152, %c0_55, %c0_56], %155 {strides = array<i32>} : memref<8x8x128xf32, #tpu.memory_space<vmem>>, vector<1x8x128xf32>,
    %c4_i32 = arith.constant 4 : i32
    %c0_57 = arith.constant 0 : index
    %c0_58 = arith.constant 0 : index
    %156 = vector.load %arg4[%c0_57, %c0_58] : memref<128x512xf32, #tpu.memory_space<vmem>>, vector<128x512xf32>
    %157 = arith.index_cast %c4_i32 : i32 to index
    %c0_59 = arith.constant 0 : index
    %c0_60 = arith.constant 0 : index
    %158 = vector.load %arg12[%157, %c0_59, %c0_60] : memref<8x8x512xf32, #tpu.memory_space<vmem>>, vector<1x8x512xf32>
    %159 = vector.shape_cast %158 : vector<1x8x512xf32> to vector<8x512xf32>
    %cst_61 = arith.constant dense<0.000000e+00> : vector<8x512xf32>
    %160 = tpu.matmul %151, %156, %cst_61 {dimension_numbers = #tpu.dot_dimension_numbers<[1], [0], [0], [1], [0, 0, 1, 1], [], []>} : vector<8x128xf32>, vector<128x512xf32>, vector<8x512xf32> -> vector<8x512xf32>
    %161 = arith.addf %159, %160 : vector<8x512xf32>
    %162 = vector.extract_strided_slice %161 {offsets = [0, 0], sizes = [8, 128], strides = [1, 1]} : vector<8x512xf32> to vector<8x128xf32>
    %163 = arith.negf %162 : vector<8x128xf32>
    %164 = math.exp %163 : vector<8x128xf32>
    %cst_62 = arith.constant 1.000000e+00 : f32
    %165 = vector.broadcast %cst_62 : f32 to vector<8x128xf32>
    %166 = arith.addf %165, %164 : vector<8x128xf32>
    %167 = arith.divf %165, %166 : vector<8x128xf32>
    %168 = vector.extract_strided_slice %161 {offsets = [0, 128], sizes = [8, 128], strides = [1, 1]} : vector<8x512xf32> to vector<8x128xf32>
    %169 = arith.negf %168 : vector<8x128xf32>
    %170 = math.exp %169 : vector<8x128xf32>
    %cst_63 = arith.constant 1.000000e+00 : f32
    %171 = vector.broadcast %cst_63 : f32 to vector<8x128xf32>
    %172 = arith.addf %171, %170 : vector<8x128xf32>
    %173 = arith.divf %171, %172 : vector<8x128xf32>
    %174 = vector.extract_strided_slice %161 {offsets = [0, 256], sizes = [8, 128], strides = [1, 1]} : vector<8x512xf32> to vector<8x128xf32>
    %175 = math.tanh %174 : vector<8x128xf32>
    %176 = vector.extract_strided_slice %161 {offsets = [0, 384], sizes = [8, 128], strides = [1, 1]} : vector<8x512xf32> to vector<8x128xf32>
    %177 = arith.negf %176 : vector<8x128xf32>
    %178 = math.exp %177 : vector<8x128xf32>
    %cst_64 = arith.constant 1.000000e+00 : f32
    %179 = vector.broadcast %cst_64 : f32 to vector<8x128xf32>
    %180 = arith.addf %179, %178 : vector<8x128xf32>
    %181 = arith.divf %179, %180 : vector<8x128xf32>
    %182 = arith.mulf %173, %149 : vector<8x128xf32>
    %183 = arith.mulf %167, %175 : vector<8x128xf32>
    %184 = arith.addf %182, %183 : vector<8x128xf32>
    %185 = math.tanh %184 : vector<8x128xf32>
    %186 = arith.mulf %181, %185 : vector<8x128xf32>
    %187 = arith.index_cast %c4_i32 : i32 to index
    %c0_65 = arith.constant 0 : index
    %c0_66 = arith.constant 0 : index
    %188 = vector.load %arg11[%187, %c0_65, %c0_66] : memref<8x8x128xf32, #tpu.memory_space<vmem>>, vector<1x8x128xf32>
    %189 = vector.shape_cast %188 : vector<1x8x128xf32> to vector<8x128xf32>
    %190 = vector.shape_cast %186 : vector<8x128xf32> to vector<1x8x128xf32>
    tpu.vector_store %arg11[%187, %c0_65, %c0_66], %190 {strides = array<i32>} : memref<8x8x128xf32, #tpu.memory_space<vmem>>, vector<1x8x128xf32>,
    %c5_i32 = arith.constant 5 : i32
    %c0_67 = arith.constant 0 : index
    %c0_68 = arith.constant 0 : index
    %191 = vector.load %arg4[%c0_67, %c0_68] : memref<128x512xf32, #tpu.memory_space<vmem>>, vector<128x512xf32>
    %192 = arith.index_cast %c5_i32 : i32 to index
    %c0_69 = arith.constant 0 : index
    %c0_70 = arith.constant 0 : index
    %193 = vector.load %arg12[%192, %c0_69, %c0_70] : memref<8x8x512xf32, #tpu.memory_space<vmem>>, vector<1x8x512xf32>
    %194 = vector.shape_cast %193 : vector<1x8x512xf32> to vector<8x512xf32>
    %cst_71 = arith.constant dense<0.000000e+00> : vector<8x512xf32>
    %195 = tpu.matmul %186, %191, %cst_71 {dimension_numbers = #tpu.dot_dimension_numbers<[1], [0], [0], [1], [0, 0, 1, 1], [], []>} : vector<8x128xf32>, vector<128x512xf32>, vector<8x512xf32> -> vector<8x512xf32>
    %196 = arith.addf %194, %195 : vector<8x512xf32>
    %197 = vector.extract_strided_slice %196 {offsets = [0, 0], sizes = [8, 128], strides = [1, 1]} : vector<8x512xf32> to vector<8x128xf32>
    %198 = arith.negf %197 : vector<8x128xf32>
    %199 = math.exp %198 : vector<8x128xf32>
    %cst_72 = arith.constant 1.000000e+00 : f32
    %200 = vector.broadcast %cst_72 : f32 to vector<8x128xf32>
    %201 = arith.addf %200, %199 : vector<8x128xf32>
    %202 = arith.divf %200, %201 : vector<8x128xf32>
    %203 = vector.extract_strided_slice %196 {offsets = [0, 128], sizes = [8, 128], strides = [1, 1]} : vector<8x512xf32> to vector<8x128xf32>
    %204 = arith.negf %203 : vector<8x128xf32>
    %205 = math.exp %204 : vector<8x128xf32>
    %cst_73 = arith.constant 1.000000e+00 : f32
    %206 = vector.broadcast %cst_73 : f32 to vector<8x128xf32>
    %207 = arith.addf %206, %205 : vector<8x128xf32>
    %208 = arith.divf %206, %207 : vector<8x128xf32>
    %209 = vector.extract_strided_slice %196 {offsets = [0, 256], sizes = [8, 128], strides = [1, 1]} : vector<8x512xf32> to vector<8x128xf32>
    %210 = math.tanh %209 : vector<8x128xf32>
    %211 = vector.extract_strided_slice %196 {offsets = [0, 384], sizes = [8, 128], strides = [1, 1]} : vector<8x512xf32> to vector<8x128xf32>
    %212 = arith.negf %211 : vector<8x128xf32>
    %213 = math.exp %212 : vector<8x128xf32>
    %cst_74 = arith.constant 1.000000e+00 : f32
    %214 = vector.broadcast %cst_74 : f32 to vector<8x128xf32>
    %215 = arith.addf %214, %213 : vector<8x128xf32>
    %216 = arith.divf %214, %215 : vector<8x128xf32>
    %217 = arith.mulf %208, %184 : vector<8x128xf32>
    %218 = arith.mulf %202, %210 : vector<8x128xf32>
    %219 = arith.addf %217, %218 : vector<8x128xf32>
    %220 = math.tanh %219 : vector<8x128xf32>
    %221 = arith.mulf %216, %220 : vector<8x128xf32>
    %222 = arith.index_cast %c5_i32 : i32 to index
    %c0_75 = arith.constant 0 : index
    %c0_76 = arith.constant 0 : index
    %223 = vector.load %arg11[%222, %c0_75, %c0_76] : memref<8x8x128xf32, #tpu.memory_space<vmem>>, vector<1x8x128xf32>
    %224 = vector.shape_cast %223 : vector<1x8x128xf32> to vector<8x128xf32>
    %225 = vector.shape_cast %221 : vector<8x128xf32> to vector<1x8x128xf32>
    tpu.vector_store %arg11[%222, %c0_75, %c0_76], %225 {strides = array<i32>} : memref<8x8x128xf32, #tpu.memory_space<vmem>>, vector<1x8x128xf32>,
    %c6_i32 = arith.constant 6 : i32
    %c0_77 = arith.constant 0 : index
    %c0_78 = arith.constant 0 : index
    %226 = vector.load %arg4[%c0_77, %c0_78] : memref<128x512xf32, #tpu.memory_space<vmem>>, vector<128x512xf32>
    %227 = arith.index_cast %c6_i32 : i32 to index
    %c0_79 = arith.constant 0 : index
    %c0_80 = arith.constant 0 : index
    %228 = vector.load %arg12[%227, %c0_79, %c0_80] : memref<8x8x512xf32, #tpu.memory_space<vmem>>, vector<1x8x512xf32>
    %229 = vector.shape_cast %228 : vector<1x8x512xf32> to vector<8x512xf32>
    %cst_81 = arith.constant dense<0.000000e+00> : vector<8x512xf32>
    %230 = tpu.matmul %221, %226, %cst_81 {dimension_numbers = #tpu.dot_dimension_numbers<[1], [0], [0], [1], [0, 0, 1, 1], [], []>} : vector<8x128xf32>, vector<128x512xf32>, vector<8x512xf32> -> vector<8x512xf32>
    %231 = arith.addf %229, %230 : vector<8x512xf32>
    %232 = vector.extract_strided_slice %231 {offsets = [0, 0], sizes = [8, 128], strides = [1, 1]} : vector<8x512xf32> to vector<8x128xf32>
    %233 = arith.negf %232 : vector<8x128xf32>
    %234 = math.exp %233 : vector<8x128xf32>
    %cst_82 = arith.constant 1.000000e+00 : f32
    %235 = vector.broadcast %cst_82 : f32 to vector<8x128xf32>
    %236 = arith.addf %235, %234 : vector<8x128xf32>
    %237 = arith.divf %235, %236 : vector<8x128xf32>
    %238 = vector.extract_strided_slice %231 {offsets = [0, 128], sizes = [8, 128], strides = [1, 1]} : vector<8x512xf32> to vector<8x128xf32>
    %239 = arith.negf %238 : vector<8x128xf32>
    %240 = math.exp %239 : vector<8x128xf32>
    %cst_83 = arith.constant 1.000000e+00 : f32
    %241 = vector.broadcast %cst_83 : f32 to vector<8x128xf32>
    %242 = arith.addf %241, %240 : vector<8x128xf32>
    %243 = arith.divf %241, %242 : vector<8x128xf32>
    %244 = vector.extract_strided_slice %231 {offsets = [0, 256], sizes = [8, 128], strides = [1, 1]} : vector<8x512xf32> to vector<8x128xf32>
    %245 = math.tanh %244 : vector<8x128xf32>
    %246 = vector.extract_strided_slice %231 {offsets = [0, 384], sizes = [8, 128], strides = [1, 1]} : vector<8x512xf32> to vector<8x128xf32>
    %247 = arith.negf %246 : vector<8x128xf32>
    %248 = math.exp %247 : vector<8x128xf32>
    %cst_84 = arith.constant 1.000000e+00 : f32
    %249 = vector.broadcast %cst_84 : f32 to vector<8x128xf32>
    %250 = arith.addf %249, %248 : vector<8x128xf32>
    %251 = arith.divf %249, %250 : vector<8x128xf32>
    %252 = arith.mulf %243, %219 : vector<8x128xf32>
    %253 = arith.mulf %237, %245 : vector<8x128xf32>
    %254 = arith.addf %252, %253 : vector<8x128xf32>
    %255 = math.tanh %254 : vector<8x128xf32>
    %256 = arith.mulf %251, %255 : vector<8x128xf32>
    %257 = arith.index_cast %c6_i32 : i32 to index
    %c0_85 = arith.constant 0 : index
    %c0_86 = arith.constant 0 : index
    %258 = vector.load %arg11[%257, %c0_85, %c0_86] : memref<8x8x128xf32, #tpu.memory_space<vmem>>, vector<1x8x128xf32>
    %259 = vector.shape_cast %258 : vector<1x8x128xf32> to vector<8x128xf32>
    %260 = vector.shape_cast %256 : vector<8x128xf32> to vector<1x8x128xf32>
    tpu.vector_store %arg11[%257, %c0_85, %c0_86], %260 {strides = array<i32>} : memref<8x8x128xf32, #tpu.memory_space<vmem>>, vector<1x8x128xf32>,
    %c7_i32 = arith.constant 7 : i32
    %c0_87 = arith.constant 0 : index
    %c0_88 = arith.constant 0 : index
    %261 = vector.load %arg4[%c0_87, %c0_88] : memref<128x512xf32, #tpu.memory_space<vmem>>, vector<128x512xf32>
    %262 = arith.index_cast %c7_i32 : i32 to index
    %c0_89 = arith.constant 0 : index
    %c0_90 = arith.constant 0 : index
    %263 = vector.load %arg12[%262, %c0_89, %c0_90] : memref<8x8x512xf32, #tpu.memory_space<vmem>>, vector<1x8x512xf32>
    %264 = vector.shape_cast %263 : vector<1x8x512xf32> to vector<8x512xf32>
    %cst_91 = arith.constant dense<0.000000e+00> : vector<8x512xf32>
    %265 = tpu.matmul %256, %261, %cst_91 {dimension_numbers = #tpu.dot_dimension_numbers<[1], [0], [0], [1], [0, 0, 1, 1], [], []>} : vector<8x128xf32>, vector<128x512xf32>, vector<8x512xf32> -> vector<8x512xf32>
    %266 = arith.addf %264, %265 : vector<8x512xf32>
    %267 = vector.extract_strided_slice %266 {offsets = [0, 0], sizes = [8, 128], strides = [1, 1]} : vector<8x512xf32> to vector<8x128xf32>
    %268 = arith.negf %267 : vector<8x128xf32>
    %269 = math.exp %268 : vector<8x128xf32>
    %cst_92 = arith.constant 1.000000e+00 : f32
    %270 = vector.broadcast %cst_92 : f32 to vector<8x128xf32>
    %271 = arith.addf %270, %269 : vector<8x128xf32>
    %272 = arith.divf %270, %271 : vector<8x128xf32>
    %273 = vector.extract_strided_slice %266 {offsets = [0, 128], sizes = [8, 128], strides = [1, 1]} : vector<8x512xf32> to vector<8x128xf32>
    %274 = arith.negf %273 : vector<8x128xf32>
    %275 = math.exp %274 : vector<8x128xf32>
    %cst_93 = arith.constant 1.000000e+00 : f32
    %276 = vector.broadcast %cst_93 : f32 to vector<8x128xf32>
    %277 = arith.addf %276, %275 : vector<8x128xf32>
    %278 = arith.divf %276, %277 : vector<8x128xf32>
    %279 = vector.extract_strided_slice %266 {offsets = [0, 256], sizes = [8, 128], strides = [1, 1]} : vector<8x512xf32> to vector<8x128xf32>
    %280 = math.tanh %279 : vector<8x128xf32>
    %281 = vector.extract_strided_slice %266 {offsets = [0, 384], sizes = [8, 128], strides = [1, 1]} : vector<8x512xf32> to vector<8x128xf32>
    %282 = arith.negf %281 : vector<8x128xf32>
    %283 = math.exp %282 : vector<8x128xf32>
    %cst_94 = arith.constant 1.000000e+00 : f32
    %284 = vector.broadcast %cst_94 : f32 to vector<8x128xf32>
    %285 = arith.addf %284, %283 : vector<8x128xf32>
    %286 = arith.divf %284, %285 : vector<8x128xf32>
    %287 = arith.mulf %278, %254 : vector<8x128xf32>
    %288 = arith.mulf %272, %280 : vector<8x128xf32>
    %289 = arith.addf %287, %288 : vector<8x128xf32>
    %290 = math.tanh %289 : vector<8x128xf32>
    %291 = arith.mulf %286, %290 : vector<8x128xf32>
    %292 = arith.index_cast %c7_i32 : i32 to index
    %c0_95 = arith.constant 0 : index
    %c0_96 = arith.constant 0 : index
    %293 = vector.load %arg11[%292, %c0_95, %c0_96] : memref<8x8x128xf32, #tpu.memory_space<vmem>>, vector<1x8x128xf32>
    %294 = vector.shape_cast %293 : vector<1x8x128xf32> to vector<8x128xf32>
    %295 = vector.shape_cast %291 : vector<8x128xf32> to vector<1x8x128xf32>
    tpu.vector_store %arg11[%292, %c0_95, %c0_96], %295 {strides = array<i32>} : memref<8x8x128xf32, #tpu.memory_space<vmem>>, vector<1x8x128xf32>,
    %c8_i32 = arith.constant 8 : i32
    %c0_97 = arith.constant 0 : index
    %c0_98 = arith.constant 0 : index
    %c0_99 = arith.constant 0 : index
    %296 = vector.load %arg9[%c0_97, %c0_98, %c0_99] : memref<2x8x128xf32, #tpu.memory_space<vmem>>, vector<1x8x128xf32>
    %297 = vector.shape_cast %296 : vector<1x8x128xf32> to vector<8x128xf32>
    %298 = vector.shape_cast %291 : vector<8x128xf32> to vector<1x8x128xf32>
    tpu.vector_store %arg9[%c0_97, %c0_98, %c0_99], %298 {strides = array<i32>} : memref<2x8x128xf32, #tpu.memory_space<vmem>>, vector<1x8x128xf32>,
    %c0_100 = arith.constant 0 : index
    %c0_101 = arith.constant 0 : index
    %c0_102 = arith.constant 0 : index
    %299 = vector.load %arg10[%c0_100, %c0_101, %c0_102] : memref<2x8x128xf32, #tpu.memory_space<vmem>>, vector<1x8x128xf32>
    %300 = vector.shape_cast %299 : vector<1x8x128xf32> to vector<8x128xf32>
    %301 = vector.shape_cast %289 : vector<8x128xf32> to vector<1x8x128xf32>
    tpu.vector_store %arg10[%c0_100, %c0_101, %c0_102], %301 {strides = array<i32>} : memref<2x8x128xf32, #tpu.memory_space<vmem>>, vector<1x8x128xf32>,
    %c0_103 = arith.constant 0 : index
    %c0_104 = arith.constant 0 : index
    %c0_105 = arith.constant 0 : index
    %302 = vector.load %arg11[%c0_103, %c0_104, %c0_105] : memref<8x8x128xf32, #tpu.memory_space<vmem>>, vector<8x8x128xf32>
    %303 = vector.shape_cast %302 : vector<8x8x128xf32> to vector<64x128xf32>
    %c0_106 = arith.constant 0 : index
    %c0_107 = arith.constant 0 : index
    %304 = vector.load %arg3[%c0_106, %c0_107] : memref<128x512xf32, #tpu.memory_space<vmem>>, vector<128x512xf32>
    %cst_108 = arith.constant dense<0.000000e+00> : vector<64x512xf32>
    %305 = tpu.matmul %303, %304, %cst_108 {dimension_numbers = #tpu.dot_dimension_numbers<[1], [0], [0], [1], [0, 0, 1, 1], [], []>} : vector<64x128xf32>, vector<128x512xf32>, vector<64x512xf32> -> vector<64x512xf32>
    %c0_109 = arith.constant 0 : index
    %c0_110 = arith.constant 0 : index
    %306 = vector.load %arg7[%c0_109, %c0_110] : memref<1x512xf32, #tpu.memory_space<vmem>>, vector<1x512xf32>
    %307 = vector.broadcast %306 : vector<1x512xf32> to vector<64x512xf32>
    %308 = arith.addf %305, %307 : vector<64x512xf32>
    %309 = vector.shape_cast %308 : vector<64x512xf32> to vector<8x8x512xf32>
    %c0_111 = arith.constant 0 : index
    %c0_112 = arith.constant 0 : index
    %c0_113 = arith.constant 0 : index
    %310 = vector.load %arg12[%c0_111, %c0_112, %c0_113] : memref<8x8x512xf32, #tpu.memory_space<vmem>>, vector<8x8x512xf32>
    tpu.vector_store %arg12[%c0_111, %c0_112, %c0_113], %309 {strides = array<i32>} : memref<8x8x512xf32, #tpu.memory_space<vmem>>, vector<8x8x512xf32>,
    %c1 = arith.constant 1 : index
    %c0_114 = arith.constant 0 : index
    %c0_115 = arith.constant 0 : index
    %311 = vector.load %arg9[%c1, %c0_114, %c0_115] : memref<2x8x128xf32, #tpu.memory_space<vmem>>, vector<1x8x128xf32>
    %312 = vector.shape_cast %311 : vector<1x8x128xf32> to vector<8x128xf32>
    %c1_116 = arith.constant 1 : index
    %c0_117 = arith.constant 0 : index
    %c0_118 = arith.constant 0 : index
    %313 = vector.load %arg10[%c1_116, %c0_117, %c0_118] : memref<2x8x128xf32, #tpu.memory_space<vmem>>, vector<1x8x128xf32>
    %314 = vector.shape_cast %313 : vector<1x8x128xf32> to vector<8x128xf32>
    %c0_i32_119 = arith.constant 0 : i32
    %c0_120 = arith.constant 0 : index
    %c0_121 = arith.constant 0 : index
    %315 = vector.load %arg5[%c0_120, %c0_121] : memref<128x512xf32, #tpu.memory_space<vmem>>, vector<128x512xf32>
    %316 = arith.index_cast %c0_i32_119 : i32 to index
    %c0_122 = arith.constant 0 : index
    %c0_123 = arith.constant 0 : index
    %317 = vector.load %arg12[%316, %c0_122, %c0_123] : memref<8x8x512xf32, #tpu.memory_space<vmem>>, vector<1x8x512xf32>
    %318 = vector.shape_cast %317 : vector<1x8x512xf32> to vector<8x512xf32>
    %cst_124 = arith.constant dense<0.000000e+00> : vector<8x512xf32>
    %319 = tpu.matmul %312, %315, %cst_124 {dimension_numbers = #tpu.dot_dimension_numbers<[1], [0], [0], [1], [0, 0, 1, 1], [], []>} : vector<8x128xf32>, vector<128x512xf32>, vector<8x512xf32> -> vector<8x512xf32>
    %320 = arith.addf %318, %319 : vector<8x512xf32>
    %321 = vector.extract_strided_slice %320 {offsets = [0, 0], sizes = [8, 128], strides = [1, 1]} : vector<8x512xf32> to vector<8x128xf32>
    %322 = arith.negf %321 : vector<8x128xf32>
    %323 = math.exp %322 : vector<8x128xf32>
    %cst_125 = arith.constant 1.000000e+00 : f32
    %324 = vector.broadcast %cst_125 : f32 to vector<8x128xf32>
    %325 = arith.addf %324, %323 : vector<8x128xf32>
    %326 = arith.divf %324, %325 : vector<8x128xf32>
    %327 = vector.extract_strided_slice %320 {offsets = [0, 128], sizes = [8, 128], strides = [1, 1]} : vector<8x512xf32> to vector<8x128xf32>
    %328 = arith.negf %327 : vector<8x128xf32>
    %329 = math.exp %328 : vector<8x128xf32>
    %cst_126 = arith.constant 1.000000e+00 : f32
    %330 = vector.broadcast %cst_126 : f32 to vector<8x128xf32>
    %331 = arith.addf %330, %329 : vector<8x128xf32>
    %332 = arith.divf %330, %331 : vector<8x128xf32>
    %333 = vector.extract_strided_slice %320 {offsets = [0, 256], sizes = [8, 128], strides = [1, 1]} : vector<8x512xf32> to vector<8x128xf32>
    %334 = math.tanh %333 : vector<8x128xf32>
    %335 = vector.extract_strided_slice %320 {offsets = [0, 384], sizes = [8, 128], strides = [1, 1]} : vector<8x512xf32> to vector<8x128xf32>
    %336 = arith.negf %335 : vector<8x128xf32>
    %337 = math.exp %336 : vector<8x128xf32>
    %cst_127 = arith.constant 1.000000e+00 : f32
    %338 = vector.broadcast %cst_127 : f32 to vector<8x128xf32>
    %339 = arith.addf %338, %337 : vector<8x128xf32>
    %340 = arith.divf %338, %339 : vector<8x128xf32>
    %341 = arith.mulf %332, %314 : vector<8x128xf32>
    %342 = arith.mulf %326, %334 : vector<8x128xf32>
    %343 = arith.addf %341, %342 : vector<8x128xf32>
    %344 = math.tanh %343 : vector<8x128xf32>
    %345 = arith.mulf %340, %344 : vector<8x128xf32>
    %346 = arith.index_cast %c0_i32_119 : i32 to index
    %c0_128 = arith.constant 0 : index
    %c0_129 = arith.constant 0 : index
    %347 = vector.load %arg8[%346, %c0_128, %c0_129] : memref<8x8x128xf32, #tpu.memory_space<vmem>>, vector<1x8x128xf32>
    %348 = vector.shape_cast %347 : vector<1x8x128xf32> to vector<8x128xf32>
    %349 = vector.shape_cast %345 : vector<8x128xf32> to vector<1x8x128xf32>
    tpu.vector_store %arg8[%346, %c0_128, %c0_129], %349 {strides = array<i32>} : memref<8x8x128xf32, #tpu.memory_space<vmem>>, vector<1x8x128xf32>,
    %c1_i32_130 = arith.constant 1 : i32
    %c0_131 = arith.constant 0 : index
    %c0_132 = arith.constant 0 : index
    %350 = vector.load %arg5[%c0_131, %c0_132] : memref<128x512xf32, #tpu.memory_space<vmem>>, vector<128x512xf32>
    %351 = arith.index_cast %c1_i32_130 : i32 to index
    %c0_133 = arith.constant 0 : index
    %c0_134 = arith.constant 0 : index
    %352 = vector.load %arg12[%351, %c0_133, %c0_134] : memref<8x8x512xf32, #tpu.memory_space<vmem>>, vector<1x8x512xf32>
    %353 = vector.shape_cast %352 : vector<1x8x512xf32> to vector<8x512xf32>
    %cst_135 = arith.constant dense<0.000000e+00> : vector<8x512xf32>
    %354 = tpu.matmul %345, %350, %cst_135 {dimension_numbers = #tpu.dot_dimension_numbers<[1], [0], [0], [1], [0, 0, 1, 1], [], []>} : vector<8x128xf32>, vector<128x512xf32>, vector<8x512xf32> -> vector<8x512xf32>
    %355 = arith.addf %353, %354 : vector<8x512xf32>
    %356 = vector.extract_strided_slice %355 {offsets = [0, 0], sizes = [8, 128], strides = [1, 1]} : vector<8x512xf32> to vector<8x128xf32>
    %357 = arith.negf %356 : vector<8x128xf32>
    %358 = math.exp %357 : vector<8x128xf32>
    %cst_136 = arith.constant 1.000000e+00 : f32
    %359 = vector.broadcast %cst_136 : f32 to vector<8x128xf32>
    %360 = arith.addf %359, %358 : vector<8x128xf32>
    %361 = arith.divf %359, %360 : vector<8x128xf32>
    %362 = vector.extract_strided_slice %355 {offsets = [0, 128], sizes = [8, 128], strides = [1, 1]} : vector<8x512xf32> to vector<8x128xf32>
    %363 = arith.negf %362 : vector<8x128xf32>
    %364 = math.exp %363 : vector<8x128xf32>
    %cst_137 = arith.constant 1.000000e+00 : f32
    %365 = vector.broadcast %cst_137 : f32 to vector<8x128xf32>
    %366 = arith.addf %365, %364 : vector<8x128xf32>
    %367 = arith.divf %365, %366 : vector<8x128xf32>
    %368 = vector.extract_strided_slice %355 {offsets = [0, 256], sizes = [8, 128], strides = [1, 1]} : vector<8x512xf32> to vector<8x128xf32>
    %369 = math.tanh %368 : vector<8x128xf32>
    %370 = vector.extract_strided_slice %355 {offsets = [0, 384], sizes = [8, 128], strides = [1, 1]} : vector<8x512xf32> to vector<8x128xf32>
    %371 = arith.negf %370 : vector<8x128xf32>
    %372 = math.exp %371 : vector<8x128xf32>
    %cst_138 = arith.constant 1.000000e+00 : f32
    %373 = vector.broadcast %cst_138 : f32 to vector<8x128xf32>
    %374 = arith.addf %373, %372 : vector<8x128xf32>
    %375 = arith.divf %373, %374 : vector<8x128xf32>
    %376 = arith.mulf %367, %343 : vector<8x128xf32>
    %377 = arith.mulf %361, %369 : vector<8x128xf32>
    %378 = arith.addf %376, %377 : vector<8x128xf32>
    %379 = math.tanh %378 : vector<8x128xf32>
    %380 = arith.mulf %375, %379 : vector<8x128xf32>
    %381 = arith.index_cast %c1_i32_130 : i32 to index
    %c0_139 = arith.constant 0 : index
    %c0_140 = arith.constant 0 : index
    %382 = vector.load %arg8[%381, %c0_139, %c0_140] : memref<8x8x128xf32, #tpu.memory_space<vmem>>, vector<1x8x128xf32>
    %383 = vector.shape_cast %382 : vector<1x8x128xf32> to vector<8x128xf32>
    %384 = vector.shape_cast %380 : vector<8x128xf32> to vector<1x8x128xf32>
    tpu.vector_store %arg8[%381, %c0_139, %c0_140], %384 {strides = array<i32>} : memref<8x8x128xf32, #tpu.memory_space<vmem>>, vector<1x8x128xf32>,
    %c2_i32_141 = arith.constant 2 : i32
    %c0_142 = arith.constant 0 : index
    %c0_143 = arith.constant 0 : index
    %385 = vector.load %arg5[%c0_142, %c0_143] : memref<128x512xf32, #tpu.memory_space<vmem>>, vector<128x512xf32>
    %386 = arith.index_cast %c2_i32_141 : i32 to index
    %c0_144 = arith.constant 0 : index
    %c0_145 = arith.constant 0 : index
    %387 = vector.load %arg12[%386, %c0_144, %c0_145] : memref<8x8x512xf32, #tpu.memory_space<vmem>>, vector<1x8x512xf32>
    %388 = vector.shape_cast %387 : vector<1x8x512xf32> to vector<8x512xf32>
    %cst_146 = arith.constant dense<0.000000e+00> : vector<8x512xf32>
    %389 = tpu.matmul %380, %385, %cst_146 {dimension_numbers = #tpu.dot_dimension_numbers<[1], [0], [0], [1], [0, 0, 1, 1], [], []>} : vector<8x128xf32>, vector<128x512xf32>, vector<8x512xf32> -> vector<8x512xf32>
    %390 = arith.addf %388, %389 : vector<8x512xf32>
    %391 = vector.extract_strided_slice %390 {offsets = [0, 0], sizes = [8, 128], strides = [1, 1]} : vector<8x512xf32> to vector<8x128xf32>
    %392 = arith.negf %391 : vector<8x128xf32>
    %393 = math.exp %392 : vector<8x128xf32>
    %cst_147 = arith.constant 1.000000e+00 : f32
    %394 = vector.broadcast %cst_147 : f32 to vector<8x128xf32>
    %395 = arith.addf %394, %393 : vector<8x128xf32>
    %396 = arith.divf %394, %395 : vector<8x128xf32>
    %397 = vector.extract_strided_slice %390 {offsets = [0, 128], sizes = [8, 128], strides = [1, 1]} : vector<8x512xf32> to vector<8x128xf32>
    %398 = arith.negf %397 : vector<8x128xf32>
    %399 = math.exp %398 : vector<8x128xf32>
    %cst_148 = arith.constant 1.000000e+00 : f32
    %400 = vector.broadcast %cst_148 : f32 to vector<8x128xf32>
    %401 = arith.addf %400, %399 : vector<8x128xf32>
    %402 = arith.divf %400, %401 : vector<8x128xf32>
    %403 = vector.extract_strided_slice %390 {offsets = [0, 256], sizes = [8, 128], strides = [1, 1]} : vector<8x512xf32> to vector<8x128xf32>
    %404 = math.tanh %403 : vector<8x128xf32>
    %405 = vector.extract_strided_slice %390 {offsets = [0, 384], sizes = [8, 128], strides = [1, 1]} : vector<8x512xf32> to vector<8x128xf32>
    %406 = arith.negf %405 : vector<8x128xf32>
    %407 = math.exp %406 : vector<8x128xf32>
    %cst_149 = arith.constant 1.000000e+00 : f32
    %408 = vector.broadcast %cst_149 : f32 to vector<8x128xf32>
    %409 = arith.addf %408, %407 : vector<8x128xf32>
    %410 = arith.divf %408, %409 : vector<8x128xf32>
    %411 = arith.mulf %402, %378 : vector<8x128xf32>
    %412 = arith.mulf %396, %404 : vector<8x128xf32>
    %413 = arith.addf %411, %412 : vector<8x128xf32>
    %414 = math.tanh %413 : vector<8x128xf32>
    %415 = arith.mulf %410, %414 : vector<8x128xf32>
    %416 = arith.index_cast %c2_i32_141 : i32 to index
    %c0_150 = arith.constant 0 : index
    %c0_151 = arith.constant 0 : index
    %417 = vector.load %arg8[%416, %c0_150, %c0_151] : memref<8x8x128xf32, #tpu.memory_space<vmem>>, vector<1x8x128xf32>
    %418 = vector.shape_cast %417 : vector<1x8x128xf32> to vector<8x128xf32>
    %419 = vector.shape_cast %415 : vector<8x128xf32> to vector<1x8x128xf32>
    tpu.vector_store %arg8[%416, %c0_150, %c0_151], %419 {strides = array<i32>} : memref<8x8x128xf32, #tpu.memory_space<vmem>>, vector<1x8x128xf32>,
    %c3_i32_152 = arith.constant 3 : i32
    %c0_153 = arith.constant 0 : index
    %c0_154 = arith.constant 0 : index
    %420 = vector.load %arg5[%c0_153, %c0_154] : memref<128x512xf32, #tpu.memory_space<vmem>>, vector<128x512xf32>
    %421 = arith.index_cast %c3_i32_152 : i32 to index
    %c0_155 = arith.constant 0 : index
    %c0_156 = arith.constant 0 : index
    %422 = vector.load %arg12[%421, %c0_155, %c0_156] : memref<8x8x512xf32, #tpu.memory_space<vmem>>, vector<1x8x512xf32>
    %423 = vector.shape_cast %422 : vector<1x8x512xf32> to vector<8x512xf32>
    %cst_157 = arith.constant dense<0.000000e+00> : vector<8x512xf32>
    %424 = tpu.matmul %415, %420, %cst_157 {dimension_numbers = #tpu.dot_dimension_numbers<[1], [0], [0], [1], [0, 0, 1, 1], [], []>} : vector<8x128xf32>, vector<128x512xf32>, vector<8x512xf32> -> vector<8x512xf32>
    %425 = arith.addf %423, %424 : vector<8x512xf32>
    %426 = vector.extract_strided_slice %425 {offsets = [0, 0], sizes = [8, 128], strides = [1, 1]} : vector<8x512xf32> to vector<8x128xf32>
    %427 = arith.negf %426 : vector<8x128xf32>
    %428 = math.exp %427 : vector<8x128xf32>
    %cst_158 = arith.constant 1.000000e+00 : f32
    %429 = vector.broadcast %cst_158 : f32 to vector<8x128xf32>
    %430 = arith.addf %429, %428 : vector<8x128xf32>
    %431 = arith.divf %429, %430 : vector<8x128xf32>
    %432 = vector.extract_strided_slice %425 {offsets = [0, 128], sizes = [8, 128], strides = [1, 1]} : vector<8x512xf32> to vector<8x128xf32>
    %433 = arith.negf %432 : vector<8x128xf32>
    %434 = math.exp %433 : vector<8x128xf32>
    %cst_159 = arith.constant 1.000000e+00 : f32
    %435 = vector.broadcast %cst_159 : f32 to vector<8x128xf32>
    %436 = arith.addf %435, %434 : vector<8x128xf32>
    %437 = arith.divf %435, %436 : vector<8x128xf32>
    %438 = vector.extract_strided_slice %425 {offsets = [0, 256], sizes = [8, 128], strides = [1, 1]} : vector<8x512xf32> to vector<8x128xf32>
    %439 = math.tanh %438 : vector<8x128xf32>
    %440 = vector.extract_strided_slice %425 {offsets = [0, 384], sizes = [8, 128], strides = [1, 1]} : vector<8x512xf32> to vector<8x128xf32>
    %441 = arith.negf %440 : vector<8x128xf32>
    %442 = math.exp %441 : vector<8x128xf32>
    %cst_160 = arith.constant 1.000000e+00 : f32
    %443 = vector.broadcast %cst_160 : f32 to vector<8x128xf32>
    %444 = arith.addf %443, %442 : vector<8x128xf32>
    %445 = arith.divf %443, %444 : vector<8x128xf32>
    %446 = arith.mulf %437, %413 : vector<8x128xf32>
    %447 = arith.mulf %431, %439 : vector<8x128xf32>
    %448 = arith.addf %446, %447 : vector<8x128xf32>
    %449 = math.tanh %448 : vector<8x128xf32>
    %450 = arith.mulf %445, %449 : vector<8x128xf32>
    %451 = arith.index_cast %c3_i32_152 : i32 to index
    %c0_161 = arith.constant 0 : index
    %c0_162 = arith.constant 0 : index
    %452 = vector.load %arg8[%451, %c0_161, %c0_162] : memref<8x8x128xf32, #tpu.memory_space<vmem>>, vector<1x8x128xf32>
    %453 = vector.shape_cast %452 : vector<1x8x128xf32> to vector<8x128xf32>
    %454 = vector.shape_cast %450 : vector<8x128xf32> to vector<1x8x128xf32>
    tpu.vector_store %arg8[%451, %c0_161, %c0_162], %454 {strides = array<i32>} : memref<8x8x128xf32, #tpu.memory_space<vmem>>, vector<1x8x128xf32>,
    %c4_i32_163 = arith.constant 4 : i32
    %c0_164 = arith.constant 0 : index
    %c0_165 = arith.constant 0 : index
    %455 = vector.load %arg5[%c0_164, %c0_165] : memref<128x512xf32, #tpu.memory_space<vmem>>, vector<128x512xf32>
    %456 = arith.index_cast %c4_i32_163 : i32 to index
    %c0_166 = arith.constant 0 : index
    %c0_167 = arith.constant 0 : index
    %457 = vector.load %arg12[%456, %c0_166, %c0_167] : memref<8x8x512xf32, #tpu.memory_space<vmem>>, vector<1x8x512xf32>
    %458 = vector.shape_cast %457 : vector<1x8x512xf32> to vector<8x512xf32>
    %cst_168 = arith.constant dense<0.000000e+00> : vector<8x512xf32>
    %459 = tpu.matmul %450, %455, %cst_168 {dimension_numbers = #tpu.dot_dimension_numbers<[1], [0], [0], [1], [0, 0, 1, 1], [], []>} : vector<8x128xf32>, vector<128x512xf32>, vector<8x512xf32> -> vector<8x512xf32>
    %460 = arith.addf %458, %459 : vector<8x512xf32>
    %461 = vector.extract_strided_slice %460 {offsets = [0, 0], sizes = [8, 128], strides = [1, 1]} : vector<8x512xf32> to vector<8x128xf32>
    %462 = arith.negf %461 : vector<8x128xf32>
    %463 = math.exp %462 : vector<8x128xf32>
    %cst_169 = arith.constant 1.000000e+00 : f32
    %464 = vector.broadcast %cst_169 : f32 to vector<8x128xf32>
    %465 = arith.addf %464, %463 : vector<8x128xf32>
    %466 = arith.divf %464, %465 : vector<8x128xf32>
    %467 = vector.extract_strided_slice %460 {offsets = [0, 128], sizes = [8, 128], strides = [1, 1]} : vector<8x512xf32> to vector<8x128xf32>
    %468 = arith.negf %467 : vector<8x128xf32>
    %469 = math.exp %468 : vector<8x128xf32>
    %cst_170 = arith.constant 1.000000e+00 : f32
    %470 = vector.broadcast %cst_170 : f32 to vector<8x128xf32>
    %471 = arith.addf %470, %469 : vector<8x128xf32>
    %472 = arith.divf %470, %471 : vector<8x128xf32>
    %473 = vector.extract_strided_slice %460 {offsets = [0, 256], sizes = [8, 128], strides = [1, 1]} : vector<8x512xf32> to vector<8x128xf32>
    %474 = math.tanh %473 : vector<8x128xf32>
    %475 = vector.extract_strided_slice %460 {offsets = [0, 384], sizes = [8, 128], strides = [1, 1]} : vector<8x512xf32> to vector<8x128xf32>
    %476 = arith.negf %475 : vector<8x128xf32>
    %477 = math.exp %476 : vector<8x128xf32>
    %cst_171 = arith.constant 1.000000e+00 : f32
    %478 = vector.broadcast %cst_171 : f32 to vector<8x128xf32>
    %479 = arith.addf %478, %477 : vector<8x128xf32>
    %480 = arith.divf %478, %479 : vector<8x128xf32>
    %481 = arith.mulf %472, %448 : vector<8x128xf32>
    %482 = arith.mulf %466, %474 : vector<8x128xf32>
    %483 = arith.addf %481, %482 : vector<8x128xf32>
    %484 = math.tanh %483 : vector<8x128xf32>
    %485 = arith.mulf %480, %484 : vector<8x128xf32>
    %486 = arith.index_cast %c4_i32_163 : i32 to index
    %c0_172 = arith.constant 0 : index
    %c0_173 = arith.constant 0 : index
    %487 = vector.load %arg8[%486, %c0_172, %c0_173] : memref<8x8x128xf32, #tpu.memory_space<vmem>>, vector<1x8x128xf32>
    %488 = vector.shape_cast %487 : vector<1x8x128xf32> to vector<8x128xf32>
    %489 = vector.shape_cast %485 : vector<8x128xf32> to vector<1x8x128xf32>
    tpu.vector_store %arg8[%486, %c0_172, %c0_173], %489 {strides = array<i32>} : memref<8x8x128xf32, #tpu.memory_space<vmem>>, vector<1x8x128xf32>,
    %c5_i32_174 = arith.constant 5 : i32
    %c0_175 = arith.constant 0 : index
    %c0_176 = arith.constant 0 : index
    %490 = vector.load %arg5[%c0_175, %c0_176] : memref<128x512xf32, #tpu.memory_space<vmem>>, vector<128x512xf32>
    %491 = arith.index_cast %c5_i32_174 : i32 to index
    %c0_177 = arith.constant 0 : index
    %c0_178 = arith.constant 0 : index
    %492 = vector.load %arg12[%491, %c0_177, %c0_178] : memref<8x8x512xf32, #tpu.memory_space<vmem>>, vector<1x8x512xf32>
    %493 = vector.shape_cast %492 : vector<1x8x512xf32> to vector<8x512xf32>
    %cst_179 = arith.constant dense<0.000000e+00> : vector<8x512xf32>
    %494 = tpu.matmul %485, %490, %cst_179 {dimension_numbers = #tpu.dot_dimension_numbers<[1], [0], [0], [1], [0, 0, 1, 1], [], []>} : vector<8x128xf32>, vector<128x512xf32>, vector<8x512xf32> -> vector<8x512xf32>
    %495 = arith.addf %493, %494 : vector<8x512xf32>
    %496 = vector.extract_strided_slice %495 {offsets = [0, 0], sizes = [8, 128], strides = [1, 1]} : vector<8x512xf32> to vector<8x128xf32>
    %497 = arith.negf %496 : vector<8x128xf32>
    %498 = math.exp %497 : vector<8x128xf32>
    %cst_180 = arith.constant 1.000000e+00 : f32
    %499 = vector.broadcast %cst_180 : f32 to vector<8x128xf32>
    %500 = arith.addf %499, %498 : vector<8x128xf32>
    %501 = arith.divf %499, %500 : vector<8x128xf32>
    %502 = vector.extract_strided_slice %495 {offsets = [0, 128], sizes = [8, 128], strides = [1, 1]} : vector<8x512xf32> to vector<8x128xf32>
    %503 = arith.negf %502 : vector<8x128xf32>
    %504 = math.exp %503 : vector<8x128xf32>
    %cst_181 = arith.constant 1.000000e+00 : f32
    %505 = vector.broadcast %cst_181 : f32 to vector<8x128xf32>
    %506 = arith.addf %505, %504 : vector<8x128xf32>
    %507 = arith.divf %505, %506 : vector<8x128xf32>
    %508 = vector.extract_strided_slice %495 {offsets = [0, 256], sizes = [8, 128], strides = [1, 1]} : vector<8x512xf32> to vector<8x128xf32>
    %509 = math.tanh %508 : vector<8x128xf32>
    %510 = vector.extract_strided_slice %495 {offsets = [0, 384], sizes = [8, 128], strides = [1, 1]} : vector<8x512xf32> to vector<8x128xf32>
    %511 = arith.negf %510 : vector<8x128xf32>
    %512 = math.exp %511 : vector<8x128xf32>
    %cst_182 = arith.constant 1.000000e+00 : f32
    %513 = vector.broadcast %cst_182 : f32 to vector<8x128xf32>
    %514 = arith.addf %513, %512 : vector<8x128xf32>
    %515 = arith.divf %513, %514 : vector<8x128xf32>
    %516 = arith.mulf %507, %483 : vector<8x128xf32>
    %517 = arith.mulf %501, %509 : vector<8x128xf32>
    %518 = arith.addf %516, %517 : vector<8x128xf32>
    %519 = math.tanh %518 : vector<8x128xf32>
    %520 = arith.mulf %515, %519 : vector<8x128xf32>
    %521 = arith.index_cast %c5_i32_174 : i32 to index
    %c0_183 = arith.constant 0 : index
    %c0_184 = arith.constant 0 : index
    %522 = vector.load %arg8[%521, %c0_183, %c0_184] : memref<8x8x128xf32, #tpu.memory_space<vmem>>, vector<1x8x128xf32>
    %523 = vector.shape_cast %522 : vector<1x8x128xf32> to vector<8x128xf32>
    %524 = vector.shape_cast %520 : vector<8x128xf32> to vector<1x8x128xf32>
    tpu.vector_store %arg8[%521, %c0_183, %c0_184], %524 {strides = array<i32>} : memref<8x8x128xf32, #tpu.memory_space<vmem>>, vector<1x8x128xf32>,
    %c6_i32_185 = arith.constant 6 : i32
    %c0_186 = arith.constant 0 : index
    %c0_187 = arith.constant 0 : index
    %525 = vector.load %arg5[%c0_186, %c0_187] : memref<128x512xf32, #tpu.memory_space<vmem>>, vector<128x512xf32>
    %526 = arith.index_cast %c6_i32_185 : i32 to index
    %c0_188 = arith.constant 0 : index
    %c0_189 = arith.constant 0 : index
    %527 = vector.load %arg12[%526, %c0_188, %c0_189] : memref<8x8x512xf32, #tpu.memory_space<vmem>>, vector<1x8x512xf32>
    %528 = vector.shape_cast %527 : vector<1x8x512xf32> to vector<8x512xf32>
    %cst_190 = arith.constant dense<0.000000e+00> : vector<8x512xf32>
    %529 = tpu.matmul %520, %525, %cst_190 {dimension_numbers = #tpu.dot_dimension_numbers<[1], [0], [0], [1], [0, 0, 1, 1], [], []>} : vector<8x128xf32>, vector<128x512xf32>, vector<8x512xf32> -> vector<8x512xf32>
    %530 = arith.addf %528, %529 : vector<8x512xf32>
    %531 = vector.extract_strided_slice %530 {offsets = [0, 0], sizes = [8, 128], strides = [1, 1]} : vector<8x512xf32> to vector<8x128xf32>
    %532 = arith.negf %531 : vector<8x128xf32>
    %533 = math.exp %532 : vector<8x128xf32>
    %cst_191 = arith.constant 1.000000e+00 : f32
    %534 = vector.broadcast %cst_191 : f32 to vector<8x128xf32>
    %535 = arith.addf %534, %533 : vector<8x128xf32>
    %536 = arith.divf %534, %535 : vector<8x128xf32>
    %537 = vector.extract_strided_slice %530 {offsets = [0, 128], sizes = [8, 128], strides = [1, 1]} : vector<8x512xf32> to vector<8x128xf32>
    %538 = arith.negf %537 : vector<8x128xf32>
    %539 = math.exp %538 : vector<8x128xf32>
    %cst_192 = arith.constant 1.000000e+00 : f32
    %540 = vector.broadcast %cst_192 : f32 to vector<8x128xf32>
    %541 = arith.addf %540, %539 : vector<8x128xf32>
    %542 = arith.divf %540, %541 : vector<8x128xf32>
    %543 = vector.extract_strided_slice %530 {offsets = [0, 256], sizes = [8, 128], strides = [1, 1]} : vector<8x512xf32> to vector<8x128xf32>
    %544 = math.tanh %543 : vector<8x128xf32>
    %545 = vector.extract_strided_slice %530 {offsets = [0, 384], sizes = [8, 128], strides = [1, 1]} : vector<8x512xf32> to vector<8x128xf32>
    %546 = arith.negf %545 : vector<8x128xf32>
    %547 = math.exp %546 : vector<8x128xf32>
    %cst_193 = arith.constant 1.000000e+00 : f32
    %548 = vector.broadcast %cst_193 : f32 to vector<8x128xf32>
    %549 = arith.addf %548, %547 : vector<8x128xf32>
    %550 = arith.divf %548, %549 : vector<8x128xf32>
    %551 = arith.mulf %542, %518 : vector<8x128xf32>
    %552 = arith.mulf %536, %544 : vector<8x128xf32>
    %553 = arith.addf %551, %552 : vector<8x128xf32>
    %554 = math.tanh %553 : vector<8x128xf32>
    %555 = arith.mulf %550, %554 : vector<8x128xf32>
    %556 = arith.index_cast %c6_i32_185 : i32 to index
    %c0_194 = arith.constant 0 : index
    %c0_195 = arith.constant 0 : index
    %557 = vector.load %arg8[%556, %c0_194, %c0_195] : memref<8x8x128xf32, #tpu.memory_space<vmem>>, vector<1x8x128xf32>
    %558 = vector.shape_cast %557 : vector<1x8x128xf32> to vector<8x128xf32>
    %559 = vector.shape_cast %555 : vector<8x128xf32> to vector<1x8x128xf32>
    tpu.vector_store %arg8[%556, %c0_194, %c0_195], %559 {strides = array<i32>} : memref<8x8x128xf32, #tpu.memory_space<vmem>>, vector<1x8x128xf32>,
    %c7_i32_196 = arith.constant 7 : i32
    %c0_197 = arith.constant 0 : index
    %c0_198 = arith.constant 0 : index
    %560 = vector.load %arg5[%c0_197, %c0_198] : memref<128x512xf32, #tpu.memory_space<vmem>>, vector<128x512xf32>
    %561 = arith.index_cast %c7_i32_196 : i32 to index
    %c0_199 = arith.constant 0 : index
    %c0_200 = arith.constant 0 : index
    %562 = vector.load %arg12[%561, %c0_199, %c0_200] : memref<8x8x512xf32, #tpu.memory_space<vmem>>, vector<1x8x512xf32>
    %563 = vector.shape_cast %562 : vector<1x8x512xf32> to vector<8x512xf32>
    %cst_201 = arith.constant dense<0.000000e+00> : vector<8x512xf32>
    %564 = tpu.matmul %555, %560, %cst_201 {dimension_numbers = #tpu.dot_dimension_numbers<[1], [0], [0], [1], [0, 0, 1, 1], [], []>} : vector<8x128xf32>, vector<128x512xf32>, vector<8x512xf32> -> vector<8x512xf32>
    %565 = arith.addf %563, %564 : vector<8x512xf32>
    %566 = vector.extract_strided_slice %565 {offsets = [0, 0], sizes = [8, 128], strides = [1, 1]} : vector<8x512xf32> to vector<8x128xf32>
    %567 = arith.negf %566 : vector<8x128xf32>
    %568 = math.exp %567 : vector<8x128xf32>
    %cst_202 = arith.constant 1.000000e+00 : f32
    %569 = vector.broadcast %cst_202 : f32 to vector<8x128xf32>
    %570 = arith.addf %569, %568 : vector<8x128xf32>
    %571 = arith.divf %569, %570 : vector<8x128xf32>
    %572 = vector.extract_strided_slice %565 {offsets = [0, 128], sizes = [8, 128], strides = [1, 1]} : vector<8x512xf32> to vector<8x128xf32>
    %573 = arith.negf %572 : vector<8x128xf32>
    %574 = math.exp %573 : vector<8x128xf32>
    %cst_203 = arith.constant 1.000000e+00 : f32
    %575 = vector.broadcast %cst_203 : f32 to vector<8x128xf32>
    %576 = arith.addf %575, %574 : vector<8x128xf32>
    %577 = arith.divf %575, %576 : vector<8x128xf32>
    %578 = vector.extract_strided_slice %565 {offsets = [0, 256], sizes = [8, 128], strides = [1, 1]} : vector<8x512xf32> to vector<8x128xf32>
    %579 = math.tanh %578 : vector<8x128xf32>
    %580 = vector.extract_strided_slice %565 {offsets = [0, 384], sizes = [8, 128], strides = [1, 1]} : vector<8x512xf32> to vector<8x128xf32>
    %581 = arith.negf %580 : vector<8x128xf32>
    %582 = math.exp %581 : vector<8x128xf32>
    %cst_204 = arith.constant 1.000000e+00 : f32
    %583 = vector.broadcast %cst_204 : f32 to vector<8x128xf32>
    %584 = arith.addf %583, %582 : vector<8x128xf32>
    %585 = arith.divf %583, %584 : vector<8x128xf32>
    %586 = arith.mulf %577, %553 : vector<8x128xf32>
    %587 = arith.mulf %571, %579 : vector<8x128xf32>
    %588 = arith.addf %586, %587 : vector<8x128xf32>
    %589 = math.tanh %588 : vector<8x128xf32>
    %590 = arith.mulf %585, %589 : vector<8x128xf32>
    %591 = arith.index_cast %c7_i32_196 : i32 to index
    %c0_205 = arith.constant 0 : index
    %c0_206 = arith.constant 0 : index
    %592 = vector.load %arg8[%591, %c0_205, %c0_206] : memref<8x8x128xf32, #tpu.memory_space<vmem>>, vector<1x8x128xf32>
    %593 = vector.shape_cast %592 : vector<1x8x128xf32> to vector<8x128xf32>
    %594 = vector.shape_cast %590 : vector<8x128xf32> to vector<1x8x128xf32>
    tpu.vector_store %arg8[%591, %c0_205, %c0_206], %594 {strides = array<i32>} : memref<8x8x128xf32, #tpu.memory_space<vmem>>, vector<1x8x128xf32>,
    %c8_i32_207 = arith.constant 8 : i32
    %c1_208 = arith.constant 1 : index
    %c0_209 = arith.constant 0 : index
    %c0_210 = arith.constant 0 : index
    %595 = vector.load %arg9[%c1_208, %c0_209, %c0_210] : memref<2x8x128xf32, #tpu.memory_space<vmem>>, vector<1x8x128xf32>
    %596 = vector.shape_cast %595 : vector<1x8x128xf32> to vector<8x128xf32>
    %597 = vector.shape_cast %590 : vector<8x128xf32> to vector<1x8x128xf32>
    tpu.vector_store %arg9[%c1_208, %c0_209, %c0_210], %597 {strides = array<i32>} : memref<2x8x128xf32, #tpu.memory_space<vmem>>, vector<1x8x128xf32>,
    %c1_211 = arith.constant 1 : index
    %c0_212 = arith.constant 0 : index
    %c0_213 = arith.constant 0 : index
    %598 = vector.load %arg10[%c1_211, %c0_212, %c0_213] : memref<2x8x128xf32, #tpu.memory_space<vmem>>, vector<1x8x128xf32>
    %599 = vector.shape_cast %598 : vector<1x8x128xf32> to vector<8x128xf32>
    %600 = vector.shape_cast %588 : vector<8x128xf32> to vector<1x8x128xf32>
    tpu.vector_store %arg10[%c1_211, %c0_212, %c0_213], %600 {strides = array<i32>} : memref<2x8x128xf32, #tpu.memory_space<vmem>>, vector<1x8x128xf32>,
    return
  }
  func.func @transform_0(%arg0: i32) -> (i32, i32, i32) {
    %c0_i32 = arith.constant 0 : i32
    %c0_i32_0 = arith.constant 0 : i32
    %c0_i32_1 = arith.constant 0 : i32
    return %arg0, %c0_i32, %c0_i32_0 : i32, i32, i32
  }
  func.func @transform_1(%arg0: i32) -> (i32, i32) {
    %c0_i32 = arith.constant 0 : i32
    %c0_i32_0 = arith.constant 0 : i32
    %c0_i32_1 = arith.constant 0 : i32
    return %c0_i32, %c0_i32_0 : i32, i32
  }
  func.func @transform_2(%arg0: i32) -> (i32, i32) {
    %c0_i32 = arith.constant 0 : i32
    %c0_i32_0 = arith.constant 0 : i32
    %c0_i32_1 = arith.constant 0 : i32
    return %c0_i32, %c0_i32_0 : i32, i32
  }
  func.func @transform_3(%arg0: i32) -> (i32, i32) {
    %c0_i32 = arith.constant 0 : i32
    %c0_i32_0 = arith.constant 0 : i32
    %c0_i32_1 = arith.constant 0 : i32
    return %c0_i32, %c0_i32_0 : i32, i32
  }
  func.func @transform_4(%arg0: i32) -> (i32, i32) {
    %c0_i32 = arith.constant 0 : i32
    %c0_i32_0 = arith.constant 0 : i32
    %c0_i32_1 = arith.constant 0 : i32
    return %c0_i32, %c0_i32_0 : i32, i32
  }
  func.func @transform_5(%arg0: i32) -> (i32, i32) {
    %c0_i32 = arith.constant 0 : i32
    %c0_i32_0 = arith.constant 0 : i32
    %c0_i32_1 = arith.constant 0 : i32
    return %c0_i32, %c0_i32_0 : i32, i32
  }
  func.func @transform_6(%arg0: i32) -> (i32, i32) {
    %c0_i32 = arith.constant 0 : i32
    %c0_i32_0 = arith.constant 0 : i32
    %c0_i32_1 = arith.constant 0 : i32
    return %c0_i32, %c0_i32_0 : i32, i32
  }
  func.func @transform_7(%arg0: i32) -> (i32, i32, i32) {
    %c0_i32 = arith.constant 0 : i32
    %c0_i32_0 = arith.constant 0 : i32
    %c0_i32_1 = arith.constant 0 : i32
    return %arg0, %c0_i32, %c0_i32_0 : i32, i32, i32
  }
}

</mosaic_0001>

<llo_original>
// kernel: lstm_forward.3
$region0: #{lstm_forward.3}
  #allocation0 [shape = 'u32[]', space=smem, size = 0x4, offset = 0x4, fixed_abs, tag = 'smem constant byte address 0x4 - core index']
  #allocation1 [shape = 'u32[144,128]{1,0:T(1,128)}', space=vmem, size = 0x12000, scoped, tag = 'internal scratch']
  %s0 = inlined_call_operand.vmem [shape: f32[8,128], index: 0, kind: input, shape index: {}]
  %s1 = inlined_call_operand.vmem [shape: f32[128,128], index: 1, kind: input, shape index: {}]
  %s2 = inlined_call_operand.vmem [shape: f32[1,128], index: 2, kind: input, shape index: {}]
  %s3 = inlined_call_operand.vmem [shape: f32[8,128], index: 3, kind: output, shape index: {}]
  %s4 = sld [smem:[#allocation0]]
  $region22: #{lstm_forward.3} parent=0
    _
  %s6 = ssub.s32 1, %s4
  %s7 = scalar_select 0, %s6, %s4
  // Predicated region
  $region2: #{lstm_forward.3} parent=0 // pred_check
    _
  $region3: #{lstm_forward.3} parent=0 // pred_check_branch
    %9 = sbr.rel (0) target = $region5
  $region4: #{lstm_forward.3} parent=0 // pred_region
    _
  $region5: #{lstm_forward.3} parent=0 // pred_fallthru
    _
  // Predicated region
  $region6: #{lstm_forward.3} parent=0 // pred_check
    _
  $region7: #{lstm_forward.3} parent=0 // pred_check_branch
    %11 = sbr.rel (0) target = $region9
  $region8: #{lstm_forward.3} parent=0 // pred_region
    _
  $region9: #{lstm_forward.3} parent=0 // pred_fallthru
    _
  // Predicated region
  $region10: #{lstm_forward.3} parent=0 // pred_check
    _
  $region11: #{lstm_forward.3} parent=0 // pred_check_branch
    %13 = sbr.rel (0) target = $region13
  $region12: #{lstm_forward.3} parent=0 // pred_region
    _
  $region13: #{lstm_forward.3} parent=0 // pred_fallthru
    _
  %v14 = vld [vmem:[%s0] sm:$0xff]
  %v15 = vld [vmem:[%s1] sm:$0xff]
  %v16 = vld [vmem:[%s1 + $0x8] sm:$0xff]
  %v17 = vld [vmem:[%s1 + $0x10] sm:$0xff]
  %v18 = vld [vmem:[%s1 + $0x18] sm:$0xff]
  %v19 = vld [vmem:[%s1 + $0x20] sm:$0xff]
  %v20 = vld [vmem:[%s1 + $0x28] sm:$0xff]
  %v21 = vld [vmem:[%s1 + $0x30] sm:$0xff]
  %v22 = vld [vmem:[%s1 + $0x38] sm:$0xff]
  %v23 = vld [vmem:[%s1 + $0x40] sm:$0xff]
  %v24 = vld [vmem:[%s1 + $0x48] sm:$0xff]
  %v25 = vld [vmem:[%s1 + $0x50] sm:$0xff]
  %v26 = vld [vmem:[%s1 + $0x58] sm:$0xff]
  %v27 = vld [vmem:[%s1 + $0x60] sm:$0xff]
  %v28 = vld [vmem:[%s1 + $0x68] sm:$0xff]
  %v29 = vld [vmem:[%s1 + $0x70] sm:$0xff]
  %v30 = vld [vmem:[%s1 + $0x78] sm:$0xff]
  %v31 = vld [vmem:[%s2] sm:$0x1]
  %v33 = vlaneseq
  %v34 = vshrl.u32 %v33, 7
  %v35 = vsub.s32 0, %v34
  %v36 = vrot.slane %v31, %v35
  %38 = vmatprep.subr.mxu0 0.0
  %39 = vmatpush1.msra.mxu0 %v15
  %40 = vmatprep.subr.mxu0 0.0
  %41 = vmatpush1.msra.mxu0 %v16
  %42 = vmatprep.subr.mxu0 0.0
  %43 = vmatpush1.msra.mxu0 %v17
  %44 = vmatprep.subr.mxu0 0.0
  %45 = vmatpush1.msra.mxu0 %v18
  %46 = vmatprep.subr.mxu0 0.0
  %47 = vmatpush1.msra.mxu0 %v19
  %48 = vmatprep.subr.mxu0 0.0
  %49 = vmatpush1.msra.mxu0 %v20
  %50 = vmatprep.subr.mxu0 0.0
  %51 = vmatpush1.msra.mxu0 %v21
  %52 = vmatprep.subr.mxu0 0.0
  %53 = vmatpush1.msra.mxu0 %v22
  %54 = vmatprep.subr.mxu0 0.0
  %55 = vmatpush1.msra.mxu0 %v23
  %56 = vmatprep.subr.mxu0 0.0
  %57 = vmatpush1.msra.mxu0 %v24
  %58 = vmatprep.subr.mxu0 0.0
  %59 = vmatpush1.msra.mxu0 %v25
  %60 = vmatprep.subr.mxu0 0.0
  %61 = vmatpush1.msra.mxu0 %v26
  %62 = vmatprep.subr.mxu0 0.0
  %63 = vmatpush1.msra.mxu0 %v27
  %64 = vmatprep.subr.mxu0 0.0
  %65 = vmatpush1.msra.mxu0 %v28
  %66 = vmatprep.subr.mxu0 0.0
  %67 = vmatpush1.msra.mxu0 %v29
  %68 = vmatprep.subr.mxu0 0.0
  %69 = vmatpush1.msra.mxu0 %v30
  %70 = vmatprep.subr.mxu0 0.0
  %71 = vmatpush1.msra.mxu0 0.0
  %72 = vmatprep.subr.mxu0 0.0
  %73 = vmatpush1.msra.mxu0 0.0
  %74 = vmatprep.subr.mxu0 0.0
  %75 = vmatpush1.msra.mxu0 0.0
  %76 = vmatprep.subr.mxu0 0.0
  %77 = vmatpush1.msra.mxu0 0.0
  %78 = vmatprep.subr.mxu0 0.0
  %79 = vmatpush1.msra.mxu0 0.0
  %80 = vmatprep.subr.mxu0 0.0
  %81 = vmatpush1.msra.mxu0 0.0
  %82 = vmatprep.subr.mxu0 0.0
  %83 = vmatpush1.msra.mxu0 0.0
  %84 = vmatprep.subr.mxu0 0.0
  %85 = vmatpush1.msra.mxu0 0.0
  %86 = vmatprep.subr.mxu0 0.0
  %87 = vmatpush1.msra.mxu0 0.0
  %88 = vmatprep.subr.mxu0 0.0
  %89 = vmatpush1.msra.mxu0 0.0
  %90 = vmatprep.subr.mxu0 0.0
  %91 = vmatpush1.msra.mxu0 0.0
  %92 = vmatprep.subr.mxu0 0.0
  %93 = vmatpush1.msra.mxu0 0.0
  %94 = vmatprep.subr.mxu0 0.0
  %95 = vmatpush1.msra.mxu0 0.0
  %96 = vmatprep.subr.mxu0 0.0
  %97 = vmatpush1.msra.mxu0 0.0
  %98 = vmatprep.subr.mxu0 0.0
  %99 = vmatpush1.msra.mxu0 0.0
  %100 = vmatprep.subr.mxu0 0.0
  %101 = vmatpush1.msra.mxu0 0.0
  %102 = vmatprep.mubr.f32.mxu0 0.0
  %103 = vmatmul.mubr.f32.gmra.mrb[0].mxu0 %v14
  %v104 = vpop.f32.mrb[0].mxu0
  %v105 = vadd.f32 %v36, %v104
  %v106 = vpop.f32.mrb[0].mxu0
  %107 = vdwg.mxu0
  %108 = vst [vmem:[%s3] sm:$0xff] %v105
  // Predicated region
  $region14: #{lstm_forward.3} parent=0 // pred_check
    _
  $region15: #{lstm_forward.3} parent=0 // pred_check_branch
    %110 = sbr.rel (0) target = $region17
  $region16: #{lstm_forward.3} parent=0 // pred_region
    _
  $region17: #{lstm_forward.3} parent=0 // pred_fallthru
    _
  // Predicated region
  $region18: #{lstm_forward.3} parent=0 // pred_check
    _
  $region19: #{lstm_forward.3} parent=0 // pred_check_branch
    %112 = sbr.rel (0) target = $region21
  $region20: #{lstm_forward.3} parent=0 // pred_region
    _
  $region21: #{lstm_forward.3} parent=0 // pred_fallthru
    _

// kernel: lstm_forward.2
$region0: #{lstm_forward.2}
  #allocation0 [shape = 'u32[]', space=smem, size = 0x4, offset = 0x4, fixed_abs, tag = 'smem constant byte address 0x4 - core index']
  #allocation1 [shape = 'u32[144,128]{1,0:T(1,128)}', space=vmem, size = 0x12000, scoped, tag = 'internal scratch']
  #allocation2 [shape = 'f32[2,8,128]{2,1,0:T(8,128)}', space=vmem, size = 0x2000, scoped, tag = 'scratch operand']
  #allocation3 [shape = 'f32[2,8,128]{2,1,0:T(8,128)}', space=vmem, size = 0x2000, scoped, tag = 'scratch operand']
  #allocation4 [shape = 'f32[8,8,128]{2,1,0:T(8,128)}', space=vmem, size = 0x8000, scoped, tag = 'scratch operand']
  #allocation5 [shape = 'f32[8,8,512]{2,1,0:T(8,128)}', space=vmem, size = 0x20000, scoped, tag = 'scratch operand']
  %s0 = inlined_call_operand.vmem [shape: f32[8,8,128], index: 0, kind: input, shape index: {}]
  %s1 = inlined_call_operand.vmem [shape: f32[128,512], index: 1, kind: input, shape index: {}]
  %s2 = inlined_call_operand.vmem [shape: f32[128,512], index: 2, kind: input, shape index: {}]
  %s3 = inlined_call_operand.vmem [shape: f32[128,512], index: 3, kind: input, shape index: {}]
  %s4 = inlined_call_operand.vmem [shape: f32[128,512], index: 4, kind: input, shape index: {}]
  %s5 = inlined_call_operand.vmem [shape: f32[1,512], index: 5, kind: input, shape index: {}]
  %s6 = inlined_call_operand.vmem [shape: f32[1,512], index: 6, kind: input, shape index: {}]
  %s7 = inlined_call_operand.vmem [shape: f32[8,8,128], index: 7, kind: output, shape index: {}]
  %s8 = sld [smem:[#allocation0]]
  $region42: #{lstm_forward.2} parent=0
    _
  %s10 = ssub.s32 1, %s8
  %s11 = scalar_select 0, %s10, %s8
  // Predicated region
  $region2: #{lstm_forward.2} parent=0 // pred_check
    _
  $region3: #{lstm_forward.2} parent=0 // pred_check_branch
    %13 = sbr.rel (0) target = $region5
  $region4: #{lstm_forward.2} parent=0 // pred_region
    _
  $region5: #{lstm_forward.2} parent=0 // pred_fallthru
    _
  // Predicated region
  $region6: #{lstm_forward.2} parent=0 // pred_check
    _
  $region7: #{lstm_forward.2} parent=0 // pred_check_branch
    %15 = sbr.rel (0) target = $region9
  $region8: #{lstm_forward.2} parent=0 // pred_region
    _
  $region9: #{lstm_forward.2} parent=0 // pred_fallthru
    _
  // Predicated region
  $region10: #{lstm_forward.2} parent=0 // pred_check
    _
  $region11: #{lstm_forward.2} parent=0 // pred_check_branch
    %17 = sbr.rel (0) target = $region13
  $region12: #{lstm_forward.2} parent=0 // pred_region
    _
  $region13: #{lstm_forward.2} parent=0 // pred_fallthru
    _
  // Predicated region
  $region14: #{lstm_forward.2} parent=0 // pred_check
    _
  $region15: #{lstm_forward.2} parent=0 // pred_check_branch
    %19 = sbr.rel (0) target = $region17
  $region16: #{lstm_forward.2} parent=0 // pred_region
    _
  $region17: #{lstm_forward.2} parent=0 // pred_fallthru
    _
  // Predicated region
  $region18: #{lstm_forward.2} parent=0 // pred_check
    _
  $region19: #{lstm_forward.2} parent=0 // pred_check_branch
    %21 = sbr.rel (0) target = $region21
  $region20: #{lstm_forward.2} parent=0 // pred_region
    _
  $region21: #{lstm_forward.2} parent=0 // pred_fallthru
    _
  // Predicated region
  $region22: #{lstm_forward.2} parent=0 // pred_check
    _
  $region23: #{lstm_forward.2} parent=0 // pred_check_branch
    %23 = sbr.rel (0) target = $region25
  $region24: #{lstm_forward.2} parent=0 // pred_region
    _
  $region25: #{lstm_forward.2} parent=0 // pred_fallthru
    _
  // Predicated region
  $region26: #{lstm_forward.2} parent=0 // pred_check
    _
  $region27: #{lstm_forward.2} parent=0 // pred_check_branch
    %25 = sbr.rel (0) target = $region29
  $region28: #{lstm_forward.2} parent=0 // pred_region
    _
  $region29: #{lstm_forward.2} parent=0 // pred_fallthru
    _
  %p26 = scmp.eq.s32.totalorder 0, 0
  // Predicated region
  $region30: #{lstm_forward.2} parent=0 // pred_check
    %p27 = pneg %p26
  $region31: #{lstm_forward.2} parent=0 // pred_check_branch
    %29 = sbr.rel (%p27) target = $region33
  $region32: #{lstm_forward.2} parent=0 // pred_region
    %30 = vst [vmem:[#allocation2] sm:$0xff] 0.0
    %31 = vst [vmem:[#allocation2 + $0x8] sm:$0xff] 0.0
    %32 = vst [vmem:[#allocation3] sm:$0xff] 0.0
    %33 = vst [vmem:[#allocation3 + $0x8] sm:$0xff] 0.0
  $region33: #{lstm_forward.2} parent=0 // pred_fallthru
    _
  %v34 = vld [vmem:[%s0] sm:$0xff]
  %v35 = vld [vmem:[%s0 + $0x8] sm:$0xff]
  %v36 = vld [vmem:[%s0 + $0x10] sm:$0xff]
  %v37 = vld [vmem:[%s0 + $0x18] sm:$0xff]
  %v38 = vld [vmem:[%s0 + $0x20] sm:$0xff]
  %v39 = vld [vmem:[%s0 + $0x28] sm:$0xff]
  %v40 = vld [vmem:[%s0 + $0x30] sm:$0xff]
  %v41 = vld [vmem:[%s0 + $0x38] sm:$0xff]
  %v42 = vld [vmem:[%s1] sm:$0xff]
  %v43 = vld [vmem:[%s1 + $0x8] sm:$0xff]
  %v44 = vld [vmem:[%s1 + $0x10] sm:$0xff]
  %v45 = vld [vmem:[%s1 + $0x18] sm:$0xff]
  %v46 = vld [vmem:[%s1 + $0x20] sm:$0xff]
  %v47 = vld [vmem:[%s1 + $0x28] sm:$0xff]
  %v48 = vld [vmem:[%s1 + $0x30] sm:$0xff]
  %v49 = vld [vmem:[%s1 + $0x38] sm:$0xff]
  %v50 = vld [vmem:[%s1 + $0x40] sm:$0xff]
  %v51 = vld [vmem:[%s1 + $0x48] sm:$0xff]
  %v52 = vld [vmem:[%s1 + $0x50] sm:$0xff]
  %v53 = vld [vmem:[%s1 + $0x58] sm:$0xff]
  %v54 = vld [vmem:[%s1 + $0x60] sm:$0xff]
  %v55 = vld [vmem:[%s1 + $0x68] sm:$0xff]
  %v56 = vld [vmem:[%s1 + $0x70] sm:$0xff]
  %v57 = vld [vmem:[%s1 + $0x78] sm:$0xff]
  %v58 = vld [vmem:[%s1 + $0x80] sm:$0xff]
  %v59 = vld [vmem:[%s1 + $0x88] sm:$0xff]
  %v60 = vld [vmem:[%s1 + $0x90] sm:$0xff]
  %v61 = vld [vmem:[%s1 + $0x98] sm:$0xff]
  %v62 = vld [vmem:[%s1 + $0xa0] sm:$0xff]
  %v63 = vld [vmem:[%s1 + $0xa8] sm:$0xff]
  %v64 = vld [vmem:[%s1 + $0xb0] sm:$0xff]
  %v65 = vld [vmem:[%s1 + $0xb8] sm:$0xff]
  %v66 = vld [vmem:[%s1 + $0xc0] sm:$0xff]
  %v67 = vld [vmem:[%s1 + $0xc8] sm:$0xff]
  %v68 = vld [vmem:[%s1 + $0xd0] sm:$0xff]
  %v69 = vld [vmem:[%s1 + $0xd8] sm:$0xff]
  %v70 = vld [vmem:[%s1 + $0xe0] sm:$0xff]
  %v71 = vld [vmem:[%s1 + $0xe8] sm:$0xff]
  %v72 = vld [vmem:[%s1 + $0xf0] sm:$0xff]
  %v73 = vld [vmem:[%s1 + $0xf8] sm:$0xff]
  %v74 = vld [vmem:[%s1 + $0x100] sm:$0xff]
  %v75 = vld [vmem:[%s1 + $0x108] sm:$0xff]
  %v76 = vld [vmem:[%s1 + $0x110] sm:$0xff]
  %v77 = vld [vmem:[%s1 + $0x118] sm:$0xff]
  %v78 = vld [vmem:[%s1 + $0x120] sm:$0xff]
  %v79 = vld [vmem:[%s1 + $0x128] sm:$0xff]
  %v80 = vld [vmem:[%s1 + $0x130] sm:$0xff]
  %v81 = vld [vmem:[%s1 + $0x138] sm:$0xff]
  %v82 = vld [vmem:[%s1 + $0x140] sm:$0xff]
  %v83 = vld [vmem:[%s1 + $0x148] sm:$0xff]
  %v84 = vld [vmem:[%s1 + $0x150] sm:$0xff]
  %v85 = vld [vmem:[%s1 + $0x158] sm:$0xff]
  %v86 = vld [vmem:[%s1 + $0x160] sm:$0xff]
  %v87 = vld [vmem:[%s1 + $0x168] sm:$0xff]
  %v88 = vld [vmem:[%s1 + $0x170] sm:$0xff]
  %v89 = vld [vmem:[%s1 + $0x178] sm:$0xff]
  %v90 = vld [vmem:[%s1 + $0x180] sm:$0xff]
  %v91 = vld [vmem:[%s1 + $0x188] sm:$0xff]
  %v92 = vld [vmem:[%s1 + $0x190] sm:$0xff]
  %v93 = vld [vmem:[%s1 + $0x198] sm:$0xff]
  %v94 = vld [vmem:[%s1 + $0x1a0] sm:$0xff]
  %v95 = vld [vmem:[%s1 + $0x1a8] sm:$0xff]
  %v96 = vld [vmem:[%s1 + $0x1b0] sm:$0xff]
  %v97 = vld [vmem:[%s1 + $0x1b8] sm:$0xff]
  %v98 = vld [vmem:[%s1 + $0x1c0] sm:$0xff]
  %v99 = vld [vmem:[%s1 + $0x1c8] sm:$0xff]
  %v100 = vld [vmem:[%s1 + $0x1d0] sm:$0xff]
  %v101 = vld [vmem:[%s1 + $0x1d8] sm:$0xff]
  %v102 = vld [vmem:[%s1 + $0x1e0] sm:$0xff]
  %v103 = vld [vmem:[%s1 + $0x1e8] sm:$0xff]
  %v104 = vld [vmem:[%s1 + $0x1f0] sm:$0xff]
  %v105 = vld [vmem:[%s1 + $0x1f8] sm:$0xff]
  %v106 = vld [vmem:[%s5] sm:$0xf]
  %v108 = vlaneseq
  %v109 = vshrl.u32 %v108, 7
  %v110 = vsub.s32 0, %v109
  %v111 = vrot.slane %v106, %v110
  %v112 = vlaneseq
  %v113 = vshrl.u32 %v112, 7
  %v114 = vsub.s32 1, %v113
  %v115 = vrot.slane %v106, %v114
  %v116 = vlaneseq
  %v117 = vshrl.u32 %v116, 7
  %v118 = vsub.s32 2, %v117
  %v119 = vrot.slane %v106, %v118
  %v120 = vlaneseq
  %v121 = vshrl.u32 %v120, 7
  %v122 = vsub.s32 3, %v121
  %v123 = vrot.slane %v106, %v122
  %128 = vmatprep.subr.mxu0 %v43
  %129 = vmatpush1.msra.mxu0 %v42
  %130 = vmatprep.subr.mxu0 %v47
  %131 = vmatpush1.msra.mxu0 %v46
  %132 = vmatprep.subr.mxu0 %v51
  %133 = vmatpush1.msra.mxu0 %v50
  %134 = vmatprep.subr.mxu0 %v55
  %135 = vmatpush1.msra.mxu0 %v54
  %136 = vmatprep.subr.mxu0 %v59
  %137 = vmatpush1.msra.mxu0 %v58
  %138 = vmatprep.subr.mxu0 %v63
  %139 = vmatpush1.msra.mxu0 %v62
  %140 = vmatprep.subr.mxu0 %v67
  %141 = vmatpush1.msra.mxu0 %v66
  %142 = vmatprep.subr.mxu0 %v71
  %143 = vmatpush1.msra.mxu0 %v70
  %144 = vmatprep.subr.mxu0 %v75
  %145 = vmatpush1.msra.mxu0 %v74
  %146 = vmatprep.subr.mxu0 %v79
  %147 = vmatpush1.msra.mxu0 %v78
  %148 = vmatprep.subr.mxu0 %v83
  %149 = vmatpush1.msra.mxu0 %v82
  %150 = vmatprep.subr.mxu0 %v87
  %151 = vmatpush1.msra.mxu0 %v86
  %152 = vmatprep.subr.mxu0 %v91
  %153 = vmatpush1.msra.mxu0 %v90
  %154 = vmatprep.subr.mxu0 %v95
  %155 = vmatpush1.msra.mxu0 %v94
  %156 = vmatprep.subr.mxu0 %v99
  %157 = vmatpush1.msra.mxu0 %v98
  %158 = vmatprep.subr.mxu0 %v103
  %159 = vmatpush1.msra.mxu0 %v102
  %160 = vmatprep.subr.mxu0 0.0
  %161 = vmatpush1.msra.mxu0 0.0
  %162 = vmatprep.subr.mxu0 0.0
  %163 = vmatpush1.msra.mxu0 0.0
  %164 = vmatprep.subr.mxu0 0.0
  %165 = vmatpush1.msra.mxu0 0.0
  %166 = vmatprep.subr.mxu0 0.0
  %167 = vmatpush1.msra.mxu0 0.0
  %168 = vmatprep.subr.mxu0 0.0
  %169 = vmatpush1.msra.mxu0 0.0
  %170 = vmatprep.subr.mxu0 0.0
  %171 = vmatpush1.msra.mxu0 0.0
  %172 = vmatprep.subr.mxu0 0.0
  %173 = vmatpush1.msra.mxu0 0.0
  %174 = vmatprep.subr.mxu0 0.0
  %175 = vmatpush1.msra.mxu0 0.0
  %176 = vmatprep.subr.mxu0 0.0
  %177 = vmatpush1.msra.mxu0 0.0
  %178 = vmatprep.subr.mxu0 0.0
  %179 = vmatpush1.msra.mxu0 0.0
  %180 = vmatprep.subr.mxu0 0.0
  %181 = vmatpush1.msra.mxu0 0.0
  %182 = vmatprep.subr.mxu0 0.0
  %183 = vmatpush1.msra.mxu0 0.0
  %184 = vmatprep.subr.mxu0 0.0
  %185 = vmatpush1.msra.mxu0 0.0
  %186 = vmatprep.subr.mxu0 0.0
  %187 = vmatpush1.msra.mxu0 0.0
  %188 = vmatprep.subr.mxu0 0.0
  %189 = vmatpush1.msra.mxu0 0.0
  %190 = vmatprep.subr.mxu0 0.0
  %191 = vmatpush1.msra.mxu0 0.0
  %192 = vmatprep.mubr.f32.mxu0 0.0
  %193 = vmatmul.mubr.f32.gmra.mrb[0].mxu0 %v34
  %v194 = vpop.f32.mrb[0].mxu0
  %v195 = vadd.f32 %v111, %v194
  %v196 = vpop.f32.mrb[0].mxu0
  %v197 = vadd.f32 %v115, %v196
  %198 = vmatprep.mubr.f32.mxu0 0.0
  %199 = vmatmul.mubr.f32.gmra.mrb[0].mxu0 %v35
  %v200 = vpop.f32.mrb[0].mxu0
  %v201 = vadd.f32 %v111, %v200
  %v202 = vpop.f32.mrb[0].mxu0
  %v203 = vadd.f32 %v115, %v202
  %204 = vmatprep.mubr.f32.mxu0 0.0
  %205 = vmatmul.mubr.f32.gmra.mrb[0].mxu0 %v36
  %v206 = vpop.f32.mrb[0].mxu0
  %v207 = vadd.f32 %v111, %v206
  %v208 = vpop.f32.mrb[0].mxu0
  %v209 = vadd.f32 %v115, %v208
  %210 = vmatprep.mubr.f32.mxu0 0.0
  %211 = vmatmul.mubr.f32.gmra.mrb[0].mxu0 %v37
  %v212 = vpop.f32.mrb[0].mxu0
  %v213 = vadd.f32 %v111, %v212
  %v214 = vpop.f32.mrb[0].mxu0
  %v215 = vadd.f32 %v115, %v214
  %216 = vmatprep.mubr.f32.mxu0 0.0
  %217 = vmatmul.mubr.f32.gmra.mrb[0].mxu0 %v38
  %v218 = vpop.f32.mrb[0].mxu0
  %v219 = vadd.f32 %v111, %v218
  %v220 = vpop.f32.mrb[0].mxu0
  %v221 = vadd.f32 %v115, %v220
  %222 = vmatprep.mubr.f32.mxu0 0.0
  %223 = vmatmul.mubr.f32.gmra.mrb[0].mxu0 %v39
  %v224 = vpop.f32.mrb[0].mxu0
  %v225 = vadd.f32 %v111, %v224
  %v226 = vpop.f32.mrb[0].mxu0
  %v227 = vadd.f32 %v115, %v226
  %228 = vmatprep.mubr.f32.mxu0 0.0
  %229 = vmatmul.mubr.f32.gmra.mrb[0].mxu0 %v40
  %v230 = vpop.f32.mrb[0].mxu0
  %v231 = vadd.f32 %v111, %v230
  %v232 = vpop.f32.mrb[0].mxu0
  %v233 = vadd.f32 %v115, %v232
  %234 = vmatprep.mubr.f32.mxu0 0.0
  %235 = vmatmul.mubr.f32.gmra.mrb[0].mxu0 %v41
  %v236 = vpop.f32.mrb[0].mxu0
  %v237 = vadd.f32 %v111, %v236
  %v238 = vpop.f32.mrb[0].mxu0
  %v239 = vadd.f32 %v115, %v238
  %240 = vdwg.mxu0
  %241 = vmatprep.subr.mxu0 %v45
  %242 = vmatpush1.msra.mxu0 %v44
  %243 = vmatprep.subr.mxu0 %v49
  %244 = vmatpush1.msra.mxu0 %v48
  %245 = vmatprep.subr.mxu0 %v53
  %246 = vmatpush1.msra.mxu0 %v52
  %247 = vmatprep.subr.mxu0 %v57
  %248 = vmatpush1.msra.mxu0 %v56
  %249 = vmatprep.subr.mxu0 %v61
  %250 = vmatpush1.msra.mxu0 %v60
  %251 = vmatprep.subr.mxu0 %v65
  %252 = vmatpush1.msra.mxu0 %v64
  %253 = vmatprep.subr.mxu0 %v69
  %254 = vmatpush1.msra.mxu0 %v68
  %255 = vmatprep.subr.mxu0 %v73
  %256 = vmatpush1.msra.mxu0 %v72
  %257 = vmatprep.subr.mxu0 %v77
  %258 = vmatpush1.msra.mxu0 %v76
  %259 = vmatprep.subr.mxu0 %v81
  %260 = vmatpush1.msra.mxu0 %v80
  %261 = vmatprep.subr.mxu0 %v85
  %262 = vmatpush1.msra.mxu0 %v84
  %263 = vmatprep.subr.mxu0 %v89
  %264 = vmatpush1.msra.mxu0 %v88
  %265 = vmatprep.subr.mxu0 %v93
  %266 = vmatpush1.msra.mxu0 %v92
  %267 = vmatprep.subr.mxu0 %v97
  %268 = vmatpush1.msra.mxu0 %v96
  %269 = vmatprep.subr.mxu0 %v101
  %270 = vmatpush1.msra.mxu0 %v100
  %271 = vmatprep.subr.mxu0 %v105
  %272 = vmatpush1.msra.mxu0 %v104
  %273 = vmatprep.subr.mxu0 0.0
  %274 = vmatpush1.msra.mxu0 0.0
  %275 = vmatprep.subr.mxu0 0.0
  %276 = vmatpush1.msra.mxu0 0.0
  %277 = vmatprep.subr.mxu0 0.0
  %278 = vmatpush1.msra.mxu0 0.0
  %279 = vmatprep.subr.mxu0 0.0
  %280 = vmatpush1.msra.mxu0 0.0
  %281 = vmatprep.subr.mxu0 0.0
  %282 = vmatpush1.msra.mxu0 0.0
  %283 = vmatprep.subr.mxu0 0.0
  %284 = vmatpush1.msra.mxu0 0.0
  %285 = vmatprep.subr.mxu0 0.0
  %286 = vmatpush1.msra.mxu0 0.0
  %287 = vmatprep.subr.mxu0 0.0
  %288 = vmatpush1.msra.mxu0 0.0
  %289 = vmatprep.subr.mxu0 0.0
  %290 = vmatpush1.msra.mxu0 0.0
  %291 = vmatprep.subr.mxu0 0.0
  %292 = vmatpush1.msra.mxu0 0.0
  %293 = vmatprep.subr.mxu0 0.0
  %294 = vmatpush1.msra.mxu0 0.0
  %295 = vmatprep.subr.mxu0 0.0
  %296 = vmatpush1.msra.mxu0 0.0
  %297 = vmatprep.subr.mxu0 0.0
  %298 = vmatpush1.msra.mxu0 0.0
  %299 = vmatprep.subr.mxu0 0.0
  %300 = vmatpush1.msra.mxu0 0.0
  %301 = vmatprep.subr.mxu0 0.0
  %302 = vmatpush1.msra.mxu0 0.0
  %303 = vmatprep.subr.mxu0 0.0
  %304 = vmatpush1.msra.mxu0 0.0
  %305 = vmatprep.mubr.f32.mxu0 0.0
  %306 = vmatmul.mubr.f32.gmra.mrb[0].mxu0 %v34
  %v307 = vpop.f32.mrb[0].mxu0
  %v308 = vadd.f32 %v119, %v307
  %v309 = vpop.f32.mrb[0].mxu0
  %v310 = vadd.f32 %v123, %v309
  %311 = vmatprep.mubr.f32.mxu0 0.0
  %312 = vmatmul.mubr.f32.gmra.mrb[0].mxu0 %v35
  %v313 = vpop.f32.mrb[0].mxu0
  %v314 = vadd.f32 %v119, %v313
  %v315 = vpop.f32.mrb[0].mxu0
  %v316 = vadd.f32 %v123, %v315
  %317 = vmatprep.mubr.f32.mxu0 0.0
  %318 = vmatmul.mubr.f32.gmra.mrb[0].mxu0 %v36
  %v319 = vpop.f32.mrb[0].mxu0
  %v320 = vadd.f32 %v119, %v319
  %v321 = vpop.f32.mrb[0].mxu0
  %v322 = vadd.f32 %v123, %v321
  %323 = vmatprep.mubr.f32.mxu0 0.0
  %324 = vmatmul.mubr.f32.gmra.mrb[0].mxu0 %v37
  %v325 = vpop.f32.mrb[0].mxu0
  %v326 = vadd.f32 %v119, %v325
  %v327 = vpop.f32.mrb[0].mxu0
  %v328 = vadd.f32 %v123, %v327
  %329 = vmatprep.mubr.f32.mxu0 0.0
  %330 = vmatmul.mubr.f32.gmra.mrb[0].mxu0 %v38
  %v331 = vpop.f32.mrb[0].mxu0
  %v332 = vadd.f32 %v119, %v331
  %v333 = vpop.f32.mrb[0].mxu0
  %v334 = vadd.f32 %v123, %v333
  %335 = vmatprep.mubr.f32.mxu0 0.0
  %336 = vmatmul.mubr.f32.gmra.mrb[0].mxu0 %v39
  %v337 = vpop.f32.mrb[0].mxu0
  %v338 = vadd.f32 %v119, %v337
  %v339 = vpop.f32.mrb[0].mxu0
  %v340 = vadd.f32 %v123, %v339
  %341 = vmatprep.mubr.f32.mxu0 0.0
  %342 = vmatmul.mubr.f32.gmra.mrb[0].mxu0 %v40
  %v343 = vpop.f32.mrb[0].mxu0
  %v344 = vadd.f32 %v119, %v343
  %v345 = vpop.f32.mrb[0].mxu0
  %v346 = vadd.f32 %v123, %v345
  %347 = vmatprep.mubr.f32.mxu0 0.0
  %348 = vmatmul.mubr.f32.gmra.mrb[0].mxu0 %v41
  %v349 = vpop.f32.mrb[0].mxu0
  %v350 = vadd.f32 %v119, %v349
  %v351 = vpop.f32.mrb[0].mxu0
  %v352 = vadd.f32 %v123, %v351
  %353 = vdwg.mxu0
  %354 = vst [vmem:[#allocation5] sm:$0xff] %v195
  %355 = vst [vmem:[#allocation5 + $0x8] sm:$0xff] %v197
  %356 = vst [vmem:[#allocation5 + $0x10] sm:$0xff] %v308
  %357 = vst [vmem:[#allocation5 + $0x18] sm:$0xff] %v310
  %358 = vst [vmem:[#allocation5 + $0x20] sm:$0xff] %v201
  %359 = vst [vmem:[#allocation5 + $0x28] sm:$0xff] %v203
  %360 = vst [vmem:[#allocation5 + $0x30] sm:$0xff] %v314
  %361 = vst [vmem:[#allocation5 + $0x38] sm:$0xff] %v316
  %362 = vst [vmem:[#allocation5 + $0x40] sm:$0xff] %v207
  %363 = vst [vmem:[#allocation5 + $0x48] sm:$0xff] %v209
  %364 = vst [vmem:[#allocation5 + $0x50] sm:$0xff] %v320
  %365 = vst [vmem:[#allocation5 + $0x58] sm:$0xff] %v322
  %366 = vst [vmem:[#allocation5 + $0x60] sm:$0xff] %v213
  %367 = vst [vmem:[#allocation5 + $0x68] sm:$0xff] %v215
  %368 = vst [vmem:[#allocation5 + $0x70] sm:$0xff] %v326
  %369 = vst [vmem:[#allocation5 + $0x78] sm:$0xff] %v328
  %370 = vst [vmem:[#allocation5 + $0x80] sm:$0xff] %v219
  %371 = vst [vmem:[#allocation5 + $0x88] sm:$0xff] %v221
  %372 = vst [vmem:[#allocation5 + $0x90] sm:$0xff] %v332
  %373 = vst [vmem:[#allocation5 + $0x98] sm:$0xff] %v334
  %374 = vst [vmem:[#allocation5 + $0xa0] sm:$0xff] %v225
  %375 = vst [vmem:[#allocation5 + $0xa8] sm:$0xff] %v227
  %376 = vst [vmem:[#allocation5 + $0xb0] sm:$0xff] %v338
  %377 = vst [vmem:[#allocation5 + $0xb8] sm:$0xff] %v340
  %378 = vst [vmem:[#allocation5 + $0xc0] sm:$0xff] %v231
  %379 = vst [vmem:[#allocation5 + $0xc8] sm:$0xff] %v233
  %380 = vst [vmem:[#allocation5 + $0xd0] sm:$0xff] %v344
  %381 = vst [vmem:[#allocation5 + $0xd8] sm:$0xff] %v346
  %382 = vst [vmem:[#allocation5 + $0xe0] sm:$0xff] %v237
  %383 = vst [vmem:[#allocation5 + $0xe8] sm:$0xff] %v239
  %384 = vst [vmem:[#allocation5 + $0xf0] sm:$0xff] %v350
  %385 = vst [vmem:[#allocation5 + $0xf8] sm:$0xff] %v352
  %v386 = vld [vmem:[#allocation2] sm:$0xff]
  %v387 = vld [vmem:[#allocation3] sm:$0xff]
  %v388 = vld [vmem:[%s3] sm:$0xff]
  %v389 = vld [vmem:[%s3 + $0x8] sm:$0xff]
  %v390 = vld [vmem:[%s3 + $0x10] sm:$0xff]
  %v391 = vld [vmem:[%s3 + $0x18] sm:$0xff]
  %v392 = vld [vmem:[%s3 + $0x20] sm:$0xff]
  %v393 = vld [vmem:[%s3 + $0x28] sm:$0xff]
  %v394 = vld [vmem:[%s3 + $0x30] sm:$0xff]
  %v395 = vld [vmem:[%s3 + $0x38] sm:$0xff]
  %v396 = vld [vmem:[%s3 + $0x40] sm:$0xff]
  %v397 = vld [vmem:[%s3 + $0x48] sm:$0xff]
  %v398 = vld [vmem:[%s3 + $0x50] sm:$0xff]
  %v399 = vld [vmem:[%s3 + $0x58] sm:$0xff]
  %v400 = vld [vmem:[%s3 + $0x60] sm:$0xff]
  %v401 = vld [vmem:[%s3 + $0x68] sm:$0xff]
  %v402 = vld [vmem:[%s3 + $0x70] sm:$0xff]
  %v403 = vld [vmem:[%s3 + $0x78] sm:$0xff]
  %v404 = vld [vmem:[%s3 + $0x80] sm:$0xff]
  %v405 = vld [vmem:[%s3 + $0x88] sm:$0xff]
  %v406 = vld [vmem:[%s3 + $0x90] sm:$0xff]
  %v407 = vld [vmem:[%s3 + $0x98] sm:$0xff]
  %v408 = vld [vmem:[%s3 + $0xa0] sm:$0xff]
  %v409 = vld [vmem:[%s3 + $0xa8] sm:$0xff]
  %v410 = vld [vmem:[%s3 + $0xb0] sm:$0xff]
  %v411 = vld [vmem:[%s3 + $0xb8] sm:$0xff]
  %v412 = vld [vmem:[%s3 + $0xc0] sm:$0xff]
  %v413 = vld [vmem:[%s3 + $0xc8] sm:$0xff]
  %v414 = vld [vmem:[%s3 + $0xd0] sm:$0xff]
  %v415 = vld [vmem:[%s3 + $0xd8] sm:$0xff]
  %v416 = vld [vmem:[%s3 + $0xe0] sm:$0xff]
  %v417 = vld [vmem:[%s3 + $0xe8] sm:$0xff]
  %v418 = vld [vmem:[%s3 + $0xf0] sm:$0xff]
  %v419 = vld [vmem:[%s3 + $0xf8] sm:$0xff]
  %v420 = vld [vmem:[%s3 + $0x100] sm:$0xff]
  %v421 = vld [vmem:[%s3 + $0x108] sm:$0xff]
  %v422 = vld [vmem:[%s3 + $0x110] sm:$0xff]
  %v423 = vld [vmem:[%s3 + $0x118] sm:$0xff]
  %v424 = vld [vmem:[%s3 + $0x120] sm:$0xff]
  %v425 = vld [vmem:[%s3 + $0x128] sm:$0xff]
  %v426 = vld [vmem:[%s3 + $0x130] sm:$0xff]
  %v427 = vld [vmem:[%s3 + $0x138] sm:$0xff]
  %v428 = vld [vmem:[%s3 + $0x140] sm:$0xff]
  %v429 = vld [vmem:[%s3 + $0x148] sm:$0xff]
  %v430 = vld [vmem:[%s3 + $0x150] sm:$0xff]
  %v431 = vld [vmem:[%s3 + $0x158] sm:$0xff]
  %v432 = vld [vmem:[%s3 + $0x160] sm:$0xff]
  %v433 = vld [vmem:[%s3 + $0x168] sm:$0xff]
  %v434 = vld [vmem:[%s3 + $0x170] sm:$0xff]
  %v435 = vld [vmem:[%s3 + $0x178] sm:$0xff]
  %v436 = vld [vmem:[%s3 + $0x180] sm:$0xff]
  %v437 = vld [vmem:[%s3 + $0x188] sm:$0xff]
  %v438 = vld [vmem:[%s3 + $0x190] sm:$0xff]
  %v439 = vld [vmem:[%s3 + $0x198] sm:$0xff]
  %v440 = vld [vmem:[%s3 + $0x1a0] sm:$0xff]
  %v441 = vld [vmem:[%s3 + $0x1a8] sm:$0xff]
  %v442 = vld [vmem:[%s3 + $0x1b0] sm:$0xff]
  %v443 = vld [vmem:[%s3 + $0x1b8] sm:$0xff]
  %v444 = vld [vmem:[%s3 + $0x1c0] sm:$0xff]
  %v445 = vld [vmem:[%s3 + $0x1c8] sm:$0xff]
  %v446 = vld [vmem:[%s3 + $0x1d0] sm:$0xff]
  %v447 = vld [vmem:[%s3 + $0x1d8] sm:$0xff]
  %v448 = vld [vmem:[%s3 + $0x1e0] sm:$0xff]
  %v449 = vld [vmem:[%s3 + $0x1e8] sm:$0xff]
  %v450 = vld [vmem:[%s3 + $0x1f0] sm:$0xff]
  %v451 = vld [vmem:[%s3 + $0x1f8] sm:$0xff]
  %v452 = vld [vmem:[#allocation5] sm:$0xff]
  %v453 = vld [vmem:[#allocation5 + $0x8] sm:$0xff]
  %v454 = vld [vmem:[#allocation5 + $0x10] sm:$0xff]
  %v455 = vld [vmem:[#allocation5 + $0x18] sm:$0xff]
  %456 = vmatprep.subr.mxu0 %v389
  %457 = vmatpush1.msra.mxu0 %v388
  %458 = vmatprep.subr.mxu0 %v393
  %459 = vmatpush1.msra.mxu0 %v392
  %460 = vmatprep.subr.mxu0 %v397
  %461 = vmatpush1.msra.mxu0 %v396
  %462 = vmatprep.subr.mxu0 %v401
  %463 = vmatpush1.msra.mxu0 %v400
  %464 = vmatprep.subr.mxu0 %v405
  %465 = vmatpush1.msra.mxu0 %v404
  %466 = vmatprep.subr.mxu0 %v409
  %467 = vmatpush1.msra.mxu0 %v408
  %468 = vmatprep.subr.mxu0 %v413
  %469 = vmatpush1.msra.mxu0 %v412
  %470 = vmatprep.subr.mxu0 %v417
  %471 = vmatpush1.msra.mxu0 %v416
  %472 = vmatprep.subr.mxu0 %v421
  %473 = vmatpush1.msra.mxu0 %v420
  %474 = vmatprep.subr.mxu0 %v425
  %475 = vmatpush1.msra.mxu0 %v424
  %476 = vmatprep.subr.mxu0 %v429
  %477 = vmatpush1.msra.mxu0 %v428
  %478 = vmatprep.subr.mxu0 %v433
  %479 = vmatpush1.msra.mxu0 %v432
  %480 = vmatprep.subr.mxu0 %v437
  %481 = vmatpush1.msra.mxu0 %v436
  %482 = vmatprep.subr.mxu0 %v441
  %483 = vmatpush1.msra.mxu0 %v440
  %484 = vmatprep.subr.mxu0 %v445
  %485 = vmatpush1.msra.mxu0 %v444
  %486 = vmatprep.subr.mxu0 %v449
  %487 = vmatpush1.msra.mxu0 %v448
  %488 = vmatprep.subr.mxu0 0.0
  %489 = vmatpush1.msra.mxu0 0.0
  %490 = vmatprep.subr.mxu0 0.0
  %491 = vmatpush1.msra.mxu0 0.0
  %492 = vmatprep.subr.mxu0 0.0
  %493 = vmatpush1.msra.mxu0 0.0
  %494 = vmatprep.subr.mxu0 0.0
  %495 = vmatpush1.msra.mxu0 0.0
  %496 = vmatprep.subr.mxu0 0.0
  %497 = vmatpush1.msra.mxu0 0.0
  %498 = vmatprep.subr.mxu0 0.0
  %499 = vmatpush1.msra.mxu0 0.0
  %500 = vmatprep.subr.mxu0 0.0
  %501 = vmatpush1.msra.mxu0 0.0
  %502 = vmatprep.subr.mxu0 0.0
  %503 = vmatpush1.msra.mxu0 0.0
  %504 = vmatprep.subr.mxu0 0.0
  %505 = vmatpush1.msra.mxu0 0.0
  %506 = vmatprep.subr.mxu0 0.0
  %507 = vmatpush1.msra.mxu0 0.0
  %508 = vmatprep.subr.mxu0 0.0
  %509 = vmatpush1.msra.mxu0 0.0
  %510 = vmatprep.subr.mxu0 0.0
  %511 = vmatpush1.msra.mxu0 0.0
  %512 = vmatprep.subr.mxu0 0.0
  %513 = vmatpush1.msra.mxu0 0.0
  %514 = vmatprep.subr.mxu0 0.0
  %515 = vmatpush1.msra.mxu0 0.0
  %516 = vmatprep.subr.mxu0 0.0
  %517 = vmatpush1.msra.mxu0 0.0
  %518 = vmatprep.subr.mxu0 0.0
  %519 = vmatpush1.msra.mxu0 0.0
  %520 = vmatprep.mubr.f32.mxu0 0.0
  %521 = vmatmul.mubr.f32.gmra.mrb[0].mxu0 %v386
  %v522 = vpop.f32.mrb[0].mxu0
  %v523 = vadd.f32 0.0, %v522
  %v524 = vpop.f32.mrb[0].mxu0
  %v525 = vadd.f32 0.0, %v524
  %526 = vdwg.mxu0
  %527 = vmatprep.subr.mxu0 %v391
  %528 = vmatpush1.msra.mxu0 %v390
  %529 = vmatprep.subr.mxu0 %v395
  %530 = vmatpush1.msra.mxu0 %v394
  %531 = vmatprep.subr.mxu0 %v399
  %532 = vmatpush1.msra.mxu0 %v398
  %533 = vmatprep.subr.mxu0 %v403
  %534 = vmatpush1.msra.mxu0 %v402
  %535 = vmatprep.subr.mxu0 %v407
  %536 = vmatpush1.msra.mxu0 %v406
  %537 = vmatprep.subr.mxu0 %v411
  %538 = vmatpush1.msra.mxu0 %v410
  %539 = vmatprep.subr.mxu0 %v415
  %540 = vmatpush1.msra.mxu0 %v414
  %541 = vmatprep.subr.mxu0 %v419
  %542 = vmatpush1.msra.mxu0 %v418
  %543 = vmatprep.subr.mxu0 %v423
  %544 = vmatpush1.msra.mxu0 %v422
  %545 = vmatprep.subr.mxu0 %v427
  %546 = vmatpush1.msra.mxu0 %v426
  %547 = vmatprep.subr.mxu0 %v431
  %548 = vmatpush1.msra.mxu0 %v430
  %549 = vmatprep.subr.mxu0 %v435
  %550 = vmatpush1.msra.mxu0 %v434
  %551 = vmatprep.subr.mxu0 %v439
  %552 = vmatpush1.msra.mxu0 %v438
  %553 = vmatprep.subr.mxu0 %v443
  %554 = vmatpush1.msra.mxu0 %v442
  %555 = vmatprep.subr.mxu0 %v447
  %556 = vmatpush1.msra.mxu0 %v446
  %557 = vmatprep.subr.mxu0 %v451
  %558 = vmatpush1.msra.mxu0 %v450
  %559 = vmatprep.subr.mxu0 0.0
  %560 = vmatpush1.msra.mxu0 0.0
  %561 = vmatprep.subr.mxu0 0.0
  %562 = vmatpush1.msra.mxu0 0.0
  %563 = vmatprep.subr.mxu0 0.0
  %564 = vmatpush1.msra.mxu0 0.0
  %565 = vmatprep.subr.mxu0 0.0
  %566 = vmatpush1.msra.mxu0 0.0
  %567 = vmatprep.subr.mxu0 0.0
  %568 = vmatpush1.msra.mxu0 0.0
  %569 = vmatprep.subr.mxu0 0.0
  %570 = vmatpush1.msra.mxu0 0.0
  %571 = vmatprep.subr.mxu0 0.0
  %572 = vmatpush1.msra.mxu0 0.0
  %573 = vmatprep.subr.mxu0 0.0
  %574 = vmatpush1.msra.mxu0 0.0
  %575 = vmatprep.subr.mxu0 0.0
  %576 = vmatpush1.msra.mxu0 0.0
  %577 = vmatprep.subr.mxu0 0.0
  %578 = vmatpush1.msra.mxu0 0.0
  %579 = vmatprep.subr.mxu0 0.0
  %580 = vmatpush1.msra.mxu0 0.0
  %581 = vmatprep.subr.mxu0 0.0
  %582 = vmatpush1.msra.mxu0 0.0
  %583 = vmatprep.subr.mxu0 0.0
  %584 = vmatpush1.msra.mxu0 0.0
  %585 = vmatprep.subr.mxu0 0.0
  %586 = vmatpush1.msra.mxu0 0.0
  %587 = vmatprep.subr.mxu0 0.0
  %588 = vmatpush1.msra.mxu0 0.0
  %589 = vmatprep.subr.mxu0 0.0
  %590 = vmatpush1.msra.mxu0 0.0
  %591 = vmatprep.mubr.f32.mxu0 0.0
  %592 = vmatmul.mubr.f32.gmra.mrb[0].mxu0 %v386
  %v593 = vpop.f32.mrb[0].mxu0
  %v594 = vadd.f32 0.0, %v593
  %v595 = vpop.f32.mrb[0].mxu0
  %v596 = vadd.f32 0.0, %v595
  %597 = vdwg.mxu0
  %v598 = vadd.f32 %v452, %v523
  %v599 = vadd.f32 %v453, %v525
  %v600 = vadd.f32 %v454, %v594
  %v601 = vadd.f32 %v455, %v596
  %v602 = vxor.u32 %v598, 2147483648
  %v603 = vmul.f32 %v602, 1.442695
  %v604 = vpow.pop %v603
  %v605 = vadd.f32 %v604, 1.0
  %v606 = vrcp.pop %v605
  %v607 = vmul.f32 1.0, %v606
  %v608 = vxor.u32 %v599, 2147483648
  %v609 = vmul.f32 %v608, 1.442695
  %v610 = vpow.pop %v609
  %v611 = vadd.f32 %v610, 1.0
  %v612 = vrcp.pop %v611
  %v613 = vmul.f32 1.0, %v612
  %v614 = vtanh.pop %v600
  %v615 = vxor.u32 %v601, 2147483648
  %v616 = vmul.f32 %v615, 1.442695
  %v617 = vpow.pop %v616
  %v618 = vadd.f32 %v617, 1.0
  %v619 = vrcp.pop %v618
  %v620 = vmul.f32 1.0, %v619
  %v621 = vmul.f32 %v613, %v387
  %v622 = vmul.f32 %v607, %v614
  %v623 = vadd.f32 %v621, %v622
  %v624 = vtanh.pop %v623
  %v625 = vmul.f32 %v620, %v624
  %626 = vst [vmem:[#allocation4] sm:$0xff] %v625
  %v627 = vld [vmem:[%s3] sm:$0xff]
  %v628 = vld [vmem:[%s3 + $0x8] sm:$0xff]
  %v629 = vld [vmem:[%s3 + $0x10] sm:$0xff]
  %v630 = vld [vmem:[%s3 + $0x18] sm:$0xff]
  %v631 = vld [vmem:[%s3 + $0x20] sm:$0xff]
  %v632 = vld [vmem:[%s3 + $0x28] sm:$0xff]
  %v633 = vld [vmem:[%s3 + $0x30] sm:$0xff]
  %v634 = vld [vmem:[%s3 + $0x38] sm:$0xff]
  %v635 = vld [vmem:[%s3 + $0x40] sm:$0xff]
  %v636 = vld [vmem:[%s3 + $0x48] sm:$0xff]
  %v637 = vld [vmem:[%s3 + $0x50] sm:$0xff]
  %v638 = vld [vmem:[%s3 + $0x58] sm:$0xff]
  %v639 = vld [vmem:[%s3 + $0x60] sm:$0xff]
  %v640 = vld [vmem:[%s3 + $0x68] sm:$0xff]
  %v641 = vld [vmem:[%s3 + $0x70] sm:$0xff]
  %v642 = vld [vmem:[%s3 + $0x78] sm:$0xff]
  %v643 = vld [vmem:[%s3 + $0x80] sm:$0xff]
  %v644 = vld [vmem:[%s3 + $0x88] sm:$0xff]
  %v645 = vld [vmem:[%s3 + $0x90] sm:$0xff]
  %v646 = vld [vmem:[%s3 + $0x98] sm:$0xff]
  %v647 = vld [vmem:[%s3 + $0xa0] sm:$0xff]
  %v648 = vld [vmem:[%s3 + $0xa8] sm:$0xff]
  %v649 = vld [vmem:[%s3 + $0xb0] sm:$0xff]
  %v650 = vld [vmem:[%s3 + $0xb8] sm:$0xff]
  %v651 = vld [vmem:[%s3 + $0xc0] sm:$0xff]
  %v652 = vld [vmem:[%s3 + $0xc8] sm:$0xff]
  %v653 = vld [vmem:[%s3 + $0xd0] sm:$0xff]
  %v654 = vld [vmem:[%s3 + $0xd8] sm:$0xff]
  %v655 = vld [vmem:[%s3 + $0xe0] sm:$0xff]
  %v656 = vld [vmem:[%s3 + $0xe8] sm:$0xff]
  %v657 = vld [vmem:[%s3 + $0xf0] sm:$0xff]
  %v658 = vld [vmem:[%s3 + $0xf8] sm:$0xff]
  %v659 = vld [vmem:[%s3 + $0x100] sm:$0xff]
  %v660 = vld [vmem:[%s3 + $0x108] sm:$0xff]
  %v661 = vld [vmem:[%s3 + $0x110] sm:$0xff]
  %v662 = vld [vmem:[%s3 + $0x118] sm:$0xff]
  %v663 = vld [vmem:[%s3 + $0x120] sm:$0xff]
  %v664 = vld [vmem:[%s3 + $0x128] sm:$0xff]
  %v665 = vld [vmem:[%s3 + $0x130] sm:$0xff]
  %v666 = vld [vmem:[%s3 + $0x138] sm:$0xff]
  %v667 = vld [vmem:[%s3 + $0x140] sm:$0xff]
  %v668 = vld [vmem:[%s3 + $0x148] sm:$0xff]
  %v669 = vld [vmem:[%s3 + $0x150] sm:$0xff]
  %v670 = vld [vmem:[%s3 + $0x158] sm:$0xff]
  %v671 = vld [vmem:[%s3 + $0x160] sm:$0xff]
  %v672 = vld [vmem:[%s3 + $0x168] sm:$0xff]
  %v673 = vld [vmem:[%s3 + $0x170] sm:$0xff]
  %v674 = vld [vmem:[%s3 + $0x178] sm:$0xff]
  %v675 = vld [vmem:[%s3 + $0x180] sm:$0xff]
  %v676 = vld [vmem:[%s3 + $0x188] sm:$0xff]
  %v677 = vld [vmem:[%s3 + $0x190] sm:$0xff]
  %v678 = vld [vmem:[%s3 + $0x198] sm:$0xff]
  %v679 = vld [vmem:[%s3 + $0x1a0] sm:$0xff]
  %v680 = vld [vmem:[%s3 + $0x1a8] sm:$0xff]
  %v681 = vld [vmem:[%s3 + $0x1b0] sm:$0xff]
  %v682 = vld [vmem:[%s3 + $0x1b8] sm:$0xff]
  %v683 = vld [vmem:[%s3 + $0x1c0] sm:$0xff]
  %v684 = vld [vmem:[%s3 + $0x1c8] sm:$0xff]
  %v685 = vld [vmem:[%s3 + $0x1d0] sm:$0xff]
  %v686 = vld [vmem:[%s3 + $0x1d8] sm:$0xff]
  %v687 = vld [vmem:[%s3 + $0x1e0] sm:$0xff]
  %v688 = vld [vmem:[%s3 + $0x1e8] sm:$0xff]
  %v689 = vld [vmem:[%s3 + $0x1f0] sm:$0xff]
  %v690 = vld [vmem:[%s3 + $0x1f8] sm:$0xff]
  %s691 = scalar_lea.vmem [#allocation5], 32
  %v692 = vld [vmem:[%s691] sm:$0xff]
  %v693 = vld [vmem:[%s691 + $0x8] sm:$0xff]
  %v694 = vld [vmem:[%s691 + $0x10] sm:$0xff]
  %v695 = vld [vmem:[%s691 + $0x18] sm:$0xff]
  %696 = vmatprep.subr.mxu0 %v628
  %697 = vmatpush1.msra.mxu0 %v627
  %698 = vmatprep.subr.mxu0 %v632
  %699 = vmatpush1.msra.mxu0 %v631
  %700 = vmatprep.subr.mxu0 %v636
  %701 = vmatpush1.msra.mxu0 %v635
  %702 = vmatprep.subr.mxu0 %v640
  %703 = vmatpush1.msra.mxu0 %v639
  %704 = vmatprep.subr.mxu0 %v644
  %705 = vmatpush1.msra.mxu0 %v643
  %706 = vmatprep.subr.mxu0 %v648
  %707 = vmatpush1.msra.mxu0 %v647
  %708 = vmatprep.subr.mxu0 %v652
  %709 = vmatpush1.msra.mxu0 %v651
  %710 = vmatprep.subr.mxu0 %v656
  %711 = vmatpush1.msra.mxu0 %v655
  %712 = vmatprep.subr.mxu0 %v660
  %713 = vmatpush1.msra.mxu0 %v659
  %714 = vmatprep.subr.mxu0 %v664
  %715 = vmatpush1.msra.mxu0 %v663
  %716 = vmatprep.subr.mxu0 %v668
  %717 = vmatpush1.msra.mxu0 %v667
  %718 = vmatprep.subr.mxu0 %v672
  %719 = vmatpush1.msra.mxu0 %v671
  %720 = vmatprep.subr.mxu0 %v676
  %721 = vmatpush1.msra.mxu0 %v675
  %722 = vmatprep.subr.mxu0 %v680
  %723 = vmatpush1.msra.mxu0 %v679
  %724 = vmatprep.subr.mxu0 %v684
  %725 = vmatpush1.msra.mxu0 %v683
  %726 = vmatprep.subr.mxu0 %v688
  %727 = vmatpush1.msra.mxu0 %v687
  %728 = vmatprep.subr.mxu0 0.0
  %729 = vmatpush1.msra.mxu0 0.0
  %730 = vmatprep.subr.mxu0 0.0
  %731 = vmatpush1.msra.mxu0 0.0
  %732 = vmatprep.subr.mxu0 0.0
  %733 = vmatpush1.msra.mxu0 0.0
  %734 = vmatprep.subr.mxu0 0.0
  %735 = vmatpush1.msra.mxu0 0.0
  %736 = vmatprep.subr.mxu0 0.0
  %737 = vmatpush1.msra.mxu0 0.0
  %738 = vmatprep.subr.mxu0 0.0
  %739 = vmatpush1.msra.mxu0 0.0
  %740 = vmatprep.subr.mxu0 0.0
  %741 = vmatpush1.msra.mxu0 0.0
  %742 = vmatprep.subr.mxu0 0.0
  %743 = vmatpush1.msra.mxu0 0.0
  %744 = vmatprep.subr.mxu0 0.0
  %745 = vmatpush1.msra.mxu0 0.0
  %746 = vmatprep.subr.mxu0 0.0
  %747 = vmatpush1.msra.mxu0 0.0
  %748 = vmatprep.subr.mxu0 0.0
  %749 = vmatpush1.msra.mxu0 0.0
  %750 = vmatprep.subr.mxu0 0.0
  %751 = vmatpush1.msra.mxu0 0.0
  %752 = vmatprep.subr.mxu0 0.0
  %753 = vmatpush1.msra.mxu0 0.0
  %754 = vmatprep.subr.mxu0 0.0
  %755 = vmatpush1.msra.mxu0 0.0
  %756 = vmatprep.subr.mxu0 0.0
  %757 = vmatpush1.msra.mxu0 0.0
  %758 = vmatprep.subr.mxu0 0.0
  %759 = vmatpush1.msra.mxu0 0.0
  %760 = vmatprep.mubr.f32.mxu0 0.0
  %761 = vmatmul.mubr.f32.gmra.mrb[0].mxu0 %v625
  %v762 = vpop.f32.mrb[0].mxu0
  %v763 = vadd.f32 0.0, %v762
  %v764 = vpop.f32.mrb[0].mxu0
  %v765 = vadd.f32 0.0, %v764
  %766 = vdwg.mxu0
  %767 = vmatprep.subr.mxu0 %v630
  %768 = vmatpush1.msra.mxu0 %v629
  %769 = vmatprep.subr.mxu0 %v634
  %770 = vmatpush1.msra.mxu0 %v633
  %771 = vmatprep.subr.mxu0 %v638
  %772 = vmatpush1.msra.mxu0 %v637
  %773 = vmatprep.subr.mxu0 %v642
  %774 = vmatpush1.msra.mxu0 %v641
  %775 = vmatprep.subr.mxu0 %v646
  %776 = vmatpush1.msra.mxu0 %v645
  %777 = vmatprep.subr.mxu0 %v650
  %778 = vmatpush1.msra.mxu0 %v649
  %779 = vmatprep.subr.mxu0 %v654
  %780 = vmatpush1.msra.mxu0 %v653
  %781 = vmatprep.subr.mxu0 %v658
  %782 = vmatpush1.msra.mxu0 %v657
  %783 = vmatprep.subr.mxu0 %v662
  %784 = vmatpush1.msra.mxu0 %v661
  %785 = vmatprep.subr.mxu0 %v666
  %786 = vmatpush1.msra.mxu0 %v665
  %787 = vmatprep.subr.mxu0 %v670
  %788 = vmatpush1.msra.mxu0 %v669
  %789 = vmatprep.subr.mxu0 %v674
  %790 = vmatpush1.msra.mxu0 %v673
  %791 = vmatprep.subr.mxu0 %v678
  %792 = vmatpush1.msra.mxu0 %v677
  %793 = vmatprep.subr.mxu0 %v682
  %794 = vmatpush1.msra.mxu0 %v681
  %795 = vmatprep.subr.mxu0 %v686
  %796 = vmatpush1.msra.mxu0 %v685
  %797 = vmatprep.subr.mxu0 %v690
  %798 = vmatpush1.msra.mxu0 %v689
  %799 = vmatprep.subr.mxu0 0.0
  %800 = vmatpush1.msra.mxu0 0.0
  %801 = vmatprep.subr.mxu0 0.0
  %802 = vmatpush1.msra.mxu0 0.0
  %803 = vmatprep.subr.mxu0 0.0
  %804 = vmatpush1.msra.mxu0 0.0
  %805 = vmatprep.subr.mxu0 0.0
  %806 = vmatpush1.msra.mxu0 0.0
  %807 = vmatprep.subr.mxu0 0.0
  %808 = vmatpush1.msra.mxu0 0.0
  %809 = vmatprep.subr.mxu0 0.0
  %810 = vmatpush1.msra.mxu0 0.0
  %811 = vmatprep.subr.mxu0 0.0
  %812 = vmatpush1.msra.mxu0 0.0
  %813 = vmatprep.subr.mxu0 0.0
  %814 = vmatpush1.msra.mxu0 0.0
  %815 = vmatprep.subr.mxu0 0.0
  %816 = vmatpush1.msra.mxu0 0.0
  %817 = vmatprep.subr.mxu0 0.0
  %818 = vmatpush1.msra.mxu0 0.0
  %819 = vmatprep.subr.mxu0 0.0
  %820 = vmatpush1.msra.mxu0 0.0
  %821 = vmatprep.subr.mxu0 0.0
  %822 = vmatpush1.msra.mxu0 0.0
  %823 = vmatprep.subr.mxu0 0.0
  %824 = vmatpush1.msra.mxu0 0.0
  %825 = vmatprep.subr.mxu0 0.0
  %826 = vmatpush1.msra.mxu0 0.0
  %827 = vmatprep.subr.mxu0 0.0
  %828 = vmatpush1.msra.mxu0 0.0
  %829 = vmatprep.subr.mxu0 0.0
  %830 = vmatpush1.msra.mxu0 0.0
  %831 = vmatprep.mubr.f32.mxu0 0.0
  %832 = vmatmul.mubr.f32.gmra.mrb[0].mxu0 %v625
  %v833 = vpop.f32.mrb[0].mxu0
  %v834 = vadd.f32 0.0, %v833
  %v835 = vpop.f32.mrb[0].mxu0
  %v836 = vadd.f32 0.0, %v835
  %837 = vdwg.mxu0
  %v838 = vadd.f32 %v692, %v763
  %v839 = vadd.f32 %v693, %v765
  %v840 = vadd.f32 %v694, %v834
  %v841 = vadd.f32 %v695, %v836
  %v842 = vxor.u32 %v838, 2147483648
  %v843 = vmul.f32 %v842, 1.442695
  %v844 = vpow.pop %v843
  %v845 = vadd.f32 %v844, 1.0
  %v846 = vrcp.pop %v845
  %v847 = vmul.f32 1.0, %v846
  %v848 = vxor.u32 %v839, 2147483648
  %v849 = vmul.f32 %v848, 1.442695
  %v850 = vpow.pop %v849
  %v851 = vadd.f32 %v850, 1.0
  %v852 = vrcp.pop %v851
  %v853 = vmul.f32 1.0, %v852
  %v854 = vtanh.pop %v840
  %v855 = vxor.u32 %v841, 2147483648
  %v856 = vmul.f32 %v855, 1.442695
  %v857 = vpow.pop %v856
  %v858 = vadd.f32 %v857, 1.0
  %v859 = vrcp.pop %v858
  %v860 = vmul.f32 1.0, %v859
  %v861 = vmul.f32 %v853, %v623
  %v862 = vmul.f32 %v847, %v854
  %v863 = vadd.f32 %v861, %v862
  %v864 = vtanh.pop %v863
  %v865 = vmul.f32 %v860, %v864
  %s866 = scalar_lea.vmem [#allocation4], 8
  %867 = vst [vmem:[%s866] sm:$0xff] %v865
  %v868 = vld [vmem:[%s3] sm:$0xff]
  %v869 = vld [vmem:[%s3 + $0x8] sm:$0xff]
  %v870 = vld [vmem:[%s3 + $0x10] sm:$0xff]
  %v871 = vld [vmem:[%s3 + $0x18] sm:$0xff]
  %v872 = vld [vmem:[%s3 + $0x20] sm:$0xff]
  %v873 = vld [vmem:[%s3 + $0x28] sm:$0xff]
  %v874 = vld [vmem:[%s3 + $0x30] sm:$0xff]
  %v875 = vld [vmem:[%s3 + $0x38] sm:$0xff]
  %v876 = vld [vmem:[%s3 + $0x40] sm:$0xff]
  %v877 = vld [vmem:[%s3 + $0x48] sm:$0xff]
  %v878 = vld [vmem:[%s3 + $0x50] sm:$0xff]
  %v879 = vld [vmem:[%s3 + $0x58] sm:$0xff]
  %v880 = vld [vmem:[%s3 + $0x60] sm:$0xff]
  %v881 = vld [vmem:[%s3 + $0x68] sm:$0xff]
  %v882 = vld [vmem:[%s3 + $0x70] sm:$0xff]
  %v883 = vld [vmem:[%s3 + $0x78] sm:$0xff]
  %v884 = vld [vmem:[%s3 + $0x80] sm:$0xff]
  %v885 = vld [vmem:[%s3 + $0x88] sm:$0xff]
  %v886 = vld [vmem:[%s3 + $0x90] sm:$0xff]
  %v887 = vld [vmem:[%s3 + $0x98] sm:$0xff]
  %v888 = vld [vmem:[%s3 + $0xa0] sm:$0xff]
  %v889 = vld [vmem:[%s3 + $0xa8] sm:$0xff]
  %v890 = vld [vmem:[%s3 + $0xb0] sm:$0xff]
  %v891 = vld [vmem:[%s3 + $0xb8] sm:$0xff]
  %v892 = vld [vmem:[%s3 + $0xc0] sm:$0xff]
  %v893 = vld [vmem:[%s3 + $0xc8] sm:$0xff]
  %v894 = vld [vmem:[%s3 + $0xd0] sm:$0xff]
  %v895 = vld [vmem:[%s3 + $0xd8] sm:$0xff]
  %v896 = vld [vmem:[%s3 + $0xe0] sm:$0xff]
  %v897 = vld [vmem:[%s3 + $0xe8] sm:$0xff]
  %v898 = vld [vmem:[%s3 + $0xf0] sm:$0xff]
  %v899 = vld [vmem:[%s3 + $0xf8] sm:$0xff]
  %v900 = vld [vmem:[%s3 + $0x100] sm:$0xff]
  %v901 = vld [vmem:[%s3 + $0x108] sm:$0xff]
  %v902 = vld [vmem:[%s3 + $0x110] sm:$0xff]
  %v903 = vld [vmem:[%s3 + $0x118] sm:$0xff]
  %v904 = vld [vmem:[%s3 + $0x120] sm:$0xff]
  %v905 = vld [vmem:[%s3 + $0x128] sm:$0xff]
  %v906 = vld [vmem:[%s3 + $0x130] sm:$0xff]
  %v907 = vld [vmem:[%s3 + $0x138] sm:$0xff]
  %v908 = vld [vmem:[%s3 + $0x140] sm:$0xff]
  %v909 = vld [vmem:[%s3 + $0x148] sm:$0xff]
  %v910 = vld [vmem:[%s3 + $0x150] sm:$0xff]
  %v911 = vld [vmem:[%s3 + $0x158] sm:$0xff]
  %v912 = vld [vmem:[%s3 + $0x160] sm:$0xff]
  %v913 = vld [vmem:[%s3 + $0x168] sm:$0xff]
  %v914 = vld [vmem:[%s3 + $0x170] sm:$0xff]
  %v915 = vld [vmem:[%s3 + $0x178] sm:$0xff]
  %v916 = vld [vmem:[%s3 + $0x180] sm:$0xff]
  %v917 = vld [vmem:[%s3 + $0x188] sm:$0xff]
  %v918 = vld [vmem:[%s3 + $0x190] sm:$0xff]
  %v919 = vld [vmem:[%s3 + $0x198] sm:$0xff]
  %v920 = vld [vmem:[%s3 + $0x1a0] sm:$0xff]
  %v921 = vld [vmem:[%s3 + $0x1a8] sm:$0xff]
  %v922 = vld [vmem:[%s3 + $0x1b0] sm:$0xff]
  %v923 = vld [vmem:[%s3 + $0x1b8] sm:$0xff]
  %v924 = vld [vmem:[%s3 + $0x1c0] sm:$0xff]
  %v925 = vld [vmem:[%s3 + $0x1c8] sm:$0xff]
  %v926 = vld [vmem:[%s3 + $0x1d0] sm:$0xff]
  %v927 = vld [vmem:[%s3 + $0x1d8] sm:$0xff]
  %v928 = vld [vmem:[%s3 + $0x1e0] sm:$0xff]
  %v929 = vld [vmem:[%s3 + $0x1e8] sm:$0xff]
  %v930 = vld [vmem:[%s3 + $0x1f0] sm:$0xff]
  %v931 = vld [vmem:[%s3 + $0x1f8] sm:$0xff]
  %s932 = scalar_lea.vmem [#allocation5], 64
  %v933 = vld [vmem:[%s932] sm:$0xff]
  %v934 = vld [vmem:[%s932 + $0x8] sm:$0xff]
  %v935 = vld [vmem:[%s932 + $0x10] sm:$0xff]
  %v936 = vld [vmem:[%s932 + $0x18] sm:$0xff]
  %937 = vmatprep.subr.mxu0 %v869
  %938 = vmatpush1.msra.mxu0 %v868
  %939 = vmatprep.subr.mxu0 %v873
  %940 = vmatpush1.msra.mxu0 %v872
  %941 = vmatprep.subr.mxu0 %v877
  %942 = vmatpush1.msra.mxu0 %v876
  %943 = vmatprep.subr.mxu0 %v881
  %944 = vmatpush1.msra.mxu0 %v880
  %945 = vmatprep.subr.mxu0 %v885
  %946 = vmatpush1.msra.mxu0 %v884
  %947 = vmatprep.subr.mxu0 %v889
  %948 = vmatpush1.msra.mxu0 %v888
  %949 = vmatprep.subr.mxu0 %v893
  %950 = vmatpush1.msra.mxu0 %v892
  %951 = vmatprep.subr.mxu0 %v897
  %952 = vmatpush1.msra.mxu0 %v896
  %953 = vmatprep.subr.mxu0 %v901
  %954 = vmatpush1.msra.mxu0 %v900
  %955 = vmatprep.subr.mxu0 %v905
  %956 = vmatpush1.msra.mxu0 %v904
  %957 = vmatprep.subr.mxu0 %v909
  %958 = vmatpush1.msra.mxu0 %v908
  %959 = vmatprep.subr.mxu0 %v913
  %960 = vmatpush1.msra.mxu0 %v912
  %961 = vmatprep.subr.mxu0 %v917
  %962 = vmatpush1.msra.mxu0 %v916
  %963 = vmatprep.subr.mxu0 %v921
  %964 = vmatpush1.msra.mxu0 %v920
  %965 = vmatprep.subr.mxu0 %v925
  %966 = vmatpush1.msra.mxu0 %v924
  %967 = vmatprep.subr.mxu0 %v929
  %968 = vmatpush1.msra.mxu0 %v928
  %969 = vmatprep.subr.mxu0 0.0
  %970 = vmatpush1.msra.mxu0 0.0
  %971 = vmatprep.subr.mxu0 0.0
  %972 = vmatpush1.msra.mxu0 0.0
  %973 = vmatprep.subr.mxu0 0.0
  %974 = vmatpush1.msra.mxu0 0.0
  %975 = vmatprep.subr.mxu0 0.0
  %976 = vmatpush1.msra.mxu0 0.0
  %977 = vmatprep.subr.mxu0 0.0
  %978 = vmatpush1.msra.mxu0 0.0
  %979 = vmatprep.subr.mxu0 0.0
  %980 = vmatpush1.msra.mxu0 0.0
  %981 = vmatprep.subr.mxu0 0.0
  %982 = vmatpush1.msra.mxu0 0.0
  %983 = vmatprep.subr.mxu0 0.0
  %984 = vmatpush1.msra.mxu0 0.0
  %985 = vmatprep.subr.mxu0 0.0
  %986 = vmatpush1.msra.mxu0 0.0
  %987 = vmatprep.subr.mxu0 0.0
  %988 = vmatpush1.msra.mxu0 0.0
  %989 = vmatprep.subr.mxu0 0.0
  %990 = vmatpush1.msra.mxu0 0.0
  %991 = vmatprep.subr.mxu0 0.0
  %992 = vmatpush1.msra.mxu0 0.0
  %993 = vmatprep.subr.mxu0 0.0
  %994 = vmatpush1.msra.mxu0 0.0
  %995 = vmatprep.subr.mxu0 0.0
  %996 = vmatpush1.msra.mxu0 0.0
  %997 = vmatprep.subr.mxu0 0.0
  %998 = vmatpush1.msra.mxu0 0.0
  %999 = vmatprep.subr.mxu0 0.0
  %1000 = vmatpush1.msra.mxu0 0.0
  %1001 = vmatprep.mubr.f32.mxu0 0.0
  %1002 = vmatmul.mubr.f32.gmra.mrb[0].mxu0 %v865
  %v1003 = vpop.f32.mrb[0].mxu0
  %v1004 = vadd.f32 0.0, %v1003
  %v1005 = vpop.f32.mrb[0].mxu0
  %v1006 = vadd.f32 0.0, %v1005
  %1007 = vdwg.mxu0
  %1008 = vmatprep.subr.mxu0 %v871
  %1009 = vmatpush1.msra.mxu0 %v870
  %1010 = vmatprep.subr.mxu0 %v875
  %1011 = vmatpush1.msra.mxu0 %v874
  %1012 = vmatprep.subr.mxu0 %v879
  %1013 = vmatpush1.msra.mxu0 %v878
  %1014 = vmatprep.subr.mxu0 %v883
  %1015 = vmatpush1.msra.mxu0 %v882
  %1016 = vmatprep.subr.mxu0 %v887
  %1017 = vmatpush1.msra.mxu0 %v886
  %1018 = vmatprep.subr.mxu0 %v891
  %1019 = vmatpush1.msra.mxu0 %v890
  %1020 = vmatprep.subr.mxu0 %v895
  %1021 = vmatpush1.msra.mxu0 %v894
  %1022 = vmatprep.subr.mxu0 %v899
  %1023 = vmatpush1.msra.mxu0 %v898
  %1024 = vmatprep.subr.mxu0 %v903
  %1025 = vmatpush1.msra.mxu0 %v902
  %1026 = vmatprep.subr.mxu0 %v907
  %1027 = vmatpush1.msra.mxu0 %v906
  %1028 = vmatprep.subr.mxu0 %v911
  %1029 = vmatpush1.msra.mxu0 %v910
  %1030 = vmatprep.subr.mxu0 %v915
  %1031 = vmatpush1.msra.mxu0 %v914
  %1032 = vmatprep.subr.mxu0 %v919
  %1033 = vmatpush1.msra.mxu0 %v918
  %1034 = vmatprep.subr.mxu0 %v923
  %1035 = vmatpush1.msra.mxu0 %v922
  %1036 = vmatprep.subr.mxu0 %v927
  %1037 = vmatpush1.msra.mxu0 %v926
  %1038 = vmatprep.subr.mxu0 %v931
  %1039 = vmatpush1.msra.mxu0 %v930
  %1040 = vmatprep.subr.mxu0 0.0
  %1041 = vmatpush1.msra.mxu0 0.0
  %1042 = vmatprep.subr.mxu0 0.0
  %1043 = vmatpush1.msra.mxu0 0.0
  %1044 = vmatprep.subr.mxu0 0.0
  %1045 = vmatpush1.msra.mxu0 0.0
  %1046 = vmatprep.subr.mxu0 0.0
  %1047 = vmatpush1.msra.mxu0 0.0
  %1048 = vmatprep.subr.mxu0 0.0
  %1049 = vmatpush1.msra.mxu0 0.0
  %1050 = vmatprep.subr.mxu0 0.0
  %1051 = vmatpush1.msra.mxu0 0.0
  %1052 = vmatprep.subr.mxu0 0.0
  %1053 = vmatpush1.msra.mxu0 0.0
  %1054 = vmatprep.subr.mxu0 0.0
  %1055 = vmatpush1.msra.mxu0 0.0
  %1056 = vmatprep.subr.mxu0 0.0
  %1057 = vmatpush1.msra.mxu0 0.0
  %1058 = vmatprep.subr.mxu0 0.0
  %1059 = vmatpush1.msra.mxu0 0.0
  %1060 = vmatprep.subr.mxu0 0.0
  %1061 = vmatpush1.msra.mxu0 0.0
  %1062 = vmatprep.subr.mxu0 0.0
  %1063 = vmatpush1.msra.mxu0 0.0
  %1064 = vmatprep.subr.mxu0 0.0
  %1065 = vmatpush1.msra.mxu0 0.0
  %1066 = vmatprep.subr.mxu0 0.0
  %1067 = vmatpush1.msra.mxu0 0.0
  %1068 = vmatprep.subr.mxu0 0.0
  %1069 = vmatpush1.msra.mxu0 0.0
  %1070 = vmatprep.subr.mxu0 0.0
  %1071 = vmatpush1.msra.mxu0 0.0
  %1072 = vmatprep.mubr.f32.mxu0 0.0
  %1073 = vmatmul.mubr.f32.gmra.mrb[0].mxu0 %v865
  %v1074 = vpop.f32.mrb[0].mxu0
  %v1075 = vadd.f32 0.0, %v1074
  %v1076 = vpop.f32.mrb[0].mxu0
  %v1077 = vadd.f32 0.0, %v1076
  %1078 = vdwg.mxu0
  %v1079 = vadd.f32 %v933, %v1004
  %v1080 = vadd.f32 %v934, %v1006
  %v1081 = vadd.f32 %v935, %v1075
  %v1082 = vadd.f32 %v936, %v1077
  %v1083 = vxor.u32 %v1079, 2147483648
  %v1084 = vmul.f32 %v1083, 1.442695
  %v1085 = vpow.pop %v1084
  %v1086 = vadd.f32 %v1085, 1.0
  %v1087 = vrcp.pop %v1086
  %v1088 = vmul.f32 1.0, %v1087
  %v1089 = vxor.u32 %v1080, 2147483648
  %v1090 = vmul.f32 %v1089, 1.442695
  %v1091 = vpow.pop %v1090
  %v1092 = vadd.f32 %v1091, 1.0
  %v1093 = vrcp.pop %v1092
  %v1094 = vmul.f32 1.0, %v1093
  %v1095 = vtanh.pop %v1081
  %v1096 = vxor.u32 %v1082, 2147483648
  %v1097 = vmul.f32 %v1096, 1.442695
  %v1098 = vpow.pop %v1097
  %v1099 = vadd.f32 %v1098, 1.0
  %v1100 = vrcp.pop %v1099
  %v1101 = vmul.f32 1.0, %v1100
  %v1102 = vmul.f32 %v1094, %v863
  %v1103 = vmul.f32 %v1088, %v1095
  %v1104 = vadd.f32 %v1102, %v1103
  %v1105 = vtanh.pop %v1104
  %v1106 = vmul.f32 %v1101, %v1105
  %s1107 = scalar_lea.vmem [#allocation4], 16
  %1108 = vst [vmem:[%s1107] sm:$0xff] %v1106
  %v1109 = vld [vmem:[%s3] sm:$0xff]
  %v1110 = vld [vmem:[%s3 + $0x8] sm:$0xff]
  %v1111 = vld [vmem:[%s3 + $0x10] sm:$0xff]
  %v1112 = vld [vmem:[%s3 + $0x18] sm:$0xff]
  %v1113 = vld [vmem:[%s3 + $0x20] sm:$0xff]
  %v1114 = vld [vmem:[%s3 + $0x28] sm:$0xff]
  %v1115 = vld [vmem:[%s3 + $0x30] sm:$0xff]
  %v1116 = vld [vmem:[%s3 + $0x38] sm:$0xff]
  %v1117 = vld [vmem:[%s3 + $0x40] sm:$0xff]
  %v1118 = vld [vmem:[%s3 + $0x48] sm:$0xff]
  %v1119 = vld [vmem:[%s3 + $0x50] sm:$0xff]
  %v1120 = vld [vmem:[%s3 + $0x58] sm:$0xff]
  %v1121 = vld [vmem:[%s3 + $0x60] sm:$0xff]
  %v1122 = vld [vmem:[%s3 + $0x68] sm:$0xff]
  %v1123 = vld [vmem:[%s3 + $0x70] sm:$0xff]
  %v1124 = vld [vmem:[%s3 + $0x78] sm:$0xff]
  %v1125 = vld [vmem:[%s3 + $0x80] sm:$0xff]
  %v1126 = vld [vmem:[%s3 + $0x88] sm:$0xff]
  %v1127 = vld [vmem:[%s3 + $0x90] sm:$0xff]
  %v1128 = vld [vmem:[%s3 + $0x98] sm:$0xff]
  %v1129 = vld [vmem:[%s3 + $0xa0] sm:$0xff]
  %v1130 = vld [vmem:[%s3 + $0xa8] sm:$0xff]
  %v1131 = vld [vmem:[%s3 + $0xb0] sm:$0xff]
  %v1132 = vld [vmem:[%s3 + $0xb8] sm:$0xff]
  %v1133 = vld [vmem:[%s3 + $0xc0] sm:$0xff]
  %v1134 = vld [vmem:[%s3 + $0xc8] sm:$0xff]
  %v1135 = vld [vmem:[%s3 + $0xd0] sm:$0xff]
  %v1136 = vld [vmem:[%s3 + $0xd8] sm:$0xff]
  %v1137 = vld [vmem:[%s3 + $0xe0] sm:$0xff]
  %v1138 = vld [vmem:[%s3 + $0xe8] sm:$0xff]
  %v1139 = vld [vmem:[%s3 + $0xf0] sm:$0xff]
  %v1140 = vld [vmem:[%s3 + $0xf8] sm:$0xff]
  %v1141 = vld [vmem:[%s3 + $0x100] sm:$0xff]
  %v1142 = vld [vmem:[%s3 + $0x108] sm:$0xff]
  %v1143 = vld [vmem:[%s3 + $0x110] sm:$0xff]
  %v1144 = vld [vmem:[%s3 + $0x118] sm:$0xff]
  %v1145 = vld [vmem:[%s3 + $0x120] sm:$0xff]
  %v1146 = vld [vmem:[%s3 + $0x128] sm:$0xff]
  %v1147 = vld [vmem:[%s3 + $0x130] sm:$0xff]
  %v1148 = vld [vmem:[%s3 + $0x138] sm:$0xff]
  %v1149 = vld [vmem:[%s3 + $0x140] sm:$0xff]
  %v1150 = vld [vmem:[%s3 + $0x148] sm:$0xff]
  %v1151 = vld [vmem:[%s3 + $0x150] sm:$0xff]
  %v1152 = vld [vmem:[%s3 + $0x158] sm:$0xff]
  %v1153 = vld [vmem:[%s3 + $0x160] sm:$0xff]
  %v1154 = vld [vmem:[%s3 + $0x168] sm:$0xff]
  %v1155 = vld [vmem:[%s3 + $0x170] sm:$0xff]
  %v1156 = vld [vmem:[%s3 + $0x178] sm:$0xff]
  %v1157 = vld [vmem:[%s3 + $0x180] sm:$0xff]
  %v1158 = vld [vmem:[%s3 + $0x188] sm:$0xff]
  %v1159 = vld [vmem:[%s3 + $0x190] sm:$0xff]
  %v1160 = vld [vmem:[%s3 + $0x198] sm:$0xff]
  %v1161 = vld [vmem:[%s3 + $0x1a0] sm:$0xff]
  %v1162 = vld [vmem:[%s3 + $0x1a8] sm:$0xff]
  %v1163 = vld [vmem:[%s3 + $0x1b0] sm:$0xff]
  %v1164 = vld [vmem:[%s3 + $0x1b8] sm:$0xff]
  %v1165 = vld [vmem:[%s3 + $0x1c0] sm:$0xff]
  %v1166 = vld [vmem:[%s3 + $0x1c8] sm:$0xff]
  %v1167 = vld [vmem:[%s3 + $0x1d0] sm:$0xff]
  %v1168 = vld [vmem:[%s3 + $0x1d8] sm:$0xff]
  %v1169 = vld [vmem:[%s3 + $0x1e0] sm:$0xff]
  %v1170 = vld [vmem:[%s3 + $0x1e8] sm:$0xff]
  %v1171 = vld [vmem:[%s3 + $0x1f0] sm:$0xff]
  %v1172 = vld [vmem:[%s3 + $0x1f8] sm:$0xff]
  %s1173 = scalar_lea.vmem [#allocation5], 96
  %v1174 = vld [vmem:[%s1173] sm:$0xff]
  %v1175 = vld [vmem:[%s1173 + $0x8] sm:$0xff]
  %v1176 = vld [vmem:[%s1173 + $0x10] sm:$0xff]
  %v1177 = vld [vmem:[%s1173 + $0x18] sm:$0xff]
  %1178 = vmatprep.subr.mxu0 %v1110
  %1179 = vmatpush1.msra.mxu0 %v1109
  %1180 = vmatprep.subr.mxu0 %v1114
  %1181 = vmatpush1.msra.mxu0 %v1113
  %1182 = vmatprep.subr.mxu0 %v1118
  %1183 = vmatpush1.msra.mxu0 %v1117
  %1184 = vmatprep.subr.mxu0 %v1122
  %1185 = vmatpush1.msra.mxu0 %v1121
  %1186 = vmatprep.subr.mxu0 %v1126
  %1187 = vmatpush1.msra.mxu0 %v1125
  %1188 = vmatprep.subr.mxu0 %v1130
  %1189 = vmatpush1.msra.mxu0 %v1129
  %1190 = vmatprep.subr.mxu0 %v1134
  %1191 = vmatpush1.msra.mxu0 %v1133
  %1192 = vmatprep.subr.mxu0 %v1138
  %1193 = vmatpush1.msra.mxu0 %v1137
  %1194 = vmatprep.subr.mxu0 %v1142
  %1195 = vmatpush1.msra.mxu0 %v1141
  %1196 = vmatprep.subr.mxu0 %v1146
  %1197 = vmatpush1.msra.mxu0 %v1145
  %1198 = vmatprep.subr.mxu0 %v1150
  %1199 = vmatpush1.msra.mxu0 %v1149
  %1200 = vmatprep.subr.mxu0 %v1154
  %1201 = vmatpush1.msra.mxu0 %v1153
  %1202 = vmatprep.subr.mxu0 %v1158
  %1203 = vmatpush1.msra.mxu0 %v1157
  %1204 = vmatprep.subr.mxu0 %v1162
  %1205 = vmatpush1.msra.mxu0 %v1161
  %1206 = vmatprep.subr.mxu0 %v1166
  %1207 = vmatpush1.msra.mxu0 %v1165
  %1208 = vmatprep.subr.mxu0 %v1170
  %1209 = vmatpush1.msra.mxu0 %v1169
  %1210 = vmatprep.subr.mxu0 0.0
  %1211 = vmatpush1.msra.mxu0 0.0
  %1212 = vmatprep.subr.mxu0 0.0
  %1213 = vmatpush1.msra.mxu0 0.0
  %1214 = vmatprep.subr.mxu0 0.0
  %1215 = vmatpush1.msra.mxu0 0.0
  %1216 = vmatprep.subr.mxu0 0.0
  %1217 = vmatpush1.msra.mxu0 0.0
  %1218 = vmatprep.subr.mxu0 0.0
  %1219 = vmatpush1.msra.mxu0 0.0
  %1220 = vmatprep.subr.mxu0 0.0
  %1221 = vmatpush1.msra.mxu0 0.0
  %1222 = vmatprep.subr.mxu0 0.0
  %1223 = vmatpush1.msra.mxu0 0.0
  %1224 = vmatprep.subr.mxu0 0.0
  %1225 = vmatpush1.msra.mxu0 0.0
  %1226 = vmatprep.subr.mxu0 0.0
  %1227 = vmatpush1.msra.mxu0 0.0
  %1228 = vmatprep.subr.mxu0 0.0
  %1229 = vmatpush1.msra.mxu0 0.0
  %1230 = vmatprep.subr.mxu0 0.0
  %1231 = vmatpush1.msra.mxu0 0.0
  %1232 = vmatprep.subr.mxu0 0.0
  %1233 = vmatpush1.msra.mxu0 0.0
  %1234 = vmatprep.subr.mxu0 0.0
  %1235 = vmatpush1.msra.mxu0 0.0
  %1236 = vmatprep.subr.mxu0 0.0
  %1237 = vmatpush1.msra.mxu0 0.0
  %1238 = vmatprep.subr.mxu0 0.0
  %1239 = vmatpush1.msra.mxu0 0.0
  %1240 = vmatprep.subr.mxu0 0.0
  %1241 = vmatpush1.msra.mxu0 0.0
  %1242 = vmatprep.mubr.f32.mxu0 0.0
  %1243 = vmatmul.mubr.f32.gmra.mrb[0].mxu0 %v1106
  %v1244 = vpop.f32.mrb[0].mxu0
  %v1245 = vadd.f32 0.0, %v1244
  %v1246 = vpop.f32.mrb[0].mxu0
  %v1247 = vadd.f32 0.0, %v1246
  %1248 = vdwg.mxu0
  %1249 = vmatprep.subr.mxu0 %v1112
  %1250 = vmatpush1.msra.mxu0 %v1111
  %1251 = vmatprep.subr.mxu0 %v1116
  %1252 = vmatpush1.msra.mxu0 %v1115
  %1253 = vmatprep.subr.mxu0 %v1120
  %1254 = vmatpush1.msra.mxu0 %v1119
  %1255 = vmatprep.subr.mxu0 %v1124
  %1256 = vmatpush1.msra.mxu0 %v1123
  %1257 = vmatprep.subr.mxu0 %v1128
  %1258 = vmatpush1.msra.mxu0 %v1127
  %1259 = vmatprep.subr.mxu0 %v1132
  %1260 = vmatpush1.msra.mxu0 %v1131
  %1261 = vmatprep.subr.mxu0 %v1136
  %1262 = vmatpush1.msra.mxu0 %v1135
  %1263 = vmatprep.subr.mxu0 %v1140
  %1264 = vmatpush1.msra.mxu0 %v1139
  %1265 = vmatprep.subr.mxu0 %v1144
  %1266 = vmatpush1.msra.mxu0 %v1143
  %1267 = vmatprep.subr.mxu0 %v1148
  %1268 = vmatpush1.msra.mxu0 %v1147
  %1269 = vmatprep.subr.mxu0 %v1152
  %1270 = vmatpush1.msra.mxu0 %v1151
  %1271 = vmatprep.subr.mxu0 %v1156
  %1272 = vmatpush1.msra.mxu0 %v1155
  %1273 = vmatprep.subr.mxu0 %v1160
  %1274 = vmatpush1.msra.mxu0 %v1159
  %1275 = vmatprep.subr.mxu0 %v1164
  %1276 = vmatpush1.msra.mxu0 %v1163
  %1277 = vmatprep.subr.mxu0 %v1168
  %1278 = vmatpush1.msra.mxu0 %v1167
  %1279 = vmatprep.subr.mxu0 %v1172
  %1280 = vmatpush1.msra.mxu0 %v1171
  %1281 = vmatprep.subr.mxu0 0.0
  %1282 = vmatpush1.msra.mxu0 0.0
  %1283 = vmatprep.subr.mxu0 0.0
  %1284 = vmatpush1.msra.mxu0 0.0
  %1285 = vmatprep.subr.mxu0 0.0
  %1286 = vmatpush1.msra.mxu0 0.0
  %1287 = vmatprep.subr.mxu0 0.0
  %1288 = vmatpush1.msra.mxu0 0.0
  %1289 = vmatprep.subr.mxu0 0.0
  %1290 = vmatpush1.msra.mxu0 0.0
  %1291 = vmatprep.subr.mxu0 0.0
  %1292 = vmatpush1.msra.mxu0 0.0
  %1293 = vmatprep.subr.mxu0 0.0
  %1294 = vmatpush1.msra.mxu0 0.0
  %1295 = vmatprep.subr.mxu0 0.0
  %1296 = vmatpush1.msra.mxu0 0.0
  %1297 = vmatprep.subr.mxu0 0.0
  %1298 = vmatpush1.msra.mxu0 0.0
  %1299 = vmatprep.subr.mxu0 0.0
  %1300 = vmatpush1.msra.mxu0 0.0
  %1301 = vmatprep.subr.mxu0 0.0
  %1302 = vmatpush1.msra.mxu0 0.0
  %1303 = vmatprep.subr.mxu0 0.0
  %1304 = vmatpush1.msra.mxu0 0.0
  %1305 = vmatprep.subr.mxu0 0.0
  %1306 = vmatpush1.msra.mxu0 0.0
  %1307 = vmatprep.subr.mxu0 0.0
  %1308 = vmatpush1.msra.mxu0 0.0
  %1309 = vmatprep.subr.mxu0 0.0
  %1310 = vmatpush1.msra.mxu0 0.0
  %1311 = vmatprep.subr.mxu0 0.0
  %1312 = vmatpush1.msra.mxu0 0.0
  %1313 = vmatprep.mubr.f32.mxu0 0.0
  %1314 = vmatmul.mubr.f32.gmra.mrb[0].mxu0 %v1106
  %v1315 = vpop.f32.mrb[0].mxu0
  %v1316 = vadd.f32 0.0, %v1315
  %v1317 = vpop.f32.mrb[0].mxu0
  %v1318 = vadd.f32 0.0, %v1317
  %1319 = vdwg.mxu0
  %v1320 = vadd.f32 %v1174, %v1245
  %v1321 = vadd.f32 %v1175, %v1247
  %v1322 = vadd.f32 %v1176, %v1316
  %v1323 = vadd.f32 %v1177, %v1318
  %v1324 = vxor.u32 %v1320, 2147483648
  %v1325 = vmul.f32 %v1324, 1.442695
  %v1326 = vpow.pop %v1325
  %v1327 = vadd.f32 %v1326, 1.0
  %v1328 = vrcp.pop %v1327
  %v1329 = vmul.f32 1.0, %v1328
  %v1330 = vxor.u32 %v1321, 2147483648
  %v1331 = vmul.f32 %v1330, 1.442695
  %v1332 = vpow.pop %v1331
  %v1333 = vadd.f32 %v1332, 1.0
  %v1334 = vrcp.pop %v1333
  %v1335 = vmul.f32 1.0, %v1334
  %v1336 = vtanh.pop %v1322
  %v1337 = vxor.u32 %v1323, 2147483648
  %v1338 = vmul.f32 %v1337, 1.442695
  %v1339 = vpow.pop %v1338
  %v1340 = vadd.f32 %v1339, 1.0
  %v1341 = vrcp.pop %v1340
  %v1342 = vmul.f32 1.0, %v1341
  %v1343 = vmul.f32 %v1335, %v1104
  %v1344 = vmul.f32 %v1329, %v1336
  %v1345 = vadd.f32 %v1343, %v1344
  %v1346 = vtanh.pop %v1345
  %v1347 = vmul.f32 %v1342, %v1346
  %s1348 = scalar_lea.vmem [#allocation4], 24
  %1349 = vst [vmem:[%s1348] sm:$0xff] %v1347
  %v1350 = vld [vmem:[%s3] sm:$0xff]
  %v1351 = vld [vmem:[%s3 + $0x8] sm:$0xff]
  %v1352 = vld [vmem:[%s3 + $0x10] sm:$0xff]
  %v1353 = vld [vmem:[%s3 + $0x18] sm:$0xff]
  %v1354 = vld [vmem:[%s3 + $0x20] sm:$0xff]
  %v1355 = vld [vmem:[%s3 + $0x28] sm:$0xff]
  %v1356 = vld [vmem:[%s3 + $0x30] sm:$0xff]
  %v1357 = vld [vmem:[%s3 + $0x38] sm:$0xff]
  %v1358 = vld [vmem:[%s3 + $0x40] sm:$0xff]
  %v1359 = vld [vmem:[%s3 + $0x48] sm:$0xff]
  %v1360 = vld [vmem:[%s3 + $0x50] sm:$0xff]
  %v1361 = vld [vmem:[%s3 + $0x58] sm:$0xff]
  %v1362 = vld [vmem:[%s3 + $0x60] sm:$0xff]
  %v1363 = vld [vmem:[%s3 + $0x68] sm:$0xff]
  %v1364 = vld [vmem:[%s3 + $0x70] sm:$0xff]
  %v1365 = vld [vmem:[%s3 + $0x78] sm:$0xff]
  %v1366 = vld [vmem:[%s3 + $0x80] sm:$0xff]
  %v1367 = vld [vmem:[%s3 + $0x88] sm:$0xff]
  %v1368 = vld [vmem:[%s3 + $0x90] sm:$0xff]
  %v1369 = vld [vmem:[%s3 + $0x98] sm:$0xff]
  %v1370 = vld [vmem:[%s3 + $0xa0] sm:$0xff]
  %v1371 = vld [vmem:[%s3 + $0xa8] sm:$0xff]
  %v1372 = vld [vmem:[%s3 + $0xb0] sm:$0xff]
  %v1373 = vld [vmem:[%s3 + $0xb8] sm:$0xff]
  %v1374 = vld [vmem:[%s3 + $0xc0] sm:$0xff]
  %v1375 = vld [vmem:[%s3 + $0xc8] sm:$0xff]
  %v1376 = vld [vmem:[%s3 + $0xd0] sm:$0xff]
  %v1377 = vld [vmem:[%s3 + $0xd8] sm:$0xff]
  %v1378 = vld [vmem:[%s3 + $0xe0] sm:$0xff]
  %v1379 = vld [vmem:[%s3 + $0xe8] sm:$0xff]
  %v1380 = vld [vmem:[%s3 + $0xf0] sm:$0xff]
  %v1381 = vld [vmem:[%s3 + $0xf8] sm:$0xff]
  %v1382 = vld [vmem:[%s3 + $0x100] sm:$0xff]
  %v1383 = vld [vmem:[%s3 + $0x108] sm:$0xff]
  %v1384 = vld [vmem:[%s3 + $0x110] sm:$0xff]
  %v1385 = vld [vmem:[%s3 + $0x118] sm:$0xff]
  %v1386 = vld [vmem:[%s3 + $0x120] sm:$0xff]
  %v1387 = vld [vmem:[%s3 + $0x128] sm:$0xff]
  %v1388 = vld [vmem:[%s3 + $0x130] sm:$0xff]
  %v1389 = vld [vmem:[%s3 + $0x138] sm:$0xff]
  %v1390 = vld [vmem:[%s3 + $0x140] sm:$0xff]
  %v1391 = vld [vmem:[%s3 + $0x148] sm:$0xff]
  %v1392 = vld [vmem:[%s3 + $0x150] sm:$0xff]
  %v1393 = vld [vmem:[%s3 + $0x158] sm:$0xff]
  %v1394 = vld [vmem:[%s3 + $0x160] sm:$0xff]
  %v1395 = vld [vmem:[%s3 + $0x168] sm:$0xff]
  %v1396 = vld [vmem:[%s3 + $0x170] sm:$0xff]
  %v1397 = vld [vmem:[%s3 + $0x178] sm:$0xff]
  %v1398 = vld [vmem:[%s3 + $0x180] sm:$0xff]
  %v1399 = vld [vmem:[%s3 + $0x188] sm:$0xff]
  %v1400 = vld [vmem:[%s3 + $0x190] sm:$0xff]
  %v1401 = vld [vmem:[%s3 + $0x198] sm:$0xff]
  %v1402 = vld [vmem:[%s3 + $0x1a0] sm:$0xff]
  %v1403 = vld [vmem:[%s3 + $0x1a8] sm:$0xff]
  %v1404 = vld [vmem:[%s3 + $0x1b0] sm:$0xff]
  %v1405 = vld [vmem:[%s3 + $0x1b8] sm:$0xff]
  %v1406 = vld [vmem:[%s3 + $0x1c0] sm:$0xff]
  %v1407 = vld [vmem:[%s3 + $0x1c8] sm:$0xff]
  %v1408 = vld [vmem:[%s3 + $0x1d0] sm:$0xff]
  %v1409 = vld [vmem:[%s3 + $0x1d8] sm:$0xff]
  %v1410 = vld [vmem:[%s3 + $0x1e0] sm:$0xff]
  %v1411 = vld [vmem:[%s3 + $0x1e8] sm:$0xff]
  %v1412 = vld [vmem:[%s3 + $0x1f0] sm:$0xff]
  %v1413 = vld [vmem:[%s3 + $0x1f8] sm:$0xff]
  %s1414 = scalar_lea.vmem [#allocation5], 128
  %v1415 = vld [vmem:[%s1414] sm:$0xff]
  %v1416 = vld [vmem:[%s1414 + $0x8] sm:$0xff]
  %v1417 = vld [vmem:[%s1414 + $0x10] sm:$0xff]
  %v1418 = vld [vmem:[%s1414 + $0x18] sm:$0xff]
  %1419 = vmatprep.subr.mxu0 %v1351
  %1420 = vmatpush1.msra.mxu0 %v1350
  %1421 = vmatprep.subr.mxu0 %v1355
  %1422 = vmatpush1.msra.mxu0 %v1354
  %1423 = vmatprep.subr.mxu0 %v1359
  %1424 = vmatpush1.msra.mxu0 %v1358
  %1425 = vmatprep.subr.mxu0 %v1363
  %1426 = vmatpush1.msra.mxu0 %v1362
  %1427 = vmatprep.subr.mxu0 %v1367
  %1428 = vmatpush1.msra.mxu0 %v1366
  %1429 = vmatprep.subr.mxu0 %v1371
  %1430 = vmatpush1.msra.mxu0 %v1370
  %1431 = vmatprep.subr.mxu0 %v1375
  %1432 = vmatpush1.msra.mxu0 %v1374
  %1433 = vmatprep.subr.mxu0 %v1379
  %1434 = vmatpush1.msra.mxu0 %v1378
  %1435 = vmatprep.subr.mxu0 %v1383
  %1436 = vmatpush1.msra.mxu0 %v1382
  %1437 = vmatprep.subr.mxu0 %v1387
  %1438 = vmatpush1.msra.mxu0 %v1386
  %1439 = vmatprep.subr.mxu0 %v1391
  %1440 = vmatpush1.msra.mxu0 %v1390
  %1441 = vmatprep.subr.mxu0 %v1395
  %1442 = vmatpush1.msra.mxu0 %v1394
  %1443 = vmatprep.subr.mxu0 %v1399
  %1444 = vmatpush1.msra.mxu0 %v1398
  %1445 = vmatprep.subr.mxu0 %v1403
  %1446 = vmatpush1.msra.mxu0 %v1402
  %1447 = vmatprep.subr.mxu0 %v1407
  %1448 = vmatpush1.msra.mxu0 %v1406
  %1449 = vmatprep.subr.mxu0 %v1411
  %1450 = vmatpush1.msra.mxu0 %v1410
  %1451 = vmatprep.subr.mxu0 0.0
  %1452 = vmatpush1.msra.mxu0 0.0
  %1453 = vmatprep.subr.mxu0 0.0
  %1454 = vmatpush1.msra.mxu0 0.0
  %1455 = vmatprep.subr.mxu0 0.0
  %1456 = vmatpush1.msra.mxu0 0.0
  %1457 = vmatprep.subr.mxu0 0.0
  %1458 = vmatpush1.msra.mxu0 0.0
  %1459 = vmatprep.subr.mxu0 0.0
  %1460 = vmatpush1.msra.mxu0 0.0
  %1461 = vmatprep.subr.mxu0 0.0
  %1462 = vmatpush1.msra.mxu0 0.0
  %1463 = vmatprep.subr.mxu0 0.0
  %1464 = vmatpush1.msra.mxu0 0.0
  %1465 = vmatprep.subr.mxu0 0.0
  %1466 = vmatpush1.msra.mxu0 0.0
  %1467 = vmatprep.subr.mxu0 0.0
  %1468 = vmatpush1.msra.mxu0 0.0
  %1469 = vmatprep.subr.mxu0 0.0
  %1470 = vmatpush1.msra.mxu0 0.0
  %1471 = vmatprep.subr.mxu0 0.0
  %1472 = vmatpush1.msra.mxu0 0.0
  %1473 = vmatprep.subr.mxu0 0.0
  %1474 = vmatpush1.msra.mxu0 0.0
  %1475 = vmatprep.subr.mxu0 0.0
  %1476 = vmatpush1.msra.mxu0 0.0
  %1477 = vmatprep.subr.mxu0 0.0
  %1478 = vmatpush1.msra.mxu0 0.0
  %1479 = vmatprep.subr.mxu0 0.0
  %1480 = vmatpush1.msra.mxu0 0.0
  %1481 = vmatprep.subr.mxu0 0.0
  %1482 = vmatpush1.msra.mxu0 0.0
  %1483 = vmatprep.mubr.f32.mxu0 0.0
  %1484 = vmatmul.mubr.f32.gmra.mrb[0].mxu0 %v1347
  %v1485 = vpop.f32.mrb[0].mxu0
  %v1486 = vadd.f32 0.0, %v1485
  %v1487 = vpop.f32.mrb[0].mxu0
  %v1488 = vadd.f32 0.0, %v1487
  %1489 = vdwg.mxu0
  %1490 = vmatprep.subr.mxu0 %v1353
  %1491 = vmatpush1.msra.mxu0 %v1352
  %1492 = vmatprep.subr.mxu0 %v1357
  %1493 = vmatpush1.msra.mxu0 %v1356
  %1494 = vmatprep.subr.mxu0 %v1361
  %1495 = vmatpush1.msra.mxu0 %v1360
  %1496 = vmatprep.subr.mxu0 %v1365
  %1497 = vmatpush1.msra.mxu0 %v1364
  %1498 = vmatprep.subr.mxu0 %v1369
  %1499 = vmatpush1.msra.mxu0 %v1368
  %1500 = vmatprep.subr.mxu0 %v1373
  %1501 = vmatpush1.msra.mxu0 %v1372
  %1502 = vmatprep.subr.mxu0 %v1377
  %1503 = vmatpush1.msra.mxu0 %v1376
  %1504 = vmatprep.subr.mxu0 %v1381
  %1505 = vmatpush1.msra.mxu0 %v1380
  %1506 = vmatprep.subr.mxu0 %v1385
  %1507 = vmatpush1.msra.mxu0 %v1384
  %1508 = vmatprep.subr.mxu0 %v1389
  %1509 = vmatpush1.msra.mxu0 %v1388
  %1510 = vmatprep.subr.mxu0 %v1393
  %1511 = vmatpush1.msra.mxu0 %v1392
  %1512 = vmatprep.subr.mxu0 %v1397
  %1513 = vmatpush1.msra.mxu0 %v1396
  %1514 = vmatprep.subr.mxu0 %v1401
  %1515 = vmatpush1.msra.mxu0 %v1400
  %1516 = vmatprep.subr.mxu0 %v1405
  %1517 = vmatpush1.msra.mxu0 %v1404
  %1518 = vmatprep.subr.mxu0 %v1409
  %1519 = vmatpush1.msra.mxu0 %v1408
  %1520 = vmatprep.subr.mxu0 %v1413
  %1521 = vmatpush1.msra.mxu0 %v1412
  %1522 = vmatprep.subr.mxu0 0.0
  %1523 = vmatpush1.msra.mxu0 0.0
  %1524 = vmatprep.subr.mxu0 0.0
  %1525 = vmatpush1.msra.mxu0 0.0
  %1526 = vmatprep.subr.mxu0 0.0
  %1527 = vmatpush1.msra.mxu0 0.0
  %1528 = vmatprep.subr.mxu0 0.0
  %1529 = vmatpush1.msra.mxu0 0.0
  %1530 = vmatprep.subr.mxu0 0.0
  %1531 = vmatpush1.msra.mxu0 0.0
  %1532 = vmatprep.subr.mxu0 0.0
  %1533 = vmatpush1.msra.mxu0 0.0
  %1534 = vmatprep.subr.mxu0 0.0
  %1535 = vmatpush1.msra.mxu0 0.0
  %1536 = vmatprep.subr.mxu0 0.0
  %1537 = vmatpush1.msra.mxu0 0.0
  %1538 = vmatprep.subr.mxu0 0.0
  %1539 = vmatpush1.msra.mxu0 0.0
  %1540 = vmatprep.subr.mxu0 0.0
  %1541 = vmatpush1.msra.mxu0 0.0
  %1542 = vmatprep.subr.mxu0 0.0
  %1543 = vmatpush1.msra.mxu0 0.0
  %1544 = vmatprep.subr.mxu0 0.0
  %1545 = vmatpush1.msra.mxu0 0.0
  %1546 = vmatprep.subr.mxu0 0.0
  %1547 = vmatpush1.msra.mxu0 0.0
  %1548 = vmatprep.subr.mxu0 0.0
  %1549 = vmatpush1.msra.mxu0 0.0
  %1550 = vmatprep.subr.mxu0 0.0
  %1551 = vmatpush1.msra.mxu0 0.0
  %1552 = vmatprep.subr.mxu0 0.0
  %1553 = vmatpush1.msra.mxu0 0.0
  %1554 = vmatprep.mubr.f32.mxu0 0.0
  %1555 = vmatmul.mubr.f32.gmra.mrb[0].mxu0 %v1347
  %v1556 = vpop.f32.mrb[0].mxu0
  %v1557 = vadd.f32 0.0, %v1556
  %v1558 = vpop.f32.mrb[0].mxu0
  %v1559 = vadd.f32 0.0, %v1558
  %1560 = vdwg.mxu0
  %v1561 = vadd.f32 %v1415, %v1486
  %v1562 = vadd.f32 %v1416, %v1488
  %v1563 = vadd.f32 %v1417, %v1557
  %v1564 = vadd.f32 %v1418, %v1559
  %v1565 = vxor.u32 %v1561, 2147483648
  %v1566 = vmul.f32 %v1565, 1.442695
  %v1567 = vpow.pop %v1566
  %v1568 = vadd.f32 %v1567, 1.0
  %v1569 = vrcp.pop %v1568
  %v1570 = vmul.f32 1.0, %v1569
  %v1571 = vxor.u32 %v1562, 2147483648
  %v1572 = vmul.f32 %v1571, 1.442695
  %v1573 = vpow.pop %v1572
  %v1574 = vadd.f32 %v1573, 1.0
  %v1575 = vrcp.pop %v1574
  %v1576 = vmul.f32 1.0, %v1575
  %v1577 = vtanh.pop %v1563
  %v1578 = vxor.u32 %v1564, 2147483648
  %v1579 = vmul.f32 %v1578, 1.442695
  %v1580 = vpow.pop %v1579
  %v1581 = vadd.f32 %v1580, 1.0
  %v1582 = vrcp.pop %v1581
  %v1583 = vmul.f32 1.0, %v1582
  %v1584 = vmul.f32 %v1576, %v1345
  %v1585 = vmul.f32 %v1570, %v1577
  %v1586 = vadd.f32 %v1584, %v1585
  %v1587 = vtanh.pop %v1586
  %v1588 = vmul.f32 %v1583, %v1587
  %s1589 = scalar_lea.vmem [#allocation4], 32
  %1590 = vst [vmem:[%s1589] sm:$0xff] %v1588
  %v1591 = vld [vmem:[%s3] sm:$0xff]
  %v1592 = vld [vmem:[%s3 + $0x8] sm:$0xff]
  %v1593 = vld [vmem:[%s3 + $0x10] sm:$0xff]
  %v1594 = vld [vmem:[%s3 + $0x18] sm:$0xff]
  %v1595 = vld [vmem:[%s3 + $0x20] sm:$0xff]
  %v1596 = vld [vmem:[%s3 + $0x28] sm:$0xff]
  %v1597 = vld [vmem:[%s3 + $0x30] sm:$0xff]
  %v1598 = vld [vmem:[%s3 + $0x38] sm:$0xff]
  %v1599 = vld [vmem:[%s3 + $0x40] sm:$0xff]
  %v1600 = vld [vmem:[%s3 + $0x48] sm:$0xff]
  %v1601 = vld [vmem:[%s3 + $0x50] sm:$0xff]
  %v1602 = vld [vmem:[%s3 + $0x58] sm:$0xff]
  %v1603 = vld [vmem:[%s3 + $0x60] sm:$0xff]
  %v1604 = vld [vmem:[%s3 + $0x68] sm:$0xff]
  %v1605 = vld [vmem:[%s3 + $0x70] sm:$0xff]
  %v1606 = vld [vmem:[%s3 + $0x78] sm:$0xff]
  %v1607 = vld [vmem:[%s3 + $0x80] sm:$0xff]
  %v1608 = vld [vmem:[%s3 + $0x88] sm:$0xff]
  %v1609 = vld [vmem:[%s3 + $0x90] sm:$0xff]
  %v1610 = vld [vmem:[%s3 + $0x98] sm:$0xff]
  %v1611 = vld [vmem:[%s3 + $0xa0] sm:$0xff]
  %v1612 = vld [vmem:[%s3 + $0xa8] sm:$0xff]
  %v1613 = vld [vmem:[%s3 + $0xb0] sm:$0xff]
  %v1614 = vld [vmem:[%s3 + $0xb8] sm:$0xff]
  %v1615 = vld [vmem:[%s3 + $0xc0] sm:$0xff]
  %v1616 = vld [vmem:[%s3 + $0xc8] sm:$0xff]
  %v1617 = vld [vmem:[%s3 + $0xd0] sm:$0xff]
  %v1618 = vld [vmem:[%s3 + $0xd8] sm:$0xff]
  %v1619 = vld [vmem:[%s3 + $0xe0] sm:$0xff]
  %v1620 = vld [vmem:[%s3 + $0xe8] sm:$0xff]
  %v1621 = vld [vmem:[%s3 + $0xf0] sm:$0xff]
  %v1622 = vld [vmem:[%s3 + $0xf8] sm:$0xff]
  %v1623 = vld [vmem:[%s3 + $0x100] sm:$0xff]
  %v1624 = vld [vmem:[%s3 + $0x108] sm:$0xff]
  %v1625 = vld [vmem:[%s3 + $0x110] sm:$0xff]
  %v1626 = vld [vmem:[%s3 + $0x118] sm:$0xff]
  %v1627 = vld [vmem:[%s3 + $0x120] sm:$0xff]
  %v1628 = vld [vmem:[%s3 + $0x128] sm:$0xff]
  %v1629 = vld [vmem:[%s3 + $0x130] sm:$0xff]
  %v1630 = vld [vmem:[%s3 + $0x138] sm:$0xff]
  %v1631 = vld [vmem:[%s3 + $0x140] sm:$0xff]
  %v1632 = vld [vmem:[%s3 + $0x148] sm:$0xff]
  %v1633 = vld [vmem:[%s3 + $0x150] sm:$0xff]
  %v1634 = vld [vmem:[%s3 + $0x158] sm:$0xff]
  %v1635 = vld [vmem:[%s3 + $0x160] sm:$0xff]
  %v1636 = vld [vmem:[%s3 + $0x168] sm:$0xff]
  %v1637 = vld [vmem:[%s3 + $0x170] sm:$0xff]
  %v1638 = vld [vmem:[%s3 + $0x178] sm:$0xff]
  %v1639 = vld [vmem:[%s3 + $0x180] sm:$0xff]
  %v1640 = vld [vmem:[%s3 + $0x188] sm:$0xff]
  %v1641 = vld [vmem:[%s3 + $0x190] sm:$0xff]
  %v1642 = vld [vmem:[%s3 + $0x198] sm:$0xff]
  %v1643 = vld [vmem:[%s3 + $0x1a0] sm:$0xff]
  %v1644 = vld [vmem:[%s3 + $0x1a8] sm:$0xff]
  %v1645 = vld [vmem:[%s3 + $0x1b0] sm:$0xff]
  %v1646 = vld [vmem:[%s3 + $0x1b8] sm:$0xff]
  %v1647 = vld [vmem:[%s3 + $0x1c0] sm:$0xff]
  %v1648 = vld [vmem:[%s3 + $0x1c8] sm:$0xff]
  %v1649 = vld [vmem:[%s3 + $0x1d0] sm:$0xff]
  %v1650 = vld [vmem:[%s3 + $0x1d8] sm:$0xff]
  %v1651 = vld [vmem:[%s3 + $0x1e0] sm:$0xff]
  %v1652 = vld [vmem:[%s3 + $0x1e8] sm:$0xff]
  %v1653 = vld [vmem:[%s3 + $0x1f0] sm:$0xff]
  %v1654 = vld [vmem:[%s3 + $0x1f8] sm:$0xff]
  %s1655 = scalar_lea.vmem [#allocation5], 160
  %v1656 = vld [vmem:[%s1655] sm:$0xff]
  %v1657 = vld [vmem:[%s1655 + $0x8] sm:$0xff]
  %v1658 = vld [vmem:[%s1655 + $0x10] sm:$0xff]
  %v1659 = vld [vmem:[%s1655 + $0x18] sm:$0xff]
  %1660 = vmatprep.subr.mxu0 %v1592
  %1661 = vmatpush1.msra.mxu0 %v1591
  %1662 = vmatprep.subr.mxu0 %v1596
  %1663 = vmatpush1.msra.mxu0 %v1595
  %1664 = vmatprep.subr.mxu0 %v1600
  %1665 = vmatpush1.msra.mxu0 %v1599
  %1666 = vmatprep.subr.mxu0 %v1604
  %1667 = vmatpush1.msra.mxu0 %v1603
  %1668 = vmatprep.subr.mxu0 %v1608
  %1669 = vmatpush1.msra.mxu0 %v1607
  %1670 = vmatprep.subr.mxu0 %v1612
  %1671 = vmatpush1.msra.mxu0 %v1611
  %1672 = vmatprep.subr.mxu0 %v1616
  %1673 = vmatpush1.msra.mxu0 %v1615
  %1674 = vmatprep.subr.mxu0 %v1620
  %1675 = vmatpush1.msra.mxu0 %v1619
  %1676 = vmatprep.subr.mxu0 %v1624
  %1677 = vmatpush1.msra.mxu0 %v1623
  %1678 = vmatprep.subr.mxu0 %v1628
  %1679 = vmatpush1.msra.mxu0 %v1627
  %1680 = vmatprep.subr.mxu0 %v1632
  %1681 = vmatpush1.msra.mxu0 %v1631
  %1682 = vmatprep.subr.mxu0 %v1636
  %1683 = vmatpush1.msra.mxu0 %v1635
  %1684 = vmatprep.subr.mxu0 %v1640
  %1685 = vmatpush1.msra.mxu0 %v1639
  %1686 = vmatprep.subr.mxu0 %v1644
  %1687 = vmatpush1.msra.mxu0 %v1643
  %1688 = vmatprep.subr.mxu0 %v1648
  %1689 = vmatpush1.msra.mxu0 %v1647
  %1690 = vmatprep.subr.mxu0 %v1652
  %1691 = vmatpush1.msra.mxu0 %v1651
  %1692 = vmatprep.subr.mxu0 0.0
  %1693 = vmatpush1.msra.mxu0 0.0
  %1694 = vmatprep.subr.mxu0 0.0
  %1695 = vmatpush1.msra.mxu0 0.0
  %1696 = vmatprep.subr.mxu0 0.0
  %1697 = vmatpush1.msra.mxu0 0.0
  %1698 = vmatprep.subr.mxu0 0.0
  %1699 = vmatpush1.msra.mxu0 0.0
  %1700 = vmatprep.subr.mxu0 0.0
  %1701 = vmatpush1.msra.mxu0 0.0
  %1702 = vmatprep.subr.mxu0 0.0
  %1703 = vmatpush1.msra.mxu0 0.0
  %1704 = vmatprep.subr.mxu0 0.0
  %1705 = vmatpush1.msra.mxu0 0.0
  %1706 = vmatprep.subr.mxu0 0.0
  %1707 = vmatpush1.msra.mxu0 0.0
  %1708 = vmatprep.subr.mxu0 0.0
  %1709 = vmatpush1.msra.mxu0 0.0
  %1710 = vmatprep.subr.mxu0 0.0
  %1711 = vmatpush1.msra.mxu0 0.0
  %1712 = vmatprep.subr.mxu0 0.0
  %1713 = vmatpush1.msra.mxu0 0.0
  %1714 = vmatprep.subr.mxu0 0.0
  %1715 = vmatpush1.msra.mxu0 0.0
  %1716 = vmatprep.subr.mxu0 0.0
  %1717 = vmatpush1.msra.mxu0 0.0
  %1718 = vmatprep.subr.mxu0 0.0
  %1719 = vmatpush1.msra.mxu0 0.0
  %1720 = vmatprep.subr.mxu0 0.0
  %1721 = vmatpush1.msra.mxu0 0.0
  %1722 = vmatprep.subr.mxu0 0.0
  %1723 = vmatpush1.msra.mxu0 0.0
  %1724 = vmatprep.mubr.f32.mxu0 0.0
  %1725 = vmatmul.mubr.f32.gmra.mrb[0].mxu0 %v1588
  %v1726 = vpop.f32.mrb[0].mxu0
  %v1727 = vadd.f32 0.0, %v1726
  %v1728 = vpop.f32.mrb[0].mxu0
  %v1729 = vadd.f32 0.0, %v1728
  %1730 = vdwg.mxu0
  %1731 = vmatprep.subr.mxu0 %v1594
  %1732 = vmatpush1.msra.mxu0 %v1593
  %1733 = vmatprep.subr.mxu0 %v1598
  %1734 = vmatpush1.msra.mxu0 %v1597
  %1735 = vmatprep.subr.mxu0 %v1602
  %1736 = vmatpush1.msra.mxu0 %v1601
  %1737 = vmatprep.subr.mxu0 %v1606
  %1738 = vmatpush1.msra.mxu0 %v1605
  %1739 = vmatprep.subr.mxu0 %v1610
  %1740 = vmatpush1.msra.mxu0 %v1609
  %1741 = vmatprep.subr.mxu0 %v1614
  %1742 = vmatpush1.msra.mxu0 %v1613
  %1743 = vmatprep.subr.mxu0 %v1618
  %1744 = vmatpush1.msra.mxu0 %v1617
  %1745 = vmatprep.subr.mxu0 %v1622
  %1746 = vmatpush1.msra.mxu0 %v1621
  %1747 = vmatprep.subr.mxu0 %v1626
  %1748 = vmatpush1.msra.mxu0 %v1625
  %1749 = vmatprep.subr.mxu0 %v1630
  %1750 = vmatpush1.msra.mxu0 %v1629
  %1751 = vmatprep.subr.mxu0 %v1634
  %1752 = vmatpush1.msra.mxu0 %v1633
  %1753 = vmatprep.subr.mxu0 %v1638
  %1754 = vmatpush1.msra.mxu0 %v1637
  %1755 = vmatprep.subr.mxu0 %v1642
  %1756 = vmatpush1.msra.mxu0 %v1641
  %1757 = vmatprep.subr.mxu0 %v1646
  %1758 = vmatpush1.msra.mxu0 %v1645
  %1759 = vmatprep.subr.mxu0 %v1650
  %1760 = vmatpush1.msra.mxu0 %v1649
  %1761 = vmatprep.subr.mxu0 %v1654
  %1762 = vmatpush1.msra.mxu0 %v1653
  %1763 = vmatprep.subr.mxu0 0.0
  %1764 = vmatpush1.msra.mxu0 0.0
  %1765 = vmatprep.subr.mxu0 0.0
  %1766 = vmatpush1.msra.mxu0 0.0
  %1767 = vmatprep.subr.mxu0 0.0
  %1768 = vmatpush1.msra.mxu0 0.0
  %1769 = vmatprep.subr.mxu0 0.0
  %1770 = vmatpush1.msra.mxu0 0.0
  %1771 = vmatprep.subr.mxu0 0.0
  %1772 = vmatpush1.msra.mxu0 0.0
  %1773 = vmatprep.subr.mxu0 0.0
  %1774 = vmatpush1.msra.mxu0 0.0
  %1775 = vmatprep.subr.mxu0 0.0
  %1776 = vmatpush1.msra.mxu0 0.0
  %1777 = vmatprep.subr.mxu0 0.0
  %1778 = vmatpush1.msra.mxu0 0.0
  %1779 = vmatprep.subr.mxu0 0.0
  %1780 = vmatpush1.msra.mxu0 0.0
  %1781 = vmatprep.subr.mxu0 0.0
  %1782 = vmatpush1.msra.mxu0 0.0
  %1783 = vmatprep.subr.mxu0 0.0
  %1784 = vmatpush1.msra.mxu0 0.0
  %1785 = vmatprep.subr.mxu0 0.0
  %1786 = vmatpush1.msra.mxu0 0.0
  %1787 = vmatprep.subr.mxu0 0.0
  %1788 = vmatpush1.msra.mxu0 0.0
  %1789 = vmatprep.subr.mxu0 0.0
  %1790 = vmatpush1.msra.mxu0 0.0
  %1791 = vmatprep.subr.mxu0 0.0
  %1792 = vmatpush1.msra.mxu0 0.0
  %1793 = vmatprep.subr.mxu0 0.0
  %1794 = vmatpush1.msra.mxu0 0.0
  %1795 = vmatprep.mubr.f32.mxu0 0.0
  %1796 = vmatmul.mubr.f32.gmra.mrb[0].mxu0 %v1588
  %v1797 = vpop.f32.mrb[0].mxu0
  %v1798 = vadd.f32 0.0, %v1797
  %v1799 = vpop.f32.mrb[0].mxu0
  %v1800 = vadd.f32 0.0, %v1799
  %1801 = vdwg.mxu0
  %v1802 = vadd.f32 %v1656, %v1727
  %v1803 = vadd.f32 %v1657, %v1729
  %v1804 = vadd.f32 %v1658, %v1798
  %v1805 = vadd.f32 %v1659, %v1800
  %v1806 = vxor.u32 %v1802, 2147483648
  %v1807 = vmul.f32 %v1806, 1.442695
  %v1808 = vpow.pop %v1807
  %v1809 = vadd.f32 %v1808, 1.0
  %v1810 = vrcp.pop %v1809
  %v1811 = vmul.f32 1.0, %v1810
  %v1812 = vxor.u32 %v1803, 2147483648
  %v1813 = vmul.f32 %v1812, 1.442695
  %v1814 = vpow.pop %v1813
  %v1815 = vadd.f32 %v1814, 1.0
  %v1816 = vrcp.pop %v1815
  %v1817 = vmul.f32 1.0, %v1816
  %v1818 = vtanh.pop %v1804
  %v1819 = vxor.u32 %v1805, 2147483648
  %v1820 = vmul.f32 %v1819, 1.442695
  %v1821 = vpow.pop %v1820
  %v1822 = vadd.f32 %v1821, 1.0
  %v1823 = vrcp.pop %v1822
  %v1824 = vmul.f32 1.0, %v1823
  %v1825 = vmul.f32 %v1817, %v1586
  %v1826 = vmul.f32 %v1811, %v1818
  %v1827 = vadd.f32 %v1825, %v1826
  %v1828 = vtanh.pop %v1827
  %v1829 = vmul.f32 %v1824, %v1828
  %s1830 = scalar_lea.vmem [#allocation4], 40
  %1831 = vst [vmem:[%s1830] sm:$0xff] %v1829
  %v1832 = vld [vmem:[%s3] sm:$0xff]
  %v1833 = vld [vmem:[%s3 + $0x8] sm:$0xff]
  %v1834 = vld [vmem:[%s3 + $0x10] sm:$0xff]
  %v1835 = vld [vmem:[%s3 + $0x18] sm:$0xff]
  %v1836 = vld [vmem:[%s3 + $0x20] sm:$0xff]
  %v1837 = vld [vmem:[%s3 + $0x28] sm:$0xff]
  %v1838 = vld [vmem:[%s3 + $0x30] sm:$0xff]
  %v1839 = vld [vmem:[%s3 + $0x38] sm:$0xff]
  %v1840 = vld [vmem:[%s3 + $0x40] sm:$0xff]
  %v1841 = vld [vmem:[%s3 + $0x48] sm:$0xff]
  %v1842 = vld [vmem:[%s3 + $0x50] sm:$0xff]
  %v1843 = vld [vmem:[%s3 + $0x58] sm:$0xff]
  %v1844 = vld [vmem:[%s3 + $0x60] sm:$0xff]
  %v1845 = vld [vmem:[%s3 + $0x68] sm:$0xff]
  %v1846 = vld [vmem:[%s3 + $0x70] sm:$0xff]
  %v1847 = vld [vmem:[%s3 + $0x78] sm:$0xff]
  %v1848 = vld [vmem:[%s3 + $0x80] sm:$0xff]
  %v1849 = vld [vmem:[%s3 + $0x88] sm:$0xff]
  %v1850 = vld [vmem:[%s3 + $0x90] sm:$0xff]
  %v1851 = vld [vmem:[%s3 + $0x98] sm:$0xff]
  %v1852 = vld [vmem:[%s3 + $0xa0] sm:$0xff]
  %v1853 = vld [vmem:[%s3 + $0xa8] sm:$0xff]
  %v1854 = vld [vmem:[%s3 + $0xb0] sm:$0xff]
  %v1855 = vld [vmem:[%s3 + $0xb8] sm:$0xff]
  %v1856 = vld [vmem:[%s3 + $0xc0] sm:$0xff]
  %v1857 = vld [vmem:[%s3 + $0xc8] sm:$0xff]
  %v1858 = vld [vmem:[%s3 + $0xd0] sm:$0xff]
  %v1859 = vld [vmem:[%s3 + $0xd8] sm:$0xff]
  %v1860 = vld [vmem:[%s3 + $0xe0] sm:$0xff]
  %v1861 = vld [vmem:[%s3 + $0xe8] sm:$0xff]
  %v1862 = vld [vmem:[%s3 + $0xf0] sm:$0xff]
  %v1863 = vld [vmem:[%s3 + $0xf8] sm:$0xff]
  %v1864 = vld [vmem:[%s3 + $0x100] sm:$0xff]
  %v1865 = vld [vmem:[%s3 + $0x108] sm:$0xff]
  %v1866 = vld [vmem:[%s3 + $0x110] sm:$0xff]
  %v1867 = vld [vmem:[%s3 + $0x118] sm:$0xff]
  %v1868 = vld [vmem:[%s3 + $0x120] sm:$0xff]
  %v1869 = vld [vmem:[%s3 + $0x128] sm:$0xff]
  %v1870 = vld [vmem:[%s3 + $0x130] sm:$0xff]
  %v1871 = vld [vmem:[%s3 + $0x138] sm:$0xff]
  %v1872 = vld [vmem:[%s3 + $0x140] sm:$0xff]
  %v1873 = vld [vmem:[%s3 + $0x148] sm:$0xff]
  %v1874 = vld [vmem:[%s3 + $0x150] sm:$0xff]
  %v1875 = vld [vmem:[%s3 + $0x158] sm:$0xff]
  %v1876 = vld [vmem:[%s3 + $0x160] sm:$0xff]
  %v1877 = vld [vmem:[%s3 + $0x168] sm:$0xff]
  %v1878 = vld [vmem:[%s3 + $0x170] sm:$0xff]
  %v1879 = vld [vmem:[%s3 + $0x178] sm:$0xff]
  %v1880 = vld [vmem:[%s3 + $0x180] sm:$0xff]
  %v1881 = vld [vmem:[%s3 + $0x188] sm:$0xff]
  %v1882 = vld [vmem:[%s3 + $0x190] sm:$0xff]
  %v1883 = vld [vmem:[%s3 + $0x198] sm:$0xff]
  %v1884 = vld [vmem:[%s3 + $0x1a0] sm:$0xff]
  %v1885 = vld [vmem:[%s3 + $0x1a8] sm:$0xff]
  %v1886 = vld [vmem:[%s3 + $0x1b0] sm:$0xff]
  %v1887 = vld [vmem:[%s3 + $0x1b8] sm:$0xff]
  %v1888 = vld [vmem:[%s3 + $0x1c0] sm:$0xff]
  %v1889 = vld [vmem:[%s3 + $0x1c8] sm:$0xff]
  %v1890 = vld [vmem:[%s3 + $0x1d0] sm:$0xff]
  %v1891 = vld [vmem:[%s3 + $0x1d8] sm:$0xff]
  %v1892 = vld [vmem:[%s3 + $0x1e0] sm:$0xff]
  %v1893 = vld [vmem:[%s3 + $0x1e8] sm:$0xff]
  %v1894 = vld [vmem:[%s3 + $0x1f0] sm:$0xff]
  %v1895 = vld [vmem:[%s3 + $0x1f8] sm:$0xff]
  %s1896 = scalar_lea.vmem [#allocation5], 192
  %v1897 = vld [vmem:[%s1896] sm:$0xff]
  %v1898 = vld [vmem:[%s1896 + $0x8] sm:$0xff]
  %v1899 = vld [vmem:[%s1896 + $0x10] sm:$0xff]
  %v1900 = vld [vmem:[%s1896 + $0x18] sm:$0xff]
  %1901 = vmatprep.subr.mxu0 %v1833
  %1902 = vmatpush1.msra.mxu0 %v1832
  %1903 = vmatprep.subr.mxu0 %v1837
  %1904 = vmatpush1.msra.mxu0 %v1836
  %1905 = vmatprep.subr.mxu0 %v1841
  %1906 = vmatpush1.msra.mxu0 %v1840
  %1907 = vmatprep.subr.mxu0 %v1845
  %1908 = vmatpush1.msra.mxu0 %v1844
  %1909 = vmatprep.subr.mxu0 %v1849
  %1910 = vmatpush1.msra.mxu0 %v1848
  %1911 = vmatprep.subr.mxu0 %v1853
  %1912 = vmatpush1.msra.mxu0 %v1852
  %1913 = vmatprep.subr.mxu0 %v1857
  %1914 = vmatpush1.msra.mxu0 %v1856
  %1915 = vmatprep.subr.mxu0 %v1861
  %1916 = vmatpush1.msra.mxu0 %v1860
  %1917 = vmatprep.subr.mxu0 %v1865
  %1918 = vmatpush1.msra.mxu0 %v1864
  %1919 = vmatprep.subr.mxu0 %v1869
  %1920 = vmatpush1.msra.mxu0 %v1868
  %1921 = vmatprep.subr.mxu0 %v1873
  %1922 = vmatpush1.msra.mxu0 %v1872
  %1923 = vmatprep.subr.mxu0 %v1877
  %1924 = vmatpush1.msra.mxu0 %v1876
  %1925 = vmatprep.subr.mxu0 %v1881
  %1926 = vmatpush1.msra.mxu0 %v1880
  %1927 = vmatprep.subr.mxu0 %v1885
  %1928 = vmatpush1.msra.mxu0 %v1884
  %1929 = vmatprep.subr.mxu0 %v1889
  %1930 = vmatpush1.msra.mxu0 %v1888
  %1931 = vmatprep.subr.mxu0 %v1893
  %1932 = vmatpush1.msra.mxu0 %v1892
  %1933 = vmatprep.subr.mxu0 0.0
  %1934 = vmatpush1.msra.mxu0 0.0
  %1935 = vmatprep.subr.mxu0 0.0
  %1936 = vmatpush1.msra.mxu0 0.0
  %1937 = vmatprep.subr.mxu0 0.0
  %1938 = vmatpush1.msra.mxu0 0.0
  %1939 = vmatprep.subr.mxu0 0.0
  %1940 = vmatpush1.msra.mxu0 0.0
  %1941 = vmatprep.subr.mxu0 0.0
  %1942 = vmatpush1.msra.mxu0 0.0
  %1943 = vmatprep.subr.mxu0 0.0
  %1944 = vmatpush1.msra.mxu0 0.0
  %1945 = vmatprep.subr.mxu0 0.0
  %1946 = vmatpush1.msra.mxu0 0.0
  %1947 = vmatprep.subr.mxu0 0.0
  %1948 = vmatpush1.msra.mxu0 0.0
  %1949 = vmatprep.subr.mxu0 0.0
  %1950 = vmatpush1.msra.mxu0 0.0
  %1951 = vmatprep.subr.mxu0 0.0
  %1952 = vmatpush1.msra.mxu0 0.0
  %1953 = vmatprep.subr.mxu0 0.0
  %1954 = vmatpush1.msra.mxu0 0.0
  %1955 = vmatprep.subr.mxu0 0.0
  %1956 = vmatpush1.msra.mxu0 0.0
  %1957 = vmatprep.subr.mxu0 0.0
  %1958 = vmatpush1.msra.mxu0 0.0
  %1959 = vmatprep.subr.mxu0 0.0
  %1960 = vmatpush1.msra.mxu0 0.0
  %1961 = vmatprep.subr.mxu0 0.0
  %1962 = vmatpush1.msra.mxu0 0.0
  %1963 = vmatprep.subr.mxu0 0.0
  %1964 = vmatpush1.msra.mxu0 0.0
  %1965 = vmatprep.mubr.f32.mxu0 0.0
  %1966 = vmatmul.mubr.f32.gmra.mrb[0].mxu0 %v1829
  %v1967 = vpop.f32.mrb[0].mxu0
  %v1968 = vadd.f32 0.0, %v1967
  %v1969 = vpop.f32.mrb[0].mxu0
  %v1970 = vadd.f32 0.0, %v1969
  %1971 = vdwg.mxu0
  %1972 = vmatprep.subr.mxu0 %v1835
  %1973 = vmatpush1.msra.mxu0 %v1834
  %1974 = vmatprep.subr.mxu0 %v1839
  %1975 = vmatpush1.msra.mxu0 %v1838
  %1976 = vmatprep.subr.mxu0 %v1843
  %1977 = vmatpush1.msra.mxu0 %v1842
  %1978 = vmatprep.subr.mxu0 %v1847
  %1979 = vmatpush1.msra.mxu0 %v1846
  %1980 = vmatprep.subr.mxu0 %v1851
  %1981 = vmatpush1.msra.mxu0 %v1850
  %1982 = vmatprep.subr.mxu0 %v1855
  %1983 = vmatpush1.msra.mxu0 %v1854
  %1984 = vmatprep.subr.mxu0 %v1859
  %1985 = vmatpush1.msra.mxu0 %v1858
  %1986 = vmatprep.subr.mxu0 %v1863
  %1987 = vmatpush1.msra.mxu0 %v1862
  %1988 = vmatprep.subr.mxu0 %v1867
  %1989 = vmatpush1.msra.mxu0 %v1866
  %1990 = vmatprep.subr.mxu0 %v1871
  %1991 = vmatpush1.msra.mxu0 %v1870
  %1992 = vmatprep.subr.mxu0 %v1875
  %1993 = vmatpush1.msra.mxu0 %v1874
  %1994 = vmatprep.subr.mxu0 %v1879
  %1995 = vmatpush1.msra.mxu0 %v1878
  %1996 = vmatprep.subr.mxu0 %v1883
  %1997 = vmatpush1.msra.mxu0 %v1882
  %1998 = vmatprep.subr.mxu0 %v1887
  %1999 = vmatpush1.msra.mxu0 %v1886
  %2000 = vmatprep.subr.mxu0 %v1891
  %2001 = vmatpush1.msra.mxu0 %v1890
  %2002 = vmatprep.subr.mxu0 %v1895
  %2003 = vmatpush1.msra.mxu0 %v1894
  %2004 = vmatprep.subr.mxu0 0.0
  %2005 = vmatpush1.msra.mxu0 0.0
  %2006 = vmatprep.subr.mxu0 0.0
  %2007 = vmatpush1.msra.mxu0 0.0
  %2008 = vmatprep.subr.mxu0 0.0
  %2009 = vmatpush1.msra.mxu0 0.0
  %2010 = vmatprep.subr.mxu0 0.0
  %2011 = vmatpush1.msra.mxu0 0.0
  %2012 = vmatprep.subr.mxu0 0.0
  %2013 = vmatpush1.msra.mxu0 0.0
  %2014 = vmatprep.subr.mxu0 0.0
  %2015 = vmatpush1.msra.mxu0 0.0
  %2016 = vmatprep.subr.mxu0 0.0
  %2017 = vmatpush1.msra.mxu0 0.0
  %2018 = vmatprep.subr.mxu0 0.0
  %2019 = vmatpush1.msra.mxu0 0.0
  %2020 = vmatprep.subr.mxu0 0.0
  %2021 = vmatpush1.msra.mxu0 0.0
  %2022 = vmatprep.subr.mxu0 0.0
  %2023 = vmatpush1.msra.mxu0 0.0
  %2024 = vmatprep.subr.mxu0 0.0
  %2025 = vmatpush1.msra.mxu0 0.0
  %2026 = vmatprep.subr.mxu0 0.0
  %2027 = vmatpush1.msra.mxu0 0.0
  %2028 = vmatprep.subr.mxu0 0.0
  %2029 = vmatpush1.msra.mxu0 0.0
  %2030 = vmatprep.subr.mxu0 0.0
  %2031 = vmatpush1.msra.mxu0 0.0
  %2032 = vmatprep.subr.mxu0 0.0
  %2033 = vmatpush1.msra.mxu0 0.0
  %2034 = vmatprep.subr.mxu0 0.0
  %2035 = vmatpush1.msra.mxu0 0.0
  %2036 = vmatprep.mubr.f32.mxu0 0.0
  %2037 = vmatmul.mubr.f32.gmra.mrb[0].mxu0 %v1829
  %v2038 = vpop.f32.mrb[0].mxu0
  %v2039 = vadd.f32 0.0, %v2038
  %v2040 = vpop.f32.mrb[0].mxu0
  %v2041 = vadd.f32 0.0, %v2040
  %2042 = vdwg.mxu0
  %v2043 = vadd.f32 %v1897, %v1968
  %v2044 = vadd.f32 %v1898, %v1970
  %v2045 = vadd.f32 %v1899, %v2039
  %v2046 = vadd.f32 %v1900, %v2041
  %v2047 = vxor.u32 %v2043, 2147483648
  %v2048 = vmul.f32 %v2047, 1.442695
  %v2049 = vpow.pop %v2048
  %v2050 = vadd.f32 %v2049, 1.0
  %v2051 = vrcp.pop %v2050
  %v2052 = vmul.f32 1.0, %v2051
  %v2053 = vxor.u32 %v2044, 2147483648
  %v2054 = vmul.f32 %v2053, 1.442695
  %v2055 = vpow.pop %v2054
  %v2056 = vadd.f32 %v2055, 1.0
  %v2057 = vrcp.pop %v2056
  %v2058 = vmul.f32 1.0, %v2057
  %v2059 = vtanh.pop %v2045
  %v2060 = vxor.u32 %v2046, 2147483648
  %v2061 = vmul.f32 %v2060, 1.442695
  %v2062 = vpow.pop %v2061
  %v2063 = vadd.f32 %v2062, 1.0
  %v2064 = vrcp.pop %v2063
  %v2065 = vmul.f32 1.0, %v2064
  %v2066 = vmul.f32 %v2058, %v1827
  %v2067 = vmul.f32 %v2052, %v2059
  %v2068 = vadd.f32 %v2066, %v2067
  %v2069 = vtanh.pop %v2068
  %v2070 = vmul.f32 %v2065, %v2069
  %s2071 = scalar_lea.vmem [#allocation4], 48
  %2072 = vst [vmem:[%s2071] sm:$0xff] %v2070
  %v2073 = vld [vmem:[%s3] sm:$0xff]
  %v2074 = vld [vmem:[%s3 + $0x8] sm:$0xff]
  %v2075 = vld [vmem:[%s3 + $0x10] sm:$0xff]
  %v2076 = vld [vmem:[%s3 + $0x18] sm:$0xff]
  %v2077 = vld [vmem:[%s3 + $0x20] sm:$0xff]
  %v2078 = vld [vmem:[%s3 + $0x28] sm:$0xff]
  %v2079 = vld [vmem:[%s3 + $0x30] sm:$0xff]
  %v2080 = vld [vmem:[%s3 + $0x38] sm:$0xff]
  %v2081 = vld [vmem:[%s3 + $0x40] sm:$0xff]
  %v2082 = vld [vmem:[%s3 + $0x48] sm:$0xff]
  %v2083 = vld [vmem:[%s3 + $0x50] sm:$0xff]
  %v2084 = vld [vmem:[%s3 + $0x58] sm:$0xff]
  %v2085 = vld [vmem:[%s3 + $0x60] sm:$0xff]
  %v2086 = vld [vmem:[%s3 + $0x68] sm:$0xff]
  %v2087 = vld [vmem:[%s3 + $0x70] sm:$0xff]
  %v2088 = vld [vmem:[%s3 + $0x78] sm:$0xff]
  %v2089 = vld [vmem:[%s3 + $0x80] sm:$0xff]
  %v2090 = vld [vmem:[%s3 + $0x88] sm:$0xff]
  %v2091 = vld [vmem:[%s3 + $0x90] sm:$0xff]
  %v2092 = vld [vmem:[%s3 + $0x98] sm:$0xff]
  %v2093 = vld [vmem:[%s3 + $0xa0] sm:$0xff]
  %v2094 = vld [vmem:[%s3 + $0xa8] sm:$0xff]
  %v2095 = vld [vmem:[%s3 + $0xb0] sm:$0xff]
  %v2096 = vld [vmem:[%s3 + $0xb8] sm:$0xff]
  %v2097 = vld [vmem:[%s3 + $0xc0] sm:$0xff]
  %v2098 = vld [vmem:[%s3 + $0xc8] sm:$0xff]
  %v2099 = vld [vmem:[%s3 + $0xd0] sm:$0xff]
  %v2100 = vld [vmem:[%s3 + $0xd8] sm:$0xff]
  %v2101 = vld [vmem:[%s3 + $0xe0] sm:$0xff]
  %v2102 = vld [vmem:[%s3 + $0xe8] sm:$0xff]
  %v2103 = vld [vmem:[%s3 + $0xf0] sm:$0xff]
  %v2104 = vld [vmem:[%s3 + $0xf8] sm:$0xff]
  %v2105 = vld [vmem:[%s3 + $0x100] sm:$0xff]
  %v2106 = vld [vmem:[%s3 + $0x108] sm:$0xff]
  %v2107 = vld [vmem:[%s3 + $0x110] sm:$0xff]
  %v2108 = vld [vmem:[%s3 + $0x118] sm:$0xff]
  %v2109 = vld [vmem:[%s3 + $0x120] sm:$0xff]
  %v2110 = vld [vmem:[%s3 + $0x128] sm:$0xff]
  %v2111 = vld [vmem:[%s3 + $0x130] sm:$0xff]
  %v2112 = vld [vmem:[%s3 + $0x138] sm:$0xff]
  %v2113 = vld [vmem:[%s3 + $0x140] sm:$0xff]
  %v2114 = vld [vmem:[%s3 + $0x148] sm:$0xff]
  %v2115 = vld [vmem:[%s3 + $0x150] sm:$0xff]
  %v2116 = vld [vmem:[%s3 + $0x158] sm:$0xff]
  %v2117 = vld [vmem:[%s3 + $0x160] sm:$0xff]
  %v2118 = vld [vmem:[%s3 + $0x168] sm:$0xff]
  %v2119 = vld [vmem:[%s3 + $0x170] sm:$0xff]
  %v2120 = vld [vmem:[%s3 + $0x178] sm:$0xff]
  %v2121 = vld [vmem:[%s3 + $0x180] sm:$0xff]
  %v2122 = vld [vmem:[%s3 + $0x188] sm:$0xff]
  %v2123 = vld [vmem:[%s3 + $0x190] sm:$0xff]
  %v2124 = vld [vmem:[%s3 + $0x198] sm:$0xff]
  %v2125 = vld [vmem:[%s3 + $0x1a0] sm:$0xff]
  %v2126 = vld [vmem:[%s3 + $0x1a8] sm:$0xff]
  %v2127 = vld [vmem:[%s3 + $0x1b0] sm:$0xff]
  %v2128 = vld [vmem:[%s3 + $0x1b8] sm:$0xff]
  %v2129 = vld [vmem:[%s3 + $0x1c0] sm:$0xff]
  %v2130 = vld [vmem:[%s3 + $0x1c8] sm:$0xff]
  %v2131 = vld [vmem:[%s3 + $0x1d0] sm:$0xff]
  %v2132 = vld [vmem:[%s3 + $0x1d8] sm:$0xff]
  %v2133 = vld [vmem:[%s3 + $0x1e0] sm:$0xff]
  %v2134 = vld [vmem:[%s3 + $0x1e8] sm:$0xff]
  %v2135 = vld [vmem:[%s3 + $0x1f0] sm:$0xff]
  %v2136 = vld [vmem:[%s3 + $0x1f8] sm:$0xff]
  %s2137 = scalar_lea.vmem [#allocation5], 224
  %v2138 = vld [vmem:[%s2137] sm:$0xff]
  %v2139 = vld [vmem:[%s2137 + $0x8] sm:$0xff]
  %v2140 = vld [vmem:[%s2137 + $0x10] sm:$0xff]
  %v2141 = vld [vmem:[%s2137 + $0x18] sm:$0xff]
  %2142 = vmatprep.subr.mxu0 %v2074
  %2143 = vmatpush1.msra.mxu0 %v2073
  %2144 = vmatprep.subr.mxu0 %v2078
  %2145 = vmatpush1.msra.mxu0 %v2077
  %2146 = vmatprep.subr.mxu0 %v2082
  %2147 = vmatpush1.msra.mxu0 %v2081
  %2148 = vmatprep.subr.mxu0 %v2086
  %2149 = vmatpush1.msra.mxu0 %v2085
  %2150 = vmatprep.subr.mxu0 %v2090
  %2151 = vmatpush1.msra.mxu0 %v2089
  %2152 = vmatprep.subr.mxu0 %v2094
  %2153 = vmatpush1.msra.mxu0 %v2093
  %2154 = vmatprep.subr.mxu0 %v2098
  %2155 = vmatpush1.msra.mxu0 %v2097
  %2156 = vmatprep.subr.mxu0 %v2102
  %2157 = vmatpush1.msra.mxu0 %v2101
  %2158 = vmatprep.subr.mxu0 %v2106
  %2159 = vmatpush1.msra.mxu0 %v2105
  %2160 = vmatprep.subr.mxu0 %v2110
  %2161 = vmatpush1.msra.mxu0 %v2109
  %2162 = vmatprep.subr.mxu0 %v2114
  %2163 = vmatpush1.msra.mxu0 %v2113
  %2164 = vmatprep.subr.mxu0 %v2118
  %2165 = vmatpush1.msra.mxu0 %v2117
  %2166 = vmatprep.subr.mxu0 %v2122
  %2167 = vmatpush1.msra.mxu0 %v2121
  %2168 = vmatprep.subr.mxu0 %v2126
  %2169 = vmatpush1.msra.mxu0 %v2125
  %2170 = vmatprep.subr.mxu0 %v2130
  %2171 = vmatpush1.msra.mxu0 %v2129
  %2172 = vmatprep.subr.mxu0 %v2134
  %2173 = vmatpush1.msra.mxu0 %v2133
  %2174 = vmatprep.subr.mxu0 0.0
  %2175 = vmatpush1.msra.mxu0 0.0
  %2176 = vmatprep.subr.mxu0 0.0
  %2177 = vmatpush1.msra.mxu0 0.0
  %2178 = vmatprep.subr.mxu0 0.0
  %2179 = vmatpush1.msra.mxu0 0.0
  %2180 = vmatprep.subr.mxu0 0.0
  %2181 = vmatpush1.msra.mxu0 0.0
  %2182 = vmatprep.subr.mxu0 0.0
  %2183 = vmatpush1.msra.mxu0 0.0
  %2184 = vmatprep.subr.mxu0 0.0
  %2185 = vmatpush1.msra.mxu0 0.0
  %2186 = vmatprep.subr.mxu0 0.0
  %2187 = vmatpush1.msra.mxu0 0.0
  %2188 = vmatprep.subr.mxu0 0.0
  %2189 = vmatpush1.msra.mxu0 0.0
  %2190 = vmatprep.subr.mxu0 0.0
  %2191 = vmatpush1.msra.mxu0 0.0
  %2192 = vmatprep.subr.mxu0 0.0
  %2193 = vmatpush1.msra.mxu0 0.0
  %2194 = vmatprep.subr.mxu0 0.0
  %2195 = vmatpush1.msra.mxu0 0.0
  %2196 = vmatprep.subr.mxu0 0.0
  %2197 = vmatpush1.msra.mxu0 0.0
  %2198 = vmatprep.subr.mxu0 0.0
  %2199 = vmatpush1.msra.mxu0 0.0
  %2200 = vmatprep.subr.mxu0 0.0
  %2201 = vmatpush1.msra.mxu0 0.0
  %2202 = vmatprep.subr.mxu0 0.0
  %2203 = vmatpush1.msra.mxu0 0.0
  %2204 = vmatprep.subr.mxu0 0.0
  %2205 = vmatpush1.msra.mxu0 0.0
  %2206 = vmatprep.mubr.f32.mxu0 0.0
  %2207 = vmatmul.mubr.f32.gmra.mrb[0].mxu0 %v2070
  %v2208 = vpop.f32.mrb[0].mxu0
  %v2209 = vadd.f32 0.0, %v2208
  %v2210 = vpop.f32.mrb[0].mxu0
  %v2211 = vadd.f32 0.0, %v2210
  %2212 = vdwg.mxu0
  %2213 = vmatprep.subr.mxu0 %v2076
  %2214 = vmatpush1.msra.mxu0 %v2075
  %2215 = vmatprep.subr.mxu0 %v2080
  %2216 = vmatpush1.msra.mxu0 %v2079
  %2217 = vmatprep.subr.mxu0 %v2084
  %2218 = vmatpush1.msra.mxu0 %v2083
  %2219 = vmatprep.subr.mxu0 %v2088
  %2220 = vmatpush1.msra.mxu0 %v2087
  %2221 = vmatprep.subr.mxu0 %v2092
  %2222 = vmatpush1.msra.mxu0 %v2091
  %2223 = vmatprep.subr.mxu0 %v2096
  %2224 = vmatpush1.msra.mxu0 %v2095
  %2225 = vmatprep.subr.mxu0 %v2100
  %2226 = vmatpush1.msra.mxu0 %v2099
  %2227 = vmatprep.subr.mxu0 %v2104
  %2228 = vmatpush1.msra.mxu0 %v2103
  %2229 = vmatprep.subr.mxu0 %v2108
  %2230 = vmatpush1.msra.mxu0 %v2107
  %2231 = vmatprep.subr.mxu0 %v2112
  %2232 = vmatpush1.msra.mxu0 %v2111
  %2233 = vmatprep.subr.mxu0 %v2116
  %2234 = vmatpush1.msra.mxu0 %v2115
  %2235 = vmatprep.subr.mxu0 %v2120
  %2236 = vmatpush1.msra.mxu0 %v2119
  %2237 = vmatprep.subr.mxu0 %v2124
  %2238 = vmatpush1.msra.mxu0 %v2123
  %2239 = vmatprep.subr.mxu0 %v2128
  %2240 = vmatpush1.msra.mxu0 %v2127
  %2241 = vmatprep.subr.mxu0 %v2132
  %2242 = vmatpush1.msra.mxu0 %v2131
  %2243 = vmatprep.subr.mxu0 %v2136
  %2244 = vmatpush1.msra.mxu0 %v2135
  %2245 = vmatprep.subr.mxu0 0.0
  %2246 = vmatpush1.msra.mxu0 0.0
  %2247 = vmatprep.subr.mxu0 0.0
  %2248 = vmatpush1.msra.mxu0 0.0
  %2249 = vmatprep.subr.mxu0 0.0
  %2250 = vmatpush1.msra.mxu0 0.0
  %2251 = vmatprep.subr.mxu0 0.0
  %2252 = vmatpush1.msra.mxu0 0.0
  %2253 = vmatprep.subr.mxu0 0.0
  %2254 = vmatpush1.msra.mxu0 0.0
  %2255 = vmatprep.subr.mxu0 0.0
  %2256 = vmatpush1.msra.mxu0 0.0
  %2257 = vmatprep.subr.mxu0 0.0
  %2258 = vmatpush1.msra.mxu0 0.0
  %2259 = vmatprep.subr.mxu0 0.0
  %2260 = vmatpush1.msra.mxu0 0.0
  %2261 = vmatprep.subr.mxu0 0.0
  %2262 = vmatpush1.msra.mxu0 0.0
  %2263 = vmatprep.subr.mxu0 0.0
  %2264 = vmatpush1.msra.mxu0 0.0
  %2265 = vmatprep.subr.mxu0 0.0
  %2266 = vmatpush1.msra.mxu0 0.0
  %2267 = vmatprep.subr.mxu0 0.0
  %2268 = vmatpush1.msra.mxu0 0.0
  %2269 = vmatprep.subr.mxu0 0.0
  %2270 = vmatpush1.msra.mxu0 0.0
  %2271 = vmatprep.subr.mxu0 0.0
  %2272 = vmatpush1.msra.mxu0 0.0
  %2273 = vmatprep.subr.mxu0 0.0
  %2274 = vmatpush1.msra.mxu0 0.0
  %2275 = vmatprep.subr.mxu0 0.0
  %2276 = vmatpush1.msra.mxu0 0.0
  %2277 = vmatprep.mubr.f32.mxu0 0.0
  %2278 = vmatmul.mubr.f32.gmra.mrb[0].mxu0 %v2070
  %v2279 = vpop.f32.mrb[0].mxu0
  %v2280 = vadd.f32 0.0, %v2279
  %v2281 = vpop.f32.mrb[0].mxu0
  %v2282 = vadd.f32 0.0, %v2281
  %2283 = vdwg.mxu0
  %v2284 = vadd.f32 %v2138, %v2209
  %v2285 = vadd.f32 %v2139, %v2211
  %v2286 = vadd.f32 %v2140, %v2280
  %v2287 = vadd.f32 %v2141, %v2282
  %v2288 = vxor.u32 %v2284, 2147483648
  %v2289 = vmul.f32 %v2288, 1.442695
  %v2290 = vpow.pop %v2289
  %v2291 = vadd.f32 %v2290, 1.0
  %v2292 = vrcp.pop %v2291
  %v2293 = vmul.f32 1.0, %v2292
  %v2294 = vxor.u32 %v2285, 2147483648
  %v2295 = vmul.f32 %v2294, 1.442695
  %v2296 = vpow.pop %v2295
  %v2297 = vadd.f32 %v2296, 1.0
  %v2298 = vrcp.pop %v2297
  %v2299 = vmul.f32 1.0, %v2298
  %v2300 = vtanh.pop %v2286
  %v2301 = vxor.u32 %v2287, 2147483648
  %v2302 = vmul.f32 %v2301, 1.442695
  %v2303 = vpow.pop %v2302
  %v2304 = vadd.f32 %v2303, 1.0
  %v2305 = vrcp.pop %v2304
  %v2306 = vmul.f32 1.0, %v2305
  %v2307 = vmul.f32 %v2299, %v2068
  %v2308 = vmul.f32 %v2293, %v2300
  %v2309 = vadd.f32 %v2307, %v2308
  %v2310 = vtanh.pop %v2309
  %v2311 = vmul.f32 %v2306, %v2310
  %s2312 = scalar_lea.vmem [#allocation4], 56
  %2313 = vst [vmem:[%s2312] sm:$0xff] %v2311
  %2314 = vst [vmem:[#allocation2] sm:$0xff] %v2311
  %2315 = vst [vmem:[#allocation3] sm:$0xff] %v2309
  %v2316 = vld [vmem:[#allocation4] sm:$0xff]
  %v2317 = vld [vmem:[#allocation4 + $0x8] sm:$0xff]
  %v2318 = vld [vmem:[#allocation4 + $0x10] sm:$0xff]
  %v2319 = vld [vmem:[#allocation4 + $0x18] sm:$0xff]
  %v2320 = vld [vmem:[#allocation4 + $0x20] sm:$0xff]
  %v2321 = vld [vmem:[#allocation4 + $0x28] sm:$0xff]
  %v2322 = vld [vmem:[#allocation4 + $0x30] sm:$0xff]
  %v2323 = vld [vmem:[#allocation4 + $0x38] sm:$0xff]
  %v2324 = vld [vmem:[%s2] sm:$0xff]
  %v2325 = vld [vmem:[%s2 + $0x8] sm:$0xff]
  %v2326 = vld [vmem:[%s2 + $0x10] sm:$0xff]
  %v2327 = vld [vmem:[%s2 + $0x18] sm:$0xff]
  %v2328 = vld [vmem:[%s2 + $0x20] sm:$0xff]
  %v2329 = vld [vmem:[%s2 + $0x28] sm:$0xff]
  %v2330 = vld [vmem:[%s2 + $0x30] sm:$0xff]
  %v2331 = vld [vmem:[%s2 + $0x38] sm:$0xff]
  %v2332 = vld [vmem:[%s2 + $0x40] sm:$0xff]
  %v2333 = vld [vmem:[%s2 + $0x48] sm:$0xff]
  %v2334 = vld [vmem:[%s2 + $0x50] sm:$0xff]
  %v2335 = vld [vmem:[%s2 + $0x58] sm:$0xff]
  %v2336 = vld [vmem:[%s2 + $0x60] sm:$0xff]
  %v2337 = vld [vmem:[%s2 + $0x68] sm:$0xff]
  %v2338 = vld [vmem:[%s2 + $0x70] sm:$0xff]
  %v2339 = vld [vmem:[%s2 + $0x78] sm:$0xff]
  %v2340 = vld [vmem:[%s2 + $0x80] sm:$0xff]
  %v2341 = vld [vmem:[%s2 + $0x88] sm:$0xff]
  %v2342 = vld [vmem:[%s2 + $0x90] sm:$0xff]
  %v2343 = vld [vmem:[%s2 + $0x98] sm:$0xff]
  %v2344 = vld [vmem:[%s2 + $0xa0] sm:$0xff]
  %v2345 = vld [vmem:[%s2 + $0xa8] sm:$0xff]
  %v2346 = vld [vmem:[%s2 + $0xb0] sm:$0xff]
  %v2347 = vld [vmem:[%s2 + $0xb8] sm:$0xff]
  %v2348 = vld [vmem:[%s2 + $0xc0] sm:$0xff]
  %v2349 = vld [vmem:[%s2 + $0xc8] sm:$0xff]
  %v2350 = vld [vmem:[%s2 + $0xd0] sm:$0xff]
  %v2351 = vld [vmem:[%s2 + $0xd8] sm:$0xff]
  %v2352 = vld [vmem:[%s2 + $0xe0] sm:$0xff]
  %v2353 = vld [vmem:[%s2 + $0xe8] sm:$0xff]
  %v2354 = vld [vmem:[%s2 + $0xf0] sm:$0xff]
  %v2355 = vld [vmem:[%s2 + $0xf8] sm:$0xff]
  %v2356 = vld [vmem:[%s2 + $0x100] sm:$0xff]
  %v2357 = vld [vmem:[%s2 + $0x108] sm:$0xff]
  %v2358 = vld [vmem:[%s2 + $0x110] sm:$0xff]
  %v2359 = vld [vmem:[%s2 + $0x118] sm:$0xff]
  %v2360 = vld [vmem:[%s2 + $0x120] sm:$0xff]
  %v2361 = vld [vmem:[%s2 + $0x128] sm:$0xff]
  %v2362 = vld [vmem:[%s2 + $0x130] sm:$0xff]
  %v2363 = vld [vmem:[%s2 + $0x138] sm:$0xff]
  %v2364 = vld [vmem:[%s2 + $0x140] sm:$0xff]
  %v2365 = vld [vmem:[%s2 + $0x148] sm:$0xff]
  %v2366 = vld [vmem:[%s2 + $0x150] sm:$0xff]
  %v2367 = vld [vmem:[%s2 + $0x158] sm:$0xff]
  %v2368 = vld [vmem:[%s2 + $0x160] sm:$0xff]
  %v2369 = vld [vmem:[%s2 + $0x168] sm:$0xff]
  %v2370 = vld [vmem:[%s2 + $0x170] sm:$0xff]
  %v2371 = vld [vmem:[%s2 + $0x178] sm:$0xff]
  %v2372 = vld [vmem:[%s2 + $0x180] sm:$0xff]
  %v2373 = vld [vmem:[%s2 + $0x188] sm:$0xff]
  %v2374 = vld [vmem:[%s2 + $0x190] sm:$0xff]
  %v2375 = vld [vmem:[%s2 + $0x198] sm:$0xff]
  %v2376 = vld [vmem:[%s2 + $0x1a0] sm:$0xff]
  %v2377 = vld [vmem:[%s2 + $0x1a8] sm:$0xff]
  %v2378 = vld [vmem:[%s2 + $0x1b0] sm:$0xff]
  %v2379 = vld [vmem:[%s2 + $0x1b8] sm:$0xff]
  %v2380 = vld [vmem:[%s2 + $0x1c0] sm:$0xff]
  %v2381 = vld [vmem:[%s2 + $0x1c8] sm:$0xff]
  %v2382 = vld [vmem:[%s2 + $0x1d0] sm:$0xff]
  %v2383 = vld [vmem:[%s2 + $0x1d8] sm:$0xff]
  %v2384 = vld [vmem:[%s2 + $0x1e0] sm:$0xff]
  %v2385 = vld [vmem:[%s2 + $0x1e8] sm:$0xff]
  %v2386 = vld [vmem:[%s2 + $0x1f0] sm:$0xff]
  %v2387 = vld [vmem:[%s2 + $0x1f8] sm:$0xff]
  %v2388 = vld [vmem:[%s6] sm:$0xf]
  %v2390 = vlaneseq
  %v2391 = vshrl.u32 %v2390, 7
  %v2392 = vsub.s32 0, %v2391
  %v2393 = vrot.slane %v2388, %v2392
  %v2394 = vlaneseq
  %v2395 = vshrl.u32 %v2394, 7
  %v2396 = vsub.s32 1, %v2395
  %v2397 = vrot.slane %v2388, %v2396
  %v2398 = vlaneseq
  %v2399 = vshrl.u32 %v2398, 7
  %v2400 = vsub.s32 2, %v2399
  %v2401 = vrot.slane %v2388, %v2400
  %v2402 = vlaneseq
  %v2403 = vshrl.u32 %v2402, 7
  %v2404 = vsub.s32 3, %v2403
  %v2405 = vrot.slane %v2388, %v2404
  %2410 = vmatprep.subr.mxu0 %v2325
  %2411 = vmatpush1.msra.mxu0 %v2324
  %2412 = vmatprep.subr.mxu0 %v2329
  %2413 = vmatpush1.msra.mxu0 %v2328
  %2414 = vmatprep.subr.mxu0 %v2333
  %2415 = vmatpush1.msra.mxu0 %v2332
  %2416 = vmatprep.subr.mxu0 %v2337
  %2417 = vmatpush1.msra.mxu0 %v2336
  %2418 = vmatprep.subr.mxu0 %v2341
  %2419 = vmatpush1.msra.mxu0 %v2340
  %2420 = vmatprep.subr.mxu0 %v2345
  %2421 = vmatpush1.msra.mxu0 %v2344
  %2422 = vmatprep.subr.mxu0 %v2349
  %2423 = vmatpush1.msra.mxu0 %v2348
  %2424 = vmatprep.subr.mxu0 %v2353
  %2425 = vmatpush1.msra.mxu0 %v2352
  %2426 = vmatprep.subr.mxu0 %v2357
  %2427 = vmatpush1.msra.mxu0 %v2356
  %2428 = vmatprep.subr.mxu0 %v2361
  %2429 = vmatpush1.msra.mxu0 %v2360
  %2430 = vmatprep.subr.mxu0 %v2365
  %2431 = vmatpush1.msra.mxu0 %v2364
  %2432 = vmatprep.subr.mxu0 %v2369
  %2433 = vmatpush1.msra.mxu0 %v2368
  %2434 = vmatprep.subr.mxu0 %v2373
  %2435 = vmatpush1.msra.mxu0 %v2372
  %2436 = vmatprep.subr.mxu0 %v2377
  %2437 = vmatpush1.msra.mxu0 %v2376
  %2438 = vmatprep.subr.mxu0 %v2381
  %2439 = vmatpush1.msra.mxu0 %v2380
  %2440 = vmatprep.subr.mxu0 %v2385
  %2441 = vmatpush1.msra.mxu0 %v2384
  %2442 = vmatprep.subr.mxu0 0.0
  %2443 = vmatpush1.msra.mxu0 0.0
  %2444 = vmatprep.subr.mxu0 0.0
  %2445 = vmatpush1.msra.mxu0 0.0
  %2446 = vmatprep.subr.mxu0 0.0
  %2447 = vmatpush1.msra.mxu0 0.0
  %2448 = vmatprep.subr.mxu0 0.0
  %2449 = vmatpush1.msra.mxu0 0.0
  %2450 = vmatprep.subr.mxu0 0.0
  %2451 = vmatpush1.msra.mxu0 0.0
  %2452 = vmatprep.subr.mxu0 0.0
  %2453 = vmatpush1.msra.mxu0 0.0
  %2454 = vmatprep.subr.mxu0 0.0
  %2455 = vmatpush1.msra.mxu0 0.0
  %2456 = vmatprep.subr.mxu0 0.0
  %2457 = vmatpush1.msra.mxu0 0.0
  %2458 = vmatprep.subr.mxu0 0.0
  %2459 = vmatpush1.msra.mxu0 0.0
  %2460 = vmatprep.subr.mxu0 0.0
  %2461 = vmatpush1.msra.mxu0 0.0
  %2462 = vmatprep.subr.mxu0 0.0
  %2463 = vmatpush1.msra.mxu0 0.0
  %2464 = vmatprep.subr.mxu0 0.0
  %2465 = vmatpush1.msra.mxu0 0.0
  %2466 = vmatprep.subr.mxu0 0.0
  %2467 = vmatpush1.msra.mxu0 0.0
  %2468 = vmatprep.subr.mxu0 0.0
  %2469 = vmatpush1.msra.mxu0 0.0
  %2470 = vmatprep.subr.mxu0 0.0
  %2471 = vmatpush1.msra.mxu0 0.0
  %2472 = vmatprep.subr.mxu0 0.0
  %2473 = vmatpush1.msra.mxu0 0.0
  %2474 = vmatprep.mubr.f32.mxu0 0.0
  %2475 = vmatmul.mubr.f32.gmra.mrb[0].mxu0 %v2316
  %v2476 = vpop.f32.mrb[0].mxu0
  %v2477 = vadd.f32 %v2393, %v2476
  %v2478 = vpop.f32.mrb[0].mxu0
  %v2479 = vadd.f32 %v2397, %v2478
  %2480 = vmatprep.mubr.f32.mxu0 0.0
  %2481 = vmatmul.mubr.f32.gmra.mrb[0].mxu0 %v2317
  %v2482 = vpop.f32.mrb[0].mxu0
  %v2483 = vadd.f32 %v2393, %v2482
  %v2484 = vpop.f32.mrb[0].mxu0
  %v2485 = vadd.f32 %v2397, %v2484
  %2486 = vmatprep.mubr.f32.mxu0 0.0
  %2487 = vmatmul.mubr.f32.gmra.mrb[0].mxu0 %v2318
  %v2488 = vpop.f32.mrb[0].mxu0
  %v2489 = vadd.f32 %v2393, %v2488
  %v2490 = vpop.f32.mrb[0].mxu0
  %v2491 = vadd.f32 %v2397, %v2490
  %2492 = vmatprep.mubr.f32.mxu0 0.0
  %2493 = vmatmul.mubr.f32.gmra.mrb[0].mxu0 %v2319
  %v2494 = vpop.f32.mrb[0].mxu0
  %v2495 = vadd.f32 %v2393, %v2494
  %v2496 = vpop.f32.mrb[0].mxu0
  %v2497 = vadd.f32 %v2397, %v2496
  %2498 = vmatprep.mubr.f32.mxu0 0.0
  %2499 = vmatmul.mubr.f32.gmra.mrb[0].mxu0 %v2320
  %v2500 = vpop.f32.mrb[0].mxu0
  %v2501 = vadd.f32 %v2393, %v2500
  %v2502 = vpop.f32.mrb[0].mxu0
  %v2503 = vadd.f32 %v2397, %v2502
  %2504 = vmatprep.mubr.f32.mxu0 0.0
  %2505 = vmatmul.mubr.f32.gmra.mrb[0].mxu0 %v2321
  %v2506 = vpop.f32.mrb[0].mxu0
  %v2507 = vadd.f32 %v2393, %v2506
  %v2508 = vpop.f32.mrb[0].mxu0
  %v2509 = vadd.f32 %v2397, %v2508
  %2510 = vmatprep.mubr.f32.mxu0 0.0
  %2511 = vmatmul.mubr.f32.gmra.mrb[0].mxu0 %v2322
  %v2512 = vpop.f32.mrb[0].mxu0
  %v2513 = vadd.f32 %v2393, %v2512
  %v2514 = vpop.f32.mrb[0].mxu0
  %v2515 = vadd.f32 %v2397, %v2514
  %2516 = vmatprep.mubr.f32.mxu0 0.0
  %2517 = vmatmul.mubr.f32.gmra.mrb[0].mxu0 %v2323
  %v2518 = vpop.f32.mrb[0].mxu0
  %v2519 = vadd.f32 %v2393, %v2518
  %v2520 = vpop.f32.mrb[0].mxu0
  %v2521 = vadd.f32 %v2397, %v2520
  %2522 = vdwg.mxu0
  %2523 = vmatprep.subr.mxu0 %v2327
  %2524 = vmatpush1.msra.mxu0 %v2326
  %2525 = vmatprep.subr.mxu0 %v2331
  %2526 = vmatpush1.msra.mxu0 %v2330
  %2527 = vmatprep.subr.mxu0 %v2335
  %2528 = vmatpush1.msra.mxu0 %v2334
  %2529 = vmatprep.subr.mxu0 %v2339
  %2530 = vmatpush1.msra.mxu0 %v2338
  %2531 = vmatprep.subr.mxu0 %v2343
  %2532 = vmatpush1.msra.mxu0 %v2342
  %2533 = vmatprep.subr.mxu0 %v2347
  %2534 = vmatpush1.msra.mxu0 %v2346
  %2535 = vmatprep.subr.mxu0 %v2351
  %2536 = vmatpush1.msra.mxu0 %v2350
  %2537 = vmatprep.subr.mxu0 %v2355
  %2538 = vmatpush1.msra.mxu0 %v2354
  %2539 = vmatprep.subr.mxu0 %v2359
  %2540 = vmatpush1.msra.mxu0 %v2358
  %2541 = vmatprep.subr.mxu0 %v2363
  %2542 = vmatpush1.msra.mxu0 %v2362
  %2543 = vmatprep.subr.mxu0 %v2367
  %2544 = vmatpush1.msra.mxu0 %v2366
  %2545 = vmatprep.subr.mxu0 %v2371
  %2546 = vmatpush1.msra.mxu0 %v2370
  %2547 = vmatprep.subr.mxu0 %v2375
  %2548 = vmatpush1.msra.mxu0 %v2374
  %2549 = vmatprep.subr.mxu0 %v2379
  %2550 = vmatpush1.msra.mxu0 %v2378
  %2551 = vmatprep.subr.mxu0 %v2383
  %2552 = vmatpush1.msra.mxu0 %v2382
  %2553 = vmatprep.subr.mxu0 %v2387
  %2554 = vmatpush1.msra.mxu0 %v2386
  %2555 = vmatprep.subr.mxu0 0.0
  %2556 = vmatpush1.msra.mxu0 0.0
  %2557 = vmatprep.subr.mxu0 0.0
  %2558 = vmatpush1.msra.mxu0 0.0
  %2559 = vmatprep.subr.mxu0 0.0
  %2560 = vmatpush1.msra.mxu0 0.0
  %2561 = vmatprep.subr.mxu0 0.0
  %2562 = vmatpush1.msra.mxu0 0.0
  %2563 = vmatprep.subr.mxu0 0.0
  %2564 = vmatpush1.msra.mxu0 0.0
  %2565 = vmatprep.subr.mxu0 0.0
  %2566 = vmatpush1.msra.mxu0 0.0
  %2567 = vmatprep.subr.mxu0 0.0
  %2568 = vmatpush1.msra.mxu0 0.0
  %2569 = vmatprep.subr.mxu0 0.0
  %2570 = vmatpush1.msra.mxu0 0.0
  %2571 = vmatprep.subr.mxu0 0.0
  %2572 = vmatpush1.msra.mxu0 0.0
  %2573 = vmatprep.subr.mxu0 0.0
  %2574 = vmatpush1.msra.mxu0 0.0
  %2575 = vmatprep.subr.mxu0 0.0
  %2576 = vmatpush1.msra.mxu0 0.0
  %2577 = vmatprep.subr.mxu0 0.0
  %2578 = vmatpush1.msra.mxu0 0.0
  %2579 = vmatprep.subr.mxu0 0.0
  %2580 = vmatpush1.msra.mxu0 0.0
  %2581 = vmatprep.subr.mxu0 0.0
  %2582 = vmatpush1.msra.mxu0 0.0
  %2583 = vmatprep.subr.mxu0 0.0
  %2584 = vmatpush1.msra.mxu0 0.0
  %2585 = vmatprep.subr.mxu0 0.0
  %2586 = vmatpush1.msra.mxu0 0.0
  %2587 = vmatprep.mubr.f32.mxu0 0.0
  %2588 = vmatmul.mubr.f32.gmra.mrb[0].mxu0 %v2316
  %v2589 = vpop.f32.mrb[0].mxu0
  %v2590 = vadd.f32 %v2401, %v2589
  %v2591 = vpop.f32.mrb[0].mxu0
  %v2592 = vadd.f32 %v2405, %v2591
  %2593 = vmatprep.mubr.f32.mxu0 0.0
  %2594 = vmatmul.mubr.f32.gmra.mrb[0].mxu0 %v2317
  %v2595 = vpop.f32.mrb[0].mxu0
  %v2596 = vadd.f32 %v2401, %v2595
  %v2597 = vpop.f32.mrb[0].mxu0
  %v2598 = vadd.f32 %v2405, %v2597
  %2599 = vmatprep.mubr.f32.mxu0 0.0
  %2600 = vmatmul.mubr.f32.gmra.mrb[0].mxu0 %v2318
  %v2601 = vpop.f32.mrb[0].mxu0
  %v2602 = vadd.f32 %v2401, %v2601
  %v2603 = vpop.f32.mrb[0].mxu0
  %v2604 = vadd.f32 %v2405, %v2603
  %2605 = vmatprep.mubr.f32.mxu0 0.0
  %2606 = vmatmul.mubr.f32.gmra.mrb[0].mxu0 %v2319
  %v2607 = vpop.f32.mrb[0].mxu0
  %v2608 = vadd.f32 %v2401, %v2607
  %v2609 = vpop.f32.mrb[0].mxu0
  %v2610 = vadd.f32 %v2405, %v2609
  %2611 = vmatprep.mubr.f32.mxu0 0.0
  %2612 = vmatmul.mubr.f32.gmra.mrb[0].mxu0 %v2320
  %v2613 = vpop.f32.mrb[0].mxu0
  %v2614 = vadd.f32 %v2401, %v2613
  %v2615 = vpop.f32.mrb[0].mxu0
  %v2616 = vadd.f32 %v2405, %v2615
  %2617 = vmatprep.mubr.f32.mxu0 0.0
  %2618 = vmatmul.mubr.f32.gmra.mrb[0].mxu0 %v2321
  %v2619 = vpop.f32.mrb[0].mxu0
  %v2620 = vadd.f32 %v2401, %v2619
  %v2621 = vpop.f32.mrb[0].mxu0
  %v2622 = vadd.f32 %v2405, %v2621
  %2623 = vmatprep.mubr.f32.mxu0 0.0
  %2624 = vmatmul.mubr.f32.gmra.mrb[0].mxu0 %v2322
  %v2625 = vpop.f32.mrb[0].mxu0
  %v2626 = vadd.f32 %v2401, %v2625
  %v2627 = vpop.f32.mrb[0].mxu0
  %v2628 = vadd.f32 %v2405, %v2627
  %2629 = vmatprep.mubr.f32.mxu0 0.0
  %2630 = vmatmul.mubr.f32.gmra.mrb[0].mxu0 %v2323
  %v2631 = vpop.f32.mrb[0].mxu0
  %v2632 = vadd.f32 %v2401, %v2631
  %v2633 = vpop.f32.mrb[0].mxu0
  %v2634 = vadd.f32 %v2405, %v2633
  %2635 = vdwg.mxu0
  %2636 = vst [vmem:[#allocation5] sm:$0xff] %v2477
  %2637 = vst [vmem:[#allocation5 + $0x8] sm:$0xff] %v2479
  %2638 = vst [vmem:[#allocation5 + $0x10] sm:$0xff] %v2590
  %2639 = vst [vmem:[#allocation5 + $0x18] sm:$0xff] %v2592
  %2640 = vst [vmem:[#allocation5 + $0x20] sm:$0xff] %v2483
  %2641 = vst [vmem:[#allocation5 + $0x28] sm:$0xff] %v2485
  %2642 = vst [vmem:[#allocation5 + $0x30] sm:$0xff] %v2596
  %2643 = vst [vmem:[#allocation5 + $0x38] sm:$0xff] %v2598
  %2644 = vst [vmem:[#allocation5 + $0x40] sm:$0xff] %v2489
  %2645 = vst [vmem:[#allocation5 + $0x48] sm:$0xff] %v2491
  %2646 = vst [vmem:[#allocation5 + $0x50] sm:$0xff] %v2602
  %2647 = vst [vmem:[#allocation5 + $0x58] sm:$0xff] %v2604
  %2648 = vst [vmem:[#allocation5 + $0x60] sm:$0xff] %v2495
  %2649 = vst [vmem:[#allocation5 + $0x68] sm:$0xff] %v2497
  %2650 = vst [vmem:[#allocation5 + $0x70] sm:$0xff] %v2608
  %2651 = vst [vmem:[#allocation5 + $0x78] sm:$0xff] %v2610
  %2652 = vst [vmem:[#allocation5 + $0x80] sm:$0xff] %v2501
  %2653 = vst [vmem:[#allocation5 + $0x88] sm:$0xff] %v2503
  %2654 = vst [vmem:[#allocation5 + $0x90] sm:$0xff] %v2614
  %2655 = vst [vmem:[#allocation5 + $0x98] sm:$0xff] %v2616
  %2656 = vst [vmem:[#allocation5 + $0xa0] sm:$0xff] %v2507
  %2657 = vst [vmem:[#allocation5 + $0xa8] sm:$0xff] %v2509
  %2658 = vst [vmem:[#allocation5 + $0xb0] sm:$0xff] %v2620
  %2659 = vst [vmem:[#allocation5 + $0xb8] sm:$0xff] %v2622
  %2660 = vst [vmem:[#allocation5 + $0xc0] sm:$0xff] %v2513
  %2661 = vst [vmem:[#allocation5 + $0xc8] sm:$0xff] %v2515
  %2662 = vst [vmem:[#allocation5 + $0xd0] sm:$0xff] %v2626
  %2663 = vst [vmem:[#allocation5 + $0xd8] sm:$0xff] %v2628
  %2664 = vst [vmem:[#allocation5 + $0xe0] sm:$0xff] %v2519
  %2665 = vst [vmem:[#allocation5 + $0xe8] sm:$0xff] %v2521
  %2666 = vst [vmem:[#allocation5 + $0xf0] sm:$0xff] %v2632
  %2667 = vst [vmem:[#allocation5 + $0xf8] sm:$0xff] %v2634
  %s2668 = scalar_lea.vmem [#allocation2], 8
  %v2669 = vld [vmem:[%s2668] sm:$0xff]
  %s2670 = scalar_lea.vmem [#allocation3], 8
  %v2671 = vld [vmem:[%s2670] sm:$0xff]
  %v2672 = vld [vmem:[%s4] sm:$0xff]
  %v2673 = vld [vmem:[%s4 + $0x8] sm:$0xff]
  %v2674 = vld [vmem:[%s4 + $0x10] sm:$0xff]
  %v2675 = vld [vmem:[%s4 + $0x18] sm:$0xff]
  %v2676 = vld [vmem:[%s4 + $0x20] sm:$0xff]
  %v2677 = vld [vmem:[%s4 + $0x28] sm:$0xff]
  %v2678 = vld [vmem:[%s4 + $0x30] sm:$0xff]
  %v2679 = vld [vmem:[%s4 + $0x38] sm:$0xff]
  %v2680 = vld [vmem:[%s4 + $0x40] sm:$0xff]
  %v2681 = vld [vmem:[%s4 + $0x48] sm:$0xff]
  %v2682 = vld [vmem:[%s4 + $0x50] sm:$0xff]
  %v2683 = vld [vmem:[%s4 + $0x58] sm:$0xff]
  %v2684 = vld [vmem:[%s4 + $0x60] sm:$0xff]
  %v2685 = vld [vmem:[%s4 + $0x68] sm:$0xff]
  %v2686 = vld [vmem:[%s4 + $0x70] sm:$0xff]
  %v2687 = vld [vmem:[%s4 + $0x78] sm:$0xff]
  %v2688 = vld [vmem:[%s4 + $0x80] sm:$0xff]
  %v2689 = vld [vmem:[%s4 + $0x88] sm:$0xff]
  %v2690 = vld [vmem:[%s4 + $0x90] sm:$0xff]
  %v2691 = vld [vmem:[%s4 + $0x98] sm:$0xff]
  %v2692 = vld [vmem:[%s4 + $0xa0] sm:$0xff]
  %v2693 = vld [vmem:[%s4 + $0xa8] sm:$0xff]
  %v2694 = vld [vmem:[%s4 + $0xb0] sm:$0xff]
  %v2695 = vld [vmem:[%s4 + $0xb8] sm:$0xff]
  %v2696 = vld [vmem:[%s4 + $0xc0] sm:$0xff]
  %v2697 = vld [vmem:[%s4 + $0xc8] sm:$0xff]
  %v2698 = vld [vmem:[%s4 + $0xd0] sm:$0xff]
  %v2699 = vld [vmem:[%s4 + $0xd8] sm:$0xff]
  %v2700 = vld [vmem:[%s4 + $0xe0] sm:$0xff]
  %v2701 = vld [vmem:[%s4 + $0xe8] sm:$0xff]
  %v2702 = vld [vmem:[%s4 + $0xf0] sm:$0xff]
  %v2703 = vld [vmem:[%s4 + $0xf8] sm:$0xff]
  %v2704 = vld [vmem:[%s4 + $0x100] sm:$0xff]
  %v2705 = vld [vmem:[%s4 + $0x108] sm:$0xff]
  %v2706 = vld [vmem:[%s4 + $0x110] sm:$0xff]
  %v2707 = vld [vmem:[%s4 + $0x118] sm:$0xff]
  %v2708 = vld [vmem:[%s4 + $0x120] sm:$0xff]
  %v2709 = vld [vmem:[%s4 + $0x128] sm:$0xff]
  %v2710 = vld [vmem:[%s4 + $0x130] sm:$0xff]
  %v2711 = vld [vmem:[%s4 + $0x138] sm:$0xff]
  %v2712 = vld [vmem:[%s4 + $0x140] sm:$0xff]
  %v2713 = vld [vmem:[%s4 + $0x148] sm:$0xff]
  %v2714 = vld [vmem:[%s4 + $0x150] sm:$0xff]
  %v2715 = vld [vmem:[%s4 + $0x158] sm:$0xff]
  %v2716 = vld [vmem:[%s4 + $0x160] sm:$0xff]
  %v2717 = vld [vmem:[%s4 + $0x168] sm:$0xff]
  %v2718 = vld [vmem:[%s4 + $0x170] sm:$0xff]
  %v2719 = vld [vmem:[%s4 + $0x178] sm:$0xff]
  %v2720 = vld [vmem:[%s4 + $0x180] sm:$0xff]
  %v2721 = vld [vmem:[%s4 + $0x188] sm:$0xff]
  %v2722 = vld [vmem:[%s4 + $0x190] sm:$0xff]
  %v2723 = vld [vmem:[%s4 + $0x198] sm:$0xff]
  %v2724 = vld [vmem:[%s4 + $0x1a0] sm:$0xff]
  %v2725 = vld [vmem:[%s4 + $0x1a8] sm:$0xff]
  %v2726 = vld [vmem:[%s4 + $0x1b0] sm:$0xff]
  %v2727 = vld [vmem:[%s4 + $0x1b8] sm:$0xff]
  %v2728 = vld [vmem:[%s4 + $0x1c0] sm:$0xff]
  %v2729 = vld [vmem:[%s4 + $0x1c8] sm:$0xff]
  %v2730 = vld [vmem:[%s4 + $0x1d0] sm:$0xff]
  %v2731 = vld [vmem:[%s4 + $0x1d8] sm:$0xff]
  %v2732 = vld [vmem:[%s4 + $0x1e0] sm:$0xff]
  %v2733 = vld [vmem:[%s4 + $0x1e8] sm:$0xff]
  %v2734 = vld [vmem:[%s4 + $0x1f0] sm:$0xff]
  %v2735 = vld [vmem:[%s4 + $0x1f8] sm:$0xff]
  %v2736 = vld [vmem:[#allocation5] sm:$0xff]
  %v2737 = vld [vmem:[#allocation5 + $0x8] sm:$0xff]
  %v2738 = vld [vmem:[#allocation5 + $0x10] sm:$0xff]
  %v2739 = vld [vmem:[#allocation5 + $0x18] sm:$0xff]
  %2740 = vmatprep.subr.mxu0 %v2673
  %2741 = vmatpush1.msra.mxu0 %v2672
  %2742 = vmatprep.subr.mxu0 %v2677
  %2743 = vmatpush1.msra.mxu0 %v2676
  %2744 = vmatprep.subr.mxu0 %v2681
  %2745 = vmatpush1.msra.mxu0 %v2680
  %2746 = vmatprep.subr.mxu0 %v2685
  %2747 = vmatpush1.msra.mxu0 %v2684
  %2748 = vmatprep.subr.mxu0 %v2689
  %2749 = vmatpush1.msra.mxu0 %v2688
  %2750 = vmatprep.subr.mxu0 %v2693
  %2751 = vmatpush1.msra.mxu0 %v2692
  %2752 = vmatprep.subr.mxu0 %v2697
  %2753 = vmatpush1.msra.mxu0 %v2696
  %2754 = vmatprep.subr.mxu0 %v2701
  %2755 = vmatpush1.msra.mxu0 %v2700
  %2756 = vmatprep.subr.mxu0 %v2705
  %2757 = vmatpush1.msra.mxu0 %v2704
  %2758 = vmatprep.subr.mxu0 %v2709
  %2759 = vmatpush1.msra.mxu0 %v2708
  %2760 = vmatprep.subr.mxu0 %v2713
  %2761 = vmatpush1.msra.mxu0 %v2712
  %2762 = vmatprep.subr.mxu0 %v2717
  %2763 = vmatpush1.msra.mxu0 %v2716
  %2764 = vmatprep.subr.mxu0 %v2721
  %2765 = vmatpush1.msra.mxu0 %v2720
  %2766 = vmatprep.subr.mxu0 %v2725
  %2767 = vmatpush1.msra.mxu0 %v2724
  %2768 = vmatprep.subr.mxu0 %v2729
  %2769 = vmatpush1.msra.mxu0 %v2728
  %2770 = vmatprep.subr.mxu0 %v2733
  %2771 = vmatpush1.msra.mxu0 %v2732
  %2772 = vmatprep.subr.mxu0 0.0
  %2773 = vmatpush1.msra.mxu0 0.0
  %2774 = vmatprep.subr.mxu0 0.0
  %2775 = vmatpush1.msra.mxu0 0.0
  %2776 = vmatprep.subr.mxu0 0.0
  %2777 = vmatpush1.msra.mxu0 0.0
  %2778 = vmatprep.subr.mxu0 0.0
  %2779 = vmatpush1.msra.mxu0 0.0
  %2780 = vmatprep.subr.mxu0 0.0
  %2781 = vmatpush1.msra.mxu0 0.0
  %2782 = vmatprep.subr.mxu0 0.0
  %2783 = vmatpush1.msra.mxu0 0.0
  %2784 = vmatprep.subr.mxu0 0.0
  %2785 = vmatpush1.msra.mxu0 0.0
  %2786 = vmatprep.subr.mxu0 0.0
  %2787 = vmatpush1.msra.mxu0 0.0
  %2788 = vmatprep.subr.mxu0 0.0
  %2789 = vmatpush1.msra.mxu0 0.0
  %2790 = vmatprep.subr.mxu0 0.0
  %2791 = vmatpush1.msra.mxu0 0.0
  %2792 = vmatprep.subr.mxu0 0.0
  %2793 = vmatpush1.msra.mxu0 0.0
  %2794 = vmatprep.subr.mxu0 0.0
  %2795 = vmatpush1.msra.mxu0 0.0
  %2796 = vmatprep.subr.mxu0 0.0
  %2797 = vmatpush1.msra.mxu0 0.0
  %2798 = vmatprep.subr.mxu0 0.0
  %2799 = vmatpush1.msra.mxu0 0.0
  %2800 = vmatprep.subr.mxu0 0.0
  %2801 = vmatpush1.msra.mxu0 0.0
  %2802 = vmatprep.subr.mxu0 0.0
  %2803 = vmatpush1.msra.mxu0 0.0
  %2804 = vmatprep.mubr.f32.mxu0 0.0
  %2805 = vmatmul.mubr.f32.gmra.mrb[0].mxu0 %v2669
  %v2806 = vpop.f32.mrb[0].mxu0
  %v2807 = vadd.f32 0.0, %v2806
  %v2808 = vpop.f32.mrb[0].mxu0
  %v2809 = vadd.f32 0.0, %v2808
  %2810 = vdwg.mxu0
  %2811 = vmatprep.subr.mxu0 %v2675
  %2812 = vmatpush1.msra.mxu0 %v2674
  %2813 = vmatprep.subr.mxu0 %v2679
  %2814 = vmatpush1.msra.mxu0 %v2678
  %2815 = vmatprep.subr.mxu0 %v2683
  %2816 = vmatpush1.msra.mxu0 %v2682
  %2817 = vmatprep.subr.mxu0 %v2687
  %2818 = vmatpush1.msra.mxu0 %v2686
  %2819 = vmatprep.subr.mxu0 %v2691
  %2820 = vmatpush1.msra.mxu0 %v2690
  %2821 = vmatprep.subr.mxu0 %v2695
  %2822 = vmatpush1.msra.mxu0 %v2694
  %2823 = vmatprep.subr.mxu0 %v2699
  %2824 = vmatpush1.msra.mxu0 %v2698
  %2825 = vmatprep.subr.mxu0 %v2703
  %2826 = vmatpush1.msra.mxu0 %v2702
  %2827 = vmatprep.subr.mxu0 %v2707
  %2828 = vmatpush1.msra.mxu0 %v2706
  %2829 = vmatprep.subr.mxu0 %v2711
  %2830 = vmatpush1.msra.mxu0 %v2710
  %2831 = vmatprep.subr.mxu0 %v2715
  %2832 = vmatpush1.msra.mxu0 %v2714
  %2833 = vmatprep.subr.mxu0 %v2719
  %2834 = vmatpush1.msra.mxu0 %v2718
  %2835 = vmatprep.subr.mxu0 %v2723
  %2836 = vmatpush1.msra.mxu0 %v2722
  %2837 = vmatprep.subr.mxu0 %v2727
  %2838 = vmatpush1.msra.mxu0 %v2726
  %2839 = vmatprep.subr.mxu0 %v2731
  %2840 = vmatpush1.msra.mxu0 %v2730
  %2841 = vmatprep.subr.mxu0 %v2735
  %2842 = vmatpush1.msra.mxu0 %v2734
  %2843 = vmatprep.subr.mxu0 0.0
  %2844 = vmatpush1.msra.mxu0 0.0
  %2845 = vmatprep.subr.mxu0 0.0
  %2846 = vmatpush1.msra.mxu0 0.0
  %2847 = vmatprep.subr.mxu0 0.0
  %2848 = vmatpush1.msra.mxu0 0.0
  %2849 = vmatprep.subr.mxu0 0.0
  %2850 = vmatpush1.msra.mxu0 0.0
  %2851 = vmatprep.subr.mxu0 0.0
  %2852 = vmatpush1.msra.mxu0 0.0
  %2853 = vmatprep.subr.mxu0 0.0
  %2854 = vmatpush1.msra.mxu0 0.0
  %2855 = vmatprep.subr.mxu0 0.0
  %2856 = vmatpush1.msra.mxu0 0.0
  %2857 = vmatprep.subr.mxu0 0.0
  %2858 = vmatpush1.msra.mxu0 0.0
  %2859 = vmatprep.subr.mxu0 0.0
  %2860 = vmatpush1.msra.mxu0 0.0
  %2861 = vmatprep.subr.mxu0 0.0
  %2862 = vmatpush1.msra.mxu0 0.0
  %2863 = vmatprep.subr.mxu0 0.0
  %2864 = vmatpush1.msra.mxu0 0.0
  %2865 = vmatprep.subr.mxu0 0.0
  %2866 = vmatpush1.msra.mxu0 0.0
  %2867 = vmatprep.subr.mxu0 0.0
  %2868 = vmatpush1.msra.mxu0 0.0
  %2869 = vmatprep.subr.mxu0 0.0
  %2870 = vmatpush1.msra.mxu0 0.0
  %2871 = vmatprep.subr.mxu0 0.0
  %2872 = vmatpush1.msra.mxu0 0.0
  %2873 = vmatprep.subr.mxu0 0.0
  %2874 = vmatpush1.msra.mxu0 0.0
  %2875 = vmatprep.mubr.f32.mxu0 0.0
  %2876 = vmatmul.mubr.f32.gmra.mrb[0].mxu0 %v2669
  %v2877 = vpop.f32.mrb[0].mxu0
  %v2878 = vadd.f32 0.0, %v2877
  %v2879 = vpop.f32.mrb[0].mxu0
  %v2880 = vadd.f32 0.0, %v2879
  %2881 = vdwg.mxu0
  %v2882 = vadd.f32 %v2736, %v2807
  %v2883 = vadd.f32 %v2737, %v2809
  %v2884 = vadd.f32 %v2738, %v2878
  %v2885 = vadd.f32 %v2739, %v2880
  %v2886 = vxor.u32 %v2882, 2147483648
  %v2887 = vmul.f32 %v2886, 1.442695
  %v2888 = vpow.pop %v2887
  %v2889 = vadd.f32 %v2888, 1.0
  %v2890 = vrcp.pop %v2889
  %v2891 = vmul.f32 1.0, %v2890
  %v2892 = vxor.u32 %v2883, 2147483648
  %v2893 = vmul.f32 %v2892, 1.442695
  %v2894 = vpow.pop %v2893
  %v2895 = vadd.f32 %v2894, 1.0
  %v2896 = vrcp.pop %v2895
  %v2897 = vmul.f32 1.0, %v2896
  %v2898 = vtanh.pop %v2884
  %v2899 = vxor.u32 %v2885, 2147483648
  %v2900 = vmul.f32 %v2899, 1.442695
  %v2901 = vpow.pop %v2900
  %v2902 = vadd.f32 %v2901, 1.0
  %v2903 = vrcp.pop %v2902
  %v2904 = vmul.f32 1.0, %v2903
  %v2905 = vmul.f32 %v2897, %v2671
  %v2906 = vmul.f32 %v2891, %v2898
  %v2907 = vadd.f32 %v2905, %v2906
  %v2908 = vtanh.pop %v2907
  %v2909 = vmul.f32 %v2904, %v2908
  %2910 = vst [vmem:[%s7] sm:$0xff] %v2909
  %v2911 = vld [vmem:[%s4] sm:$0xff]
  %v2912 = vld [vmem:[%s4 + $0x8] sm:$0xff]
  %v2913 = vld [vmem:[%s4 + $0x10] sm:$0xff]
  %v2914 = vld [vmem:[%s4 + $0x18] sm:$0xff]
  %v2915 = vld [vmem:[%s4 + $0x20] sm:$0xff]
  %v2916 = vld [vmem:[%s4 + $0x28] sm:$0xff]
  %v2917 = vld [vmem:[%s4 + $0x30] sm:$0xff]
  %v2918 = vld [vmem:[%s4 + $0x38] sm:$0xff]
  %v2919 = vld [vmem:[%s4 + $0x40] sm:$0xff]
  %v2920 = vld [vmem:[%s4 + $0x48] sm:$0xff]
  %v2921 = vld [vmem:[%s4 + $0x50] sm:$0xff]
  %v2922 = vld [vmem:[%s4 + $0x58] sm:$0xff]
  %v2923 = vld [vmem:[%s4 + $0x60] sm:$0xff]
  %v2924 = vld [vmem:[%s4 + $0x68] sm:$0xff]
  %v2925 = vld [vmem:[%s4 + $0x70] sm:$0xff]
  %v2926 = vld [vmem:[%s4 + $0x78] sm:$0xff]
  %v2927 = vld [vmem:[%s4 + $0x80] sm:$0xff]
  %v2928 = vld [vmem:[%s4 + $0x88] sm:$0xff]
  %v2929 = vld [vmem:[%s4 + $0x90] sm:$0xff]
  %v2930 = vld [vmem:[%s4 + $0x98] sm:$0xff]
  %v2931 = vld [vmem:[%s4 + $0xa0] sm:$0xff]
  %v2932 = vld [vmem:[%s4 + $0xa8] sm:$0xff]
  %v2933 = vld [vmem:[%s4 + $0xb0] sm:$0xff]
  %v2934 = vld [vmem:[%s4 + $0xb8] sm:$0xff]
  %v2935 = vld [vmem:[%s4 + $0xc0] sm:$0xff]
  %v2936 = vld [vmem:[%s4 + $0xc8] sm:$0xff]
  %v2937 = vld [vmem:[%s4 + $0xd0] sm:$0xff]
  %v2938 = vld [vmem:[%s4 + $0xd8] sm:$0xff]
  %v2939 = vld [vmem:[%s4 + $0xe0] sm:$0xff]
  %v2940 = vld [vmem:[%s4 + $0xe8] sm:$0xff]
  %v2941 = vld [vmem:[%s4 + $0xf0] sm:$0xff]
  %v2942 = vld [vmem:[%s4 + $0xf8] sm:$0xff]
  %v2943 = vld [vmem:[%s4 + $0x100] sm:$0xff]
  %v2944 = vld [vmem:[%s4 + $0x108] sm:$0xff]
  %v2945 = vld [vmem:[%s4 + $0x110] sm:$0xff]
  %v2946 = vld [vmem:[%s4 + $0x118] sm:$0xff]
  %v2947 = vld [vmem:[%s4 + $0x120] sm:$0xff]
  %v2948 = vld [vmem:[%s4 + $0x128] sm:$0xff]
  %v2949 = vld [vmem:[%s4 + $0x130] sm:$0xff]
  %v2950 = vld [vmem:[%s4 + $0x138] sm:$0xff]
  %v2951 = vld [vmem:[%s4 + $0x140] sm:$0xff]
  %v2952 = vld [vmem:[%s4 + $0x148] sm:$0xff]
  %v2953 = vld [vmem:[%s4 + $0x150] sm:$0xff]
  %v2954 = vld [vmem:[%s4 + $0x158] sm:$0xff]
  %v2955 = vld [vmem:[%s4 + $0x160] sm:$0xff]
  %v2956 = vld [vmem:[%s4 + $0x168] sm:$0xff]
  %v2957 = vld [vmem:[%s4 + $0x170] sm:$0xff]
  %v2958 = vld [vmem:[%s4 + $0x178] sm:$0xff]
  %v2959 = vld [vmem:[%s4 + $0x180] sm:$0xff]
  %v2960 = vld [vmem:[%s4 + $0x188] sm:$0xff]
  %v2961 = vld [vmem:[%s4 + $0x190] sm:$0xff]
  %v2962 = vld [vmem:[%s4 + $0x198] sm:$0xff]
  %v2963 = vld [vmem:[%s4 + $0x1a0] sm:$0xff]
  %v2964 = vld [vmem:[%s4 + $0x1a8] sm:$0xff]
  %v2965 = vld [vmem:[%s4 + $0x1b0] sm:$0xff]
  %v2966 = vld [vmem:[%s4 + $0x1b8] sm:$0xff]
  %v2967 = vld [vmem:[%s4 + $0x1c0] sm:$0xff]
  %v2968 = vld [vmem:[%s4 + $0x1c8] sm:$0xff]
  %v2969 = vld [vmem:[%s4 + $0x1d0] sm:$0xff]
  %v2970 = vld [vmem:[%s4 + $0x1d8] sm:$0xff]
  %v2971 = vld [vmem:[%s4 + $0x1e0] sm:$0xff]
  %v2972 = vld [vmem:[%s4 + $0x1e8] sm:$0xff]
  %v2973 = vld [vmem:[%s4 + $0x1f0] sm:$0xff]
  %v2974 = vld [vmem:[%s4 + $0x1f8] sm:$0xff]
  %v2975 = vld [vmem:[%s691] sm:$0xff]
  %v2976 = vld [vmem:[%s691 + $0x8] sm:$0xff]
  %v2977 = vld [vmem:[%s691 + $0x10] sm:$0xff]
  %v2978 = vld [vmem:[%s691 + $0x18] sm:$0xff]
  %2979 = vmatprep.subr.mxu0 %v2912
  %2980 = vmatpush1.msra.mxu0 %v2911
  %2981 = vmatprep.subr.mxu0 %v2916
  %2982 = vmatpush1.msra.mxu0 %v2915
  %2983 = vmatprep.subr.mxu0 %v2920
  %2984 = vmatpush1.msra.mxu0 %v2919
  %2985 = vmatprep.subr.mxu0 %v2924
  %2986 = vmatpush1.msra.mxu0 %v2923
  %2987 = vmatprep.subr.mxu0 %v2928
  %2988 = vmatpush1.msra.mxu0 %v2927
  %2989 = vmatprep.subr.mxu0 %v2932
  %2990 = vmatpush1.msra.mxu0 %v2931
  %2991 = vmatprep.subr.mxu0 %v2936
  %2992 = vmatpush1.msra.mxu0 %v2935
  %2993 = vmatprep.subr.mxu0 %v2940
  %2994 = vmatpush1.msra.mxu0 %v2939
  %2995 = vmatprep.subr.mxu0 %v2944
  %2996 = vmatpush1.msra.mxu0 %v2943
  %2997 = vmatprep.subr.mxu0 %v2948
  %2998 = vmatpush1.msra.mxu0 %v2947
  %2999 = vmatprep.subr.mxu0 %v2952
  %3000 = vmatpush1.msra.mxu0 %v2951
  %3001 = vmatprep.subr.mxu0 %v2956
  %3002 = vmatpush1.msra.mxu0 %v2955
  %3003 = vmatprep.subr.mxu0 %v2960
  %3004 = vmatpush1.msra.mxu0 %v2959
  %3005 = vmatprep.subr.mxu0 %v2964
  %3006 = vmatpush1.msra.mxu0 %v2963
  %3007 = vmatprep.subr.mxu0 %v2968
  %3008 = vmatpush1.msra.mxu0 %v2967
  %3009 = vmatprep.subr.mxu0 %v2972
  %3010 = vmatpush1.msra.mxu0 %v2971
  %3011 = vmatprep.subr.mxu0 0.0
  %3012 = vmatpush1.msra.mxu0 0.0
  %3013 = vmatprep.subr.mxu0 0.0
  %3014 = vmatpush1.msra.mxu0 0.0
  %3015 = vmatprep.subr.mxu0 0.0
  %3016 = vmatpush1.msra.mxu0 0.0
  %3017 = vmatprep.subr.mxu0 0.0
  %3018 = vmatpush1.msra.mxu0 0.0
  %3019 = vmatprep.subr.mxu0 0.0
  %3020 = vmatpush1.msra.mxu0 0.0
  %3021 = vmatprep.subr.mxu0 0.0
  %3022 = vmatpush1.msra.mxu0 0.0
  %3023 = vmatprep.subr.mxu0 0.0
  %3024 = vmatpush1.msra.mxu0 0.0
  %3025 = vmatprep.subr.mxu0 0.0
  %3026 = vmatpush1.msra.mxu0 0.0
  %3027 = vmatprep.subr.mxu0 0.0
  %3028 = vmatpush1.msra.mxu0 0.0
  %3029 = vmatprep.subr.mxu0 0.0
  %3030 = vmatpush1.msra.mxu0 0.0
  %3031 = vmatprep.subr.mxu0 0.0
  %3032 = vmatpush1.msra.mxu0 0.0
  %3033 = vmatprep.subr.mxu0 0.0
  %3034 = vmatpush1.msra.mxu0 0.0
  %3035 = vmatprep.subr.mxu0 0.0
  %3036 = vmatpush1.msra.mxu0 0.0
  %3037 = vmatprep.subr.mxu0 0.0
  %3038 = vmatpush1.msra.mxu0 0.0
  %3039 = vmatprep.subr.mxu0 0.0
  %3040 = vmatpush1.msra.mxu0 0.0
  %3041 = vmatprep.subr.mxu0 0.0
  %3042 = vmatpush1.msra.mxu0 0.0
  %3043 = vmatprep.mubr.f32.mxu0 0.0
  %3044 = vmatmul.mubr.f32.gmra.mrb[0].mxu0 %v2909
  %v3045 = vpop.f32.mrb[0].mxu0
  %v3046 = vadd.f32 0.0, %v3045
  %v3047 = vpop.f32.mrb[0].mxu0
  %v3048 = vadd.f32 0.0, %v3047
  %3049 = vdwg.mxu0
  %3050 = vmatprep.subr.mxu0 %v2914
  %3051 = vmatpush1.msra.mxu0 %v2913
  %3052 = vmatprep.subr.mxu0 %v2918
  %3053 = vmatpush1.msra.mxu0 %v2917
  %3054 = vmatprep.subr.mxu0 %v2922
  %3055 = vmatpush1.msra.mxu0 %v2921
  %3056 = vmatprep.subr.mxu0 %v2926
  %3057 = vmatpush1.msra.mxu0 %v2925
  %3058 = vmatprep.subr.mxu0 %v2930
  %3059 = vmatpush1.msra.mxu0 %v2929
  %3060 = vmatprep.subr.mxu0 %v2934
  %3061 = vmatpush1.msra.mxu0 %v2933
  %3062 = vmatprep.subr.mxu0 %v2938
  %3063 = vmatpush1.msra.mxu0 %v2937
  %3064 = vmatprep.subr.mxu0 %v2942
  %3065 = vmatpush1.msra.mxu0 %v2941
  %3066 = vmatprep.subr.mxu0 %v2946
  %3067 = vmatpush1.msra.mxu0 %v2945
  %3068 = vmatprep.subr.mxu0 %v2950
  %3069 = vmatpush1.msra.mxu0 %v2949
  %3070 = vmatprep.subr.mxu0 %v2954
  %3071 = vmatpush1.msra.mxu0 %v2953
  %3072 = vmatprep.subr.mxu0 %v2958
  %3073 = vmatpush1.msra.mxu0 %v2957
  %3074 = vmatprep.subr.mxu0 %v2962
  %3075 = vmatpush1.msra.mxu0 %v2961
  %3076 = vmatprep.subr.mxu0 %v2966
  %3077 = vmatpush1.msra.mxu0 %v2965
  %3078 = vmatprep.subr.mxu0 %v2970
  %3079 = vmatpush1.msra.mxu0 %v2969
  %3080 = vmatprep.subr.mxu0 %v2974
  %3081 = vmatpush1.msra.mxu0 %v2973
  %3082 = vmatprep.subr.mxu0 0.0
  %3083 = vmatpush1.msra.mxu0 0.0
  %3084 = vmatprep.subr.mxu0 0.0
  %3085 = vmatpush1.msra.mxu0 0.0
  %3086 = vmatprep.subr.mxu0 0.0
  %3087 = vmatpush1.msra.mxu0 0.0
  %3088 = vmatprep.subr.mxu0 0.0
  %3089 = vmatpush1.msra.mxu0 0.0
  %3090 = vmatprep.subr.mxu0 0.0
  %3091 = vmatpush1.msra.mxu0 0.0
  %3092 = vmatprep.subr.mxu0 0.0
  %3093 = vmatpush1.msra.mxu0 0.0
  %3094 = vmatprep.subr.mxu0 0.0
  %3095 = vmatpush1.msra.mxu0 0.0
  %3096 = vmatprep.subr.mxu0 0.0
  %3097 = vmatpush1.msra.mxu0 0.0
  %3098 = vmatprep.subr.mxu0 0.0
  %3099 = vmatpush1.msra.mxu0 0.0
  %3100 = vmatprep.subr.mxu0 0.0
  %3101 = vmatpush1.msra.mxu0 0.0
  %3102 = vmatprep.subr.mxu0 0.0
  %3103 = vmatpush1.msra.mxu0 0.0
  %3104 = vmatprep.subr.mxu0 0.0
  %3105 = vmatpush1.msra.mxu0 0.0
  %3106 = vmatprep.subr.mxu0 0.0
  %3107 = vmatpush1.msra.mxu0 0.0
  %3108 = vmatprep.subr.mxu0 0.0
  %3109 = vmatpush1.msra.mxu0 0.0
  %3110 = vmatprep.subr.mxu0 0.0
  %3111 = vmatpush1.msra.mxu0 0.0
  %3112 = vmatprep.subr.mxu0 0.0
  %3113 = vmatpush1.msra.mxu0 0.0
  %3114 = vmatprep.mubr.f32.mxu0 0.0
  %3115 = vmatmul.mubr.f32.gmra.mrb[0].mxu0 %v2909
  %v3116 = vpop.f32.mrb[0].mxu0
  %v3117 = vadd.f32 0.0, %v3116
  %v3118 = vpop.f32.mrb[0].mxu0
  %v3119 = vadd.f32 0.0, %v3118
  %3120 = vdwg.mxu0
  %v3121 = vadd.f32 %v2975, %v3046
  %v3122 = vadd.f32 %v2976, %v3048
  %v3123 = vadd.f32 %v2977, %v3117
  %v3124 = vadd.f32 %v2978, %v3119
  %v3125 = vxor.u32 %v3121, 2147483648
  %v3126 = vmul.f32 %v3125, 1.442695
  %v3127 = vpow.pop %v3126
  %v3128 = vadd.f32 %v3127, 1.0
  %v3129 = vrcp.pop %v3128
  %v3130 = vmul.f32 1.0, %v3129
  %v3131 = vxor.u32 %v3122, 2147483648
  %v3132 = vmul.f32 %v3131, 1.442695
  %v3133 = vpow.pop %v3132
  %v3134 = vadd.f32 %v3133, 1.0
  %v3135 = vrcp.pop %v3134
  %v3136 = vmul.f32 1.0, %v3135
  %v3137 = vtanh.pop %v3123
  %v3138 = vxor.u32 %v3124, 2147483648
  %v3139 = vmul.f32 %v3138, 1.442695
  %v3140 = vpow.pop %v3139
  %v3141 = vadd.f32 %v3140, 1.0
  %v3142 = vrcp.pop %v3141
  %v3143 = vmul.f32 1.0, %v3142
  %v3144 = vmul.f32 %v3136, %v2907
  %v3145 = vmul.f32 %v3130, %v3137
  %v3146 = vadd.f32 %v3144, %v3145
  %v3147 = vtanh.pop %v3146
  %v3148 = vmul.f32 %v3143, %v3147
  %s3149 = scalar_lea.vmem %s7, 8
  %3150 = vst [vmem:[%s3149] sm:$0xff] %v3148
  %v3151 = vld [vmem:[%s4] sm:$0xff]
  %v3152 = vld [vmem:[%s4 + $0x8] sm:$0xff]
  %v3153 = vld [vmem:[%s4 + $0x10] sm:$0xff]
  %v3154 = vld [vmem:[%s4 + $0x18] sm:$0xff]
  %v3155 = vld [vmem:[%s4 + $0x20] sm:$0xff]
  %v3156 = vld [vmem:[%s4 + $0x28] sm:$0xff]
  %v3157 = vld [vmem:[%s4 + $0x30] sm:$0xff]
  %v3158 = vld [vmem:[%s4 + $0x38] sm:$0xff]
  %v3159 = vld [vmem:[%s4 + $0x40] sm:$0xff]
  %v3160 = vld [vmem:[%s4 + $0x48] sm:$0xff]
  %v3161 = vld [vmem:[%s4 + $0x50] sm:$0xff]
  %v3162 = vld [vmem:[%s4 + $0x58] sm:$0xff]
  %v3163 = vld [vmem:[%s4 + $0x60] sm:$0xff]
  %v3164 = vld [vmem:[%s4 + $0x68] sm:$0xff]
  %v3165 = vld [vmem:[%s4 + $0x70] sm:$0xff]
  %v3166 = vld [vmem:[%s4 + $0x78] sm:$0xff]
  %v3167 = vld [vmem:[%s4 + $0x80] sm:$0xff]
  %v3168 = vld [vmem:[%s4 + $0x88] sm:$0xff]
  %v3169 = vld [vmem:[%s4 + $0x90] sm:$0xff]
  %v3170 = vld [vmem:[%s4 + $0x98] sm:$0xff]
  %v3171 = vld [vmem:[%s4 + $0xa0] sm:$0xff]
  %v3172 = vld [vmem:[%s4 + $0xa8] sm:$0xff]
  %v3173 = vld [vmem:[%s4 + $0xb0] sm:$0xff]
  %v3174 = vld [vmem:[%s4 + $0xb8] sm:$0xff]
  %v3175 = vld [vmem:[%s4 + $0xc0] sm:$0xff]
  %v3176 = vld [vmem:[%s4 + $0xc8] sm:$0xff]
  %v3177 = vld [vmem:[%s4 + $0xd0] sm:$0xff]
  %v3178 = vld [vmem:[%s4 + $0xd8] sm:$0xff]
  %v3179 = vld [vmem:[%s4 + $0xe0] sm:$0xff]
  %v3180 = vld [vmem:[%s4 + $0xe8] sm:$0xff]
  %v3181 = vld [vmem:[%s4 + $0xf0] sm:$0xff]
  %v3182 = vld [vmem:[%s4 + $0xf8] sm:$0xff]
  %v3183 = vld [vmem:[%s4 + $0x100] sm:$0xff]
  %v3184 = vld [vmem:[%s4 + $0x108] sm:$0xff]
  %v3185 = vld [vmem:[%s4 + $0x110] sm:$0xff]
  %v3186 = vld [vmem:[%s4 + $0x118] sm:$0xff]
  %v3187 = vld [vmem:[%s4 + $0x120] sm:$0xff]
  %v3188 = vld [vmem:[%s4 + $0x128] sm:$0xff]
  %v3189 = vld [vmem:[%s4 + $0x130] sm:$0xff]
  %v3190 = vld [vmem:[%s4 + $0x138] sm:$0xff]
  %v3191 = vld [vmem:[%s4 + $0x140] sm:$0xff]
  %v3192 = vld [vmem:[%s4 + $0x148] sm:$0xff]
  %v3193 = vld [vmem:[%s4 + $0x150] sm:$0xff]
  %v3194 = vld [vmem:[%s4 + $0x158] sm:$0xff]
  %v3195 = vld [vmem:[%s4 + $0x160] sm:$0xff]
  %v3196 = vld [vmem:[%s4 + $0x168] sm:$0xff]
  %v3197 = vld [vmem:[%s4 + $0x170] sm:$0xff]
  %v3198 = vld [vmem:[%s4 + $0x178] sm:$0xff]
  %v3199 = vld [vmem:[%s4 + $0x180] sm:$0xff]
  %v3200 = vld [vmem:[%s4 + $0x188] sm:$0xff]
  %v3201 = vld [vmem:[%s4 + $0x190] sm:$0xff]
  %v3202 = vld [vmem:[%s4 + $0x198] sm:$0xff]
  %v3203 = vld [vmem:[%s4 + $0x1a0] sm:$0xff]
  %v3204 = vld [vmem:[%s4 + $0x1a8] sm:$0xff]
  %v3205 = vld [vmem:[%s4 + $0x1b0] sm:$0xff]
  %v3206 = vld [vmem:[%s4 + $0x1b8] sm:$0xff]
  %v3207 = vld [vmem:[%s4 + $0x1c0] sm:$0xff]
  %v3208 = vld [vmem:[%s4 + $0x1c8] sm:$0xff]
  %v3209 = vld [vmem:[%s4 + $0x1d0] sm:$0xff]
  %v3210 = vld [vmem:[%s4 + $0x1d8] sm:$0xff]
  %v3211 = vld [vmem:[%s4 + $0x1e0] sm:$0xff]
  %v3212 = vld [vmem:[%s4 + $0x1e8] sm:$0xff]
  %v3213 = vld [vmem:[%s4 + $0x1f0] sm:$0xff]
  %v3214 = vld [vmem:[%s4 + $0x1f8] sm:$0xff]
  %v3215 = vld [vmem:[%s932] sm:$0xff]
  %v3216 = vld [vmem:[%s932 + $0x8] sm:$0xff]
  %v3217 = vld [vmem:[%s932 + $0x10] sm:$0xff]
  %v3218 = vld [vmem:[%s932 + $0x18] sm:$0xff]
  %3219 = vmatprep.subr.mxu0 %v3152
  %3220 = vmatpush1.msra.mxu0 %v3151
  %3221 = vmatprep.subr.mxu0 %v3156
  %3222 = vmatpush1.msra.mxu0 %v3155
  %3223 = vmatprep.subr.mxu0 %v3160
  %3224 = vmatpush1.msra.mxu0 %v3159
  %3225 = vmatprep.subr.mxu0 %v3164
  %3226 = vmatpush1.msra.mxu0 %v3163
  %3227 = vmatprep.subr.mxu0 %v3168
  %3228 = vmatpush1.msra.mxu0 %v3167
  %3229 = vmatprep.subr.mxu0 %v3172
  %3230 = vmatpush1.msra.mxu0 %v3171
  %3231 = vmatprep.subr.mxu0 %v3176
  %3232 = vmatpush1.msra.mxu0 %v3175
  %3233 = vmatprep.subr.mxu0 %v3180
  %3234 = vmatpush1.msra.mxu0 %v3179
  %3235 = vmatprep.subr.mxu0 %v3184
  %3236 = vmatpush1.msra.mxu0 %v3183
  %3237 = vmatprep.subr.mxu0 %v3188
  %3238 = vmatpush1.msra.mxu0 %v3187
  %3239 = vmatprep.subr.mxu0 %v3192
  %3240 = vmatpush1.msra.mxu0 %v3191
  %3241 = vmatprep.subr.mxu0 %v3196
  %3242 = vmatpush1.msra.mxu0 %v3195
  %3243 = vmatprep.subr.mxu0 %v3200
  %3244 = vmatpush1.msra.mxu0 %v3199
  %3245 = vmatprep.subr.mxu0 %v3204
  %3246 = vmatpush1.msra.mxu0 %v3203
  %3247 = vmatprep.subr.mxu0 %v3208
  %3248 = vmatpush1.msra.mxu0 %v3207
  %3249 = vmatprep.subr.mxu0 %v3212
  %3250 = vmatpush1.msra.mxu0 %v3211
  %3251 = vmatprep.subr.mxu0 0.0
  %3252 = vmatpush1.msra.mxu0 0.0
  %3253 = vmatprep.subr.mxu0 0.0
  %3254 = vmatpush1.msra.mxu0 0.0
  %3255 = vmatprep.subr.mxu0 0.0
  %3256 = vmatpush1.msra.mxu0 0.0
  %3257 = vmatprep.subr.mxu0 0.0
  %3258 = vmatpush1.msra.mxu0 0.0
  %3259 = vmatprep.subr.mxu0 0.0
  %3260 = vmatpush1.msra.mxu0 0.0
  %3261 = vmatprep.subr.mxu0 0.0
  %3262 = vmatpush1.msra.mxu0 0.0
  %3263 = vmatprep.subr.mxu0 0.0
  %3264 = vmatpush1.msra.mxu0 0.0
  %3265 = vmatprep.subr.mxu0 0.0
  %3266 = vmatpush1.msra.mxu0 0.0
  %3267 = vmatprep.subr.mxu0 0.0
  %3268 = vmatpush1.msra.mxu0 0.0
  %3269 = vmatprep.subr.mxu0 0.0
  %3270 = vmatpush1.msra.mxu0 0.0
  %3271 = vmatprep.subr.mxu0 0.0
  %3272 = vmatpush1.msra.mxu0 0.0
  %3273 = vmatprep.subr.mxu0 0.0
  %3274 = vmatpush1.msra.mxu0 0.0
  %3275 = vmatprep.subr.mxu0 0.0
  %3276 = vmatpush1.msra.mxu0 0.0
  %3277 = vmatprep.subr.mxu0 0.0
  %3278 = vmatpush1.msra.mxu0 0.0
  %3279 = vmatprep.subr.mxu0 0.0
  %3280 = vmatpush1.msra.mxu0 0.0
  %3281 = vmatprep.subr.mxu0 0.0
  %3282 = vmatpush1.msra.mxu0 0.0
  %3283 = vmatprep.mubr.f32.mxu0 0.0
  %3284 = vmatmul.mubr.f32.gmra.mrb[0].mxu0 %v3148
  %v3285 = vpop.f32.mrb[0].mxu0
  %v3286 = vadd.f32 0.0, %v3285
  %v3287 = vpop.f32.mrb[0].mxu0
  %v3288 = vadd.f32 0.0, %v3287
  %3289 = vdwg.mxu0
  %3290 = vmatprep.subr.mxu0 %v3154
  %3291 = vmatpush1.msra.mxu0 %v3153
  %3292 = vmatprep.subr.mxu0 %v3158
  %3293 = vmatpush1.msra.mxu0 %v3157
  %3294 = vmatprep.subr.mxu0 %v3162
  %3295 = vmatpush1.msra.mxu0 %v3161
  %3296 = vmatprep.subr.mxu0 %v3166
  %3297 = vmatpush1.msra.mxu0 %v3165
  %3298 = vmatprep.subr.mxu0 %v3170
  %3299 = vmatpush1.msra.mxu0 %v3169
  %3300 = vmatprep.subr.mxu0 %v3174
  %3301 = vmatpush1.msra.mxu0 %v3173
  %3302 = vmatprep.subr.mxu0 %v3178
  %3303 = vmatpush1.msra.mxu0 %v3177
  %3304 = vmatprep.subr.mxu0 %v3182
  %3305 = vmatpush1.msra.mxu0 %v3181
  %3306 = vmatprep.subr.mxu0 %v3186
  %3307 = vmatpush1.msra.mxu0 %v3185
  %3308 = vmatprep.subr.mxu0 %v3190
  %3309 = vmatpush1.msra.mxu0 %v3189
  %3310 = vmatprep.subr.mxu0 %v3194
  %3311 = vmatpush1.msra.mxu0 %v3193
  %3312 = vmatprep.subr.mxu0 %v3198
  %3313 = vmatpush1.msra.mxu0 %v3197
  %3314 = vmatprep.subr.mxu0 %v3202
  %3315 = vmatpush1.msra.mxu0 %v3201
  %3316 = vmatprep.subr.mxu0 %v3206
  %3317 = vmatpush1.msra.mxu0 %v3205
  %3318 = vmatprep.subr.mxu0 %v3210
  %3319 = vmatpush1.msra.mxu0 %v3209
  %3320 = vmatprep.subr.mxu0 %v3214
  %3321 = vmatpush1.msra.mxu0 %v3213
  %3322 = vmatprep.subr.mxu0 0.0
  %3323 = vmatpush1.msra.mxu0 0.0
  %3324 = vmatprep.subr.mxu0 0.0
  %3325 = vmatpush1.msra.mxu0 0.0
  %3326 = vmatprep.subr.mxu0 0.0
  %3327 = vmatpush1.msra.mxu0 0.0
  %3328 = vmatprep.subr.mxu0 0.0
  %3329 = vmatpush1.msra.mxu0 0.0
  %3330 = vmatprep.subr.mxu0 0.0
  %3331 = vmatpush1.msra.mxu0 0.0
  %3332 = vmatprep.subr.mxu0 0.0
  %3333 = vmatpush1.msra.mxu0 0.0
  %3334 = vmatprep.subr.mxu0 0.0
  %3335 = vmatpush1.msra.mxu0 0.0
  %3336 = vmatprep.subr.mxu0 0.0
  %3337 = vmatpush1.msra.mxu0 0.0
  %3338 = vmatprep.subr.mxu0 0.0
  %3339 = vmatpush1.msra.mxu0 0.0
  %3340 = vmatprep.subr.mxu0 0.0
  %3341 = vmatpush1.msra.mxu0 0.0
  %3342 = vmatprep.subr.mxu0 0.0
  %3343 = vmatpush1.msra.mxu0 0.0
  %3344 = vmatprep.subr.mxu0 0.0
  %3345 = vmatpush1.msra.mxu0 0.0
  %3346 = vmatprep.subr.mxu0 0.0
  %3347 = vmatpush1.msra.mxu0 0.0
  %3348 = vmatprep.subr.mxu0 0.0
  %3349 = vmatpush1.msra.mxu0 0.0
  %3350 = vmatprep.subr.mxu0 0.0
  %3351 = vmatpush1.msra.mxu0 0.0
  %3352 = vmatprep.subr.mxu0 0.0
  %3353 = vmatpush1.msra.mxu0 0.0
  %3354 = vmatprep.mubr.f32.mxu0 0.0
  %3355 = vmatmul.mubr.f32.gmra.mrb[0].mxu0 %v3148
  %v3356 = vpop.f32.mrb[0].mxu0
  %v3357 = vadd.f32 0.0, %v3356
  %v3358 = vpop.f32.mrb[0].mxu0
  %v3359 = vadd.f32 0.0, %v3358
  %3360 = vdwg.mxu0
  %v3361 = vadd.f32 %v3215, %v3286
  %v3362 = vadd.f32 %v3216, %v3288
  %v3363 = vadd.f32 %v3217, %v3357
  %v3364 = vadd.f32 %v3218, %v3359
  %v3365 = vxor.u32 %v3361, 2147483648
  %v3366 = vmul.f32 %v3365, 1.442695
  %v3367 = vpow.pop %v3366
  %v3368 = vadd.f32 %v3367, 1.0
  %v3369 = vrcp.pop %v3368
  %v3370 = vmul.f32 1.0, %v3369
  %v3371 = vxor.u32 %v3362, 2147483648
  %v3372 = vmul.f32 %v3371, 1.442695
  %v3373 = vpow.pop %v3372
  %v3374 = vadd.f32 %v3373, 1.0
  %v3375 = vrcp.pop %v3374
  %v3376 = vmul.f32 1.0, %v3375
  %v3377 = vtanh.pop %v3363
  %v3378 = vxor.u32 %v3364, 2147483648
  %v3379 = vmul.f32 %v3378, 1.442695
  %v3380 = vpow.pop %v3379
  %v3381 = vadd.f32 %v3380, 1.0
  %v3382 = vrcp.pop %v3381
  %v3383 = vmul.f32 1.0, %v3382
  %v3384 = vmul.f32 %v3376, %v3146
  %v3385 = vmul.f32 %v3370, %v3377
  %v3386 = vadd.f32 %v3384, %v3385
  %v3387 = vtanh.pop %v3386
  %v3388 = vmul.f32 %v3383, %v3387
  %s3389 = scalar_lea.vmem %s7, 16
  %3390 = vst [vmem:[%s3389] sm:$0xff] %v3388
  %v3391 = vld [vmem:[%s4] sm:$0xff]
  %v3392 = vld [vmem:[%s4 + $0x8] sm:$0xff]
  %v3393 = vld [vmem:[%s4 + $0x10] sm:$0xff]
  %v3394 = vld [vmem:[%s4 + $0x18] sm:$0xff]
  %v3395 = vld [vmem:[%s4 + $0x20] sm:$0xff]
  %v3396 = vld [vmem:[%s4 + $0x28] sm:$0xff]
  %v3397 = vld [vmem:[%s4 + $0x30] sm:$0xff]
  %v3398 = vld [vmem:[%s4 + $0x38] sm:$0xff]
  %v3399 = vld [vmem:[%s4 + $0x40] sm:$0xff]
  %v3400 = vld [vmem:[%s4 + $0x48] sm:$0xff]
  %v3401 = vld [vmem:[%s4 + $0x50] sm:$0xff]
  %v3402 = vld [vmem:[%s4 + $0x58] sm:$0xff]
  %v3403 = vld [vmem:[%s4 + $0x60] sm:$0xff]
  %v3404 = vld [vmem:[%s4 + $0x68] sm:$0xff]
  %v3405 = vld [vmem:[%s4 + $0x70] sm:$0xff]
  %v3406 = vld [vmem:[%s4 + $0x78] sm:$0xff]
  %v3407 = vld [vmem:[%s4 + $0x80] sm:$0xff]
  %v3408 = vld [vmem:[%s4 + $0x88] sm:$0xff]
  %v3409 = vld [vmem:[%s4 + $0x90] sm:$0xff]
  %v3410 = vld [vmem:[%s4 + $0x98] sm:$0xff]
  %v3411 = vld [vmem:[%s4 + $0xa0] sm:$0xff]
  %v3412 = vld [vmem:[%s4 + $0xa8] sm:$0xff]
  %v3413 = vld [vmem:[%s4 + $0xb0] sm:$0xff]
  %v3414 = vld [vmem:[%s4 + $0xb8] sm:$0xff]
  %v3415 = vld [vmem:[%s4 + $0xc0] sm:$0xff]
  %v3416 = vld [vmem:[%s4 + $0xc8] sm:$0xff]
  %v3417 = vld [vmem:[%s4 + $0xd0] sm:$0xff]
  %v3418 = vld [vmem:[%s4 + $0xd8] sm:$0xff]
  %v3419 = vld [vmem:[%s4 + $0xe0] sm:$0xff]
  %v3420 = vld [vmem:[%s4 + $0xe8] sm:$0xff]
  %v3421 = vld [vmem:[%s4 + $0xf0] sm:$0xff]
  %v3422 = vld [vmem:[%s4 + $0xf8] sm:$0xff]
  %v3423 = vld [vmem:[%s4 + $0x100] sm:$0xff]
  %v3424 = vld [vmem:[%s4 + $0x108] sm:$0xff]
  %v3425 = vld [vmem:[%s4 + $0x110] sm:$0xff]
  %v3426 = vld [vmem:[%s4 + $0x118] sm:$0xff]
  %v3427 = vld [vmem:[%s4 + $0x120] sm:$0xff]
  %v3428 = vld [vmem:[%s4 + $0x128] sm:$0xff]
  %v3429 = vld [vmem:[%s4 + $0x130] sm:$0xff]
  %v3430 = vld [vmem:[%s4 + $0x138] sm:$0xff]
  %v3431 = vld [vmem:[%s4 + $0x140] sm:$0xff]
  %v3432 = vld [vmem:[%s4 + $0x148] sm:$0xff]
  %v3433 = vld [vmem:[%s4 + $0x150] sm:$0xff]
  %v3434 = vld [vmem:[%s4 + $0x158] sm:$0xff]
  %v3435 = vld [vmem:[%s4 + $0x160] sm:$0xff]
  %v3436 = vld [vmem:[%s4 + $0x168] sm:$0xff]
  %v3437 = vld [vmem:[%s4 + $0x170] sm:$0xff]
  %v3438 = vld [vmem:[%s4 + $0x178] sm:$0xff]
  %v3439 = vld [vmem:[%s4 + $0x180] sm:$0xff]
  %v3440 = vld [vmem:[%s4 + $0x188] sm:$0xff]
  %v3441 = vld [vmem:[%s4 + $0x190] sm:$0xff]
  %v3442 = vld [vmem:[%s4 + $0x198] sm:$0xff]
  %v3443 = vld [vmem:[%s4 + $0x1a0] sm:$0xff]
  %v3444 = vld [vmem:[%s4 + $0x1a8] sm:$0xff]
  %v3445 = vld [vmem:[%s4 + $0x1b0] sm:$0xff]
  %v3446 = vld [vmem:[%s4 + $0x1b8] sm:$0xff]
  %v3447 = vld [vmem:[%s4 + $0x1c0] sm:$0xff]
  %v3448 = vld [vmem:[%s4 + $0x1c8] sm:$0xff]
  %v3449 = vld [vmem:[%s4 + $0x1d0] sm:$0xff]
  %v3450 = vld [vmem:[%s4 + $0x1d8] sm:$0xff]
  %v3451 = vld [vmem:[%s4 + $0x1e0] sm:$0xff]
  %v3452 = vld [vmem:[%s4 + $0x1e8] sm:$0xff]
  %v3453 = vld [vmem:[%s4 + $0x1f0] sm:$0xff]
  %v3454 = vld [vmem:[%s4 + $0x1f8] sm:$0xff]
  %v3455 = vld [vmem:[%s1173] sm:$0xff]
  %v3456 = vld [vmem:[%s1173 + $0x8] sm:$0xff]
  %v3457 = vld [vmem:[%s1173 + $0x10] sm:$0xff]
  %v3458 = vld [vmem:[%s1173 + $0x18] sm:$0xff]
  %3459 = vmatprep.subr.mxu0 %v3392
  %3460 = vmatpush1.msra.mxu0 %v3391
  %3461 = vmatprep.subr.mxu0 %v3396
  %3462 = vmatpush1.msra.mxu0 %v3395
  %3463 = vmatprep.subr.mxu0 %v3400
  %3464 = vmatpush1.msra.mxu0 %v3399
  %3465 = vmatprep.subr.mxu0 %v3404
  %3466 = vmatpush1.msra.mxu0 %v3403
  %3467 = vmatprep.subr.mxu0 %v3408
  %3468 = vmatpush1.msra.mxu0 %v3407
  %3469 = vmatprep.subr.mxu0 %v3412
  %3470 = vmatpush1.msra.mxu0 %v3411
  %3471 = vmatprep.subr.mxu0 %v3416
  %3472 = vmatpush1.msra.mxu0 %v3415
  %3473 = vmatprep.subr.mxu0 %v3420
  %3474 = vmatpush1.msra.mxu0 %v3419
  %3475 = vmatprep.subr.mxu0 %v3424
  %3476 = vmatpush1.msra.mxu0 %v3423
  %3477 = vmatprep.subr.mxu0 %v3428
  %3478 = vmatpush1.msra.mxu0 %v3427
  %3479 = vmatprep.subr.mxu0 %v3432
  %3480 = vmatpush1.msra.mxu0 %v3431
  %3481 = vmatprep.subr.mxu0 %v3436
  %3482 = vmatpush1.msra.mxu0 %v3435
  %3483 = vmatprep.subr.mxu0 %v3440
  %3484 = vmatpush1.msra.mxu0 %v3439
  %3485 = vmatprep.subr.mxu0 %v3444
  %3486 = vmatpush1.msra.mxu0 %v3443
  %3487 = vmatprep.subr.mxu0 %v3448
  %3488 = vmatpush1.msra.mxu0 %v3447
  %3489 = vmatprep.subr.mxu0 %v3452
  %3490 = vmatpush1.msra.mxu0 %v3451
  %3491 = vmatprep.subr.mxu0 0.0
  %3492 = vmatpush1.msra.mxu0 0.0
  %3493 = vmatprep.subr.mxu0 0.0
  %3494 = vmatpush1.msra.mxu0 0.0
  %3495 = vmatprep.subr.mxu0 0.0
  %3496 = vmatpush1.msra.mxu0 0.0
  %3497 = vmatprep.subr.mxu0 0.0
  %3498 = vmatpush1.msra.mxu0 0.0
  %3499 = vmatprep.subr.mxu0 0.0
  %3500 = vmatpush1.msra.mxu0 0.0
  %3501 = vmatprep.subr.mxu0 0.0
  %3502 = vmatpush1.msra.mxu0 0.0
  %3503 = vmatprep.subr.mxu0 0.0
  %3504 = vmatpush1.msra.mxu0 0.0
  %3505 = vmatprep.subr.mxu0 0.0
  %3506 = vmatpush1.msra.mxu0 0.0
  %3507 = vmatprep.subr.mxu0 0.0
  %3508 = vmatpush1.msra.mxu0 0.0
  %3509 = vmatprep.subr.mxu0 0.0
  %3510 = vmatpush1.msra.mxu0 0.0
  %3511 = vmatprep.subr.mxu0 0.0
  %3512 = vmatpush1.msra.mxu0 0.0
  %3513 = vmatprep.subr.mxu0 0.0
  %3514 = vmatpush1.msra.mxu0 0.0
  %3515 = vmatprep.subr.mxu0 0.0
  %3516 = vmatpush1.msra.mxu0 0.0
  %3517 = vmatprep.subr.mxu0 0.0
  %3518 = vmatpush1.msra.mxu0 0.0
  %3519 = vmatprep.subr.mxu0 0.0
  %3520 = vmatpush1.msra.mxu0 0.0
  %3521 = vmatprep.subr.mxu0 0.0
  %3522 = vmatpush1.msra.mxu0 0.0
  %3523 = vmatprep.mubr.f32.mxu0 0.0
  %3524 = vmatmul.mubr.f32.gmra.mrb[0].mxu0 %v3388
  %v3525 = vpop.f32.mrb[0].mxu0
  %v3526 = vadd.f32 0.0, %v3525
  %v3527 = vpop.f32.mrb[0].mxu0
  %v3528 = vadd.f32 0.0, %v3527
  %3529 = vdwg.mxu0
  %3530 = vmatprep.subr.mxu0 %v3394
  %3531 = vmatpush1.msra.mxu0 %v3393
  %3532 = vmatprep.subr.mxu0 %v3398
  %3533 = vmatpush1.msra.mxu0 %v3397
  %3534 = vmatprep.subr.mxu0 %v3402
  %3535 = vmatpush1.msra.mxu0 %v3401
  %3536 = vmatprep.subr.mxu0 %v3406
  %3537 = vmatpush1.msra.mxu0 %v3405
  %3538 = vmatprep.subr.mxu0 %v3410
  %3539 = vmatpush1.msra.mxu0 %v3409
  %3540 = vmatprep.subr.mxu0 %v3414
  %3541 = vmatpush1.msra.mxu0 %v3413
  %3542 = vmatprep.subr.mxu0 %v3418
  %3543 = vmatpush1.msra.mxu0 %v3417
  %3544 = vmatprep.subr.mxu0 %v3422
  %3545 = vmatpush1.msra.mxu0 %v3421
  %3546 = vmatprep.subr.mxu0 %v3426
  %3547 = vmatpush1.msra.mxu0 %v3425
  %3548 = vmatprep.subr.mxu0 %v3430
  %3549 = vmatpush1.msra.mxu0 %v3429
  %3550 = vmatprep.subr.mxu0 %v3434
  %3551 = vmatpush1.msra.mxu0 %v3433
  %3552 = vmatprep.subr.mxu0 %v3438
  %3553 = vmatpush1.msra.mxu0 %v3437
  %3554 = vmatprep.subr.mxu0 %v3442
  %3555 = vmatpush1.msra.mxu0 %v3441
  %3556 = vmatprep.subr.mxu0 %v3446
  %3557 = vmatpush1.msra.mxu0 %v3445
  %3558 = vmatprep.subr.mxu0 %v3450
  %3559 = vmatpush1.msra.mxu0 %v3449
  %3560 = vmatprep.subr.mxu0 %v3454
  %3561 = vmatpush1.msra.mxu0 %v3453
  %3562 = vmatprep.subr.mxu0 0.0
  %3563 = vmatpush1.msra.mxu0 0.0
  %3564 = vmatprep.subr.mxu0 0.0
  %3565 = vmatpush1.msra.mxu0 0.0
  %3566 = vmatprep.subr.mxu0 0.0
  %3567 = vmatpush1.msra.mxu0 0.0
  %3568 = vmatprep.subr.mxu0 0.0
  %3569 = vmatpush1.msra.mxu0 0.0
  %3570 = vmatprep.subr.mxu0 0.0
  %3571 = vmatpush1.msra.mxu0 0.0
  %3572 = vmatprep.subr.mxu0 0.0
  %3573 = vmatpush1.msra.mxu0 0.0
  %3574 = vmatprep.subr.mxu0 0.0
  %3575 = vmatpush1.msra.mxu0 0.0
  %3576 = vmatprep.subr.mxu0 0.0
  %3577 = vmatpush1.msra.mxu0 0.0
  %3578 = vmatprep.subr.mxu0 0.0
  %3579 = vmatpush1.msra.mxu0 0.0
  %3580 = vmatprep.subr.mxu0 0.0
  %3581 = vmatpush1.msra.mxu0 0.0
  %3582 = vmatprep.subr.mxu0 0.0
  %3583 = vmatpush1.msra.mxu0 0.0
  %3584 = vmatprep.subr.mxu0 0.0
  %3585 = vmatpush1.msra.mxu0 0.0
  %3586 = vmatprep.subr.mxu0 0.0
  %3587 = vmatpush1.msra.mxu0 0.0
  %3588 = vmatprep.subr.mxu0 0.0
  %3589 = vmatpush1.msra.mxu0 0.0
  %3590 = vmatprep.subr.mxu0 0.0
  %3591 = vmatpush1.msra.mxu0 0.0
  %3592 = vmatprep.subr.mxu0 0.0
  %3593 = vmatpush1.msra.mxu0 0.0
  %3594 = vmatprep.mubr.f32.mxu0 0.0
  %3595 = vmatmul.mubr.f32.gmra.mrb[0].mxu0 %v3388
  %v3596 = vpop.f32.mrb[0].mxu0
  %v3597 = vadd.f32 0.0, %v3596
  %v3598 = vpop.f32.mrb[0].mxu0
  %v3599 = vadd.f32 0.0, %v3598
  %3600 = vdwg.mxu0
  %v3601 = vadd.f32 %v3455, %v3526
  %v3602 = vadd.f32 %v3456, %v3528
  %v3603 = vadd.f32 %v3457, %v3597
  %v3604 = vadd.f32 %v3458, %v3599
  %v3605 = vxor.u32 %v3601, 2147483648
  %v3606 = vmul.f32 %v3605, 1.442695
  %v3607 = vpow.pop %v3606
  %v3608 = vadd.f32 %v3607, 1.0
  %v3609 = vrcp.pop %v3608
  %v3610 = vmul.f32 1.0, %v3609
  %v3611 = vxor.u32 %v3602, 2147483648
  %v3612 = vmul.f32 %v3611, 1.442695
  %v3613 = vpow.pop %v3612
  %v3614 = vadd.f32 %v3613, 1.0
  %v3615 = vrcp.pop %v3614
  %v3616 = vmul.f32 1.0, %v3615
  %v3617 = vtanh.pop %v3603
  %v3618 = vxor.u32 %v3604, 2147483648
  %v3619 = vmul.f32 %v3618, 1.442695
  %v3620 = vpow.pop %v3619
  %v3621 = vadd.f32 %v3620, 1.0
  %v3622 = vrcp.pop %v3621
  %v3623 = vmul.f32 1.0, %v3622
  %v3624 = vmul.f32 %v3616, %v3386
  %v3625 = vmul.f32 %v3610, %v3617
  %v3626 = vadd.f32 %v3624, %v3625
  %v3627 = vtanh.pop %v3626
  %v3628 = vmul.f32 %v3623, %v3627
  %s3629 = scalar_lea.vmem %s7, 24
  %3630 = vst [vmem:[%s3629] sm:$0xff] %v3628
  %v3631 = vld [vmem:[%s4] sm:$0xff]
  %v3632 = vld [vmem:[%s4 + $0x8] sm:$0xff]
  %v3633 = vld [vmem:[%s4 + $0x10] sm:$0xff]
  %v3634 = vld [vmem:[%s4 + $0x18] sm:$0xff]
  %v3635 = vld [vmem:[%s4 + $0x20] sm:$0xff]
  %v3636 = vld [vmem:[%s4 + $0x28] sm:$0xff]
  %v3637 = vld [vmem:[%s4 + $0x30] sm:$0xff]
  %v3638 = vld [vmem:[%s4 + $0x38] sm:$0xff]
  %v3639 = vld [vmem:[%s4 + $0x40] sm:$0xff]
  %v3640 = vld [vmem:[%s4 + $0x48] sm:$0xff]
  %v3641 = vld [vmem:[%s4 + $0x50] sm:$0xff]
  %v3642 = vld [vmem:[%s4 + $0x58] sm:$0xff]
  %v3643 = vld [vmem:[%s4 + $0x60] sm:$0xff]
  %v3644 = vld [vmem:[%s4 + $0x68] sm:$0xff]
  %v3645 = vld [vmem:[%s4 + $0x70] sm:$0xff]
  %v3646 = vld [vmem:[%s4 + $0x78] sm:$0xff]
  %v3647 = vld [vmem:[%s4 + $0x80] sm:$0xff]
  %v3648 = vld [vmem:[%s4 + $0x88] sm:$0xff]
  %v3649 = vld [vmem:[%s4 + $0x90] sm:$0xff]
  %v3650 = vld [vmem:[%s4 + $0x98] sm:$0xff]
  %v3651 = vld [vmem:[%s4 + $0xa0] sm:$0xff]
  %v3652 = vld [vmem:[%s4 + $0xa8] sm:$0xff]
  %v3653 = vld [vmem:[%s4 + $0xb0] sm:$0xff]
  %v3654 = vld [vmem:[%s4 + $0xb8] sm:$0xff]
  %v3655 = vld [vmem:[%s4 + $0xc0] sm:$0xff]
  %v3656 = vld [vmem:[%s4 + $0xc8] sm:$0xff]
  %v3657 = vld [vmem:[%s4 + $0xd0] sm:$0xff]
  %v3658 = vld [vmem:[%s4 + $0xd8] sm:$0xff]
  %v3659 = vld [vmem:[%s4 + $0xe0] sm:$0xff]
  %v3660 = vld [vmem:[%s4 + $0xe8] sm:$0xff]
  %v3661 = vld [vmem:[%s4 + $0xf0] sm:$0xff]
  %v3662 = vld [vmem:[%s4 + $0xf8] sm:$0xff]
  %v3663 = vld [vmem:[%s4 + $0x100] sm:$0xff]
  %v3664 = vld [vmem:[%s4 + $0x108] sm:$0xff]
  %v3665 = vld [vmem:[%s4 + $0x110] sm:$0xff]
  %v3666 = vld [vmem:[%s4 + $0x118] sm:$0xff]
  %v3667 = vld [vmem:[%s4 + $0x120] sm:$0xff]
  %v3668 = vld [vmem:[%s4 + $0x128] sm:$0xff]
  %v3669 = vld [vmem:[%s4 + $0x130] sm:$0xff]
  %v3670 = vld [vmem:[%s4 + $0x138] sm:$0xff]
  %v3671 = vld [vmem:[%s4 + $0x140] sm:$0xff]
  %v3672 = vld [vmem:[%s4 + $0x148] sm:$0xff]
  %v3673 = vld [vmem:[%s4 + $0x150] sm:$0xff]
  %v3674 = vld [vmem:[%s4 + $0x158] sm:$0xff]
  %v3675 = vld [vmem:[%s4 + $0x160] sm:$0xff]
  %v3676 = vld [vmem:[%s4 + $0x168] sm:$0xff]
  %v3677 = vld [vmem:[%s4 + $0x170] sm:$0xff]
  %v3678 = vld [vmem:[%s4 + $0x178] sm:$0xff]
  %v3679 = vld [vmem:[%s4 + $0x180] sm:$0xff]
  %v3680 = vld [vmem:[%s4 + $0x188] sm:$0xff]
  %v3681 = vld [vmem:[%s4 + $0x190] sm:$0xff]
  %v3682 = vld [vmem:[%s4 + $0x198] sm:$0xff]
  %v3683 = vld [vmem:[%s4 + $0x1a0] sm:$0xff]
  %v3684 = vld [vmem:[%s4 + $0x1a8] sm:$0xff]
  %v3685 = vld [vmem:[%s4 + $0x1b0] sm:$0xff]
  %v3686 = vld [vmem:[%s4 + $0x1b8] sm:$0xff]
  %v3687 = vld [vmem:[%s4 + $0x1c0] sm:$0xff]
  %v3688 = vld [vmem:[%s4 + $0x1c8] sm:$0xff]
  %v3689 = vld [vmem:[%s4 + $0x1d0] sm:$0xff]
  %v3690 = vld [vmem:[%s4 + $0x1d8] sm:$0xff]
  %v3691 = vld [vmem:[%s4 + $0x1e0] sm:$0xff]
  %v3692 = vld [vmem:[%s4 + $0x1e8] sm:$0xff]
  %v3693 = vld [vmem:[%s4 + $0x1f0] sm:$0xff]
  %v3694 = vld [vmem:[%s4 + $0x1f8] sm:$0xff]
  %v3695 = vld [vmem:[%s1414] sm:$0xff]
  %v3696 = vld [vmem:[%s1414 + $0x8] sm:$0xff]
  %v3697 = vld [vmem:[%s1414 + $0x10] sm:$0xff]
  %v3698 = vld [vmem:[%s1414 + $0x18] sm:$0xff]
  %3699 = vmatprep.subr.mxu0 %v3632
  %3700 = vmatpush1.msra.mxu0 %v3631
  %3701 = vmatprep.subr.mxu0 %v3636
  %3702 = vmatpush1.msra.mxu0 %v3635
  %3703 = vmatprep.subr.mxu0 %v3640
  %3704 = vmatpush1.msra.mxu0 %v3639
  %3705 = vmatprep.subr.mxu0 %v3644
  %3706 = vmatpush1.msra.mxu0 %v3643
  %3707 = vmatprep.subr.mxu0 %v3648
  %3708 = vmatpush1.msra.mxu0 %v3647
  %3709 = vmatprep.subr.mxu0 %v3652
  %3710 = vmatpush1.msra.mxu0 %v3651
  %3711 = vmatprep.subr.mxu0 %v3656
  %3712 = vmatpush1.msra.mxu0 %v3655
  %3713 = vmatprep.subr.mxu0 %v3660
  %3714 = vmatpush1.msra.mxu0 %v3659
  %3715 = vmatprep.subr.mxu0 %v3664
  %3716 = vmatpush1.msra.mxu0 %v3663
  %3717 = vmatprep.subr.mxu0 %v3668
  %3718 = vmatpush1.msra.mxu0 %v3667
  %3719 = vmatprep.subr.mxu0 %v3672
  %3720 = vmatpush1.msra.mxu0 %v3671
  %3721 = vmatprep.subr.mxu0 %v3676
  %3722 = vmatpush1.msra.mxu0 %v3675
  %3723 = vmatprep.subr.mxu0 %v3680
  %3724 = vmatpush1.msra.mxu0 %v3679
  %3725 = vmatprep.subr.mxu0 %v3684
  %3726 = vmatpush1.msra.mxu0 %v3683
  %3727 = vmatprep.subr.mxu0 %v3688
  %3728 = vmatpush1.msra.mxu0 %v3687
  %3729 = vmatprep.subr.mxu0 %v3692
  %3730 = vmatpush1.msra.mxu0 %v3691
  %3731 = vmatprep.subr.mxu0 0.0
  %3732 = vmatpush1.msra.mxu0 0.0
  %3733 = vmatprep.subr.mxu0 0.0
  %3734 = vmatpush1.msra.mxu0 0.0
  %3735 = vmatprep.subr.mxu0 0.0
  %3736 = vmatpush1.msra.mxu0 0.0
  %3737 = vmatprep.subr.mxu0 0.0
  %3738 = vmatpush1.msra.mxu0 0.0
  %3739 = vmatprep.subr.mxu0 0.0
  %3740 = vmatpush1.msra.mxu0 0.0
  %3741 = vmatprep.subr.mxu0 0.0
  %3742 = vmatpush1.msra.mxu0 0.0
  %3743 = vmatprep.subr.mxu0 0.0
  %3744 = vmatpush1.msra.mxu0 0.0
  %3745 = vmatprep.subr.mxu0 0.0
  %3746 = vmatpush1.msra.mxu0 0.0
  %3747 = vmatprep.subr.mxu0 0.0
  %3748 = vmatpush1.msra.mxu0 0.0
  %3749 = vmatprep.subr.mxu0 0.0
  %3750 = vmatpush1.msra.mxu0 0.0
  %3751 = vmatprep.subr.mxu0 0.0
  %3752 = vmatpush1.msra.mxu0 0.0
  %3753 = vmatprep.subr.mxu0 0.0
  %3754 = vmatpush1.msra.mxu0 0.0
  %3755 = vmatprep.subr.mxu0 0.0
  %3756 = vmatpush1.msra.mxu0 0.0
  %3757 = vmatprep.subr.mxu0 0.0
  %3758 = vmatpush1.msra.mxu0 0.0
  %3759 = vmatprep.subr.mxu0 0.0
  %3760 = vmatpush1.msra.mxu0 0.0
  %3761 = vmatprep.subr.mxu0 0.0
  %3762 = vmatpush1.msra.mxu0 0.0
  %3763 = vmatprep.mubr.f32.mxu0 0.0
  %3764 = vmatmul.mubr.f32.gmra.mrb[0].mxu0 %v3628
  %v3765 = vpop.f32.mrb[0].mxu0
  %v3766 = vadd.f32 0.0, %v3765
  %v3767 = vpop.f32.mrb[0].mxu0
  %v3768 = vadd.f32 0.0, %v3767
  %3769 = vdwg.mxu0
  %3770 = vmatprep.subr.mxu0 %v3634
  %3771 = vmatpush1.msra.mxu0 %v3633
  %3772 = vmatprep.subr.mxu0 %v3638
  %3773 = vmatpush1.msra.mxu0 %v3637
  %3774 = vmatprep.subr.mxu0 %v3642
  %3775 = vmatpush1.msra.mxu0 %v3641
  %3776 = vmatprep.subr.mxu0 %v3646
  %3777 = vmatpush1.msra.mxu0 %v3645
  %3778 = vmatprep.subr.mxu0 %v3650
  %3779 = vmatpush1.msra.mxu0 %v3649
  %3780 = vmatprep.subr.mxu0 %v3654
  %3781 = vmatpush1.msra.mxu0 %v3653
  %3782 = vmatprep.subr.mxu0 %v3658
  %3783 = vmatpush1.msra.mxu0 %v3657
  %3784 = vmatprep.subr.mxu0 %v3662
  %3785 = vmatpush1.msra.mxu0 %v3661
  %3786 = vmatprep.subr.mxu0 %v3666
  %3787 = vmatpush1.msra.mxu0 %v3665
  %3788 = vmatprep.subr.mxu0 %v3670
  %3789 = vmatpush1.msra.mxu0 %v3669
  %3790 = vmatprep.subr.mxu0 %v3674
  %3791 = vmatpush1.msra.mxu0 %v3673
  %3792 = vmatprep.subr.mxu0 %v3678
  %3793 = vmatpush1.msra.mxu0 %v3677
  %3794 = vmatprep.subr.mxu0 %v3682
  %3795 = vmatpush1.msra.mxu0 %v3681
  %3796 = vmatprep.subr.mxu0 %v3686
  %3797 = vmatpush1.msra.mxu0 %v3685
  %3798 = vmatprep.subr.mxu0 %v3690
  %3799 = vmatpush1.msra.mxu0 %v3689
  %3800 = vmatprep.subr.mxu0 %v3694
  %3801 = vmatpush1.msra.mxu0 %v3693
  %3802 = vmatprep.subr.mxu0 0.0
  %3803 = vmatpush1.msra.mxu0 0.0
  %3804 = vmatprep.subr.mxu0 0.0
  %3805 = vmatpush1.msra.mxu0 0.0
  %3806 = vmatprep.subr.mxu0 0.0
  %3807 = vmatpush1.msra.mxu0 0.0
  %3808 = vmatprep.subr.mxu0 0.0
  %3809 = vmatpush1.msra.mxu0 0.0
  %3810 = vmatprep.subr.mxu0 0.0
  %3811 = vmatpush1.msra.mxu0 0.0
  %3812 = vmatprep.subr.mxu0 0.0
  %3813 = vmatpush1.msra.mxu0 0.0
  %3814 = vmatprep.subr.mxu0 0.0
  %3815 = vmatpush1.msra.mxu0 0.0
  %3816 = vmatprep.subr.mxu0 0.0
  %3817 = vmatpush1.msra.mxu0 0.0
  %3818 = vmatprep.subr.mxu0 0.0
  %3819 = vmatpush1.msra.mxu0 0.0
  %3820 = vmatprep.subr.mxu0 0.0
  %3821 = vmatpush1.msra.mxu0 0.0
  %3822 = vmatprep.subr.mxu0 0.0
  %3823 = vmatpush1.msra.mxu0 0.0
  %3824 = vmatprep.subr.mxu0 0.0
  %3825 = vmatpush1.msra.mxu0 0.0
  %3826 = vmatprep.subr.mxu0 0.0
  %3827 = vmatpush1.msra.mxu0 0.0
  %3828 = vmatprep.subr.mxu0 0.0
  %3829 = vmatpush1.msra.mxu0 0.0
  %3830 = vmatprep.subr.mxu0 0.0
  %3831 = vmatpush1.msra.mxu0 0.0
  %3832 = vmatprep.subr.mxu0 0.0
  %3833 = vmatpush1.msra.mxu0 0.0
  %3834 = vmatprep.mubr.f32.mxu0 0.0
  %3835 = vmatmul.mubr.f32.gmra.mrb[0].mxu0 %v3628
  %v3836 = vpop.f32.mrb[0].mxu0
  %v3837 = vadd.f32 0.0, %v3836
  %v3838 = vpop.f32.mrb[0].mxu0
  %v3839 = vadd.f32 0.0, %v3838
  %3840 = vdwg.mxu0
  %v3841 = vadd.f32 %v3695, %v3766
  %v3842 = vadd.f32 %v3696, %v3768
  %v3843 = vadd.f32 %v3697, %v3837
  %v3844 = vadd.f32 %v3698, %v3839
  %v3845 = vxor.u32 %v3841, 2147483648
  %v3846 = vmul.f32 %v3845, 1.442695
  %v3847 = vpow.pop %v3846
  %v3848 = vadd.f32 %v3847, 1.0
  %v3849 = vrcp.pop %v3848
  %v3850 = vmul.f32 1.0, %v3849
  %v3851 = vxor.u32 %v3842, 2147483648
  %v3852 = vmul.f32 %v3851, 1.442695
  %v3853 = vpow.pop %v3852
  %v3854 = vadd.f32 %v3853, 1.0
  %v3855 = vrcp.pop %v3854
  %v3856 = vmul.f32 1.0, %v3855
  %v3857 = vtanh.pop %v3843
  %v3858 = vxor.u32 %v3844, 2147483648
  %v3859 = vmul.f32 %v3858, 1.442695
  %v3860 = vpow.pop %v3859
  %v3861 = vadd.f32 %v3860, 1.0
  %v3862 = vrcp.pop %v3861
  %v3863 = vmul.f32 1.0, %v3862
  %v3864 = vmul.f32 %v3856, %v3626
  %v3865 = vmul.f32 %v3850, %v3857
  %v3866 = vadd.f32 %v3864, %v3865
  %v3867 = vtanh.pop %v3866
  %v3868 = vmul.f32 %v3863, %v3867
  %s3869 = scalar_lea.vmem %s7, 32
  %3870 = vst [vmem:[%s3869] sm:$0xff] %v3868
  %v3871 = vld [vmem:[%s4] sm:$0xff]
  %v3872 = vld [vmem:[%s4 + $0x8] sm:$0xff]
  %v3873 = vld [vmem:[%s4 + $0x10] sm:$0xff]
  %v3874 = vld [vmem:[%s4 + $0x18] sm:$0xff]
  %v3875 = vld [vmem:[%s4 + $0x20] sm:$0xff]
  %v3876 = vld [vmem:[%s4 + $0x28] sm:$0xff]
  %v3877 = vld [vmem:[%s4 + $0x30] sm:$0xff]
  %v3878 = vld [vmem:[%s4 + $0x38] sm:$0xff]
  %v3879 = vld [vmem:[%s4 + $0x40] sm:$0xff]
  %v3880 = vld [vmem:[%s4 + $0x48] sm:$0xff]
  %v3881 = vld [vmem:[%s4 + $0x50] sm:$0xff]
  %v3882 = vld [vmem:[%s4 + $0x58] sm:$0xff]
  %v3883 = vld [vmem:[%s4 + $0x60] sm:$0xff]
  %v3884 = vld [vmem:[%s4 + $0x68] sm:$0xff]
  %v3885 = vld [vmem:[%s4 + $0x70] sm:$0xff]
  %v3886 = vld [vmem:[%s4 + $0x78] sm:$0xff]
  %v3887 = vld [vmem:[%s4 + $0x80] sm:$0xff]
  %v3888 = vld [vmem:[%s4 + $0x88] sm:$0xff]
  %v3889 = vld [vmem:[%s4 + $0x90] sm:$0xff]
  %v3890 = vld [vmem:[%s4 + $0x98] sm:$0xff]
  %v3891 = vld [vmem:[%s4 + $0xa0] sm:$0xff]
  %v3892 = vld [vmem:[%s4 + $0xa8] sm:$0xff]
  %v3893 = vld [vmem:[%s4 + $0xb0] sm:$0xff]
  %v3894 = vld [vmem:[%s4 + $0xb8] sm:$0xff]
  %v3895 = vld [vmem:[%s4 + $0xc0] sm:$0xff]
  %v3896 = vld [vmem:[%s4 + $0xc8] sm:$0xff]
  %v3897 = vld [vmem:[%s4 + $0xd0] sm:$0xff]
  %v3898 = vld [vmem:[%s4 + $0xd8] sm:$0xff]
  %v3899 = vld [vmem:[%s4 + $0xe0] sm:$0xff]
  %v3900 = vld [vmem:[%s4 + $0xe8] sm:$0xff]
  %v3901 = vld [vmem:[%s4 + $0xf0] sm:$0xff]
  %v3902 = vld [vmem:[%s4 + $0xf8] sm:$0xff]
  %v3903 = vld [vmem:[%s4 + $0x100] sm:$0xff]
  %v3904 = vld [vmem:[%s4 + $0x108] sm:$0xff]
  %v3905 = vld [vmem:[%s4 + $0x110] sm:$0xff]
  %v3906 = vld [vmem:[%s4 + $0x118] sm:$0xff]
  %v3907 = vld [vmem:[%s4 + $0x120] sm:$0xff]
  %v3908 = vld [vmem:[%s4 + $0x128] sm:$0xff]
  %v3909 = vld [vmem:[%s4 + $0x130] sm:$0xff]
  %v3910 = vld [vmem:[%s4 + $0x138] sm:$0xff]
  %v3911 = vld [vmem:[%s4 + $0x140] sm:$0xff]
  %v3912 = vld [vmem:[%s4 + $0x148] sm:$0xff]
  %v3913 = vld [vmem:[%s4 + $0x150] sm:$0xff]
  %v3914 = vld [vmem:[%s4 + $0x158] sm:$0xff]
  %v3915 = vld [vmem:[%s4 + $0x160] sm:$0xff]
  %v3916 = vld [vmem:[%s4 + $0x168] sm:$0xff]
  %v3917 = vld [vmem:[%s4 + $0x170] sm:$0xff]
  %v3918 = vld [vmem:[%s4 + $0x178] sm:$0xff]
  %v3919 = vld [vmem:[%s4 + $0x180] sm:$0xff]
  %v3920 = vld [vmem:[%s4 + $0x188] sm:$0xff]
  %v3921 = vld [vmem:[%s4 + $0x190] sm:$0xff]
  %v3922 = vld [vmem:[%s4 + $0x198] sm:$0xff]
  %v3923 = vld [vmem:[%s4 + $0x1a0] sm:$0xff]
  %v3924 = vld [vmem:[%s4 + $0x1a8] sm:$0xff]
  %v3925 = vld [vmem:[%s4 + $0x1b0] sm:$0xff]
  %v3926 = vld [vmem:[%s4 + $0x1b8] sm:$0xff]
  %v3927 = vld [vmem:[%s4 + $0x1c0] sm:$0xff]
  %v3928 = vld [vmem:[%s4 + $0x1c8] sm:$0xff]
  %v3929 = vld [vmem:[%s4 + $0x1d0] sm:$0xff]
  %v3930 = vld [vmem:[%s4 + $0x1d8] sm:$0xff]
  %v3931 = vld [vmem:[%s4 + $0x1e0] sm:$0xff]
  %v3932 = vld [vmem:[%s4 + $0x1e8] sm:$0xff]
  %v3933 = vld [vmem:[%s4 + $0x1f0] sm:$0xff]
  %v3934 = vld [vmem:[%s4 + $0x1f8] sm:$0xff]
  %v3935 = vld [vmem:[%s1655] sm:$0xff]
  %v3936 = vld [vmem:[%s1655 + $0x8] sm:$0xff]
  %v3937 = vld [vmem:[%s1655 + $0x10] sm:$0xff]
  %v3938 = vld [vmem:[%s1655 + $0x18] sm:$0xff]
  %3939 = vmatprep.subr.mxu0 %v3872
  %3940 = vmatpush1.msra.mxu0 %v3871
  %3941 = vmatprep.subr.mxu0 %v3876
  %3942 = vmatpush1.msra.mxu0 %v3875
  %3943 = vmatprep.subr.mxu0 %v3880
  %3944 = vmatpush1.msra.mxu0 %v3879
  %3945 = vmatprep.subr.mxu0 %v3884
  %3946 = vmatpush1.msra.mxu0 %v3883
  %3947 = vmatprep.subr.mxu0 %v3888
  %3948 = vmatpush1.msra.mxu0 %v3887
  %3949 = vmatprep.subr.mxu0 %v3892
  %3950 = vmatpush1.msra.mxu0 %v3891
  %3951 = vmatprep.subr.mxu0 %v3896
  %3952 = vmatpush1.msra.mxu0 %v3895
  %3953 = vmatprep.subr.mxu0 %v3900
  %3954 = vmatpush1.msra.mxu0 %v3899
  %3955 = vmatprep.subr.mxu0 %v3904
  %3956 = vmatpush1.msra.mxu0 %v3903
  %3957 = vmatprep.subr.mxu0 %v3908
  %3958 = vmatpush1.msra.mxu0 %v3907
  %3959 = vmatprep.subr.mxu0 %v3912
  %3960 = vmatpush1.msra.mxu0 %v3911
  %3961 = vmatprep.subr.mxu0 %v3916
  %3962 = vmatpush1.msra.mxu0 %v3915
  %3963 = vmatprep.subr.mxu0 %v3920
  %3964 = vmatpush1.msra.mxu0 %v3919
  %3965 = vmatprep.subr.mxu0 %v3924
  %3966 = vmatpush1.msra.mxu0 %v3923
  %3967 = vmatprep.subr.mxu0 %v3928
  %3968 = vmatpush1.msra.mxu0 %v3927
  %3969 = vmatprep.subr.mxu0 %v3932
  %3970 = vmatpush1.msra.mxu0 %v3931
  %3971 = vmatprep.subr.mxu0 0.0
  %3972 = vmatpush1.msra.mxu0 0.0
  %3973 = vmatprep.subr.mxu0 0.0
  %3974 = vmatpush1.msra.mxu0 0.0
  %3975 = vmatprep.subr.mxu0 0.0
  %3976 = vmatpush1.msra.mxu0 0.0
  %3977 = vmatprep.subr.mxu0 0.0
  %3978 = vmatpush1.msra.mxu0 0.0
  %3979 = vmatprep.subr.mxu0 0.0
  %3980 = vmatpush1.msra.mxu0 0.0
  %3981 = vmatprep.subr.mxu0 0.0
  %3982 = vmatpush1.msra.mxu0 0.0
  %3983 = vmatprep.subr.mxu0 0.0
  %3984 = vmatpush1.msra.mxu0 0.0
  %3985 = vmatprep.subr.mxu0 0.0
  %3986 = vmatpush1.msra.mxu0 0.0
  %3987 = vmatprep.subr.mxu0 0.0
  %3988 = vmatpush1.msra.mxu0 0.0
  %3989 = vmatprep.subr.mxu0 0.0
  %3990 = vmatpush1.msra.mxu0 0.0
  %3991 = vmatprep.subr.mxu0 0.0
  %3992 = vmatpush1.msra.mxu0 0.0
  %3993 = vmatprep.subr.mxu0 0.0
  %3994 = vmatpush1.msra.mxu0 0.0
  %3995 = vmatprep.subr.mxu0 0.0
  %3996 = vmatpush1.msra.mxu0 0.0
  %3997 = vmatprep.subr.mxu0 0.0
  %3998 = vmatpush1.msra.mxu0 0.0
  %3999 = vmatprep.subr.mxu0 0.0
  %4000 = vmatpush1.msra.mxu0 0.0
  %4001 = vmatprep.subr.mxu0 0.0
  %4002 = vmatpush1.msra.mxu0 0.0
  %4003 = vmatprep.mubr.f32.mxu0 0.0
  %4004 = vmatmul.mubr.f32.gmra.mrb[0].mxu0 %v3868
  %v4005 = vpop.f32.mrb[0].mxu0
  %v4006 = vadd.f32 0.0, %v4005
  %v4007 = vpop.f32.mrb[0].mxu0
  %v4008 = vadd.f32 0.0, %v4007
  %4009 = vdwg.mxu0
  %4010 = vmatprep.subr.mxu0 %v3874
  %4011 = vmatpush1.msra.mxu0 %v3873
  %4012 = vmatprep.subr.mxu0 %v3878
  %4013 = vmatpush1.msra.mxu0 %v3877
  %4014 = vmatprep.subr.mxu0 %v3882
  %4015 = vmatpush1.msra.mxu0 %v3881
  %4016 = vmatprep.subr.mxu0 %v3886
  %4017 = vmatpush1.msra.mxu0 %v3885
  %4018 = vmatprep.subr.mxu0 %v3890
  %4019 = vmatpush1.msra.mxu0 %v3889
  %4020 = vmatprep.subr.mxu0 %v3894
  %4021 = vmatpush1.msra.mxu0 %v3893
  %4022 = vmatprep.subr.mxu0 %v3898
  %4023 = vmatpush1.msra.mxu0 %v3897
  %4024 = vmatprep.subr.mxu0 %v3902
  %4025 = vmatpush1.msra.mxu0 %v3901
  %4026 = vmatprep.subr.mxu0 %v3906
  %4027 = vmatpush1.msra.mxu0 %v3905
  %4028 = vmatprep.subr.mxu0 %v3910
  %4029 = vmatpush1.msra.mxu0 %v3909
  %4030 = vmatprep.subr.mxu0 %v3914
  %4031 = vmatpush1.msra.mxu0 %v3913
  %4032 = vmatprep.subr.mxu0 %v3918
  %4033 = vmatpush1.msra.mxu0 %v3917
  %4034 = vmatprep.subr.mxu0 %v3922
  %4035 = vmatpush1.msra.mxu0 %v3921
  %4036 = vmatprep.subr.mxu0 %v3926
  %4037 = vmatpush1.msra.mxu0 %v3925
  %4038 = vmatprep.subr.mxu0 %v3930
  %4039 = vmatpush1.msra.mxu0 %v3929
  %4040 = vmatprep.subr.mxu0 %v3934
  %4041 = vmatpush1.msra.mxu0 %v3933
  %4042 = vmatprep.subr.mxu0 0.0
  %4043 = vmatpush1.msra.mxu0 0.0
  %4044 = vmatprep.subr.mxu0 0.0
  %4045 = vmatpush1.msra.mxu0 0.0
  %4046 = vmatprep.subr.mxu0 0.0
  %4047 = vmatpush1.msra.mxu0 0.0
  %4048 = vmatprep.subr.mxu0 0.0
  %4049 = vmatpush1.msra.mxu0 0.0
  %4050 = vmatprep.subr.mxu0 0.0
  %4051 = vmatpush1.msra.mxu0 0.0
  %4052 = vmatprep.subr.mxu0 0.0
  %4053 = vmatpush1.msra.mxu0 0.0
  %4054 = vmatprep.subr.mxu0 0.0
  %4055 = vmatpush1.msra.mxu0 0.0
  %4056 = vmatprep.subr.mxu0 0.0
  %4057 = vmatpush1.msra.mxu0 0.0
  %4058 = vmatprep.subr.mxu0 0.0
  %4059 = vmatpush1.msra.mxu0 0.0
  %4060 = vmatprep.subr.mxu0 0.0
  %4061 = vmatpush1.msra.mxu0 0.0
  %4062 = vmatprep.subr.mxu0 0.0
  %4063 = vmatpush1.msra.mxu0 0.0
  %4064 = vmatprep.subr.mxu0 0.0
  %4065 = vmatpush1.msra.mxu0 0.0
  %4066 = vmatprep.subr.mxu0 0.0
  %4067 = vmatpush1.msra.mxu0 0.0
  %4068 = vmatprep.subr.mxu0 0.0
  %4069 = vmatpush1.msra.mxu0 0.0
  %4070 = vmatprep.subr.mxu0 0.0
  %4071 = vmatpush1.msra.mxu0 0.0
  %4072 = vmatprep.subr.mxu0 0.0
  %4073 = vmatpush1.msra.mxu0 0.0
  %4074 = vmatprep.mubr.f32.mxu0 0.0
  %4075 = vmatmul.mubr.f32.gmra.mrb[0].mxu0 %v3868
  %v4076 = vpop.f32.mrb[0].mxu0
  %v4077 = vadd.f32 0.0, %v4076
  %v4078 = vpop.f32.mrb[0].mxu0
  %v4079 = vadd.f32 0.0, %v4078
  %4080 = vdwg.mxu0
  %v4081 = vadd.f32 %v3935, %v4006
  %v4082 = vadd.f32 %v3936, %v4008
  %v4083 = vadd.f32 %v3937, %v4077
  %v4084 = vadd.f32 %v3938, %v4079
  %v4085 = vxor.u32 %v4081, 2147483648
  %v4086 = vmul.f32 %v4085, 1.442695
  %v4087 = vpow.pop %v4086
  %v4088 = vadd.f32 %v4087, 1.0
  %v4089 = vrcp.pop %v4088
  %v4090 = vmul.f32 1.0, %v4089
  %v4091 = vxor.u32 %v4082, 2147483648
  %v4092 = vmul.f32 %v4091, 1.442695
  %v4093 = vpow.pop %v4092
  %v4094 = vadd.f32 %v4093, 1.0
  %v4095 = vrcp.pop %v4094
  %v4096 = vmul.f32 1.0, %v4095
  %v4097 = vtanh.pop %v4083
  %v4098 = vxor.u32 %v4084, 2147483648
  %v4099 = vmul.f32 %v4098, 1.442695
  %v4100 = vpow.pop %v4099
  %v4101 = vadd.f32 %v4100, 1.0
  %v4102 = vrcp.pop %v4101
  %v4103 = vmul.f32 1.0, %v4102
  %v4104 = vmul.f32 %v4096, %v3866
  %v4105 = vmul.f32 %v4090, %v4097
  %v4106 = vadd.f32 %v4104, %v4105
  %v4107 = vtanh.pop %v4106
  %v4108 = vmul.f32 %v4103, %v4107
  %s4109 = scalar_lea.vmem %s7, 40
  %4110 = vst [vmem:[%s4109] sm:$0xff] %v4108
  %v4111 = vld [vmem:[%s4] sm:$0xff]
  %v4112 = vld [vmem:[%s4 + $0x8] sm:$0xff]
  %v4113 = vld [vmem:[%s4 + $0x10] sm:$0xff]
  %v4114 = vld [vmem:[%s4 + $0x18] sm:$0xff]
  %v4115 = vld [vmem:[%s4 + $0x20] sm:$0xff]
  %v4116 = vld [vmem:[%s4 + $0x28] sm:$0xff]
  %v4117 = vld [vmem:[%s4 + $0x30] sm:$0xff]
  %v4118 = vld [vmem:[%s4 + $0x38] sm:$0xff]
  %v4119 = vld [vmem:[%s4 + $0x40] sm:$0xff]
  %v4120 = vld [vmem:[%s4 + $0x48] sm:$0xff]
  %v4121 = vld [vmem:[%s4 + $0x50] sm:$0xff]
  %v4122 = vld [vmem:[%s4 + $0x58] sm:$0xff]
  %v4123 = vld [vmem:[%s4 + $0x60] sm:$0xff]
  %v4124 = vld [vmem:[%s4 + $0x68] sm:$0xff]
  %v4125 = vld [vmem:[%s4 + $0x70] sm:$0xff]
  %v4126 = vld [vmem:[%s4 + $0x78] sm:$0xff]
  %v4127 = vld [vmem:[%s4 + $0x80] sm:$0xff]
  %v4128 = vld [vmem:[%s4 + $0x88] sm:$0xff]
  %v4129 = vld [vmem:[%s4 + $0x90] sm:$0xff]
  %v4130 = vld [vmem:[%s4 + $0x98] sm:$0xff]
  %v4131 = vld [vmem:[%s4 + $0xa0] sm:$0xff]
  %v4132 = vld [vmem:[%s4 + $0xa8] sm:$0xff]
  %v4133 = vld [vmem:[%s4 + $0xb0] sm:$0xff]
  %v4134 = vld [vmem:[%s4 + $0xb8] sm:$0xff]
  %v4135 = vld [vmem:[%s4 + $0xc0] sm:$0xff]
  %v4136 = vld [vmem:[%s4 + $0xc8] sm:$0xff]
  %v4137 = vld [vmem:[%s4 + $0xd0] sm:$0xff]
  %v4138 = vld [vmem:[%s4 + $0xd8] sm:$0xff]
  %v4139 = vld [vmem:[%s4 + $0xe0] sm:$0xff]
  %v4140 = vld [vmem:[%s4 + $0xe8] sm:$0xff]
  %v4141 = vld [vmem:[%s4 + $0xf0] sm:$0xff]
  %v4142 = vld [vmem:[%s4 + $0xf8] sm:$0xff]
  %v4143 = vld [vmem:[%s4 + $0x100] sm:$0xff]
  %v4144 = vld [vmem:[%s4 + $0x108] sm:$0xff]
  %v4145 = vld [vmem:[%s4 + $0x110] sm:$0xff]
  %v4146 = vld [vmem:[%s4 + $0x118] sm:$0xff]
  %v4147 = vld [vmem:[%s4 + $0x120] sm:$0xff]
  %v4148 = vld [vmem:[%s4 + $0x128] sm:$0xff]
  %v4149 = vld [vmem:[%s4 + $0x130] sm:$0xff]
  %v4150 = vld [vmem:[%s4 + $0x138] sm:$0xff]
  %v4151 = vld [vmem:[%s4 + $0x140] sm:$0xff]
  %v4152 = vld [vmem:[%s4 + $0x148] sm:$0xff]
  %v4153 = vld [vmem:[%s4 + $0x150] sm:$0xff]
  %v4154 = vld [vmem:[%s4 + $0x158] sm:$0xff]
  %v4155 = vld [vmem:[%s4 + $0x160] sm:$0xff]
  %v4156 = vld [vmem:[%s4 + $0x168] sm:$0xff]
  %v4157 = vld [vmem:[%s4 + $0x170] sm:$0xff]
  %v4158 = vld [vmem:[%s4 + $0x178] sm:$0xff]
  %v4159 = vld [vmem:[%s4 + $0x180] sm:$0xff]
  %v4160 = vld [vmem:[%s4 + $0x188] sm:$0xff]
  %v4161 = vld [vmem:[%s4 + $0x190] sm:$0xff]
  %v4162 = vld [vmem:[%s4 + $0x198] sm:$0xff]
  %v4163 = vld [vmem:[%s4 + $0x1a0] sm:$0xff]
  %v4164 = vld [vmem:[%s4 + $0x1a8] sm:$0xff]
  %v4165 = vld [vmem:[%s4 + $0x1b0] sm:$0xff]
  %v4166 = vld [vmem:[%s4 + $0x1b8] sm:$0xff]
  %v4167 = vld [vmem:[%s4 + $0x1c0] sm:$0xff]
  %v4168 = vld [vmem:[%s4 + $0x1c8] sm:$0xff]
  %v4169 = vld [vmem:[%s4 + $0x1d0] sm:$0xff]
  %v4170 = vld [vmem:[%s4 + $0x1d8] sm:$0xff]
  %v4171 = vld [vmem:[%s4 + $0x1e0] sm:$0xff]
  %v4172 = vld [vmem:[%s4 + $0x1e8] sm:$0xff]
  %v4173 = vld [vmem:[%s4 + $0x1f0] sm:$0xff]
  %v4174 = vld [vmem:[%s4 + $0x1f8] sm:$0xff]
  %v4175 = vld [vmem:[%s1896] sm:$0xff]
  %v4176 = vld [vmem:[%s1896 + $0x8] sm:$0xff]
  %v4177 = vld [vmem:[%s1896 + $0x10] sm:$0xff]
  %v4178 = vld [vmem:[%s1896 + $0x18] sm:$0xff]
  %4179 = vmatprep.subr.mxu0 %v4112
  %4180 = vmatpush1.msra.mxu0 %v4111
  %4181 = vmatprep.subr.mxu0 %v4116
  %4182 = vmatpush1.msra.mxu0 %v4115
  %4183 = vmatprep.subr.mxu0 %v4120
  %4184 = vmatpush1.msra.mxu0 %v4119
  %4185 = vmatprep.subr.mxu0 %v4124
  %4186 = vmatpush1.msra.mxu0 %v4123
  %4187 = vmatprep.subr.mxu0 %v4128
  %4188 = vmatpush1.msra.mxu0 %v4127
  %4189 = vmatprep.subr.mxu0 %v4132
  %4190 = vmatpush1.msra.mxu0 %v4131
  %4191 = vmatprep.subr.mxu0 %v4136
  %4192 = vmatpush1.msra.mxu0 %v4135
  %4193 = vmatprep.subr.mxu0 %v4140
  %4194 = vmatpush1.msra.mxu0 %v4139
  %4195 = vmatprep.subr.mxu0 %v4144
  %4196 = vmatpush1.msra.mxu0 %v4143
  %4197 = vmatprep.subr.mxu0 %v4148
  %4198 = vmatpush1.msra.mxu0 %v4147
  %4199 = vmatprep.subr.mxu0 %v4152
  %4200 = vmatpush1.msra.mxu0 %v4151
  %4201 = vmatprep.subr.mxu0 %v4156
  %4202 = vmatpush1.msra.mxu0 %v4155
  %4203 = vmatprep.subr.mxu0 %v4160
  %4204 = vmatpush1.msra.mxu0 %v4159
  %4205 = vmatprep.subr.mxu0 %v4164
  %4206 = vmatpush1.msra.mxu0 %v4163
  %4207 = vmatprep.subr.mxu0 %v4168
  %4208 = vmatpush1.msra.mxu0 %v4167
  %4209 = vmatprep.subr.mxu0 %v4172
  %4210 = vmatpush1.msra.mxu0 %v4171
  %4211 = vmatprep.subr.mxu0 0.0
  %4212 = vmatpush1.msra.mxu0 0.0
  %4213 = vmatprep.subr.mxu0 0.0
  %4214 = vmatpush1.msra.mxu0 0.0
  %4215 = vmatprep.subr.mxu0 0.0
  %4216 = vmatpush1.msra.mxu0 0.0
  %4217 = vmatprep.subr.mxu0 0.0
  %4218 = vmatpush1.msra.mxu0 0.0
  %4219 = vmatprep.subr.mxu0 0.0
  %4220 = vmatpush1.msra.mxu0 0.0
  %4221 = vmatprep.subr.mxu0 0.0
  %4222 = vmatpush1.msra.mxu0 0.0
  %4223 = vmatprep.subr.mxu0 0.0
  %4224 = vmatpush1.msra.mxu0 0.0
  %4225 = vmatprep.subr.mxu0 0.0
  %4226 = vmatpush1.msra.mxu0 0.0
  %4227 = vmatprep.subr.mxu0 0.0
  %4228 = vmatpush1.msra.mxu0 0.0
  %4229 = vmatprep.subr.mxu0 0.0
  %4230 = vmatpush1.msra.mxu0 0.0
  %4231 = vmatprep.subr.mxu0 0.0
  %4232 = vmatpush1.msra.mxu0 0.0
  %4233 = vmatprep.subr.mxu0 0.0
  %4234 = vmatpush1.msra.mxu0 0.0
  %4235 = vmatprep.subr.mxu0 0.0
  %4236 = vmatpush1.msra.mxu0 0.0
  %4237 = vmatprep.subr.mxu0 0.0
  %4238 = vmatpush1.msra.mxu0 0.0
  %4239 = vmatprep.subr.mxu0 0.0
  %4240 = vmatpush1.msra.mxu0 0.0
  %4241 = vmatprep.subr.mxu0 0.0
  %4242 = vmatpush1.msra.mxu0 0.0
  %4243 = vmatprep.mubr.f32.mxu0 0.0
  %4244 = vmatmul.mubr.f32.gmra.mrb[0].mxu0 %v4108
  %v4245 = vpop.f32.mrb[0].mxu0
  %v4246 = vadd.f32 0.0, %v4245
  %v4247 = vpop.f32.mrb[0].mxu0
  %v4248 = vadd.f32 0.0, %v4247
  %4249 = vdwg.mxu0
  %4250 = vmatprep.subr.mxu0 %v4114
  %4251 = vmatpush1.msra.mxu0 %v4113
  %4252 = vmatprep.subr.mxu0 %v4118
  %4253 = vmatpush1.msra.mxu0 %v4117
  %4254 = vmatprep.subr.mxu0 %v4122
  %4255 = vmatpush1.msra.mxu0 %v4121
  %4256 = vmatprep.subr.mxu0 %v4126
  %4257 = vmatpush1.msra.mxu0 %v4125
  %4258 = vmatprep.subr.mxu0 %v4130
  %4259 = vmatpush1.msra.mxu0 %v4129
  %4260 = vmatprep.subr.mxu0 %v4134
  %4261 = vmatpush1.msra.mxu0 %v4133
  %4262 = vmatprep.subr.mxu0 %v4138
  %4263 = vmatpush1.msra.mxu0 %v4137
  %4264 = vmatprep.subr.mxu0 %v4142
  %4265 = vmatpush1.msra.mxu0 %v4141
  %4266 = vmatprep.subr.mxu0 %v4146
  %4267 = vmatpush1.msra.mxu0 %v4145
  %4268 = vmatprep.subr.mxu0 %v4150
  %4269 = vmatpush1.msra.mxu0 %v4149
  %4270 = vmatprep.subr.mxu0 %v4154
  %4271 = vmatpush1.msra.mxu0 %v4153
  %4272 = vmatprep.subr.mxu0 %v4158
  %4273 = vmatpush1.msra.mxu0 %v4157
  %4274 = vmatprep.subr.mxu0 %v4162
  %4275 = vmatpush1.msra.mxu0 %v4161
  %4276 = vmatprep.subr.mxu0 %v4166
  %4277 = vmatpush1.msra.mxu0 %v4165
  %4278 = vmatprep.subr.mxu0 %v4170
  %4279 = vmatpush1.msra.mxu0 %v4169
  %4280 = vmatprep.subr.mxu0 %v4174
  %4281 = vmatpush1.msra.mxu0 %v4173
  %4282 = vmatprep.subr.mxu0 0.0
  %4283 = vmatpush1.msra.mxu0 0.0
  %4284 = vmatprep.subr.mxu0 0.0
  %4285 = vmatpush1.msra.mxu0 0.0
  %4286 = vmatprep.subr.mxu0 0.0
  %4287 = vmatpush1.msra.mxu0 0.0
  %4288 = vmatprep.subr.mxu0 0.0
  %4289 = vmatpush1.msra.mxu0 0.0
  %4290 = vmatprep.subr.mxu0 0.0
  %4291 = vmatpush1.msra.mxu0 0.0
  %4292 = vmatprep.subr.mxu0 0.0
  %4293 = vmatpush1.msra.mxu0 0.0
  %4294 = vmatprep.subr.mxu0 0.0
  %4295 = vmatpush1.msra.mxu0 0.0
  %4296 = vmatprep.subr.mxu0 0.0
  %4297 = vmatpush1.msra.mxu0 0.0
  %4298 = vmatprep.subr.mxu0 0.0
  %4299 = vmatpush1.msra.mxu0 0.0
  %4300 = vmatprep.subr.mxu0 0.0
  %4301 = vmatpush1.msra.mxu0 0.0
  %4302 = vmatprep.subr.mxu0 0.0
  %4303 = vmatpush1.msra.mxu0 0.0
  %4304 = vmatprep.subr.mxu0 0.0
  %4305 = vmatpush1.msra.mxu0 0.0
  %4306 = vmatprep.subr.mxu0 0.0
  %4307 = vmatpush1.msra.mxu0 0.0
  %4308 = vmatprep.subr.mxu0 0.0
  %4309 = vmatpush1.msra.mxu0 0.0
  %4310 = vmatprep.subr.mxu0 0.0
  %4311 = vmatpush1.msra.mxu0 0.0
  %4312 = vmatprep.subr.mxu0 0.0
  %4313 = vmatpush1.msra.mxu0 0.0
  %4314 = vmatprep.mubr.f32.mxu0 0.0
  %4315 = vmatmul.mubr.f32.gmra.mrb[0].mxu0 %v4108
  %v4316 = vpop.f32.mrb[0].mxu0
  %v4317 = vadd.f32 0.0, %v4316
  %v4318 = vpop.f32.mrb[0].mxu0
  %v4319 = vadd.f32 0.0, %v4318
  %4320 = vdwg.mxu0
  %v4321 = vadd.f32 %v4175, %v4246
  %v4322 = vadd.f32 %v4176, %v4248
  %v4323 = vadd.f32 %v4177, %v4317
  %v4324 = vadd.f32 %v4178, %v4319
  %v4325 = vxor.u32 %v4321, 2147483648
  %v4326 = vmul.f32 %v4325, 1.442695
  %v4327 = vpow.pop %v4326
  %v4328 = vadd.f32 %v4327, 1.0
  %v4329 = vrcp.pop %v4328
  %v4330 = vmul.f32 1.0, %v4329
  %v4331 = vxor.u32 %v4322, 2147483648
  %v4332 = vmul.f32 %v4331, 1.442695
  %v4333 = vpow.pop %v4332
  %v4334 = vadd.f32 %v4333, 1.0
  %v4335 = vrcp.pop %v4334
  %v4336 = vmul.f32 1.0, %v4335
  %v4337 = vtanh.pop %v4323
  %v4338 = vxor.u32 %v4324, 2147483648
  %v4339 = vmul.f32 %v4338, 1.442695
  %v4340 = vpow.pop %v4339
  %v4341 = vadd.f32 %v4340, 1.0
  %v4342 = vrcp.pop %v4341
  %v4343 = vmul.f32 1.0, %v4342
  %v4344 = vmul.f32 %v4336, %v4106
  %v4345 = vmul.f32 %v4330, %v4337
  %v4346 = vadd.f32 %v4344, %v4345
  %v4347 = vtanh.pop %v4346
  %v4348 = vmul.f32 %v4343, %v4347
  %s4349 = scalar_lea.vmem %s7, 48
  %4350 = vst [vmem:[%s4349] sm:$0xff] %v4348
  %v4351 = vld [vmem:[%s4] sm:$0xff]
  %v4352 = vld [vmem:[%s4 + $0x8] sm:$0xff]
  %v4353 = vld [vmem:[%s4 + $0x10] sm:$0xff]
  %v4354 = vld [vmem:[%s4 + $0x18] sm:$0xff]
  %v4355 = vld [vmem:[%s4 + $0x20] sm:$0xff]
  %v4356 = vld [vmem:[%s4 + $0x28] sm:$0xff]
  %v4357 = vld [vmem:[%s4 + $0x30] sm:$0xff]
  %v4358 = vld [vmem:[%s4 + $0x38] sm:$0xff]
  %v4359 = vld [vmem:[%s4 + $0x40] sm:$0xff]
  %v4360 = vld [vmem:[%s4 + $0x48] sm:$0xff]
  %v4361 = vld [vmem:[%s4 + $0x50] sm:$0xff]
  %v4362 = vld [vmem:[%s4 + $0x58] sm:$0xff]
  %v4363 = vld [vmem:[%s4 + $0x60] sm:$0xff]
  %v4364 = vld [vmem:[%s4 + $0x68] sm:$0xff]
  %v4365 = vld [vmem:[%s4 + $0x70] sm:$0xff]
  %v4366 = vld [vmem:[%s4 + $0x78] sm:$0xff]
  %v4367 = vld [vmem:[%s4 + $0x80] sm:$0xff]
  %v4368 = vld [vmem:[%s4 + $0x88] sm:$0xff]
  %v4369 = vld [vmem:[%s4 + $0x90] sm:$0xff]
  %v4370 = vld [vmem:[%s4 + $0x98] sm:$0xff]
  %v4371 = vld [vmem:[%s4 + $0xa0] sm:$0xff]
  %v4372 = vld [vmem:[%s4 + $0xa8] sm:$0xff]
  %v4373 = vld [vmem:[%s4 + $0xb0] sm:$0xff]
  %v4374 = vld [vmem:[%s4 + $0xb8] sm:$0xff]
  %v4375 = vld [vmem:[%s4 + $0xc0] sm:$0xff]
  %v4376 = vld [vmem:[%s4 + $0xc8] sm:$0xff]
  %v4377 = vld [vmem:[%s4 + $0xd0] sm:$0xff]
  %v4378 = vld [vmem:[%s4 + $0xd8] sm:$0xff]
  %v4379 = vld [vmem:[%s4 + $0xe0] sm:$0xff]
  %v4380 = vld [vmem:[%s4 + $0xe8] sm:$0xff]
  %v4381 = vld [vmem:[%s4 + $0xf0] sm:$0xff]
  %v4382 = vld [vmem:[%s4 + $0xf8] sm:$0xff]
  %v4383 = vld [vmem:[%s4 + $0x100] sm:$0xff]
  %v4384 = vld [vmem:[%s4 + $0x108] sm:$0xff]
  %v4385 = vld [vmem:[%s4 + $0x110] sm:$0xff]
  %v4386 = vld [vmem:[%s4 + $0x118] sm:$0xff]
  %v4387 = vld [vmem:[%s4 + $0x120] sm:$0xff]
  %v4388 = vld [vmem:[%s4 + $0x128] sm:$0xff]
  %v4389 = vld [vmem:[%s4 + $0x130] sm:$0xff]
  %v4390 = vld [vmem:[%s4 + $0x138] sm:$0xff]
  %v4391 = vld [vmem:[%s4 + $0x140] sm:$0xff]
  %v4392 = vld [vmem:[%s4 + $0x148] sm:$0xff]
  %v4393 = vld [vmem:[%s4 + $0x150] sm:$0xff]
  %v4394 = vld [vmem:[%s4 + $0x158] sm:$0xff]
  %v4395 = vld [vmem:[%s4 + $0x160] sm:$0xff]
  %v4396 = vld [vmem:[%s4 + $0x168] sm:$0xff]
  %v4397 = vld [vmem:[%s4 + $0x170] sm:$0xff]
  %v4398 = vld [vmem:[%s4 + $0x178] sm:$0xff]
  %v4399 = vld [vmem:[%s4 + $0x180] sm:$0xff]
  %v4400 = vld [vmem:[%s4 + $0x188] sm:$0xff]
  %v4401 = vld [vmem:[%s4 + $0x190] sm:$0xff]
  %v4402 = vld [vmem:[%s4 + $0x198] sm:$0xff]
  %v4403 = vld [vmem:[%s4 + $0x1a0] sm:$0xff]
  %v4404 = vld [vmem:[%s4 + $0x1a8] sm:$0xff]
  %v4405 = vld [vmem:[%s4 + $0x1b0] sm:$0xff]
  %v4406 = vld [vmem:[%s4 + $0x1b8] sm:$0xff]
  %v4407 = vld [vmem:[%s4 + $0x1c0] sm:$0xff]
  %v4408 = vld [vmem:[%s4 + $0x1c8] sm:$0xff]
  %v4409 = vld [vmem:[%s4 + $0x1d0] sm:$0xff]
  %v4410 = vld [vmem:[%s4 + $0x1d8] sm:$0xff]
  %v4411 = vld [vmem:[%s4 + $0x1e0] sm:$0xff]
  %v4412 = vld [vmem:[%s4 + $0x1e8] sm:$0xff]
  %v4413 = vld [vmem:[%s4 + $0x1f0] sm:$0xff]
  %v4414 = vld [vmem:[%s4 + $0x1f8] sm:$0xff]
  %v4415 = vld [vmem:[%s2137] sm:$0xff]
  %v4416 = vld [vmem:[%s2137 + $0x8] sm:$0xff]
  %v4417 = vld [vmem:[%s2137 + $0x10] sm:$0xff]
  %v4418 = vld [vmem:[%s2137 + $0x18] sm:$0xff]
  %4419 = vmatprep.subr.mxu0 %v4352
  %4420 = vmatpush1.msra.mxu0 %v4351
  %4421 = vmatprep.subr.mxu0 %v4356
  %4422 = vmatpush1.msra.mxu0 %v4355
  %4423 = vmatprep.subr.mxu0 %v4360
  %4424 = vmatpush1.msra.mxu0 %v4359
  %4425 = vmatprep.subr.mxu0 %v4364
  %4426 = vmatpush1.msra.mxu0 %v4363
  %4427 = vmatprep.subr.mxu0 %v4368
  %4428 = vmatpush1.msra.mxu0 %v4367
  %4429 = vmatprep.subr.mxu0 %v4372
  %4430 = vmatpush1.msra.mxu0 %v4371
  %4431 = vmatprep.subr.mxu0 %v4376
  %4432 = vmatpush1.msra.mxu0 %v4375
  %4433 = vmatprep.subr.mxu0 %v4380
  %4434 = vmatpush1.msra.mxu0 %v4379
  %4435 = vmatprep.subr.mxu0 %v4384
  %4436 = vmatpush1.msra.mxu0 %v4383
  %4437 = vmatprep.subr.mxu0 %v4388
  %4438 = vmatpush1.msra.mxu0 %v4387
  %4439 = vmatprep.subr.mxu0 %v4392
  %4440 = vmatpush1.msra.mxu0 %v4391
  %4441 = vmatprep.subr.mxu0 %v4396
  %4442 = vmatpush1.msra.mxu0 %v4395
  %4443 = vmatprep.subr.mxu0 %v4400
  %4444 = vmatpush1.msra.mxu0 %v4399
  %4445 = vmatprep.subr.mxu0 %v4404
  %4446 = vmatpush1.msra.mxu0 %v4403
  %4447 = vmatprep.subr.mxu0 %v4408
  %4448 = vmatpush1.msra.mxu0 %v4407
  %4449 = vmatprep.subr.mxu0 %v4412
  %4450 = vmatpush1.msra.mxu0 %v4411
  %4451 = vmatprep.subr.mxu0 0.0
  %4452 = vmatpush1.msra.mxu0 0.0
  %4453 = vmatprep.subr.mxu0 0.0
  %4454 = vmatpush1.msra.mxu0 0.0
  %4455 = vmatprep.subr.mxu0 0.0
  %4456 = vmatpush1.msra.mxu0 0.0
  %4457 = vmatprep.subr.mxu0 0.0
  %4458 = vmatpush1.msra.mxu0 0.0
  %4459 = vmatprep.subr.mxu0 0.0
  %4460 = vmatpush1.msra.mxu0 0.0
  %4461 = vmatprep.subr.mxu0 0.0
  %4462 = vmatpush1.msra.mxu0 0.0
  %4463 = vmatprep.subr.mxu0 0.0
  %4464 = vmatpush1.msra.mxu0 0.0
  %4465 = vmatprep.subr.mxu0 0.0
  %4466 = vmatpush1.msra.mxu0 0.0
  %4467 = vmatprep.subr.mxu0 0.0
  %4468 = vmatpush1.msra.mxu0 0.0
  %4469 = vmatprep.subr.mxu0 0.0
  %4470 = vmatpush1.msra.mxu0 0.0
  %4471 = vmatprep.subr.mxu0 0.0
  %4472 = vmatpush1.msra.mxu0 0.0
  %4473 = vmatprep.subr.mxu0 0.0
  %4474 = vmatpush1.msra.mxu0 0.0
  %4475 = vmatprep.subr.mxu0 0.0
  %4476 = vmatpush1.msra.mxu0 0.0
  %4477 = vmatprep.subr.mxu0 0.0
  %4478 = vmatpush1.msra.mxu0 0.0
  %4479 = vmatprep.subr.mxu0 0.0
  %4480 = vmatpush1.msra.mxu0 0.0
  %4481 = vmatprep.subr.mxu0 0.0
  %4482 = vmatpush1.msra.mxu0 0.0
  %4483 = vmatprep.mubr.f32.mxu0 0.0
  %4484 = vmatmul.mubr.f32.gmra.mrb[0].mxu0 %v4348
  %v4485 = vpop.f32.mrb[0].mxu0
  %v4486 = vadd.f32 0.0, %v4485
  %v4487 = vpop.f32.mrb[0].mxu0
  %v4488 = vadd.f32 0.0, %v4487
  %4489 = vdwg.mxu0
  %4490 = vmatprep.subr.mxu0 %v4354
  %4491 = vmatpush1.msra.mxu0 %v4353
  %4492 = vmatprep.subr.mxu0 %v4358
  %4493 = vmatpush1.msra.mxu0 %v4357
  %4494 = vmatprep.subr.mxu0 %v4362
  %4495 = vmatpush1.msra.mxu0 %v4361
  %4496 = vmatprep.subr.mxu0 %v4366
  %4497 = vmatpush1.msra.mxu0 %v4365
  %4498 = vmatprep.subr.mxu0 %v4370
  %4499 = vmatpush1.msra.mxu0 %v4369
  %4500 = vmatprep.subr.mxu0 %v4374
  %4501 = vmatpush1.msra.mxu0 %v4373
  %4502 = vmatprep.subr.mxu0 %v4378
  %4503 = vmatpush1.msra.mxu0 %v4377
  %4504 = vmatprep.subr.mxu0 %v4382
  %4505 = vmatpush1.msra.mxu0 %v4381
  %4506 = vmatprep.subr.mxu0 %v4386
  %4507 = vmatpush1.msra.mxu0 %v4385
  %4508 = vmatprep.subr.mxu0 %v4390
  %4509 = vmatpush1.msra.mxu0 %v4389
  %4510 = vmatprep.subr.mxu0 %v4394
  %4511 = vmatpush1.msra.mxu0 %v4393
  %4512 = vmatprep.subr.mxu0 %v4398
  %4513 = vmatpush1.msra.mxu0 %v4397
  %4514 = vmatprep.subr.mxu0 %v4402
  %4515 = vmatpush1.msra.mxu0 %v4401
  %4516 = vmatprep.subr.mxu0 %v4406
  %4517 = vmatpush1.msra.mxu0 %v4405
  %4518 = vmatprep.subr.mxu0 %v4410
  %4519 = vmatpush1.msra.mxu0 %v4409
  %4520 = vmatprep.subr.mxu0 %v4414
  %4521 = vmatpush1.msra.mxu0 %v4413
  %4522 = vmatprep.subr.mxu0 0.0
  %4523 = vmatpush1.msra.mxu0 0.0
  %4524 = vmatprep.subr.mxu0 0.0
  %4525 = vmatpush1.msra.mxu0 0.0
  %4526 = vmatprep.subr.mxu0 0.0
  %4527 = vmatpush1.msra.mxu0 0.0
  %4528 = vmatprep.subr.mxu0 0.0
  %4529 = vmatpush1.msra.mxu0 0.0
  %4530 = vmatprep.subr.mxu0 0.0
  %4531 = vmatpush1.msra.mxu0 0.0
  %4532 = vmatprep.subr.mxu0 0.0
  %4533 = vmatpush1.msra.mxu0 0.0
  %4534 = vmatprep.subr.mxu0 0.0
  %4535 = vmatpush1.msra.mxu0 0.0
  %4536 = vmatprep.subr.mxu0 0.0
  %4537 = vmatpush1.msra.mxu0 0.0
  %4538 = vmatprep.subr.mxu0 0.0
  %4539 = vmatpush1.msra.mxu0 0.0
  %4540 = vmatprep.subr.mxu0 0.0
  %4541 = vmatpush1.msra.mxu0 0.0
  %4542 = vmatprep.subr.mxu0 0.0
  %4543 = vmatpush1.msra.mxu0 0.0
  %4544 = vmatprep.subr.mxu0 0.0
  %4545 = vmatpush1.msra.mxu0 0.0
  %4546 = vmatprep.subr.mxu0 0.0
  %4547 = vmatpush1.msra.mxu0 0.0
  %4548 = vmatprep.subr.mxu0 0.0
  %4549 = vmatpush1.msra.mxu0 0.0
  %4550 = vmatprep.subr.mxu0 0.0
  %4551 = vmatpush1.msra.mxu0 0.0
  %4552 = vmatprep.subr.mxu0 0.0
  %4553 = vmatpush1.msra.mxu0 0.0
  %4554 = vmatprep.mubr.f32.mxu0 0.0
  %4555 = vmatmul.mubr.f32.gmra.mrb[0].mxu0 %v4348
  %v4556 = vpop.f32.mrb[0].mxu0
  %v4557 = vadd.f32 0.0, %v4556
  %v4558 = vpop.f32.mrb[0].mxu0
  %v4559 = vadd.f32 0.0, %v4558
  %4560 = vdwg.mxu0
  %v4561 = vadd.f32 %v4415, %v4486
  %v4562 = vadd.f32 %v4416, %v4488
  %v4563 = vadd.f32 %v4417, %v4557
  %v4564 = vadd.f32 %v4418, %v4559
  %v4565 = vxor.u32 %v4561, 2147483648
  %v4566 = vmul.f32 %v4565, 1.442695
  %v4567 = vpow.pop %v4566
  %v4568 = vadd.f32 %v4567, 1.0
  %v4569 = vrcp.pop %v4568
  %v4570 = vmul.f32 1.0, %v4569
  %v4571 = vxor.u32 %v4562, 2147483648
  %v4572 = vmul.f32 %v4571, 1.442695
  %v4573 = vpow.pop %v4572
  %v4574 = vadd.f32 %v4573, 1.0
  %v4575 = vrcp.pop %v4574
  %v4576 = vmul.f32 1.0, %v4575
  %v4577 = vtanh.pop %v4563
  %v4578 = vxor.u32 %v4564, 2147483648
  %v4579 = vmul.f32 %v4578, 1.442695
  %v4580 = vpow.pop %v4579
  %v4581 = vadd.f32 %v4580, 1.0
  %v4582 = vrcp.pop %v4581
  %v4583 = vmul.f32 1.0, %v4582
  %v4584 = vmul.f32 %v4576, %v4346
  %v4585 = vmul.f32 %v4570, %v4577
  %v4586 = vadd.f32 %v4584, %v4585
  %v4587 = vtanh.pop %v4586
  %v4588 = vmul.f32 %v4583, %v4587
  %s4589 = scalar_lea.vmem %s7, 56
  %4590 = vst [vmem:[%s4589] sm:$0xff] %v4588
  %4591 = vst [vmem:[%s2668] sm:$0xff] %v4588
  %4592 = vst [vmem:[%s2670] sm:$0xff] %v4586
  // Predicated region
  $region34: #{lstm_forward.2} parent=0 // pred_check
    _
  $region35: #{lstm_forward.2} parent=0 // pred_check_branch
    %4594 = sbr.rel (0) target = $region37
  $region36: #{lstm_forward.2} parent=0 // pred_region
    _
  $region37: #{lstm_forward.2} parent=0 // pred_fallthru
    _
  // Predicated region
  $region38: #{lstm_forward.2} parent=0 // pred_check
    _
  $region39: #{lstm_forward.2} parent=0 // pred_check_branch
    %4596 = sbr.rel (0) target = $region41
  $region40: #{lstm_forward.2} parent=0 // pred_region
    _
  $region41: #{lstm_forward.2} parent=0 // pred_fallthru
    _

</llo_original>
